<compile_context>
chip_gen: v5e
topology: v5e:2x2
jax: 0.10.0
libtpu: 0.0.40
codegen_flags: <defaults>
</compile_context>

<pallas_src>
import functools

import jax
import jax.numpy as jnp
from jax.experimental import pallas as pl
from jax.experimental.pallas import tpu as pltpu


# ----------------------------------------------------------------------------
# Shared helpers
# ----------------------------------------------------------------------------
def _im2col_3x3(src_ref, dst_ref, H, W, C):
    """dst[h*W + w, (di*3+dj)*C + c] = src[h+di, w+dj, c], src is the (H+2, W+2, C) slab."""
    for di in range(3):
        for dj in range(3):
            t = di * 3 + dj
            dst_ref[:, t * C:(t + 1) * C] = (
                src_ref[di:di + H, dj:dj + W, :].reshape(H * W, C))


def _prep_w(w):
    """(Cout, Cin, 3, 3) OIHW -> (9*Cin, Cout) bf16, row index = (di*3+dj)*Cin + cin."""
    cout, cin = w.shape[:2]
    return jnp.transpose(w, (2, 3, 1, 0)).reshape(9 * cin, cout).astype(jnp.bfloat16)


def _prep_b(b):
    return b.astype(jnp.float32).reshape(1, -1)


def _cout_tile(cout):
    # 256-wide tiles feed the v6e/v7x 256-deep MXU; 128 still maps cleanly on v5e.
    if cout % 256 == 0:
        return 256
    if cout % 128 == 0:
        return 128
    return cout                                   # full-extent block


def _fused_fits_vmem(H, W, cin, cout, budget=12 * 1024 * 1024):
    """Conservative estimate vs. the smallest scoped-VMEM default (v5e, 16 MiB)."""
    hw = H * W
    scratch = ((H + 2) * (W + 2) * (cin + cout) * 2      # padded slabs (bf16)
               + hw * 9 * (cin + cout) * 2)               # im2col slabs (bf16)
    blocks = 2 * (hw * cin * 4 + hw * cout * 4)           # double-buffered x / out
    weights = 2 * (2 * 9 * cin * cout * 2 + 9 * cout * cout * 2 + 3 * cout * 4)
    return scratch + blocks + weights < budget


# ----------------------------------------------------------------------------
# Fully fused ResBlock kernel (one pallas_call per block)
# ----------------------------------------------------------------------------
def _make_resblock_kernel(H, W, cin, cout, has_down):
    HW = H * W

    def kernel(*refs):
        if has_down:
            (x_ref, w1_ref, b1_ref, w2_ref, b2_ref, wd_ref, bd_ref,
             o_ref, xp_ref, a1_ref, rp_ref, a2_ref) = refs
        else:
            (x_ref, w1_ref, b1_ref, w2_ref, b2_ref,
             o_ref, xp_ref, a1_ref, rp_ref, a2_ref) = refs

        x = x_ref[...]                                      # (H, W, cin) f32

        # -- zero-pad x into the VMEM slab (halo stays zero), then im2col once --
        xp_ref[...] = jnp.zeros_like(xp_ref)
        xp_ref[1:H + 1, 1:W + 1, :] = x.astype(jnp.bfloat16)
        _im2col_3x3(xp_ref, a1_ref, H, W, cin)
        a1 = a1_ref[...]                                    # (HW, 9*cin) bf16

        # conv1(relu(x)):  relu(im2col(x)) == im2col(relu(x)) since relu(0) == 0.
        # One K = 9*cin matmul keeps the MXU fed (no 9-tap accumulator chain).
        r = jnp.dot(jnp.maximum(a1, 0), w1_ref[...],
                    preferred_element_type=jnp.float32) + b1_ref[...]

        # Shortcut branch reuses the same im2col slab -> x is read from HBM only once.
        if has_down:
            identity = jnp.dot(a1, wd_ref[...],
                               preferred_element_type=jnp.float32) + bd_ref[...]
        else:
            identity = x.reshape(HW, cout)                  # exact f32 identity

        # conv2(relu(r)) + identity; ReLU applied in conv1's f32 epilogue.
        rp_ref[...] = jnp.zeros_like(rp_ref)
        rp_ref[1:H + 1, 1:W + 1, :] = (
            jnp.maximum(r, 0.0).astype(jnp.bfloat16).reshape(H, W, cout))
        _im2col_3x3(rp_ref, a2_ref, H, W, cout)

        out = (jnp.dot(a2_ref[...], w2_ref[...], preferred_element_type=jnp.float32)
               + b2_ref[...] + identity)
        o_ref[...] = out.astype(o_ref.dtype)                # (HW, cout)

    return kernel


def _res_block_fused(x_nhwc, params):
    N, H, W, cin = x_nhwc.shape
    w1, b1 = params['conv1']
    w2, b2 = params['conv2']
    cout = w1.shape[0]
    has_down = 'downsample' in params
    if not has_down:
        assert cin == cout
    HW = H * W

    inputs = [x_nhwc.astype(jnp.float32), _prep_w(w1), _prep_b(b1),
              _prep_w(w2), _prep_b(b2)]
    in_specs = [
        pl.BlockSpec((None, H, W, cin), lambda n: (n, 0, 0, 0)),
        pl.BlockSpec((9 * cin, cout), lambda n: (0, 0)),
        pl.BlockSpec((1, cout), lambda n: (0, 0)),
        pl.BlockSpec((9 * cout, cout), lambda n: (0, 0)),
        pl.BlockSpec((1, cout), lambda n: (0, 0)),
    ]
    if has_down:
        wd, bd = params['downsample']
        inputs += [_prep_w(wd), _prep_b(bd)]
        in_specs += [pl.BlockSpec((9 * cin, cout), lambda n: (0, 0)),
                     pl.BlockSpec((1, cout), lambda n: (0, 0))]

    flops = 2 * N * HW * 9 * (cin * cout + cout * cout
                              + (cin * cout if has_down else 0))
    bytes_accessed = (N * HW * cin * 4 + N * HW * cout * 4
                      + 9 * cin * cout * 2 * (2 if has_down else 1)
                      + 9 * cout * cout * 2 + (3 if has_down else 2) * cout * 4)

    out = pl.pallas_call(
        _make_resblock_kernel(H, W, cin, cout, has_down),
        out_shape=jax.ShapeDtypeStruct((N, HW, cout), jnp.float32),
        grid_spec=pltpu.PrefetchScalarGridSpec(
            num_scalar_prefetch=0,
            grid=(N,),
            in_specs=in_specs,
            out_specs=pl.BlockSpec((None, HW, cout), lambda n: (n, 0, 0)),
            scratch_shapes=[
                pltpu.VMEM((H + 2, W + 2, cin), jnp.bfloat16),    # padded x slab
                pltpu.VMEM((HW, 9 * cin), jnp.bfloat16),          # im2col(x)
                pltpu.VMEM((H + 2, W + 2, cout), jnp.bfloat16),   # padded relu(r) slab
                pltpu.VMEM((HW, 9 * cout), jnp.bfloat16),         # im2col(relu(r))
            ]),
        compiler_params=pltpu.CompilerParams(
            dimension_semantics=("parallel",)),
        cost_estimate=pl.CostEstimate(flops=flops, transcendentals=0,
                                      bytes_accessed=bytes_accessed),
    )(*inputs)
    return out.reshape(N, H, W, cout)


# ----------------------------------------------------------------------------
# Fallback: single 3x3 conv kernel (Cout-tiled), same in-kernel pad + folded-K design
# ----------------------------------------------------------------------------
def _make_conv_kernel(H, W, cin, tco, relu_input, relu_output, has_res):
    HW = H * W

    def kernel(*refs):
        if has_res:
            x_ref, w_ref, b_ref, r_ref, o_ref, xp_ref, a_ref = refs
        else:
            x_ref, w_ref, b_ref, o_ref, xp_ref, a_ref = refs
            r_ref = None

        # Pad + im2col once per image; reused across Cout tiles because VMEM scratch
        # persists across grid steps and the Cout axis is the inner "arbitrary" axis.
        @pl.when(pl.program_id(1) == 0)
        def _():
            xp_ref[...] = jnp.zeros_like(xp_ref)
            xv = x_ref[...]
            if relu_input:
                xv = jnp.maximum(xv, 0)
            xp_ref[1:H + 1, 1:W + 1, :] = xv
            _im2col_3x3(xp_ref, a_ref, H, W, cin)

        y = jnp.dot(a_ref[...], w_ref[...],
                    preferred_element_type=jnp.float32) + b_ref[...]
        if relu_output:
            y = jnp.maximum(y, 0.0)
        if has_res:
            y = y + r_ref[...].astype(jnp.float32)
        o_ref[...] = y.astype(o_ref.dtype)

    return kernel


def conv3x3(x_nhwc, w, b, *, relu_input=False, relu_output=False, residual=None,
            out_dtype=jnp.float32):
    """out = relu?(conv2d(relu?(x), w, b, k=3, s=1, p=1)) [+ residual]."""
    N, H, W, cin = x_nhwc.shape
    cout = w.shape[0]
    assert w.shape == (cout, cin, 3, 3)
    tco = _cout_tile(cout)
    nj = cout // tco
    HW = H * W

    inputs = [x_nhwc.astype(jnp.bfloat16), _prep_w(w), _prep_b(b)]
    in_specs = [
        pl.BlockSpec((None, H, W, cin), lambda n, j: (n, 0, 0, 0)),
        pl.BlockSpec((9 * cin, tco), lambda n, j: (0, j)),
        pl.BlockSpec((1, tco), lambda n, j: (0, j)),
    ]
    has_res = residual is not None
    if has_res:
        assert residual.shape == (N, H, W, cout)
        inputs.append(residual.astype(jnp.bfloat16).reshape(N, HW, cout))   # bf16 stream
        in_specs.append(pl.BlockSpec((None, HW, tco), lambda n, j: (n, 0, j)))

    flops = 2 * N * HW * 9 * cin * cout
    bytes_accessed = (N * HW * cin * 2 + 9 * cin * cout * 2 + cout * 4
                      + (N * HW * cout * 2 if has_res else 0)
                      + N * HW * cout * jnp.dtype(out_dtype).itemsize)

    out = pl.pallas_call(
        _make_conv_kernel(H, W, cin, tco, relu_input, relu_output, has_res),
        out_shape=jax.ShapeDtypeStruct((N, HW, cout), out_dtype),
        grid_spec=pltpu.PrefetchScalarGridSpec(
            num_scalar_prefetch=0,
            grid=(N, nj),
            in_specs=in_specs,
            out_specs=pl.BlockSpec((None, HW, tco), lambda n, j: (n, 0, j)),
            scratch_shapes=[pltpu.VMEM((H + 2, W + 2, cin), jnp.bfloat16),
                            pltpu.VMEM((HW, 9 * cin), jnp.bfloat16)]),
        compiler_params=pltpu.CompilerParams(
            dimension_semantics=("parallel", "arbitrary")),
        cost_estimate=pl.CostEstimate(flops=flops, transcendentals=0,
                                      bytes_accessed=bytes_accessed),
    )(*inputs)
    return out.reshape(N, H, W, cout)


def _res_block_unfused(x_nhwc, params):
    # TODO(synk): fuse the downsample conv into conv1's pallas_call (shared x slab).
    w1, b1 = params['conv1']
    w2, b2 = params['conv2']
    if 'downsample' in params:
        wd, bd = params['downsample']
        identity = conv3x3(x_nhwc, wd, bd)                      # f32
    else:
        identity = x_nhwc
    # ReLU of r folded into conv1's f32 epilogue (no bf16 pre-ReLU pass in conv2).
    r = conv3x3(x_nhwc, w1, b1, relu_input=True, relu_output=True,
                out_dtype=jnp.bfloat16)
    return conv3x3(r, w2, b2, residual=identity, out_dtype=jnp.float32)


# ----------------------------------------------------------------------------
# ResBlock forward (mirrors the PyTorch module; NCHW in / NCHW out)
# ----------------------------------------------------------------------------
@functools.partial(jax.jit, static_argnames=("force_unfused",))
def res_block(params, x_nchw, force_unfused=False):
    x = jnp.transpose(x_nchw, (0, 2, 3, 1))                     # NCHW -> NHWC
    N, H, W, cin = x.shape
    cout = params['conv1'][0].shape[0]
    if (not force_unfused) and _fused_fits_vmem(H, W, cin, cout):
        out = _res_block_fused(x, params)
    else:
        out = _res_block_unfused(x, params)
    return jnp.transpose(out, (0, 3, 1, 2))                     # NHWC -> NCHW


# ----------------------------------------------------------------------------
# Deterministic synthetic parameters (PyTorch-style Conv2d init)
# ----------------------------------------------------------------------------
def _conv_init(key, cout, cin):
    kw, kb = jax.random.split(key)
    bound = (cin * 9) ** -0.5
    w = jax.random.uniform(kw, (cout, cin, 3, 3), jnp.float32, -bound, bound)
    b = jax.random.uniform(kb, (cout,), jnp.float32, -bound, bound)
    return w, b


def init_res_block(key, indim, outdim=None):
    if outdim is None:
        outdim = indim
    k1, k2, k3 = jax.random.split(key, 3)
    params = {'conv1': _conv_init(k1, outdim, indim),
              'conv2': _conv_init(k2, outdim, outdim)}
    if indim != outdim:
        params['downsample'] = _conv_init(k3, outdim, indim)
    return params


# ----------------------------------------------------------------------------
# Pure-JAX f32 reference for validation
# ----------------------------------------------------------------------------
def _conv_ref(x_nchw, w, b):
    y = jax.lax.conv_general_dilated(
        x_nchw, w, window_strides=(1, 1), padding=((1, 1), (1, 1)),
        dimension_numbers=('NCHW', 'OIHW', 'NCHW'))
    return y + b.reshape(1, -1, 1, 1)


def res_block_ref(params, x_nchw):
    r = _conv_ref(jax.nn.relu(x_nchw), *params['conv1'])
    r = _conv_ref(jax.nn.relu(r), *params['conv2'])
    identity = (_conv_ref(x_nchw, *params['downsample'])
                if 'downsample' in params else x_nchw)
    return identity + r


# ----------------------------------------------------------------------------
if __name__ == "__main__":
    key = jax.random.PRNGKey(0)
    kx, kp1, kp2 = jax.random.split(key, 3)

    N, C, H, W = 2, 32, 16, 16
    x = jax.random.normal(kx, (N, C, H, W), jnp.float32)

    p_same = init_res_block(kp1, C)            # indim == outdim -> identity shortcut
    p_down = init_res_block(kp2, C, 64)        # indim != outdim -> 3x3 downsample conv

    for p, cout in ((p_same, C), (p_down, 64)):
        ref = res_block_ref(p, x)
        for force_unfused in (False, True):    # exercise both the fused and fallback paths
            y = jax.block_until_ready(res_block(p, x, force_unfused=force_unfused))
            assert y.shape == (N, cout, H, W), y.shape
            assert bool(jnp.all(jnp.isfinite(y)))
            rel = float(jnp.max(jnp.abs(y - ref)) / (jnp.max(jnp.abs(ref)) + 1e-6))
            assert rel < 5e-2, f"relative error too large: {rel} (unfused={force_unfused})"

    print("KERNEL_OK")
</pallas_src>

<mosaic_0001>
module attributes {stable_mosaic.version = 11 : i64} {
  func.func @kernel(%arg0: i32, %arg1: memref<1x16x16x32xf32, #tpu.memory_space<vmem>>, %arg2: memref<288x32xbf16, #tpu.memory_space<vmem>>, %arg3: memref<1x32xf32, #tpu.memory_space<vmem>>, %arg4: memref<288x32xbf16, #tpu.memory_space<vmem>>, %arg5: memref<1x32xf32, #tpu.memory_space<vmem>>, %arg6: memref<1x256x32xf32, #tpu.memory_space<vmem>>, %arg7: memref<18x18x32xbf16, #tpu.memory_space<vmem>>, %arg8: memref<256x288xbf16, #tpu.memory_space<vmem>>, %arg9: memref<18x18x32xbf16, #tpu.memory_space<vmem>>, %arg10: memref<256x288xbf16, #tpu.memory_space<vmem>>) attributes {dimension_semantics = [#tpu.dimension_semantics<parallel>], iteration_bounds = array<i64: 2>, scalar_prefetch = 0 : i64, scratch_operands = 4 : i64, tpu.core_type = #tpu.core_type<tc>, window_params = [{transform_indices = @transform_0, window_bounds = array<i64: 1, 16, 16, 32>}, {pipeline_mode = #tpu.pipeline_mode<synchronous>, transform_indices = @transform_1, window_bounds = array<i64: 288, 32>}, {pipeline_mode = #tpu.pipeline_mode<synchronous>, transform_indices = @transform_2, window_bounds = array<i64: 1, 32>}, {pipeline_mode = #tpu.pipeline_mode<synchronous>, transform_indices = @transform_3, window_bounds = array<i64: 288, 32>}, {pipeline_mode = #tpu.pipeline_mode<synchronous>, transform_indices = @transform_4, window_bounds = array<i64: 1, 32>}, {transform_indices = @transform_5, window_bounds = array<i64: 1, 256, 32>}]} {
    %c0 = arith.constant 0 : index
    %c0_0 = arith.constant 0 : index
    %c0_1 = arith.constant 0 : index
    %c0_2 = arith.constant 0 : index
    %0 = vector.load %arg1[%c0, %c0_0, %c0_1, %c0_2] : memref<1x16x16x32xf32, #tpu.memory_space<vmem>>, vector<1x16x16x32xf32>
    %1 = vector.shape_cast %0 : vector<1x16x16x32xf32> to vector<16x16x32xf32>
    %cst = arith.constant 0.000000e+00 : bf16
    %2 = vector.broadcast %cst : bf16 to vector<18x18x32xbf16>
    %c0_3 = arith.constant 0 : index
    %c0_4 = arith.constant 0 : index
    %c0_5 = arith.constant 0 : index
    %3 = vector.load %arg7[%c0_3, %c0_4, %c0_5] : memref<18x18x32xbf16, #tpu.memory_space<vmem>>, vector<18x18x32xbf16>
    tpu.vector_store %arg7[%c0_3, %c0_4, %c0_5], %2 {strides = array<i32>} : memref<18x18x32xbf16, #tpu.memory_space<vmem>>, vector<18x18x32xbf16>,
    %4 = arith.truncf %1 : vector<16x16x32xf32> to vector<16x16x32xbf16>
    %c1 = arith.constant 1 : index
    %c1_6 = arith.constant 1 : index
    %c0_7 = arith.constant 0 : index
    %5 = vector.load %arg7[%c1, %c1_6, %c0_7] : memref<18x18x32xbf16, #tpu.memory_space<vmem>>, vector<16x16x32xbf16>
    tpu.vector_store %arg7[%c1, %c1_6, %c0_7], %4 {strides = array<i32>} : memref<18x18x32xbf16, #tpu.memory_space<vmem>>, vector<16x16x32xbf16>,
    %c0_8 = arith.constant 0 : index
    %c0_9 = arith.constant 0 : index
    %c0_10 = arith.constant 0 : index
    %6 = vector.load %arg7[%c0_8, %c0_9, %c0_10] : memref<18x18x32xbf16, #tpu.memory_space<vmem>>, vector<16x16x32xbf16>
    %7 = vector.shape_cast %6 : vector<16x16x32xbf16> to vector<256x32xbf16>
    %c0_11 = arith.constant 0 : index
    %c0_12 = arith.constant 0 : index
    %8 = vector.load %arg8[%c0_11, %c0_12] : memref<256x288xbf16, #tpu.memory_space<vmem>>, vector<256x32xbf16>
    tpu.vector_store %arg8[%c0_11, %c0_12], %7 {strides = array<i32>} : memref<256x288xbf16, #tpu.memory_space<vmem>>, vector<256x32xbf16>,
    %c0_13 = arith.constant 0 : index
    %c1_14 = arith.constant 1 : index
    %c0_15 = arith.constant 0 : index
    %9 = vector.load %arg7[%c0_13, %c1_14, %c0_15] : memref<18x18x32xbf16, #tpu.memory_space<vmem>>, vector<16x16x32xbf16>
    %10 = vector.shape_cast %9 : vector<16x16x32xbf16> to vector<256x32xbf16>
    %c0_16 = arith.constant 0 : index
    %c32 = arith.constant 32 : index
    %11 = vector.load %arg8[%c0_16, %c32] : memref<256x288xbf16, #tpu.memory_space<vmem>>, vector<256x32xbf16>
    tpu.vector_store %arg8[%c0_16, %c32], %10 {strides = array<i32>} : memref<256x288xbf16, #tpu.memory_space<vmem>>, vector<256x32xbf16>,
    %c0_17 = arith.constant 0 : index
    %c2 = arith.constant 2 : index
    %c0_18 = arith.constant 0 : index
    %12 = vector.load %arg7[%c0_17, %c2, %c0_18] : memref<18x18x32xbf16, #tpu.memory_space<vmem>>, vector<16x16x32xbf16>
    %13 = vector.shape_cast %12 : vector<16x16x32xbf16> to vector<256x32xbf16>
    %c0_19 = arith.constant 0 : index
    %c64 = arith.constant 64 : index
    %14 = vector.load %arg8[%c0_19, %c64] : memref<256x288xbf16, #tpu.memory_space<vmem>>, vector<256x32xbf16>
    tpu.vector_store %arg8[%c0_19, %c64], %13 {strides = array<i32>} : memref<256x288xbf16, #tpu.memory_space<vmem>>, vector<256x32xbf16>,
    %c1_20 = arith.constant 1 : index
    %c0_21 = arith.constant 0 : index
    %c0_22 = arith.constant 0 : index
    %15 = vector.load %arg7[%c1_20, %c0_21, %c0_22] : memref<18x18x32xbf16, #tpu.memory_space<vmem>>, vector<16x16x32xbf16>
    %16 = vector.shape_cast %15 : vector<16x16x32xbf16> to vector<256x32xbf16>
    %c0_23 = arith.constant 0 : index
    %c96 = arith.constant 96 : index
    %17 = vector.load %arg8[%c0_23, %c96] : memref<256x288xbf16, #tpu.memory_space<vmem>>, vector<256x32xbf16>
    tpu.vector_store %arg8[%c0_23, %c96], %16 {strides = array<i32>} : memref<256x288xbf16, #tpu.memory_space<vmem>>, vector<256x32xbf16>,
    %c1_24 = arith.constant 1 : index
    %c1_25 = arith.constant 1 : index
    %c0_26 = arith.constant 0 : index
    %18 = vector.load %arg7[%c1_24, %c1_25, %c0_26] : memref<18x18x32xbf16, #tpu.memory_space<vmem>>, vector<16x16x32xbf16>
    %19 = vector.shape_cast %18 : vector<16x16x32xbf16> to vector<256x32xbf16>
    %c0_27 = arith.constant 0 : index
    %c128 = arith.constant 128 : index
    %20 = vector.load %arg8[%c0_27, %c128] : memref<256x288xbf16, #tpu.memory_space<vmem>>, vector<256x32xbf16>
    tpu.vector_store %arg8[%c0_27, %c128], %19 {strides = array<i32>} : memref<256x288xbf16, #tpu.memory_space<vmem>>, vector<256x32xbf16>,
    %c1_28 = arith.constant 1 : index
    %c2_29 = arith.constant 2 : index
    %c0_30 = arith.constant 0 : index
    %21 = vector.load %arg7[%c1_28, %c2_29, %c0_30] : memref<18x18x32xbf16, #tpu.memory_space<vmem>>, vector<16x16x32xbf16>
    %22 = vector.shape_cast %21 : vector<16x16x32xbf16> to vector<256x32xbf16>
    %c0_31 = arith.constant 0 : index
    %c160 = arith.constant 160 : index
    %23 = vector.load %arg8[%c0_31, %c160] : memref<256x288xbf16, #tpu.memory_space<vmem>>, vector<256x32xbf16>
    tpu.vector_store %arg8[%c0_31, %c160], %22 {strides = array<i32>} : memref<256x288xbf16, #tpu.memory_space<vmem>>, vector<256x32xbf16>,
    %c2_32 = arith.constant 2 : index
    %c0_33 = arith.constant 0 : index
    %c0_34 = arith.constant 0 : index
    %24 = vector.load %arg7[%c2_32, %c0_33, %c0_34] : memref<18x18x32xbf16, #tpu.memory_space<vmem>>, vector<16x16x32xbf16>
    %25 = vector.shape_cast %24 : vector<16x16x32xbf16> to vector<256x32xbf16>
    %c0_35 = arith.constant 0 : index
    %c192 = arith.constant 192 : index
    %26 = vector.load %arg8[%c0_35, %c192] : memref<256x288xbf16, #tpu.memory_space<vmem>>, vector<256x32xbf16>
    tpu.vector_store %arg8[%c0_35, %c192], %25 {strides = array<i32>} : memref<256x288xbf16, #tpu.memory_space<vmem>>, vector<256x32xbf16>,
    %c2_36 = arith.constant 2 : index
    %c1_37 = arith.constant 1 : index
    %c0_38 = arith.constant 0 : index
    %27 = vector.load %arg7[%c2_36, %c1_37, %c0_38] : memref<18x18x32xbf16, #tpu.memory_space<vmem>>, vector<16x16x32xbf16>
    %28 = vector.shape_cast %27 : vector<16x16x32xbf16> to vector<256x32xbf16>
    %c0_39 = arith.constant 0 : index
    %c224 = arith.constant 224 : index
    %29 = vector.load %arg8[%c0_39, %c224] : memref<256x288xbf16, #tpu.memory_space<vmem>>, vector<256x32xbf16>
    tpu.vector_store %arg8[%c0_39, %c224], %28 {strides = array<i32>} : memref<256x288xbf16, #tpu.memory_space<vmem>>, vector<256x32xbf16>,
    %c2_40 = arith.constant 2 : index
    %c2_41 = arith.constant 2 : index
    %c0_42 = arith.constant 0 : index
    %30 = vector.load %arg7[%c2_40, %c2_41, %c0_42] : memref<18x18x32xbf16, #tpu.memory_space<vmem>>, vector<16x16x32xbf16>
    %31 = vector.shape_cast %30 : vector<16x16x32xbf16> to vector<256x32xbf16>
    %c0_43 = arith.constant 0 : index
    %c256 = arith.constant 256 : index
    %32 = vector.load %arg8[%c0_43, %c256] : memref<256x288xbf16, #tpu.memory_space<vmem>>, vector<256x32xbf16>
    tpu.vector_store %arg8[%c0_43, %c256], %31 {strides = array<i32>} : memref<256x288xbf16, #tpu.memory_space<vmem>>, vector<256x32xbf16>,
    %c0_44 = arith.constant 0 : index
    %c0_45 = arith.constant 0 : index
    %33 = vector.load %arg8[%c0_44, %c0_45] : memref<256x288xbf16, #tpu.memory_space<vmem>>, vector<256x288xbf16>
    %cst_46 = arith.constant 0.000000e+00 : bf16
    %34 = vector.broadcast %cst_46 : bf16 to vector<256x288xbf16>
    %35 = arith.maximumf %33, %34 : vector<256x288xbf16>
    %c0_47 = arith.constant 0 : index
    %c0_48 = arith.constant 0 : index
    %36 = vector.load %arg2[%c0_47, %c0_48] : memref<288x32xbf16, #tpu.memory_space<vmem>>, vector<288x32xbf16>
    %cst_49 = arith.constant dense<0.000000e+00> : vector<256x32xf32>
    %37 = tpu.matmul %35, %36, %cst_49 {dimension_numbers = #tpu.dot_dimension_numbers<[1], [0], [0], [1], [0, 0, 1, 1], [], []>} : vector<256x288xbf16>, vector<288x32xbf16>, vector<256x32xf32> -> vector<256x32xf32>
    %c0_50 = arith.constant 0 : index
    %c0_51 = arith.constant 0 : index
    %38 = vector.load %arg3[%c0_50, %c0_51] : memref<1x32xf32, #tpu.memory_space<vmem>>, vector<1x32xf32>
    %39 = vector.broadcast %38 : vector<1x32xf32> to vector<256x32xf32>
    %40 = arith.addf %37, %39 : vector<256x32xf32>
    %41 = vector.shape_cast %1 : vector<16x16x32xf32> to vector<256x32xf32>
    %cst_52 = arith.constant 0.000000e+00 : bf16
    %42 = vector.broadcast %cst_52 : bf16 to vector<18x18x32xbf16>
    %c0_53 = arith.constant 0 : index
    %c0_54 = arith.constant 0 : index
    %c0_55 = arith.constant 0 : index
    %43 = vector.load %arg9[%c0_53, %c0_54, %c0_55] : memref<18x18x32xbf16, #tpu.memory_space<vmem>>, vector<18x18x32xbf16>
    tpu.vector_store %arg9[%c0_53, %c0_54, %c0_55], %42 {strides = array<i32>} : memref<18x18x32xbf16, #tpu.memory_space<vmem>>, vector<18x18x32xbf16>,
    %cst_56 = arith.constant 0.000000e+00 : f32
    %44 = vector.broadcast %cst_56 : f32 to vector<256x32xf32>
    %45 = arith.maximumf %40, %44 : vector<256x32xf32>
    %46 = arith.truncf %45 : vector<256x32xf32> to vector<256x32xbf16>
    %47 = vector.shape_cast %46 : vector<256x32xbf16> to vector<16x16x32xbf16>
    %c1_57 = arith.constant 1 : index
    %c1_58 = arith.constant 1 : index
    %c0_59 = arith.constant 0 : index
    %48 = vector.load %arg9[%c1_57, %c1_58, %c0_59] : memref<18x18x32xbf16, #tpu.memory_space<vmem>>, vector<16x16x32xbf16>
    tpu.vector_store %arg9[%c1_57, %c1_58, %c0_59], %47 {strides = array<i32>} : memref<18x18x32xbf16, #tpu.memory_space<vmem>>, vector<16x16x32xbf16>,
    %c0_60 = arith.constant 0 : index
    %c0_61 = arith.constant 0 : index
    %c0_62 = arith.constant 0 : index
    %49 = vector.load %arg9[%c0_60, %c0_61, %c0_62] : memref<18x18x32xbf16, #tpu.memory_space<vmem>>, vector<16x16x32xbf16>
    %50 = vector.shape_cast %49 : vector<16x16x32xbf16> to vector<256x32xbf16>
    %c0_63 = arith.constant 0 : index
    %c0_64 = arith.constant 0 : index
    %51 = vector.load %arg10[%c0_63, %c0_64] : memref<256x288xbf16, #tpu.memory_space<vmem>>, vector<256x32xbf16>
    tpu.vector_store %arg10[%c0_63, %c0_64], %50 {strides = array<i32>} : memref<256x288xbf16, #tpu.memory_space<vmem>>, vector<256x32xbf16>,
    %c0_65 = arith.constant 0 : index
    %c1_66 = arith.constant 1 : index
    %c0_67 = arith.constant 0 : index
    %52 = vector.load %arg9[%c0_65, %c1_66, %c0_67] : memref<18x18x32xbf16, #tpu.memory_space<vmem>>, vector<16x16x32xbf16>
    %53 = vector.shape_cast %52 : vector<16x16x32xbf16> to vector<256x32xbf16>
    %c0_68 = arith.constant 0 : index
    %c32_69 = arith.constant 32 : index
    %54 = vector.load %arg10[%c0_68, %c32_69] : memref<256x288xbf16, #tpu.memory_space<vmem>>, vector<256x32xbf16>
    tpu.vector_store %arg10[%c0_68, %c32_69], %53 {strides = array<i32>} : memref<256x288xbf16, #tpu.memory_space<vmem>>, vector<256x32xbf16>,
    %c0_70 = arith.constant 0 : index
    %c2_71 = arith.constant 2 : index
    %c0_72 = arith.constant 0 : index
    %55 = vector.load %arg9[%c0_70, %c2_71, %c0_72] : memref<18x18x32xbf16, #tpu.memory_space<vmem>>, vector<16x16x32xbf16>
    %56 = vector.shape_cast %55 : vector<16x16x32xbf16> to vector<256x32xbf16>
    %c0_73 = arith.constant 0 : index
    %c64_74 = arith.constant 64 : index
    %57 = vector.load %arg10[%c0_73, %c64_74] : memref<256x288xbf16, #tpu.memory_space<vmem>>, vector<256x32xbf16>
    tpu.vector_store %arg10[%c0_73, %c64_74], %56 {strides = array<i32>} : memref<256x288xbf16, #tpu.memory_space<vmem>>, vector<256x32xbf16>,
    %c1_75 = arith.constant 1 : index
    %c0_76 = arith.constant 0 : index
    %c0_77 = arith.constant 0 : index
    %58 = vector.load %arg9[%c1_75, %c0_76, %c0_77] : memref<18x18x32xbf16, #tpu.memory_space<vmem>>, vector<16x16x32xbf16>
    %59 = vector.shape_cast %58 : vector<16x16x32xbf16> to vector<256x32xbf16>
    %c0_78 = arith.constant 0 : index
    %c96_79 = arith.constant 96 : index
    %60 = vector.load %arg10[%c0_78, %c96_79] : memref<256x288xbf16, #tpu.memory_space<vmem>>, vector<256x32xbf16>
    tpu.vector_store %arg10[%c0_78, %c96_79], %59 {strides = array<i32>} : memref<256x288xbf16, #tpu.memory_space<vmem>>, vector<256x32xbf16>,
    %c1_80 = arith.constant 1 : index
    %c1_81 = arith.constant 1 : index
    %c0_82 = arith.constant 0 : index
    %61 = vector.load %arg9[%c1_80, %c1_81, %c0_82] : memref<18x18x32xbf16, #tpu.memory_space<vmem>>, vector<16x16x32xbf16>
    %62 = vector.shape_cast %61 : vector<16x16x32xbf16> to vector<256x32xbf16>
    %c0_83 = arith.constant 0 : index
    %c128_84 = arith.constant 128 : index
    %63 = vector.load %arg10[%c0_83, %c128_84] : memref<256x288xbf16, #tpu.memory_space<vmem>>, vector<256x32xbf16>
    tpu.vector_store %arg10[%c0_83, %c128_84], %62 {strides = array<i32>} : memref<256x288xbf16, #tpu.memory_space<vmem>>, vector<256x32xbf16>,
    %c1_85 = arith.constant 1 : index
    %c2_86 = arith.constant 2 : index
    %c0_87 = arith.constant 0 : index
    %64 = vector.load %arg9[%c1_85, %c2_86, %c0_87] : memref<18x18x32xbf16, #tpu.memory_space<vmem>>, vector<16x16x32xbf16>
    %65 = vector.shape_cast %64 : vector<16x16x32xbf16> to vector<256x32xbf16>
    %c0_88 = arith.constant 0 : index
    %c160_89 = arith.constant 160 : index
    %66 = vector.load %arg10[%c0_88, %c160_89] : memref<256x288xbf16, #tpu.memory_space<vmem>>, vector<256x32xbf16>
    tpu.vector_store %arg10[%c0_88, %c160_89], %65 {strides = array<i32>} : memref<256x288xbf16, #tpu.memory_space<vmem>>, vector<256x32xbf16>,
    %c2_90 = arith.constant 2 : index
    %c0_91 = arith.constant 0 : index
    %c0_92 = arith.constant 0 : index
    %67 = vector.load %arg9[%c2_90, %c0_91, %c0_92] : memref<18x18x32xbf16, #tpu.memory_space<vmem>>, vector<16x16x32xbf16>
    %68 = vector.shape_cast %67 : vector<16x16x32xbf16> to vector<256x32xbf16>
    %c0_93 = arith.constant 0 : index
    %c192_94 = arith.constant 192 : index
    %69 = vector.load %arg10[%c0_93, %c192_94] : memref<256x288xbf16, #tpu.memory_space<vmem>>, vector<256x32xbf16>
    tpu.vector_store %arg10[%c0_93, %c192_94], %68 {strides = array<i32>} : memref<256x288xbf16, #tpu.memory_space<vmem>>, vector<256x32xbf16>,
    %c2_95 = arith.constant 2 : index
    %c1_96 = arith.constant 1 : index
    %c0_97 = arith.constant 0 : index
    %70 = vector.load %arg9[%c2_95, %c1_96, %c0_97] : memref<18x18x32xbf16, #tpu.memory_space<vmem>>, vector<16x16x32xbf16>
    %71 = vector.shape_cast %70 : vector<16x16x32xbf16> to vector<256x32xbf16>
    %c0_98 = arith.constant 0 : index
    %c224_99 = arith.constant 224 : index
    %72 = vector.load %arg10[%c0_98, %c224_99] : memref<256x288xbf16, #tpu.memory_space<vmem>>, vector<256x32xbf16>
    tpu.vector_store %arg10[%c0_98, %c224_99], %71 {strides = array<i32>} : memref<256x288xbf16, #tpu.memory_space<vmem>>, vector<256x32xbf16>,
    %c2_100 = arith.constant 2 : index
    %c2_101 = arith.constant 2 : index
    %c0_102 = arith.constant 0 : index
    %73 = vector.load %arg9[%c2_100, %c2_101, %c0_102] : memref<18x18x32xbf16, #tpu.memory_space<vmem>>, vector<16x16x32xbf16>
    %74 = vector.shape_cast %73 : vector<16x16x32xbf16> to vector<256x32xbf16>
    %c0_103 = arith.constant 0 : index
    %c256_104 = arith.constant 256 : index
    %75 = vector.load %arg10[%c0_103, %c256_104] : memref<256x288xbf16, #tpu.memory_space<vmem>>, vector<256x32xbf16>
    tpu.vector_store %arg10[%c0_103, %c256_104], %74 {strides = array<i32>} : memref<256x288xbf16, #tpu.memory_space<vmem>>, vector<256x32xbf16>,
    %c0_105 = arith.constant 0 : index
    %c0_106 = arith.constant 0 : index
    %76 = vector.load %arg10[%c0_105, %c0_106] : memref<256x288xbf16, #tpu.memory_space<vmem>>, vector<256x288xbf16>
    %c0_107 = arith.constant 0 : index
    %c0_108 = arith.constant 0 : index
    %77 = vector.load %arg4[%c0_107, %c0_108] : memref<288x32xbf16, #tpu.memory_space<vmem>>, vector<288x32xbf16>
    %cst_109 = arith.constant dense<0.000000e+00> : vector<256x32xf32>
    %78 = tpu.matmul %76, %77, %cst_109 {dimension_numbers = #tpu.dot_dimension_numbers<[1], [0], [0], [1], [0, 0, 1, 1], [], []>} : vector<256x288xbf16>, vector<288x32xbf16>, vector<256x32xf32> -> vector<256x32xf32>
    %c0_110 = arith.constant 0 : index
    %c0_111 = arith.constant 0 : index
    %79 = vector.load %arg5[%c0_110, %c0_111] : memref<1x32xf32, #tpu.memory_space<vmem>>, vector<1x32xf32>
    %80 = vector.broadcast %79 : vector<1x32xf32> to vector<256x32xf32>
    %81 = arith.addf %78, %80 : vector<256x32xf32>
    %82 = arith.addf %81, %41 : vector<256x32xf32>
    %c0_112 = arith.constant 0 : index
    %c0_113 = arith.constant 0 : index
    %c0_114 = arith.constant 0 : index
    %83 = vector.load %arg6[%c0_112, %c0_113, %c0_114] : memref<1x256x32xf32, #tpu.memory_space<vmem>>, vector<1x256x32xf32>
    %84 = vector.shape_cast %83 : vector<1x256x32xf32> to vector<256x32xf32>
    %85 = vector.shape_cast %82 : vector<256x32xf32> to vector<1x256x32xf32>
    tpu.vector_store %arg6[%c0_112, %c0_113, %c0_114], %85 {strides = array<i32>} : memref<1x256x32xf32, #tpu.memory_space<vmem>>, vector<1x256x32xf32>,
    return
  }
  func.func @transform_0(%arg0: i32) -> (i32, i32, i32, i32) {
    %c0_i32 = arith.constant 0 : i32
    %c0_i32_0 = arith.constant 0 : i32
    %c0_i32_1 = arith.constant 0 : i32
    %c0_i32_2 = arith.constant 0 : i32
    return %arg0, %c0_i32, %c0_i32_0, %c0_i32_1 : i32, i32, i32, i32
  }
  func.func @transform_1(%arg0: i32) -> (i32, i32) {
    %c0_i32 = arith.constant 0 : i32
    %c0_i32_0 = arith.constant 0 : i32
    %c0_i32_1 = arith.constant 0 : i32
    return %c0_i32, %c0_i32_0 : i32, i32
  }
  func.func @transform_2(%arg0: i32) -> (i32, i32) {
    %c0_i32 = arith.constant 0 : i32
    %c0_i32_0 = arith.constant 0 : i32
    %c0_i32_1 = arith.constant 0 : i32
    return %c0_i32, %c0_i32_0 : i32, i32
  }
  func.func @transform_3(%arg0: i32) -> (i32, i32) {
    %c0_i32 = arith.constant 0 : i32
    %c0_i32_0 = arith.constant 0 : i32
    %c0_i32_1 = arith.constant 0 : i32
    return %c0_i32, %c0_i32_0 : i32, i32
  }
  func.func @transform_4(%arg0: i32) -> (i32, i32) {
    %c0_i32 = arith.constant 0 : i32
    %c0_i32_0 = arith.constant 0 : i32
    %c0_i32_1 = arith.constant 0 : i32
    return %c0_i32, %c0_i32_0 : i32, i32
  }
  func.func @transform_5(%arg0: i32) -> (i32, i32, i32) {
    %c0_i32 = arith.constant 0 : i32
    %c0_i32_0 = arith.constant 0 : i32
    %c0_i32_1 = arith.constant 0 : i32
    return %arg0, %c0_i32, %c0_i32_0 : i32, i32, i32
  }
}

</mosaic_0001>

<llo_original>
// kernel: res_block.1
$region0: #{res_block.1}
  #allocation0 [shape = 'u32[]', space=smem, size = 0x4, offset = 0x4, fixed_abs, tag = 'smem constant byte address 0x4 - core index']
  #allocation1 [shape = 'u32[72,128]{1,0:T(1,128)}', space=vmem, size = 0x9000, scoped, tag = 'internal scratch']
  #allocation2 [shape = 'bf16[18,18,32]{2,1,0:T(8,128)(2,1)}', space=vmem, size = 0x1b000, scoped, tag = 'scratch operand']
  #allocation3 [shape = 'bf16[256,288]{1,0:T(8,128)(2,1)}', space=vmem, size = 0x30000, scoped, tag = 'scratch operand']
  #allocation4 [shape = 'bf16[18,18,32]{2,1,0:T(8,128)(2,1)}', space=vmem, size = 0x1b000, scoped, tag = 'scratch operand']
  #allocation5 [shape = 'bf16[256,288]{1,0:T(8,128)(2,1)}', space=vmem, size = 0x30000, scoped, tag = 'scratch operand']
  %s0 = inlined_call_operand.vmem [shape: f32[2,16,16,32], index: 0, kind: input, shape index: {}]
  %s1 = inlined_call_operand.vmem [shape: bf16[288,32], index: 1, kind: input, shape index: {}]
  %s2 = inlined_call_operand.vmem [shape: f32[1,32], index: 2, kind: input, shape index: {}]
  %s3 = inlined_call_operand.vmem [shape: bf16[288,32], index: 3, kind: input, shape index: {}]
  %s4 = inlined_call_operand.vmem [shape: f32[1,32], index: 4, kind: input, shape index: {}]
  %s5 = inlined_call_operand.hbm [shape: f32[2,256,32], index: 5, kind: output, shape index: {}]
  %s6 = sld [smem:[#allocation0]]
  $region53: #{res_block.1} parent=0
    _
  %s8 = ssub.s32 1, %s6
  %s9 = scalar_select 0, %s8, %s6
  $region1: #{res_block.1} parent=0
    #allocation6 [shape = 'u8[262144]{0}', space=vmem, size = 0x40000, scoped, tag = 'output window, operand 0']
    #allocation7 [shape = 's32[2]{0}', space=sflag, size = 0x8, scoped, tag = 'scoped memory for res_block.1']
    %10 = vsyncpa [#allocation7], 0
    %s11 = scalar_lea.sflag [#allocation7], 1
    %12 = vsyncpa %s11, 0
    loop: start=0, step=1, limit=4
    $region2: #{res_block.1} parent=1 // loop_pre_header
      _
    $region3: #{res_block.1} parent=1 // loop_header
      %s14 = sphi 0, %s18
      %p15 = scmp.ge.s32.totalorder %s14, 4
      %s24 = sphi 0, %s26
      %s27 = sphi 0, %s24
      %s28 = sphi 0, %s27
      %s44 = sphi 0, %s28
      %s48 = sphi 0, %s48
      %s50 = sphi 0, %s48
      %s51 = sphi 0, %s50
      %s65 = sphi 0, %s51
      %s69 = sphi 0, %s69
      %s71 = sphi 0, %s69
      %s72 = sphi 0, %s71
      %s86 = sphi 0, %s72
      %s90 = sphi 0, %s90
      %s92 = sphi 0, %s90
      %s93 = sphi 0, %s92
      %s107 = sphi 0, %s93
      %s111 = sphi 0, %s111
      %s113 = sphi 0, %s111
      %s114 = sphi 0, %s113
      %s128 = sphi 0, %s114
      %s134 = sphi 0, %s136
      %s137 = sphi 0, %s134
      %s138 = sphi 0, %s137
      %s154 = sphi 0, %s138
    $region4: #{res_block.1} parent=1 // loop_header_branch
      %17 = sbr.rel (%p15) target = $region8
    $region5: #{res_block.1} parent=1 // loop_body
      %s19 = ssub.s32 %s14, 1
      %s20 = ssub.s32 %s14, 2
      %s21 = sadd.s32 %s14, 1
      %s22 = ssub.s32 %s14, %s21
      %p23 = scmp.eq.s32.totalorder %s22, 0
      %s25 = sadd.s32 %s24, 1
      %s26 = scalar_select %p23, %s24, %s25
      %p29 = pneg %p23
      %p30 = scmp.eq.s32.totalorder %s14, 1
      %p31 = por %p29, %p30
      %p32 = scmp.ne.s32.totalorder %s24, %s27
      %p33 = scmp.eq.s32.totalorder %s14, 0
      %p34 = por %p32, %p33
      %p35 = scmp.ne.s32.totalorder %s24, %s27
      %p36 = scmp.eq.s32.totalorder %s19, 1
      %p37 = por %p35, %p36
      %p38 = scmp.ne.s32.totalorder %s27, %s28
      %p39 = scmp.eq.s32.totalorder %s19, 0
      %p40 = por %p38, %p39
      %p41 = scmp.ne.s32.totalorder %s27, %s28
      %p42 = scmp.eq.s32.totalorder %s20, 1
      %p43 = por %p41, %p42
      %p45 = scmp.ne.s32.totalorder %s28, %s44
      %p46 = scmp.eq.s32.totalorder %s20, 0
      %p47 = por %p45, %p46
      %s49 = sadd.s32 %s48, 1
      %p52 = scmp.eq.s32.totalorder %s14, 1
      %p53 = scmp.ne.s32.totalorder %s48, %s50
      %p54 = scmp.eq.s32.totalorder %s14, 0
      %p55 = por %p53, %p54
      %p56 = scmp.ne.s32.totalorder %s48, %s50
      %p57 = scmp.eq.s32.totalorder %s19, 1
      %p58 = por %p56, %p57
      %p59 = scmp.ne.s32.totalorder %s50, %s51
      %p60 = scmp.eq.s32.totalorder %s19, 0
      %p61 = por %p59, %p60
      %p62 = scmp.ne.s32.totalorder %s50, %s51
      %p63 = scmp.eq.s32.totalorder %s20, 1
      %p64 = por %p62, %p63
      %p66 = scmp.ne.s32.totalorder %s51, %s65
      %p67 = scmp.eq.s32.totalorder %s20, 0
      %p68 = por %p66, %p67
      %s70 = sadd.s32 %s69, 1
      %p73 = scmp.eq.s32.totalorder %s14, 1
      %p74 = scmp.ne.s32.totalorder %s69, %s71
      %p75 = scmp.eq.s32.totalorder %s14, 0
      %p76 = por %p74, %p75
      %p77 = scmp.ne.s32.totalorder %s69, %s71
      %p78 = scmp.eq.s32.totalorder %s19, 1
      %p79 = por %p77, %p78
      %p80 = scmp.ne.s32.totalorder %s71, %s72
      %p81 = scmp.eq.s32.totalorder %s19, 0
      %p82 = por %p80, %p81
      %p83 = scmp.ne.s32.totalorder %s71, %s72
      %p84 = scmp.eq.s32.totalorder %s20, 1
      %p85 = por %p83, %p84
      %p87 = scmp.ne.s32.totalorder %s72, %s86
      %p88 = scmp.eq.s32.totalorder %s20, 0
      %p89 = por %p87, %p88
      %s91 = sadd.s32 %s90, 1
      %p94 = scmp.eq.s32.totalorder %s14, 1
      %p95 = scmp.ne.s32.totalorder %s90, %s92
      %p96 = scmp.eq.s32.totalorder %s14, 0
      %p97 = por %p95, %p96
      %p98 = scmp.ne.s32.totalorder %s90, %s92
      %p99 = scmp.eq.s32.totalorder %s19, 1
      %p100 = por %p98, %p99
      %p101 = scmp.ne.s32.totalorder %s92, %s93
      %p102 = scmp.eq.s32.totalorder %s19, 0
      %p103 = por %p101, %p102
      %p104 = scmp.ne.s32.totalorder %s92, %s93
      %p105 = scmp.eq.s32.totalorder %s20, 1
      %p106 = por %p104, %p105
      %p108 = scmp.ne.s32.totalorder %s93, %s107
      %p109 = scmp.eq.s32.totalorder %s20, 0
      %p110 = por %p108, %p109
      %s112 = sadd.s32 %s111, 1
      %p115 = scmp.eq.s32.totalorder %s14, 1
      %p116 = scmp.ne.s32.totalorder %s111, %s113
      %p117 = scmp.eq.s32.totalorder %s14, 0
      %p118 = por %p116, %p117
      %p119 = scmp.ne.s32.totalorder %s111, %s113
      %p120 = scmp.eq.s32.totalorder %s19, 1
      %p121 = por %p119, %p120
      %p122 = scmp.ne.s32.totalorder %s113, %s114
      %p123 = scmp.eq.s32.totalorder %s19, 0
      %p124 = por %p122, %p123
      %p125 = scmp.ne.s32.totalorder %s113, %s114
      %p126 = scmp.eq.s32.totalorder %s20, 1
      %p127 = por %p125, %p126
      %p129 = scmp.ne.s32.totalorder %s114, %s128
      %p130 = scmp.eq.s32.totalorder %s20, 0
      %p131 = por %p129, %p130
      %s132 = ssub.s32 %s14, %s21
      %p133 = scmp.eq.s32.totalorder %s132, 0
      %s135 = sadd.s32 %s134, 1
      %s136 = scalar_select %p133, %s134, %s135
      %p139 = pneg %p133
      %p140 = scmp.eq.s32.totalorder %s14, 1
      %p141 = por %p139, %p140
      %p142 = scmp.ne.s32.totalorder %s134, %s137
      %p143 = scmp.eq.s32.totalorder %s14, 0
      %p144 = por %p142, %p143
      %p145 = scmp.ne.s32.totalorder %s134, %s137
      %p146 = scmp.eq.s32.totalorder %s19, 1
      %p147 = por %p145, %p146
      %p148 = scmp.ne.s32.totalorder %s137, %s138
      %p149 = scmp.eq.s32.totalorder %s19, 0
      %p150 = por %p148, %p149
      %p151 = scmp.ne.s32.totalorder %s137, %s138
      %p152 = scmp.eq.s32.totalorder %s20, 1
      %p153 = por %p151, %p152
      %p155 = scmp.ne.s32.totalorder %s138, %s154
      %p156 = scmp.eq.s32.totalorder %s20, 0
      %p157 = por %p155, %p156
      %p158 = scmp.le.s32.totalorder 1, %s14
      %p159 = scmp.lt.s32.totalorder %s14, 3
      %p160 = pnand %p158, %p159
      %p161 = pneg %p160
      // Predicated region
      $region9: #{res_block.1} parent=5 // pred_check
        _
      $region10: #{res_block.1} parent=5 // pred_check_branch
        %163 = sbr.rel (%p160) target = $region12
      $region11: #{res_block.1} parent=5 // pred_region
        %s164 = ssub.s32 %s14, 1
        // Predicated region
        $region13: #{res_block.1} parent=11 // pred_check
          %p165 = pneg %p61
        $region14: #{res_block.1} parent=11 // pred_check_branch
          %167 = sbr.rel (%p165) target = $region16
        $region15: #{res_block.1} parent=11 // pred_region
          _
        $region16: #{res_block.1} parent=11 // pred_fallthru
          _
        // Predicated region
        $region17: #{res_block.1} parent=11 // pred_check
          %p168 = pneg %p82
        $region18: #{res_block.1} parent=11 // pred_check_branch
          %170 = sbr.rel (%p168) target = $region20
        $region19: #{res_block.1} parent=11 // pred_region
          _
        $region20: #{res_block.1} parent=11 // pred_fallthru
          _
        // Predicated region
        $region21: #{res_block.1} parent=11 // pred_check
          %p171 = pneg %p103
        $region22: #{res_block.1} parent=11 // pred_check_branch
          %173 = sbr.rel (%p171) target = $region24
        $region23: #{res_block.1} parent=11 // pred_region
          _
        $region24: #{res_block.1} parent=11 // pred_fallthru
          _
        // Predicated region
        $region25: #{res_block.1} parent=11 // pred_check
          %p174 = pneg %p124
        $region26: #{res_block.1} parent=11 // pred_check_branch
          %176 = sbr.rel (%p174) target = $region28
        $region27: #{res_block.1} parent=11 // pred_region
          _
        $region28: #{res_block.1} parent=11 // pred_fallthru
          _
      $region12: #{res_block.1} parent=5 // pred_fallthru
        _
      %p177 = scmp.lt.s32.totalorder %s14, 2
      // Predicated region
      $region29: #{res_block.1} parent=5 // pred_check
        %p178 = pneg %p177
      $region30: #{res_block.1} parent=5 // pred_check_branch
        %180 = sbr.rel (%p178) target = $region32
      $region31: #{res_block.1} parent=5 // pred_region
        // Predicated region
        $region33: #{res_block.1} parent=31 // pred_check
          %p181 = pneg %p34
        $region34: #{res_block.1} parent=31 // pred_check_branch
          %183 = sbr.rel (%p181) target = $region36
        $region35: #{res_block.1} parent=31 // pred_region
          %p184 = scmp.lt.s32.totalorder %s14, 1
          %s185 = scalar_select %p184, %s14, 1
          %s186 = smul.addr %s185, 32
          %s187 = smul.addr %s186, 8
          %s188 = scalar_lea.vmem %s0, %s187
        $region36: #{res_block.1} parent=31 // pred_fallthru
          _
      $region32: #{res_block.1} parent=5 // pred_fallthru
        _
      %p189 = scmp.le.s32.totalorder 1, %s14
      %p190 = scmp.lt.s32.totalorder %s14, 3
      %p191 = pnand %p189, %p190
      %p192 = pneg %p191
      // Predicated region
      $region37: #{res_block.1} parent=5 // pred_check
        _
      $region38: #{res_block.1} parent=5 // pred_check_branch
        %194 = sbr.rel (%p191) target = $region40
      $region39: #{res_block.1} parent=5 // pred_region
        %s195 = ssub.s32 %s14, 1
        %p196 = scmp.lt.s32.totalorder %s19, 1
        %s197 = scalar_select %p196, %s19, 1
        %s198 = smul.addr %s197, 32
        %s199 = smul.addr %s198, 8
        %s200 = scalar_lea.vmem %s0, %s199
        %p201 = pneg %p40
        %p202 = pneg %p37
        %p203 = pneg %p61
        %p204 = pneg %p58
        %p205 = pneg %p82
        %p206 = pneg %p79
        %p207 = pneg %p103
        %p208 = pneg %p100
        %p209 = pneg %p124
        %p210 = pneg %p121
        %p211 = pneg %p150
        %p212 = pneg %p147
        %s213 = sand.u32 %s137, 1
        %s214 = scalar_lea.sflag [#allocation7], %s213
        %s215 = sand.u32 %s137, 1
        %s216 = smul.addr %s215, 256
        %s217 = scalar_lea.vmem [#allocation6], %s216
        %p218 = scmp.lt.s32.totalorder %s19, 1
        %s219 = scalar_select %p218, %s19, 1
        %s220 = smul.addr %s219, 32
        %s221 = smul.addr %s220, 8
        %s222 = scalar_lea.vmem %s0, %s221
        %v224 = vld [vmem:[%s222] sm:$0xff]
        %v225 = vld [vmem:[%s222 + $0x8] sm:$0xff]
        %v226 = vld [vmem:[%s222 + $0x10] sm:$0xff]
        %v227 = vld [vmem:[%s222 + $0x18] sm:$0xff]
        %v228 = vld [vmem:[%s222 + $0x20] sm:$0xff]
        %v229 = vld [vmem:[%s222 + $0x28] sm:$0xff]
        %v230 = vld [vmem:[%s222 + $0x30] sm:$0xff]
        %v231 = vld [vmem:[%s222 + $0x38] sm:$0xff]
        %v232 = vld [vmem:[%s222 + $0x40] sm:$0xff]
        %v233 = vld [vmem:[%s222 + $0x48] sm:$0xff]
        %v234 = vld [vmem:[%s222 + $0x50] sm:$0xff]
        %v235 = vld [vmem:[%s222 + $0x58] sm:$0xff]
        %v236 = vld [vmem:[%s222 + $0x60] sm:$0xff]
        %v237 = vld [vmem:[%s222 + $0x68] sm:$0xff]
        %v238 = vld [vmem:[%s222 + $0x70] sm:$0xff]
        %v239 = vld [vmem:[%s222 + $0x78] sm:$0xff]
        %v240 = vld [vmem:[%s222 + $0x80] sm:$0xff]
        %v241 = vld [vmem:[%s222 + $0x88] sm:$0xff]
        %v242 = vld [vmem:[%s222 + $0x90] sm:$0xff]
        %v243 = vld [vmem:[%s222 + $0x98] sm:$0xff]
        %v244 = vld [vmem:[%s222 + $0xa0] sm:$0xff]
        %v245 = vld [vmem:[%s222 + $0xa8] sm:$0xff]
        %v246 = vld [vmem:[%s222 + $0xb0] sm:$0xff]
        %v247 = vld [vmem:[%s222 + $0xb8] sm:$0xff]
        %v248 = vld [vmem:[%s222 + $0xc0] sm:$0xff]
        %v249 = vld [vmem:[%s222 + $0xc8] sm:$0xff]
        %v250 = vld [vmem:[%s222 + $0xd0] sm:$0xff]
        %v251 = vld [vmem:[%s222 + $0xd8] sm:$0xff]
        %v252 = vld [vmem:[%s222 + $0xe0] sm:$0xff]
        %v253 = vld [vmem:[%s222 + $0xe8] sm:$0xff]
        %v254 = vld [vmem:[%s222 + $0xf0] sm:$0xff]
        %v255 = vld [vmem:[%s222 + $0xf8] sm:$0xff]
        %vm256 = vcmask 257024
        %257 = vst.msk [vmem:[#allocation2] sm:$0xf] %vm256, 0
        %258 = vst.msk [vmem:[#allocation2 + $0x4] sm:$0xf] %vm256, 0
        %vm259 = vcmask 253952
        %260 = vst.msk [vmem:[#allocation2 + $0x8] sm:$0x1] %vm259, 0
        %261 = vst.msk [vmem:[#allocation2 + $0xc] sm:$0xf] %vm256, 0
        %262 = vst.msk [vmem:[#allocation2 + $0x10] sm:$0xf] %vm256, 0
        %263 = vst.msk [vmem:[#allocation2 + $0x14] sm:$0x1] %vm259, 0
        %264 = vst.msk [vmem:[#allocation2 + $0x18] sm:$0xf] %vm256, 0
        %265 = vst.msk [vmem:[#allocation2 + $0x1c] sm:$0xf] %vm256, 0
        %266 = vst.msk [vmem:[#allocation2 + $0x20] sm:$0x1] %vm259, 0
        %267 = vst.msk [vmem:[#allocation2 + $0x24] sm:$0xf] %vm256, 0
        %268 = vst.msk [vmem:[#allocation2 + $0x28] sm:$0xf] %vm256, 0
        %269 = vst.msk [vmem:[#allocation2 + $0x2c] sm:$0x1] %vm259, 0
        %270 = vst.msk [vmem:[#allocation2 + $0x30] sm:$0xf] %vm256, 0
        %271 = vst.msk [vmem:[#allocation2 + $0x34] sm:$0xf] %vm256, 0
        %272 = vst.msk [vmem:[#allocation2 + $0x38] sm:$0x1] %vm259, 0
        %273 = vst.msk [vmem:[#allocation2 + $0x3c] sm:$0xf] %vm256, 0
        %274 = vst.msk [vmem:[#allocation2 + $0x40] sm:$0xf] %vm256, 0
        %275 = vst.msk [vmem:[#allocation2 + $0x44] sm:$0x1] %vm259, 0
        %276 = vst.msk [vmem:[#allocation2 + $0x48] sm:$0xf] %vm256, 0
        %277 = vst.msk [vmem:[#allocation2 + $0x4c] sm:$0xf] %vm256, 0
        %278 = vst.msk [vmem:[#allocation2 + $0x50] sm:$0x1] %vm259, 0
        %279 = vst.msk [vmem:[#allocation2 + $0x54] sm:$0xf] %vm256, 0
        %280 = vst.msk [vmem:[#allocation2 + $0x58] sm:$0xf] %vm256, 0
        %281 = vst.msk [vmem:[#allocation2 + $0x5c] sm:$0x1] %vm259, 0
        %282 = vst.msk [vmem:[#allocation2 + $0x60] sm:$0xf] %vm256, 0
        %283 = vst.msk [vmem:[#allocation2 + $0x64] sm:$0xf] %vm256, 0
        %284 = vst.msk [vmem:[#allocation2 + $0x68] sm:$0x1] %vm259, 0
        %285 = vst.msk [vmem:[#allocation2 + $0x6c] sm:$0xf] %vm256, 0
        %286 = vst.msk [vmem:[#allocation2 + $0x70] sm:$0xf] %vm256, 0
        %287 = vst.msk [vmem:[#allocation2 + $0x74] sm:$0x1] %vm259, 0
        %288 = vst.msk [vmem:[#allocation2 + $0x78] sm:$0xf] %vm256, 0
        %289 = vst.msk [vmem:[#allocation2 + $0x7c] sm:$0xf] %vm256, 0
        %290 = vst.msk [vmem:[#allocation2 + $0x80] sm:$0x1] %vm259, 0
        %291 = vst.msk [vmem:[#allocation2 + $0x84] sm:$0xf] %vm256, 0
        %292 = vst.msk [vmem:[#allocation2 + $0x88] sm:$0xf] %vm256, 0
        %293 = vst.msk [vmem:[#allocation2 + $0x8c] sm:$0x1] %vm259, 0
        %294 = vst.msk [vmem:[#allocation2 + $0x90] sm:$0xf] %vm256, 0
        %295 = vst.msk [vmem:[#allocation2 + $0x94] sm:$0xf] %vm256, 0
        %296 = vst.msk [vmem:[#allocation2 + $0x98] sm:$0x1] %vm259, 0
        %297 = vst.msk [vmem:[#allocation2 + $0x9c] sm:$0xf] %vm256, 0
        %298 = vst.msk [vmem:[#allocation2 + $0xa0] sm:$0xf] %vm256, 0
        %299 = vst.msk [vmem:[#allocation2 + $0xa4] sm:$0x1] %vm259, 0
        %300 = vst.msk [vmem:[#allocation2 + $0xa8] sm:$0xf] %vm256, 0
        %301 = vst.msk [vmem:[#allocation2 + $0xac] sm:$0xf] %vm256, 0
        %302 = vst.msk [vmem:[#allocation2 + $0xb0] sm:$0x1] %vm259, 0
        %303 = vst.msk [vmem:[#allocation2 + $0xb4] sm:$0xf] %vm256, 0
        %304 = vst.msk [vmem:[#allocation2 + $0xb8] sm:$0xf] %vm256, 0
        %305 = vst.msk [vmem:[#allocation2 + $0xbc] sm:$0x1] %vm259, 0
        %306 = vst.msk [vmem:[#allocation2 + $0xc0] sm:$0xf] %vm256, 0
        %307 = vst.msk [vmem:[#allocation2 + $0xc4] sm:$0xf] %vm256, 0
        %308 = vst.msk [vmem:[#allocation2 + $0xc8] sm:$0x1] %vm259, 0
        %309 = vst.msk [vmem:[#allocation2 + $0xcc] sm:$0xf] %vm256, 0
        %310 = vst.msk [vmem:[#allocation2 + $0xd0] sm:$0xf] %vm256, 0
        %311 = vst.msk [vmem:[#allocation2 + $0xd4] sm:$0x1] %vm259, 0
        %v312 = vpack.c.bf16 %v224, %v224
        %v313 = vpack.c.bf16 %v225, %v225
        %v314 = vpack.c.bf16 %v226, %v226
        %v315 = vpack.c.bf16 %v227, %v227
        %v316 = vpack.c.bf16 %v228, %v228
        %v317 = vpack.c.bf16 %v229, %v229
        %v318 = vpack.c.bf16 %v230, %v230
        %v319 = vpack.c.bf16 %v231, %v231
        %v320 = vpack.c.bf16 %v232, %v232
        %v321 = vpack.c.bf16 %v233, %v233
        %v322 = vpack.c.bf16 %v234, %v234
        %v323 = vpack.c.bf16 %v235, %v235
        %v324 = vpack.c.bf16 %v236, %v236
        %v325 = vpack.c.bf16 %v237, %v237
        %v326 = vpack.c.bf16 %v238, %v238
        %v327 = vpack.c.bf16 %v239, %v239
        %v328 = vpack.c.bf16 %v240, %v240
        %v329 = vpack.c.bf16 %v241, %v241
        %v330 = vpack.c.bf16 %v242, %v242
        %v331 = vpack.c.bf16 %v243, %v243
        %v332 = vpack.c.bf16 %v244, %v244
        %v333 = vpack.c.bf16 %v245, %v245
        %v334 = vpack.c.bf16 %v246, %v246
        %v335 = vpack.c.bf16 %v247, %v247
        %v336 = vpack.c.bf16 %v248, %v248
        %v337 = vpack.c.bf16 %v249, %v249
        %v338 = vpack.c.bf16 %v250, %v250
        %v339 = vpack.c.bf16 %v251, %v251
        %v340 = vpack.c.bf16 %v252, %v252
        %v341 = vpack.c.bf16 %v253, %v253
        %v342 = vpack.c.bf16 %v254, %v254
        %v343 = vpack.c.bf16 %v255, %v255
        %vm344 = vsmask.f32 256
        %vm345 = vsmask.f32 4368
        %vm346 = vmor %vm344, %vm345
        %v348 = vshrl.u32 %v312, 16
        %v350 = vrot.slane %v348, 7
        %v351 = vshll.u32 %v312, 16
        %v353 = vor.u32 %v350, %v351
        %v354 = vrot.slane %v350, 4
        %v356 = vshrl.u32 %v313, 16
        %v358 = vrot.slane %v356, 7
        %v359 = vshll.u32 %v313, 16
        %v361 = vor.u32 %v358, %v359
        %v362 = vsel %vm346, %v354, %v361
        %v363 = vrot.slane %v358, 4
        %v365 = vshrl.u32 %v314, 16
        %v367 = vrot.slane %v365, 7
        %v368 = vshll.u32 %v314, 16
        %v370 = vor.u32 %v367, %v368
        %v371 = vrot.slane %v367, 4
        %v373 = vshrl.u32 %v315, 16
        %v375 = vrot.slane %v373, 7
        %v376 = vshll.u32 %v315, 16
        %v378 = vor.u32 %v375, %v376
        %v379 = vsel %vm346, %v371, %v378
        %v380 = vrot.slane %v375, 4
        %v382 = vshrl.u32 %v316, 16
        %v384 = vrot.slane %v382, 7
        %v385 = vshll.u32 %v316, 16
        %v387 = vor.u32 %v384, %v385
        %v388 = vrot.slane %v384, 4
        %v390 = vshrl.u32 %v317, 16
        %v392 = vrot.slane %v390, 7
        %v393 = vshll.u32 %v317, 16
        %v395 = vor.u32 %v392, %v393
        %v396 = vsel %vm346, %v388, %v395
        %v397 = vrot.slane %v392, 4
        %v399 = vshrl.u32 %v318, 16
        %v401 = vrot.slane %v399, 7
        %v402 = vshll.u32 %v318, 16
        %v404 = vor.u32 %v401, %v402
        %v405 = vrot.slane %v401, 4
        %v407 = vshrl.u32 %v319, 16
        %v409 = vrot.slane %v407, 7
        %v410 = vshll.u32 %v319, 16
        %v412 = vor.u32 %v409, %v410
        %v413 = vsel %vm346, %v405, %v412
        %v414 = vrot.slane %v409, 4
        %v416 = vshrl.u32 %v320, 16
        %v418 = vrot.slane %v416, 7
        %v419 = vshll.u32 %v320, 16
        %v421 = vor.u32 %v418, %v419
        %v422 = vrot.slane %v418, 4
        %v424 = vshrl.u32 %v321, 16
        %v426 = vrot.slane %v424, 7
        %v427 = vshll.u32 %v321, 16
        %v429 = vor.u32 %v426, %v427
        %v430 = vsel %vm346, %v422, %v429
        %v431 = vrot.slane %v426, 4
        %v433 = vshrl.u32 %v322, 16
        %v435 = vrot.slane %v433, 7
        %v436 = vshll.u32 %v322, 16
        %v438 = vor.u32 %v435, %v436
        %v439 = vrot.slane %v435, 4
        %v441 = vshrl.u32 %v323, 16
        %v443 = vrot.slane %v441, 7
        %v444 = vshll.u32 %v323, 16
        %v446 = vor.u32 %v443, %v444
        %v447 = vsel %vm346, %v439, %v446
        %v448 = vrot.slane %v443, 4
        %v450 = vshrl.u32 %v324, 16
        %v452 = vrot.slane %v450, 7
        %v453 = vshll.u32 %v324, 16
        %v455 = vor.u32 %v452, %v453
        %v456 = vrot.slane %v452, 4
        %v458 = vshrl.u32 %v325, 16
        %v460 = vrot.slane %v458, 7
        %v461 = vshll.u32 %v325, 16
        %v463 = vor.u32 %v460, %v461
        %v464 = vsel %vm346, %v456, %v463
        %v465 = vrot.slane %v460, 4
        %v467 = vshrl.u32 %v326, 16
        %v469 = vrot.slane %v467, 7
        %v470 = vshll.u32 %v326, 16
        %v472 = vor.u32 %v469, %v470
        %v473 = vrot.slane %v469, 4
        %v475 = vshrl.u32 %v327, 16
        %v477 = vrot.slane %v475, 7
        %v478 = vshll.u32 %v327, 16
        %v480 = vor.u32 %v477, %v478
        %v481 = vsel %vm346, %v473, %v480
        %v482 = vrot.slane %v477, 4
        %v484 = vshrl.u32 %v328, 16
        %v486 = vrot.slane %v484, 7
        %v487 = vshll.u32 %v328, 16
        %v489 = vor.u32 %v486, %v487
        %v490 = vrot.slane %v486, 4
        %v492 = vshrl.u32 %v329, 16
        %v494 = vrot.slane %v492, 7
        %v495 = vshll.u32 %v329, 16
        %v497 = vor.u32 %v494, %v495
        %v498 = vsel %vm346, %v490, %v497
        %v499 = vrot.slane %v494, 4
        %v501 = vshrl.u32 %v330, 16
        %v503 = vrot.slane %v501, 7
        %v504 = vshll.u32 %v330, 16
        %v506 = vor.u32 %v503, %v504
        %v507 = vrot.slane %v503, 4
        %v509 = vshrl.u32 %v331, 16
        %v511 = vrot.slane %v509, 7
        %v512 = vshll.u32 %v331, 16
        %v514 = vor.u32 %v511, %v512
        %v515 = vsel %vm346, %v507, %v514
        %v516 = vrot.slane %v511, 4
        %v518 = vshrl.u32 %v332, 16
        %v520 = vrot.slane %v518, 7
        %v521 = vshll.u32 %v332, 16
        %v523 = vor.u32 %v520, %v521
        %v524 = vrot.slane %v520, 4
        %v526 = vshrl.u32 %v333, 16
        %v528 = vrot.slane %v526, 7
        %v529 = vshll.u32 %v333, 16
        %v531 = vor.u32 %v528, %v529
        %v532 = vsel %vm346, %v524, %v531
        %v533 = vrot.slane %v528, 4
        %v535 = vshrl.u32 %v334, 16
        %v537 = vrot.slane %v535, 7
        %v538 = vshll.u32 %v334, 16
        %v540 = vor.u32 %v537, %v538
        %v541 = vrot.slane %v537, 4
        %v543 = vshrl.u32 %v335, 16
        %v545 = vrot.slane %v543, 7
        %v546 = vshll.u32 %v335, 16
        %v548 = vor.u32 %v545, %v546
        %v549 = vsel %vm346, %v541, %v548
        %v550 = vrot.slane %v545, 4
        %v552 = vshrl.u32 %v336, 16
        %v554 = vrot.slane %v552, 7
        %v555 = vshll.u32 %v336, 16
        %v557 = vor.u32 %v554, %v555
        %v558 = vrot.slane %v554, 4
        %v560 = vshrl.u32 %v337, 16
        %v562 = vrot.slane %v560, 7
        %v563 = vshll.u32 %v337, 16
        %v565 = vor.u32 %v562, %v563
        %v566 = vsel %vm346, %v558, %v565
        %v567 = vrot.slane %v562, 4
        %v569 = vshrl.u32 %v338, 16
        %v571 = vrot.slane %v569, 7
        %v572 = vshll.u32 %v338, 16
        %v574 = vor.u32 %v571, %v572
        %v575 = vrot.slane %v571, 4
        %v577 = vshrl.u32 %v339, 16
        %v579 = vrot.slane %v577, 7
        %v580 = vshll.u32 %v339, 16
        %v582 = vor.u32 %v579, %v580
        %v583 = vsel %vm346, %v575, %v582
        %v584 = vrot.slane %v579, 4
        %v586 = vshrl.u32 %v340, 16
        %v588 = vrot.slane %v586, 7
        %v589 = vshll.u32 %v340, 16
        %v591 = vor.u32 %v588, %v589
        %v592 = vrot.slane %v588, 4
        %v594 = vshrl.u32 %v341, 16
        %v596 = vrot.slane %v594, 7
        %v597 = vshll.u32 %v341, 16
        %v599 = vor.u32 %v596, %v597
        %v600 = vsel %vm346, %v592, %v599
        %v601 = vrot.slane %v596, 4
        %v603 = vshrl.u32 %v342, 16
        %v605 = vrot.slane %v603, 7
        %v606 = vshll.u32 %v342, 16
        %v608 = vor.u32 %v605, %v606
        %v609 = vrot.slane %v605, 4
        %v611 = vshrl.u32 %v343, 16
        %v613 = vrot.slane %v611, 7
        %v614 = vshll.u32 %v343, 16
        %v616 = vor.u32 %v613, %v614
        %v617 = vsel %vm346, %v609, %v616
        %v618 = vrot.slane %v613, 4
        %s667 = scalar_lea.vmem [#allocation2], 12
        %vm668 = vcmask 257024
        %vm669 = vsmask.f32 7938
        %vm670 = vmand %vm668, %vm669
        %v671 = vld [vmem:[%s667] sm:$0xf]
        %v672 = vsel %vm670, %v353, %v671
        %673 = vst [vmem:[%s667] sm:$0xf] %v672
        %674 = vst.msk [vmem:[%s667 + $0x4] sm:$0xf] %vm256, %v362
        %vm675 = vcmask 253952
        %vm676 = vmand %vm675, %vm344
        %v677 = vld [vmem:[%s667 + $0x8] sm:$0x1]
        %v678 = vsel %vm676, %v363, %v677
        %679 = vst [vmem:[%s667 + $0x8] sm:$0x1] %v678
        %v680 = vld [vmem:[%s667 + $0xc] sm:$0xf]
        %v681 = vsel %vm670, %v370, %v680
        %682 = vst [vmem:[%s667 + $0xc] sm:$0xf] %v681
        %683 = vst.msk [vmem:[%s667 + $0x10] sm:$0xf] %vm256, %v379
        %v684 = vld [vmem:[%s667 + $0x14] sm:$0x1]
        %v685 = vsel %vm676, %v380, %v684
        %686 = vst [vmem:[%s667 + $0x14] sm:$0x1] %v685
        %v687 = vld [vmem:[%s667 + $0x18] sm:$0xf]
        %v688 = vsel %vm670, %v387, %v687
        %689 = vst [vmem:[%s667 + $0x18] sm:$0xf] %v688
        %690 = vst.msk [vmem:[%s667 + $0x1c] sm:$0xf] %vm256, %v396
        %v691 = vld [vmem:[%s667 + $0x20] sm:$0x1]
        %v692 = vsel %vm676, %v397, %v691
        %693 = vst [vmem:[%s667 + $0x20] sm:$0x1] %v692
        %v694 = vld [vmem:[%s667 + $0x24] sm:$0xf]
        %v695 = vsel %vm670, %v404, %v694
        %696 = vst [vmem:[%s667 + $0x24] sm:$0xf] %v695
        %697 = vst.msk [vmem:[%s667 + $0x28] sm:$0xf] %vm256, %v413
        %v698 = vld [vmem:[%s667 + $0x2c] sm:$0x1]
        %v699 = vsel %vm676, %v414, %v698
        %700 = vst [vmem:[%s667 + $0x2c] sm:$0x1] %v699
        %v701 = vld [vmem:[%s667 + $0x30] sm:$0xf]
        %v702 = vsel %vm670, %v421, %v701
        %703 = vst [vmem:[%s667 + $0x30] sm:$0xf] %v702
        %704 = vst.msk [vmem:[%s667 + $0x34] sm:$0xf] %vm256, %v430
        %v705 = vld [vmem:[%s667 + $0x38] sm:$0x1]
        %v706 = vsel %vm676, %v431, %v705
        %707 = vst [vmem:[%s667 + $0x38] sm:$0x1] %v706
        %v708 = vld [vmem:[%s667 + $0x3c] sm:$0xf]
        %v709 = vsel %vm670, %v438, %v708
        %710 = vst [vmem:[%s667 + $0x3c] sm:$0xf] %v709
        %711 = vst.msk [vmem:[%s667 + $0x40] sm:$0xf] %vm256, %v447
        %v712 = vld [vmem:[%s667 + $0x44] sm:$0x1]
        %v713 = vsel %vm676, %v448, %v712
        %714 = vst [vmem:[%s667 + $0x44] sm:$0x1] %v713
        %v715 = vld [vmem:[%s667 + $0x48] sm:$0xf]
        %v716 = vsel %vm670, %v455, %v715
        %717 = vst [vmem:[%s667 + $0x48] sm:$0xf] %v716
        %718 = vst.msk [vmem:[%s667 + $0x4c] sm:$0xf] %vm256, %v464
        %v719 = vld [vmem:[%s667 + $0x50] sm:$0x1]
        %v720 = vsel %vm676, %v465, %v719
        %721 = vst [vmem:[%s667 + $0x50] sm:$0x1] %v720
        %v722 = vld [vmem:[%s667 + $0x54] sm:$0xf]
        %v723 = vsel %vm670, %v472, %v722
        %724 = vst [vmem:[%s667 + $0x54] sm:$0xf] %v723
        %725 = vst.msk [vmem:[%s667 + $0x58] sm:$0xf] %vm256, %v481
        %v726 = vld [vmem:[%s667 + $0x5c] sm:$0x1]
        %v727 = vsel %vm676, %v482, %v726
        %728 = vst [vmem:[%s667 + $0x5c] sm:$0x1] %v727
        %v729 = vld [vmem:[%s667 + $0x60] sm:$0xf]
        %v730 = vsel %vm670, %v489, %v729
        %731 = vst [vmem:[%s667 + $0x60] sm:$0xf] %v730
        %732 = vst.msk [vmem:[%s667 + $0x64] sm:$0xf] %vm256, %v498
        %v733 = vld [vmem:[%s667 + $0x68] sm:$0x1]
        %v734 = vsel %vm676, %v499, %v733
        %735 = vst [vmem:[%s667 + $0x68] sm:$0x1] %v734
        %v736 = vld [vmem:[%s667 + $0x6c] sm:$0xf]
        %v737 = vsel %vm670, %v506, %v736
        %738 = vst [vmem:[%s667 + $0x6c] sm:$0xf] %v737
        %739 = vst.msk [vmem:[%s667 + $0x70] sm:$0xf] %vm256, %v515
        %v740 = vld [vmem:[%s667 + $0x74] sm:$0x1]
        %v741 = vsel %vm676, %v516, %v740
        %742 = vst [vmem:[%s667 + $0x74] sm:$0x1] %v741
        %v743 = vld [vmem:[%s667 + $0x78] sm:$0xf]
        %v744 = vsel %vm670, %v523, %v743
        %745 = vst [vmem:[%s667 + $0x78] sm:$0xf] %v744
        %746 = vst.msk [vmem:[%s667 + $0x7c] sm:$0xf] %vm256, %v532
        %v747 = vld [vmem:[%s667 + $0x80] sm:$0x1]
        %v748 = vsel %vm676, %v533, %v747
        %749 = vst [vmem:[%s667 + $0x80] sm:$0x1] %v748
        %v750 = vld [vmem:[%s667 + $0x84] sm:$0xf]
        %v751 = vsel %vm670, %v540, %v750
        %752 = vst [vmem:[%s667 + $0x84] sm:$0xf] %v751
        %753 = vst.msk [vmem:[%s667 + $0x88] sm:$0xf] %vm256, %v549
        %v754 = vld [vmem:[%s667 + $0x8c] sm:$0x1]
        %v755 = vsel %vm676, %v550, %v754
        %756 = vst [vmem:[%s667 + $0x8c] sm:$0x1] %v755
        %v757 = vld [vmem:[%s667 + $0x90] sm:$0xf]
        %v758 = vsel %vm670, %v557, %v757
        %759 = vst [vmem:[%s667 + $0x90] sm:$0xf] %v758
        %760 = vst.msk [vmem:[%s667 + $0x94] sm:$0xf] %vm256, %v566
        %v761 = vld [vmem:[%s667 + $0x98] sm:$0x1]
        %v762 = vsel %vm676, %v567, %v761
        %763 = vst [vmem:[%s667 + $0x98] sm:$0x1] %v762
        %v764 = vld [vmem:[%s667 + $0x9c] sm:$0xf]
        %v765 = vsel %vm670, %v574, %v764
        %766 = vst [vmem:[%s667 + $0x9c] sm:$0xf] %v765
        %767 = vst.msk [vmem:[%s667 + $0xa0] sm:$0xf] %vm256, %v583
        %v768 = vld [vmem:[%s667 + $0xa4] sm:$0x1]
        %v769 = vsel %vm676, %v584, %v768
        %770 = vst [vmem:[%s667 + $0xa4] sm:$0x1] %v769
        %v771 = vld [vmem:[%s667 + $0xa8] sm:$0xf]
        %v772 = vsel %vm670, %v591, %v771
        %773 = vst [vmem:[%s667 + $0xa8] sm:$0xf] %v772
        %774 = vst.msk [vmem:[%s667 + $0xac] sm:$0xf] %vm256, %v600
        %v775 = vld [vmem:[%s667 + $0xb0] sm:$0x1]
        %v776 = vsel %vm676, %v601, %v775
        %777 = vst [vmem:[%s667 + $0xb0] sm:$0x1] %v776
        %v778 = vld [vmem:[%s667 + $0xb4] sm:$0xf]
        %v779 = vsel %vm670, %v608, %v778
        %780 = vst [vmem:[%s667 + $0xb4] sm:$0xf] %v779
        %781 = vst.msk [vmem:[%s667 + $0xb8] sm:$0xf] %vm256, %v617
        %v782 = vld [vmem:[%s667 + $0xbc] sm:$0x1]
        %v783 = vsel %vm676, %v618, %v782
        %784 = vst [vmem:[%s667 + $0xbc] sm:$0x1] %v783
        %v785 = vld [vmem:[#allocation2] sm:$0xf]
        %v786 = vld [vmem:[#allocation2 + $0x4] sm:$0xf]
        %v787 = vld [vmem:[#allocation2 + $0xc] sm:$0xf]
        %v788 = vld [vmem:[#allocation2 + $0x10] sm:$0xf]
        %v789 = vld [vmem:[#allocation2 + $0x18] sm:$0xf]
        %v790 = vld [vmem:[#allocation2 + $0x1c] sm:$0xf]
        %v791 = vld [vmem:[#allocation2 + $0x24] sm:$0xf]
        %v792 = vld [vmem:[#allocation2 + $0x28] sm:$0xf]
        %v793 = vld [vmem:[#allocation2 + $0x30] sm:$0xf]
        %v794 = vld [vmem:[#allocation2 + $0x34] sm:$0xf]
        %v795 = vld [vmem:[#allocation2 + $0x3c] sm:$0xf]
        %v796 = vld [vmem:[#allocation2 + $0x40] sm:$0xf]
        %v797 = vld [vmem:[#allocation2 + $0x48] sm:$0xf]
        %v798 = vld [vmem:[#allocation2 + $0x4c] sm:$0xf]
        %v799 = vld [vmem:[#allocation2 + $0x54] sm:$0xf]
        %v800 = vld [vmem:[#allocation2 + $0x58] sm:$0xf]
        %v801 = vld [vmem:[#allocation2 + $0x60] sm:$0xf]
        %v802 = vld [vmem:[#allocation2 + $0x64] sm:$0xf]
        %v803 = vld [vmem:[#allocation2 + $0x6c] sm:$0xf]
        %v804 = vld [vmem:[#allocation2 + $0x70] sm:$0xf]
        %v805 = vld [vmem:[#allocation2 + $0x78] sm:$0xf]
        %v806 = vld [vmem:[#allocation2 + $0x7c] sm:$0xf]
        %v807 = vld [vmem:[#allocation2 + $0x84] sm:$0xf]
        %v808 = vld [vmem:[#allocation2 + $0x88] sm:$0xf]
        %v809 = vld [vmem:[#allocation2 + $0x90] sm:$0xf]
        %v810 = vld [vmem:[#allocation2 + $0x94] sm:$0xf]
        %v811 = vld [vmem:[#allocation2 + $0x9c] sm:$0xf]
        %v812 = vld [vmem:[#allocation2 + $0xa0] sm:$0xf]
        %v813 = vld [vmem:[#allocation2 + $0xa8] sm:$0xf]
        %v814 = vld [vmem:[#allocation2 + $0xac] sm:$0xf]
        %v815 = vld [vmem:[#allocation2 + $0xb4] sm:$0xf]
        %v816 = vld [vmem:[#allocation2 + $0xb8] sm:$0xf]
        %817 = vst.msk [vmem:[#allocation3] sm:$0xf] %vm256, %v785
        %818 = vst.msk [vmem:[#allocation3 + $0xc] sm:$0xf] %vm256, %v786
        %819 = vst.msk [vmem:[#allocation3 + $0x18] sm:$0xf] %vm256, %v787
        %820 = vst.msk [vmem:[#allocation3 + $0x24] sm:$0xf] %vm256, %v788
        %821 = vst.msk [vmem:[#allocation3 + $0x30] sm:$0xf] %vm256, %v789
        %822 = vst.msk [vmem:[#allocation3 + $0x3c] sm:$0xf] %vm256, %v790
        %823 = vst.msk [vmem:[#allocation3 + $0x48] sm:$0xf] %vm256, %v791
        %824 = vst.msk [vmem:[#allocation3 + $0x54] sm:$0xf] %vm256, %v792
        %825 = vst.msk [vmem:[#allocation3 + $0x60] sm:$0xf] %vm256, %v793
        %826 = vst.msk [vmem:[#allocation3 + $0x6c] sm:$0xf] %vm256, %v794
        %827 = vst.msk [vmem:[#allocation3 + $0x78] sm:$0xf] %vm256, %v795
        %828 = vst.msk [vmem:[#allocation3 + $0x84] sm:$0xf] %vm256, %v796
        %829 = vst.msk [vmem:[#allocation3 + $0x90] sm:$0xf] %vm256, %v797
        %830 = vst.msk [vmem:[#allocation3 + $0x9c] sm:$0xf] %vm256, %v798
        %831 = vst.msk [vmem:[#allocation3 + $0xa8] sm:$0xf] %vm256, %v799
        %832 = vst.msk [vmem:[#allocation3 + $0xb4] sm:$0xf] %vm256, %v800
        %833 = vst.msk [vmem:[#allocation3 + $0xc0] sm:$0xf] %vm256, %v801
        %834 = vst.msk [vmem:[#allocation3 + $0xcc] sm:$0xf] %vm256, %v802
        %835 = vst.msk [vmem:[#allocation3 + $0xd8] sm:$0xf] %vm256, %v803
        %836 = vst.msk [vmem:[#allocation3 + $0xe4] sm:$0xf] %vm256, %v804
        %837 = vst.msk [vmem:[#allocation3 + $0xf0] sm:$0xf] %vm256, %v805
        %838 = vst.msk [vmem:[#allocation3 + $0xfc] sm:$0xf] %vm256, %v806
        %839 = vst.msk [vmem:[#allocation3 + $0x108] sm:$0xf] %vm256, %v807
        %840 = vst.msk [vmem:[#allocation3 + $0x114] sm:$0xf] %vm256, %v808
        %841 = vst.msk [vmem:[#allocation3 + $0x120] sm:$0xf] %vm256, %v809
        %842 = vst.msk [vmem:[#allocation3 + $0x12c] sm:$0xf] %vm256, %v810
        %843 = vst.msk [vmem:[#allocation3 + $0x138] sm:$0xf] %vm256, %v811
        %844 = vst.msk [vmem:[#allocation3 + $0x144] sm:$0xf] %vm256, %v812
        %845 = vst.msk [vmem:[#allocation3 + $0x150] sm:$0xf] %vm256, %v813
        %846 = vst.msk [vmem:[#allocation3 + $0x15c] sm:$0xf] %vm256, %v814
        %847 = vst.msk [vmem:[#allocation3 + $0x168] sm:$0xf] %vm256, %v815
        %848 = vst.msk [vmem:[#allocation3 + $0x174] sm:$0xf] %vm256, %v816
        %v849 = vld [vmem:[#allocation2] sm:$0xf]
        %v850 = vld [vmem:[#allocation2 + $0x4] sm:$0xf]
        %v851 = vld [vmem:[#allocation2 + $0x8] sm:$0x1]
        %v852 = vld [vmem:[#allocation2 + $0xc] sm:$0xf]
        %v853 = vld [vmem:[#allocation2 + $0x10] sm:$0xf]
        %v854 = vld [vmem:[#allocation2 + $0x14] sm:$0x1]
        %v855 = vld [vmem:[#allocation2 + $0x18] sm:$0xf]
        %v856 = vld [vmem:[#allocation2 + $0x1c] sm:$0xf]
        %v857 = vld [vmem:[#allocation2 + $0x20] sm:$0x1]
        %v858 = vld [vmem:[#allocation2 + $0x24] sm:$0xf]
        %v859 = vld [vmem:[#allocation2 + $0x28] sm:$0xf]
        %v860 = vld [vmem:[#allocation2 + $0x2c] sm:$0x1]
        %v861 = vld [vmem:[#allocation2 + $0x30] sm:$0xf]
        %v862 = vld [vmem:[#allocation2 + $0x34] sm:$0xf]
        %v863 = vld [vmem:[#allocation2 + $0x38] sm:$0x1]
        %v864 = vld [vmem:[#allocation2 + $0x3c] sm:$0xf]
        %v865 = vld [vmem:[#allocation2 + $0x40] sm:$0xf]
        %v866 = vld [vmem:[#allocation2 + $0x44] sm:$0x1]
        %v867 = vld [vmem:[#allocation2 + $0x48] sm:$0xf]
        %v868 = vld [vmem:[#allocation2 + $0x4c] sm:$0xf]
        %v869 = vld [vmem:[#allocation2 + $0x50] sm:$0x1]
        %v870 = vld [vmem:[#allocation2 + $0x54] sm:$0xf]
        %v871 = vld [vmem:[#allocation2 + $0x58] sm:$0xf]
        %v872 = vld [vmem:[#allocation2 + $0x5c] sm:$0x1]
        %v873 = vld [vmem:[#allocation2 + $0x60] sm:$0xf]
        %v874 = vld [vmem:[#allocation2 + $0x64] sm:$0xf]
        %v875 = vld [vmem:[#allocation2 + $0x68] sm:$0x1]
        %v876 = vld [vmem:[#allocation2 + $0x6c] sm:$0xf]
        %v877 = vld [vmem:[#allocation2 + $0x70] sm:$0xf]
        %v878 = vld [vmem:[#allocation2 + $0x74] sm:$0x1]
        %v879 = vld [vmem:[#allocation2 + $0x78] sm:$0xf]
        %v880 = vld [vmem:[#allocation2 + $0x7c] sm:$0xf]
        %v881 = vld [vmem:[#allocation2 + $0x80] sm:$0x1]
        %v882 = vld [vmem:[#allocation2 + $0x84] sm:$0xf]
        %v883 = vld [vmem:[#allocation2 + $0x88] sm:$0xf]
        %v884 = vld [vmem:[#allocation2 + $0x8c] sm:$0x1]
        %v885 = vld [vmem:[#allocation2 + $0x90] sm:$0xf]
        %v886 = vld [vmem:[#allocation2 + $0x94] sm:$0xf]
        %v887 = vld [vmem:[#allocation2 + $0x98] sm:$0x1]
        %v888 = vld [vmem:[#allocation2 + $0x9c] sm:$0xf]
        %v889 = vld [vmem:[#allocation2 + $0xa0] sm:$0xf]
        %v890 = vld [vmem:[#allocation2 + $0xa4] sm:$0x1]
        %v891 = vld [vmem:[#allocation2 + $0xa8] sm:$0xf]
        %v892 = vld [vmem:[#allocation2 + $0xac] sm:$0xf]
        %v893 = vld [vmem:[#allocation2 + $0xb0] sm:$0x1]
        %v894 = vld [vmem:[#allocation2 + $0xb4] sm:$0xf]
        %v895 = vld [vmem:[#allocation2 + $0xb8] sm:$0xf]
        %v896 = vld [vmem:[#allocation2 + $0xbc] sm:$0x1]
        %vm897 = vsmask.f32 3328
        %vm898 = vsmask.f32 7440
        %vm899 = vmor %vm897, %vm898
        %v901 = vshrl.u32 %v849, 16
        %v903 = vrot.slane %v901, 4
        %v904 = vshll.u32 %v849, 16
        %v906 = vrot.slane %v904, 5
        %v907 = vor.u32 %v903, %v906
        %v908 = vrot.slane %v907, 4
        %v910 = vshll.u32 %v850, 16
        %v912 = vrot.slane %v910, 5
        %v913 = vsel %vm899, %v908, %v912
        %v914 = vshrl.u32 %v850, 16
        %v916 = vrot.slane %v914, 4
        %v917 = vor.u32 %v916, %v912
        %v918 = vrot.slane %v917, 4
        %v920 = vshll.u32 %v851, 16
        %v922 = vrot.slane %v920, 5
        %v923 = vsel %vm899, %v918, %v922
        %v925 = vshrl.u32 %v852, 16
        %v927 = vrot.slane %v925, 4
        %v928 = vshll.u32 %v852, 16
        %v930 = vrot.slane %v928, 5
        %v931 = vor.u32 %v927, %v930
        %v932 = vrot.slane %v931, 4
        %v934 = vshll.u32 %v853, 16
        %v936 = vrot.slane %v934, 5
        %v937 = vsel %vm899, %v932, %v936
        %v938 = vshrl.u32 %v853, 16
        %v940 = vrot.slane %v938, 4
        %v941 = vor.u32 %v940, %v936
        %v942 = vrot.slane %v941, 4
        %v944 = vshll.u32 %v854, 16
        %v946 = vrot.slane %v944, 5
        %v947 = vsel %vm899, %v942, %v946
        %v949 = vshrl.u32 %v855, 16
        %v951 = vrot.slane %v949, 4
        %v952 = vshll.u32 %v855, 16
        %v954 = vrot.slane %v952, 5
        %v955 = vor.u32 %v951, %v954
        %v956 = vrot.slane %v955, 4
        %v958 = vshll.u32 %v856, 16
        %v960 = vrot.slane %v958, 5
        %v961 = vsel %vm899, %v956, %v960
        %v962 = vshrl.u32 %v856, 16
        %v964 = vrot.slane %v962, 4
        %v965 = vor.u32 %v964, %v960
        %v966 = vrot.slane %v965, 4
        %v968 = vshll.u32 %v857, 16
        %v970 = vrot.slane %v968, 5
        %v971 = vsel %vm899, %v966, %v970
        %v973 = vshrl.u32 %v858, 16
        %v975 = vrot.slane %v973, 4
        %v976 = vshll.u32 %v858, 16
        %v978 = vrot.slane %v976, 5
        %v979 = vor.u32 %v975, %v978
        %v980 = vrot.slane %v979, 4
        %v982 = vshll.u32 %v859, 16
        %v984 = vrot.slane %v982, 5
        %v985 = vsel %vm899, %v980, %v984
        %v986 = vshrl.u32 %v859, 16
        %v988 = vrot.slane %v986, 4
        %v989 = vor.u32 %v988, %v984
        %v990 = vrot.slane %v989, 4
        %v992 = vshll.u32 %v860, 16
        %v994 = vrot.slane %v992, 5
        %v995 = vsel %vm899, %v990, %v994
        %v997 = vshrl.u32 %v861, 16
        %v999 = vrot.slane %v997, 4
        %v1000 = vshll.u32 %v861, 16
        %v1002 = vrot.slane %v1000, 5
        %v1003 = vor.u32 %v999, %v1002
        %v1004 = vrot.slane %v1003, 4
        %v1006 = vshll.u32 %v862, 16
        %v1008 = vrot.slane %v1006, 5
        %v1009 = vsel %vm899, %v1004, %v1008
        %v1010 = vshrl.u32 %v862, 16
        %v1012 = vrot.slane %v1010, 4
        %v1013 = vor.u32 %v1012, %v1008
        %v1014 = vrot.slane %v1013, 4
        %v1016 = vshll.u32 %v863, 16
        %v1018 = vrot.slane %v1016, 5
        %v1019 = vsel %vm899, %v1014, %v1018
        %v1021 = vshrl.u32 %v864, 16
        %v1023 = vrot.slane %v1021, 4
        %v1024 = vshll.u32 %v864, 16
        %v1026 = vrot.slane %v1024, 5
        %v1027 = vor.u32 %v1023, %v1026
        %v1028 = vrot.slane %v1027, 4
        %v1030 = vshll.u32 %v865, 16
        %v1032 = vrot.slane %v1030, 5
        %v1033 = vsel %vm899, %v1028, %v1032
        %v1034 = vshrl.u32 %v865, 16
        %v1036 = vrot.slane %v1034, 4
        %v1037 = vor.u32 %v1036, %v1032
        %v1038 = vrot.slane %v1037, 4
        %v1040 = vshll.u32 %v866, 16
        %v1042 = vrot.slane %v1040, 5
        %v1043 = vsel %vm899, %v1038, %v1042
        %v1045 = vshrl.u32 %v867, 16
        %v1047 = vrot.slane %v1045, 4
        %v1048 = vshll.u32 %v867, 16
        %v1050 = vrot.slane %v1048, 5
        %v1051 = vor.u32 %v1047, %v1050
        %v1052 = vrot.slane %v1051, 4
        %v1054 = vshll.u32 %v868, 16
        %v1056 = vrot.slane %v1054, 5
        %v1057 = vsel %vm899, %v1052, %v1056
        %v1058 = vshrl.u32 %v868, 16
        %v1060 = vrot.slane %v1058, 4
        %v1061 = vor.u32 %v1060, %v1056
        %v1062 = vrot.slane %v1061, 4
        %v1064 = vshll.u32 %v869, 16
        %v1066 = vrot.slane %v1064, 5
        %v1067 = vsel %vm899, %v1062, %v1066
        %v1069 = vshrl.u32 %v870, 16
        %v1071 = vrot.slane %v1069, 4
        %v1072 = vshll.u32 %v870, 16
        %v1074 = vrot.slane %v1072, 5
        %v1075 = vor.u32 %v1071, %v1074
        %v1076 = vrot.slane %v1075, 4
        %v1078 = vshll.u32 %v871, 16
        %v1080 = vrot.slane %v1078, 5
        %v1081 = vsel %vm899, %v1076, %v1080
        %v1082 = vshrl.u32 %v871, 16
        %v1084 = vrot.slane %v1082, 4
        %v1085 = vor.u32 %v1084, %v1080
        %v1086 = vrot.slane %v1085, 4
        %v1088 = vshll.u32 %v872, 16
        %v1090 = vrot.slane %v1088, 5
        %v1091 = vsel %vm899, %v1086, %v1090
        %v1093 = vshrl.u32 %v873, 16
        %v1095 = vrot.slane %v1093, 4
        %v1096 = vshll.u32 %v873, 16
        %v1098 = vrot.slane %v1096, 5
        %v1099 = vor.u32 %v1095, %v1098
        %v1100 = vrot.slane %v1099, 4
        %v1102 = vshll.u32 %v874, 16
        %v1104 = vrot.slane %v1102, 5
        %v1105 = vsel %vm899, %v1100, %v1104
        %v1106 = vshrl.u32 %v874, 16
        %v1108 = vrot.slane %v1106, 4
        %v1109 = vor.u32 %v1108, %v1104
        %v1110 = vrot.slane %v1109, 4
        %v1112 = vshll.u32 %v875, 16
        %v1114 = vrot.slane %v1112, 5
        %v1115 = vsel %vm899, %v1110, %v1114
        %v1117 = vshrl.u32 %v876, 16
        %v1119 = vrot.slane %v1117, 4
        %v1120 = vshll.u32 %v876, 16
        %v1122 = vrot.slane %v1120, 5
        %v1123 = vor.u32 %v1119, %v1122
        %v1124 = vrot.slane %v1123, 4
        %v1126 = vshll.u32 %v877, 16
        %v1128 = vrot.slane %v1126, 5
        %v1129 = vsel %vm899, %v1124, %v1128
        %v1130 = vshrl.u32 %v877, 16
        %v1132 = vrot.slane %v1130, 4
        %v1133 = vor.u32 %v1132, %v1128
        %v1134 = vrot.slane %v1133, 4
        %v1136 = vshll.u32 %v878, 16
        %v1138 = vrot.slane %v1136, 5
        %v1139 = vsel %vm899, %v1134, %v1138
        %v1141 = vshrl.u32 %v879, 16
        %v1143 = vrot.slane %v1141, 4
        %v1144 = vshll.u32 %v879, 16
        %v1146 = vrot.slane %v1144, 5
        %v1147 = vor.u32 %v1143, %v1146
        %v1148 = vrot.slane %v1147, 4
        %v1150 = vshll.u32 %v880, 16
        %v1152 = vrot.slane %v1150, 5
        %v1153 = vsel %vm899, %v1148, %v1152
        %v1154 = vshrl.u32 %v880, 16
        %v1156 = vrot.slane %v1154, 4
        %v1157 = vor.u32 %v1156, %v1152
        %v1158 = vrot.slane %v1157, 4
        %v1160 = vshll.u32 %v881, 16
        %v1162 = vrot.slane %v1160, 5
        %v1163 = vsel %vm899, %v1158, %v1162
        %v1165 = vshrl.u32 %v882, 16
        %v1167 = vrot.slane %v1165, 4
        %v1168 = vshll.u32 %v882, 16
        %v1170 = vrot.slane %v1168, 5
        %v1171 = vor.u32 %v1167, %v1170
        %v1172 = vrot.slane %v1171, 4
        %v1174 = vshll.u32 %v883, 16
        %v1176 = vrot.slane %v1174, 5
        %v1177 = vsel %vm899, %v1172, %v1176
        %v1178 = vshrl.u32 %v883, 16
        %v1180 = vrot.slane %v1178, 4
        %v1181 = vor.u32 %v1180, %v1176
        %v1182 = vrot.slane %v1181, 4
        %v1184 = vshll.u32 %v884, 16
        %v1186 = vrot.slane %v1184, 5
        %v1187 = vsel %vm899, %v1182, %v1186
        %v1189 = vshrl.u32 %v885, 16
        %v1191 = vrot.slane %v1189, 4
        %v1192 = vshll.u32 %v885, 16
        %v1194 = vrot.slane %v1192, 5
        %v1195 = vor.u32 %v1191, %v1194
        %v1196 = vrot.slane %v1195, 4
        %v1198 = vshll.u32 %v886, 16
        %v1200 = vrot.slane %v1198, 5
        %v1201 = vsel %vm899, %v1196, %v1200
        %v1202 = vshrl.u32 %v886, 16
        %v1204 = vrot.slane %v1202, 4
        %v1205 = vor.u32 %v1204, %v1200
        %v1206 = vrot.slane %v1205, 4
        %v1208 = vshll.u32 %v887, 16
        %v1210 = vrot.slane %v1208, 5
        %v1211 = vsel %vm899, %v1206, %v1210
        %v1213 = vshrl.u32 %v888, 16
        %v1215 = vrot.slane %v1213, 4
        %v1216 = vshll.u32 %v888, 16
        %v1218 = vrot.slane %v1216, 5
        %v1219 = vor.u32 %v1215, %v1218
        %v1220 = vrot.slane %v1219, 4
        %v1222 = vshll.u32 %v889, 16
        %v1224 = vrot.slane %v1222, 5
        %v1225 = vsel %vm899, %v1220, %v1224
        %v1226 = vshrl.u32 %v889, 16
        %v1228 = vrot.slane %v1226, 4
        %v1229 = vor.u32 %v1228, %v1224
        %v1230 = vrot.slane %v1229, 4
        %v1232 = vshll.u32 %v890, 16
        %v1234 = vrot.slane %v1232, 5
        %v1235 = vsel %vm899, %v1230, %v1234
        %v1237 = vshrl.u32 %v891, 16
        %v1239 = vrot.slane %v1237, 4
        %v1240 = vshll.u32 %v891, 16
        %v1242 = vrot.slane %v1240, 5
        %v1243 = vor.u32 %v1239, %v1242
        %v1244 = vrot.slane %v1243, 4
        %v1246 = vshll.u32 %v892, 16
        %v1248 = vrot.slane %v1246, 5
        %v1249 = vsel %vm899, %v1244, %v1248
        %v1250 = vshrl.u32 %v892, 16
        %v1252 = vrot.slane %v1250, 4
        %v1253 = vor.u32 %v1252, %v1248
        %v1254 = vrot.slane %v1253, 4
        %v1256 = vshll.u32 %v893, 16
        %v1258 = vrot.slane %v1256, 5
        %v1259 = vsel %vm899, %v1254, %v1258
        %v1261 = vshrl.u32 %v894, 16
        %v1263 = vrot.slane %v1261, 4
        %v1264 = vshll.u32 %v894, 16
        %v1266 = vrot.slane %v1264, 5
        %v1267 = vor.u32 %v1263, %v1266
        %v1268 = vrot.slane %v1267, 4
        %v1270 = vshll.u32 %v895, 16
        %v1272 = vrot.slane %v1270, 5
        %v1273 = vsel %vm899, %v1268, %v1272
        %v1274 = vshrl.u32 %v895, 16
        %v1276 = vrot.slane %v1274, 4
        %v1277 = vor.u32 %v1276, %v1272
        %v1278 = vrot.slane %v1277, 4
        %v1280 = vshll.u32 %v896, 16
        %v1282 = vrot.slane %v1280, 5
        %v1283 = vsel %vm899, %v1278, %v1282
        %1284 = vrot.lane.b32.xlu0 %v913, 32
        %v1285 = vpop.permute.xlu0 %1284
        %1286 = vrot.lane.b32.xlu0 %v923, 32
        %v1287 = vpop.permute.xlu0 %1286
        %1288 = vrot.lane.b32.xlu0 %v937, 32
        %v1289 = vpop.permute.xlu0 %1288
        %1290 = vrot.lane.b32.xlu0 %v947, 32
        %v1291 = vpop.permute.xlu0 %1290
        %1292 = vrot.lane.b32.xlu0 %v961, 32
        %v1293 = vpop.permute.xlu0 %1292
        %1294 = vrot.lane.b32.xlu0 %v971, 32
        %v1295 = vpop.permute.xlu0 %1294
        %1296 = vrot.lane.b32.xlu0 %v985, 32
        %v1297 = vpop.permute.xlu0 %1296
        %1298 = vrot.lane.b32.xlu0 %v995, 32
        %v1299 = vpop.permute.xlu0 %1298
        %1300 = vrot.lane.b32.xlu0 %v1009, 32
        %v1301 = vpop.permute.xlu0 %1300
        %1302 = vrot.lane.b32.xlu0 %v1019, 32
        %v1303 = vpop.permute.xlu0 %1302
        %1304 = vrot.lane.b32.xlu0 %v1033, 32
        %v1305 = vpop.permute.xlu0 %1304
        %1306 = vrot.lane.b32.xlu0 %v1043, 32
        %v1307 = vpop.permute.xlu0 %1306
        %1308 = vrot.lane.b32.xlu0 %v1057, 32
        %v1309 = vpop.permute.xlu0 %1308
        %1310 = vrot.lane.b32.xlu0 %v1067, 32
        %v1311 = vpop.permute.xlu0 %1310
        %1312 = vrot.lane.b32.xlu0 %v1081, 32
        %v1313 = vpop.permute.xlu0 %1312
        %1314 = vrot.lane.b32.xlu0 %v1091, 32
        %v1315 = vpop.permute.xlu0 %1314
        %1316 = vrot.lane.b32.xlu0 %v1105, 32
        %v1317 = vpop.permute.xlu0 %1316
        %1318 = vrot.lane.b32.xlu0 %v1115, 32
        %v1319 = vpop.permute.xlu0 %1318
        %1320 = vrot.lane.b32.xlu0 %v1129, 32
        %v1321 = vpop.permute.xlu0 %1320
        %1322 = vrot.lane.b32.xlu0 %v1139, 32
        %v1323 = vpop.permute.xlu0 %1322
        %1324 = vrot.lane.b32.xlu0 %v1153, 32
        %v1325 = vpop.permute.xlu0 %1324
        %1326 = vrot.lane.b32.xlu0 %v1163, 32
        %v1327 = vpop.permute.xlu0 %1326
        %1328 = vrot.lane.b32.xlu0 %v1177, 32
        %v1329 = vpop.permute.xlu0 %1328
        %1330 = vrot.lane.b32.xlu0 %v1187, 32
        %v1331 = vpop.permute.xlu0 %1330
        %1332 = vrot.lane.b32.xlu0 %v1201, 32
        %v1333 = vpop.permute.xlu0 %1332
        %1334 = vrot.lane.b32.xlu0 %v1211, 32
        %v1335 = vpop.permute.xlu0 %1334
        %1336 = vrot.lane.b32.xlu0 %v1225, 32
        %v1337 = vpop.permute.xlu0 %1336
        %1338 = vrot.lane.b32.xlu0 %v1235, 32
        %v1339 = vpop.permute.xlu0 %1338
        %1340 = vrot.lane.b32.xlu0 %v1249, 32
        %v1341 = vpop.permute.xlu0 %1340
        %1342 = vrot.lane.b32.xlu0 %v1259, 32
        %v1343 = vpop.permute.xlu0 %1342
        %1344 = vrot.lane.b32.xlu0 %v1273, 32
        %v1345 = vpop.permute.xlu0 %1344
        %1346 = vrot.lane.b32.xlu0 %v1283, 32
        %v1347 = vpop.permute.xlu0 %1346
        %vm1380 = vcmask 519424
        %1381 = vst.msk [vmem:[#allocation3] sm:$0xf] %vm1380, %v1285
        %1382 = vst.msk [vmem:[#allocation3 + $0xc] sm:$0xf] %vm1380, %v1287
        %1383 = vst.msk [vmem:[#allocation3 + $0x18] sm:$0xf] %vm1380, %v1289
        %1384 = vst.msk [vmem:[#allocation3 + $0x24] sm:$0xf] %vm1380, %v1291
        %1385 = vst.msk [vmem:[#allocation3 + $0x30] sm:$0xf] %vm1380, %v1293
        %1386 = vst.msk [vmem:[#allocation3 + $0x3c] sm:$0xf] %vm1380, %v1295
        %1387 = vst.msk [vmem:[#allocation3 + $0x48] sm:$0xf] %vm1380, %v1297
        %1388 = vst.msk [vmem:[#allocation3 + $0x54] sm:$0xf] %vm1380, %v1299
        %1389 = vst.msk [vmem:[#allocation3 + $0x60] sm:$0xf] %vm1380, %v1301
        %1390 = vst.msk [vmem:[#allocation3 + $0x6c] sm:$0xf] %vm1380, %v1303
        %1391 = vst.msk [vmem:[#allocation3 + $0x78] sm:$0xf] %vm1380, %v1305
        %1392 = vst.msk [vmem:[#allocation3 + $0x84] sm:$0xf] %vm1380, %v1307
        %1393 = vst.msk [vmem:[#allocation3 + $0x90] sm:$0xf] %vm1380, %v1309
        %1394 = vst.msk [vmem:[#allocation3 + $0x9c] sm:$0xf] %vm1380, %v1311
        %1395 = vst.msk [vmem:[#allocation3 + $0xa8] sm:$0xf] %vm1380, %v1313
        %1396 = vst.msk [vmem:[#allocation3 + $0xb4] sm:$0xf] %vm1380, %v1315
        %1397 = vst.msk [vmem:[#allocation3 + $0xc0] sm:$0xf] %vm1380, %v1317
        %1398 = vst.msk [vmem:[#allocation3 + $0xcc] sm:$0xf] %vm1380, %v1319
        %1399 = vst.msk [vmem:[#allocation3 + $0xd8] sm:$0xf] %vm1380, %v1321
        %1400 = vst.msk [vmem:[#allocation3 + $0xe4] sm:$0xf] %vm1380, %v1323
        %1401 = vst.msk [vmem:[#allocation3 + $0xf0] sm:$0xf] %vm1380, %v1325
        %1402 = vst.msk [vmem:[#allocation3 + $0xfc] sm:$0xf] %vm1380, %v1327
        %1403 = vst.msk [vmem:[#allocation3 + $0x108] sm:$0xf] %vm1380, %v1329
        %1404 = vst.msk [vmem:[#allocation3 + $0x114] sm:$0xf] %vm1380, %v1331
        %1405 = vst.msk [vmem:[#allocation3 + $0x120] sm:$0xf] %vm1380, %v1333
        %1406 = vst.msk [vmem:[#allocation3 + $0x12c] sm:$0xf] %vm1380, %v1335
        %1407 = vst.msk [vmem:[#allocation3 + $0x138] sm:$0xf] %vm1380, %v1337
        %1408 = vst.msk [vmem:[#allocation3 + $0x144] sm:$0xf] %vm1380, %v1339
        %1409 = vst.msk [vmem:[#allocation3 + $0x150] sm:$0xf] %vm1380, %v1341
        %1410 = vst.msk [vmem:[#allocation3 + $0x15c] sm:$0xf] %vm1380, %v1343
        %1411 = vst.msk [vmem:[#allocation3 + $0x168] sm:$0xf] %vm1380, %v1345
        %1412 = vst.msk [vmem:[#allocation3 + $0x174] sm:$0xf] %vm1380, %v1347
        %v1413 = vld [vmem:[#allocation2] sm:$0xe]
        %v1414 = vld [vmem:[#allocation2 + $0x4] sm:$0xf]
        %v1415 = vld [vmem:[#allocation2 + $0x8] sm:$0x1]
        %v1416 = vld [vmem:[#allocation2 + $0xc] sm:$0xe]
        %v1417 = vld [vmem:[#allocation2 + $0x10] sm:$0xf]
        %v1418 = vld [vmem:[#allocation2 + $0x14] sm:$0x1]
        %v1419 = vld [vmem:[#allocation2 + $0x18] sm:$0xe]
        %v1420 = vld [vmem:[#allocation2 + $0x1c] sm:$0xf]
        %v1421 = vld [vmem:[#allocation2 + $0x20] sm:$0x1]
        %v1422 = vld [vmem:[#allocation2 + $0x24] sm:$0xe]
        %v1423 = vld [vmem:[#allocation2 + $0x28] sm:$0xf]
        %v1424 = vld [vmem:[#allocation2 + $0x2c] sm:$0x1]
        %v1425 = vld [vmem:[#allocation2 + $0x30] sm:$0xe]
        %v1426 = vld [vmem:[#allocation2 + $0x34] sm:$0xf]
        %v1427 = vld [vmem:[#allocation2 + $0x38] sm:$0x1]
        %v1428 = vld [vmem:[#allocation2 + $0x3c] sm:$0xe]
        %v1429 = vld [vmem:[#allocation2 + $0x40] sm:$0xf]
        %v1430 = vld [vmem:[#allocation2 + $0x44] sm:$0x1]
        %v1431 = vld [vmem:[#allocation2 + $0x48] sm:$0xe]
        %v1432 = vld [vmem:[#allocation2 + $0x4c] sm:$0xf]
        %v1433 = vld [vmem:[#allocation2 + $0x50] sm:$0x1]
        %v1434 = vld [vmem:[#allocation2 + $0x54] sm:$0xe]
        %v1435 = vld [vmem:[#allocation2 + $0x58] sm:$0xf]
        %v1436 = vld [vmem:[#allocation2 + $0x5c] sm:$0x1]
        %v1437 = vld [vmem:[#allocation2 + $0x60] sm:$0xe]
        %v1438 = vld [vmem:[#allocation2 + $0x64] sm:$0xf]
        %v1439 = vld [vmem:[#allocation2 + $0x68] sm:$0x1]
        %v1440 = vld [vmem:[#allocation2 + $0x6c] sm:$0xe]
        %v1441 = vld [vmem:[#allocation2 + $0x70] sm:$0xf]
        %v1442 = vld [vmem:[#allocation2 + $0x74] sm:$0x1]
        %v1443 = vld [vmem:[#allocation2 + $0x78] sm:$0xe]
        %v1444 = vld [vmem:[#allocation2 + $0x7c] sm:$0xf]
        %v1445 = vld [vmem:[#allocation2 + $0x80] sm:$0x1]
        %v1446 = vld [vmem:[#allocation2 + $0x84] sm:$0xe]
        %v1447 = vld [vmem:[#allocation2 + $0x88] sm:$0xf]
        %v1448 = vld [vmem:[#allocation2 + $0x8c] sm:$0x1]
        %v1449 = vld [vmem:[#allocation2 + $0x90] sm:$0xe]
        %v1450 = vld [vmem:[#allocation2 + $0x94] sm:$0xf]
        %v1451 = vld [vmem:[#allocation2 + $0x98] sm:$0x1]
        %v1452 = vld [vmem:[#allocation2 + $0x9c] sm:$0xe]
        %v1453 = vld [vmem:[#allocation2 + $0xa0] sm:$0xf]
        %v1454 = vld [vmem:[#allocation2 + $0xa4] sm:$0x1]
        %v1455 = vld [vmem:[#allocation2 + $0xa8] sm:$0xe]
        %v1456 = vld [vmem:[#allocation2 + $0xac] sm:$0xf]
        %v1457 = vld [vmem:[#allocation2 + $0xb0] sm:$0x1]
        %v1458 = vld [vmem:[#allocation2 + $0xb4] sm:$0xe]
        %v1459 = vld [vmem:[#allocation2 + $0xb8] sm:$0xf]
        %v1460 = vld [vmem:[#allocation2 + $0xbc] sm:$0x1]
        %vm1509 = vcmask 1042432
        %vm1510 = vcmask 1046532
        %vm1511 = vmor %vm1509, %vm1510
        %v1512 = vrot.slane %v1413, 5
        %v1513 = vrot.slane %v1512, 4
        %v1514 = vrot.slane %v1414, 5
        %v1515 = vsel %vm1511, %v1513, %v1514
        %v1516 = vrot.slane %v1514, 4
        %v1517 = vrot.slane %v1415, 5
        %v1518 = vsel %vm1511, %v1516, %v1517
        %v1519 = vrot.slane %v1416, 5
        %v1520 = vrot.slane %v1519, 4
        %v1521 = vrot.slane %v1417, 5
        %v1522 = vsel %vm1511, %v1520, %v1521
        %v1523 = vrot.slane %v1521, 4
        %v1524 = vrot.slane %v1418, 5
        %v1525 = vsel %vm1511, %v1523, %v1524
        %v1526 = vrot.slane %v1419, 5
        %v1527 = vrot.slane %v1526, 4
        %v1528 = vrot.slane %v1420, 5
        %v1529 = vsel %vm1511, %v1527, %v1528
        %v1530 = vrot.slane %v1528, 4
        %v1531 = vrot.slane %v1421, 5
        %v1532 = vsel %vm1511, %v1530, %v1531
        %v1533 = vrot.slane %v1422, 5
        %v1534 = vrot.slane %v1533, 4
        %v1535 = vrot.slane %v1423, 5
        %v1536 = vsel %vm1511, %v1534, %v1535
        %v1537 = vrot.slane %v1535, 4
        %v1538 = vrot.slane %v1424, 5
        %v1539 = vsel %vm1511, %v1537, %v1538
        %v1540 = vrot.slane %v1425, 5
        %v1541 = vrot.slane %v1540, 4
        %v1542 = vrot.slane %v1426, 5
        %v1543 = vsel %vm1511, %v1541, %v1542
        %v1544 = vrot.slane %v1542, 4
        %v1545 = vrot.slane %v1427, 5
        %v1546 = vsel %vm1511, %v1544, %v1545
        %v1547 = vrot.slane %v1428, 5
        %v1548 = vrot.slane %v1547, 4
        %v1549 = vrot.slane %v1429, 5
        %v1550 = vsel %vm1511, %v1548, %v1549
        %v1551 = vrot.slane %v1549, 4
        %v1552 = vrot.slane %v1430, 5
        %v1553 = vsel %vm1511, %v1551, %v1552
        %v1554 = vrot.slane %v1431, 5
        %v1555 = vrot.slane %v1554, 4
        %v1556 = vrot.slane %v1432, 5
        %v1557 = vsel %vm1511, %v1555, %v1556
        %v1558 = vrot.slane %v1556, 4
        %v1559 = vrot.slane %v1433, 5
        %v1560 = vsel %vm1511, %v1558, %v1559
        %v1561 = vrot.slane %v1434, 5
        %v1562 = vrot.slane %v1561, 4
        %v1563 = vrot.slane %v1435, 5
        %v1564 = vsel %vm1511, %v1562, %v1563
        %v1565 = vrot.slane %v1563, 4
        %v1566 = vrot.slane %v1436, 5
        %v1567 = vsel %vm1511, %v1565, %v1566
        %v1568 = vrot.slane %v1437, 5
        %v1569 = vrot.slane %v1568, 4
        %v1570 = vrot.slane %v1438, 5
        %v1571 = vsel %vm1511, %v1569, %v1570
        %v1572 = vrot.slane %v1570, 4
        %v1573 = vrot.slane %v1439, 5
        %v1574 = vsel %vm1511, %v1572, %v1573
        %v1575 = vrot.slane %v1440, 5
        %v1576 = vrot.slane %v1575, 4
        %v1577 = vrot.slane %v1441, 5
        %v1578 = vsel %vm1511, %v1576, %v1577
        %v1579 = vrot.slane %v1577, 4
        %v1580 = vrot.slane %v1442, 5
        %v1581 = vsel %vm1511, %v1579, %v1580
        %v1582 = vrot.slane %v1443, 5
        %v1583 = vrot.slane %v1582, 4
        %v1584 = vrot.slane %v1444, 5
        %v1585 = vsel %vm1511, %v1583, %v1584
        %v1586 = vrot.slane %v1584, 4
        %v1587 = vrot.slane %v1445, 5
        %v1588 = vsel %vm1511, %v1586, %v1587
        %v1589 = vrot.slane %v1446, 5
        %v1590 = vrot.slane %v1589, 4
        %v1591 = vrot.slane %v1447, 5
        %v1592 = vsel %vm1511, %v1590, %v1591
        %v1593 = vrot.slane %v1591, 4
        %v1594 = vrot.slane %v1448, 5
        %v1595 = vsel %vm1511, %v1593, %v1594
        %v1596 = vrot.slane %v1449, 5
        %v1597 = vrot.slane %v1596, 4
        %v1598 = vrot.slane %v1450, 5
        %v1599 = vsel %vm1511, %v1597, %v1598
        %v1600 = vrot.slane %v1598, 4
        %v1601 = vrot.slane %v1451, 5
        %v1602 = vsel %vm1511, %v1600, %v1601
        %v1603 = vrot.slane %v1452, 5
        %v1604 = vrot.slane %v1603, 4
        %v1605 = vrot.slane %v1453, 5
        %v1606 = vsel %vm1511, %v1604, %v1605
        %v1607 = vrot.slane %v1605, 4
        %v1608 = vrot.slane %v1454, 5
        %v1609 = vsel %vm1511, %v1607, %v1608
        %v1610 = vrot.slane %v1455, 5
        %v1611 = vrot.slane %v1610, 4
        %v1612 = vrot.slane %v1456, 5
        %v1613 = vsel %vm1511, %v1611, %v1612
        %v1614 = vrot.slane %v1612, 4
        %v1615 = vrot.slane %v1457, 5
        %v1616 = vsel %vm1511, %v1614, %v1615
        %v1617 = vrot.slane %v1458, 5
        %v1618 = vrot.slane %v1617, 4
        %v1619 = vrot.slane %v1459, 5
        %v1620 = vsel %vm1511, %v1618, %v1619
        %v1621 = vrot.slane %v1619, 4
        %v1622 = vrot.slane %v1460, 5
        %v1623 = vsel %vm1511, %v1621, %v1622
        %1624 = vrot.lane.b32.xlu0 %v1515, 64
        %v1625 = vpop.permute.xlu0 %1624
        %1626 = vrot.lane.b32.xlu0 %v1518, 64
        %v1627 = vpop.permute.xlu0 %1626
        %1628 = vrot.lane.b32.xlu0 %v1522, 64
        %v1629 = vpop.permute.xlu0 %1628
        %1630 = vrot.lane.b32.xlu0 %v1525, 64
        %v1631 = vpop.permute.xlu0 %1630
        %1632 = vrot.lane.b32.xlu0 %v1529, 64
        %v1633 = vpop.permute.xlu0 %1632
        %1634 = vrot.lane.b32.xlu0 %v1532, 64
        %v1635 = vpop.permute.xlu0 %1634
        %1636 = vrot.lane.b32.xlu0 %v1536, 64
        %v1637 = vpop.permute.xlu0 %1636
        %1638 = vrot.lane.b32.xlu0 %v1539, 64
        %v1639 = vpop.permute.xlu0 %1638
        %1640 = vrot.lane.b32.xlu0 %v1543, 64
        %v1641 = vpop.permute.xlu0 %1640
        %1642 = vrot.lane.b32.xlu0 %v1546, 64
        %v1643 = vpop.permute.xlu0 %1642
        %1644 = vrot.lane.b32.xlu0 %v1550, 64
        %v1645 = vpop.permute.xlu0 %1644
        %1646 = vrot.lane.b32.xlu0 %v1553, 64
        %v1647 = vpop.permute.xlu0 %1646
        %1648 = vrot.lane.b32.xlu0 %v1557, 64
        %v1649 = vpop.permute.xlu0 %1648
        %1650 = vrot.lane.b32.xlu0 %v1560, 64
        %v1651 = vpop.permute.xlu0 %1650
        %1652 = vrot.lane.b32.xlu0 %v1564, 64
        %v1653 = vpop.permute.xlu0 %1652
        %1654 = vrot.lane.b32.xlu0 %v1567, 64
        %v1655 = vpop.permute.xlu0 %1654
        %1656 = vrot.lane.b32.xlu0 %v1571, 64
        %v1657 = vpop.permute.xlu0 %1656
        %1658 = vrot.lane.b32.xlu0 %v1574, 64
        %v1659 = vpop.permute.xlu0 %1658
        %1660 = vrot.lane.b32.xlu0 %v1578, 64
        %v1661 = vpop.permute.xlu0 %1660
        %1662 = vrot.lane.b32.xlu0 %v1581, 64
        %v1663 = vpop.permute.xlu0 %1662
        %1664 = vrot.lane.b32.xlu0 %v1585, 64
        %v1665 = vpop.permute.xlu0 %1664
        %1666 = vrot.lane.b32.xlu0 %v1588, 64
        %v1667 = vpop.permute.xlu0 %1666
        %1668 = vrot.lane.b32.xlu0 %v1592, 64
        %v1669 = vpop.permute.xlu0 %1668
        %1670 = vrot.lane.b32.xlu0 %v1595, 64
        %v1671 = vpop.permute.xlu0 %1670
        %1672 = vrot.lane.b32.xlu0 %v1599, 64
        %v1673 = vpop.permute.xlu0 %1672
        %1674 = vrot.lane.b32.xlu0 %v1602, 64
        %v1675 = vpop.permute.xlu0 %1674
        %1676 = vrot.lane.b32.xlu0 %v1606, 64
        %v1677 = vpop.permute.xlu0 %1676
        %1678 = vrot.lane.b32.xlu0 %v1609, 64
        %v1679 = vpop.permute.xlu0 %1678
        %1680 = vrot.lane.b32.xlu0 %v1613, 64
        %v1681 = vpop.permute.xlu0 %1680
        %1682 = vrot.lane.b32.xlu0 %v1616, 64
        %v1683 = vpop.permute.xlu0 %1682
        %1684 = vrot.lane.b32.xlu0 %v1620, 64
        %v1685 = vpop.permute.xlu0 %1684
        %1686 = vrot.lane.b32.xlu0 %v1623, 64
        %v1687 = vpop.permute.xlu0 %1686
        %vm1720 = vcmask 781824
        %1721 = vst.msk [vmem:[#allocation3] sm:$0xf] %vm1720, %v1625
        %1722 = vst.msk [vmem:[#allocation3 + $0xc] sm:$0xf] %vm1720, %v1627
        %1723 = vst.msk [vmem:[#allocation3 + $0x18] sm:$0xf] %vm1720, %v1629
        %1724 = vst.msk [vmem:[#allocation3 + $0x24] sm:$0xf] %vm1720, %v1631
        %1725 = vst.msk [vmem:[#allocation3 + $0x30] sm:$0xf] %vm1720, %v1633
        %1726 = vst.msk [vmem:[#allocation3 + $0x3c] sm:$0xf] %vm1720, %v1635
        %1727 = vst.msk [vmem:[#allocation3 + $0x48] sm:$0xf] %vm1720, %v1637
        %1728 = vst.msk [vmem:[#allocation3 + $0x54] sm:$0xf] %vm1720, %v1639
        %1729 = vst.msk [vmem:[#allocation3 + $0x60] sm:$0xf] %vm1720, %v1641
        %1730 = vst.msk [vmem:[#allocation3 + $0x6c] sm:$0xf] %vm1720, %v1643
        %1731 = vst.msk [vmem:[#allocation3 + $0x78] sm:$0xf] %vm1720, %v1645
        %1732 = vst.msk [vmem:[#allocation3 + $0x84] sm:$0xf] %vm1720, %v1647
        %1733 = vst.msk [vmem:[#allocation3 + $0x90] sm:$0xf] %vm1720, %v1649
        %1734 = vst.msk [vmem:[#allocation3 + $0x9c] sm:$0xf] %vm1720, %v1651
        %1735 = vst.msk [vmem:[#allocation3 + $0xa8] sm:$0xf] %vm1720, %v1653
        %1736 = vst.msk [vmem:[#allocation3 + $0xb4] sm:$0xf] %vm1720, %v1655
        %1737 = vst.msk [vmem:[#allocation3 + $0xc0] sm:$0xf] %vm1720, %v1657
        %1738 = vst.msk [vmem:[#allocation3 + $0xcc] sm:$0xf] %vm1720, %v1659
        %1739 = vst.msk [vmem:[#allocation3 + $0xd8] sm:$0xf] %vm1720, %v1661
        %1740 = vst.msk [vmem:[#allocation3 + $0xe4] sm:$0xf] %vm1720, %v1663
        %1741 = vst.msk [vmem:[#allocation3 + $0xf0] sm:$0xf] %vm1720, %v1665
        %1742 = vst.msk [vmem:[#allocation3 + $0xfc] sm:$0xf] %vm1720, %v1667
        %1743 = vst.msk [vmem:[#allocation3 + $0x108] sm:$0xf] %vm1720, %v1669
        %1744 = vst.msk [vmem:[#allocation3 + $0x114] sm:$0xf] %vm1720, %v1671
        %1745 = vst.msk [vmem:[#allocation3 + $0x120] sm:$0xf] %vm1720, %v1673
        %1746 = vst.msk [vmem:[#allocation3 + $0x12c] sm:$0xf] %vm1720, %v1675
        %1747 = vst.msk [vmem:[#allocation3 + $0x138] sm:$0xf] %vm1720, %v1677
        %1748 = vst.msk [vmem:[#allocation3 + $0x144] sm:$0xf] %vm1720, %v1679
        %1749 = vst.msk [vmem:[#allocation3 + $0x150] sm:$0xf] %vm1720, %v1681
        %1750 = vst.msk [vmem:[#allocation3 + $0x15c] sm:$0xf] %vm1720, %v1683
        %1751 = vst.msk [vmem:[#allocation3 + $0x168] sm:$0xf] %vm1720, %v1685
        %1752 = vst.msk [vmem:[#allocation3 + $0x174] sm:$0xf] %vm1720, %v1687
        %v1753 = vld [vmem:[%s667] sm:$0xf]
        %v1754 = vld [vmem:[%s667 + $0x4] sm:$0xf]
        %v1755 = vld [vmem:[%s667 + $0xc] sm:$0xf]
        %v1756 = vld [vmem:[%s667 + $0x10] sm:$0xf]
        %v1757 = vld [vmem:[%s667 + $0x18] sm:$0xf]
        %v1758 = vld [vmem:[%s667 + $0x1c] sm:$0xf]
        %v1759 = vld [vmem:[%s667 + $0x24] sm:$0xf]
        %v1760 = vld [vmem:[%s667 + $0x28] sm:$0xf]
        %v1761 = vld [vmem:[%s667 + $0x30] sm:$0xf]
        %v1762 = vld [vmem:[%s667 + $0x34] sm:$0xf]
        %v1763 = vld [vmem:[%s667 + $0x3c] sm:$0xf]
        %v1764 = vld [vmem:[%s667 + $0x40] sm:$0xf]
        %v1765 = vld [vmem:[%s667 + $0x48] sm:$0xf]
        %v1766 = vld [vmem:[%s667 + $0x4c] sm:$0xf]
        %v1767 = vld [vmem:[%s667 + $0x54] sm:$0xf]
        %v1768 = vld [vmem:[%s667 + $0x58] sm:$0xf]
        %v1769 = vld [vmem:[%s667 + $0x60] sm:$0xf]
        %v1770 = vld [vmem:[%s667 + $0x64] sm:$0xf]
        %v1771 = vld [vmem:[%s667 + $0x6c] sm:$0xf]
        %v1772 = vld [vmem:[%s667 + $0x70] sm:$0xf]
        %v1773 = vld [vmem:[%s667 + $0x78] sm:$0xf]
        %v1774 = vld [vmem:[%s667 + $0x7c] sm:$0xf]
        %v1775 = vld [vmem:[%s667 + $0x84] sm:$0xf]
        %v1776 = vld [vmem:[%s667 + $0x88] sm:$0xf]
        %v1777 = vld [vmem:[%s667 + $0x90] sm:$0xf]
        %v1778 = vld [vmem:[%s667 + $0x94] sm:$0xf]
        %v1779 = vld [vmem:[%s667 + $0x9c] sm:$0xf]
        %v1780 = vld [vmem:[%s667 + $0xa0] sm:$0xf]
        %v1781 = vld [vmem:[%s667 + $0xa8] sm:$0xf]
        %v1782 = vld [vmem:[%s667 + $0xac] sm:$0xf]
        %v1783 = vld [vmem:[%s667 + $0xb4] sm:$0xf]
        %v1784 = vld [vmem:[%s667 + $0xb8] sm:$0xf]
        %1817 = vrot.lane.b32.xlu0 %v1753, 96
        %v1818 = vpop.permute.xlu0 %1817
        %1819 = vrot.lane.b32.xlu0 %v1754, 96
        %v1820 = vpop.permute.xlu0 %1819
        %1821 = vrot.lane.b32.xlu0 %v1755, 96
        %v1822 = vpop.permute.xlu0 %1821
        %1823 = vrot.lane.b32.xlu0 %v1756, 96
        %v1824 = vpop.permute.xlu0 %1823
        %1825 = vrot.lane.b32.xlu0 %v1757, 96
        %v1826 = vpop.permute.xlu0 %1825
        %1827 = vrot.lane.b32.xlu0 %v1758, 96
        %v1828 = vpop.permute.xlu0 %1827
        %1829 = vrot.lane.b32.xlu0 %v1759, 96
        %v1830 = vpop.permute.xlu0 %1829
        %1831 = vrot.lane.b32.xlu0 %v1760, 96
        %v1832 = vpop.permute.xlu0 %1831
        %1833 = vrot.lane.b32.xlu0 %v1761, 96
        %v1834 = vpop.permute.xlu0 %1833
        %1835 = vrot.lane.b32.xlu0 %v1762, 96
        %v1836 = vpop.permute.xlu0 %1835
        %1837 = vrot.lane.b32.xlu0 %v1763, 96
        %v1838 = vpop.permute.xlu0 %1837
        %1839 = vrot.lane.b32.xlu0 %v1764, 96
        %v1840 = vpop.permute.xlu0 %1839
        %1841 = vrot.lane.b32.xlu0 %v1765, 96
        %v1842 = vpop.permute.xlu0 %1841
        %1843 = vrot.lane.b32.xlu0 %v1766, 96
        %v1844 = vpop.permute.xlu0 %1843
        %1845 = vrot.lane.b32.xlu0 %v1767, 96
        %v1846 = vpop.permute.xlu0 %1845
        %1847 = vrot.lane.b32.xlu0 %v1768, 96
        %v1848 = vpop.permute.xlu0 %1847
        %1849 = vrot.lane.b32.xlu0 %v1769, 96
        %v1850 = vpop.permute.xlu0 %1849
        %1851 = vrot.lane.b32.xlu0 %v1770, 96
        %v1852 = vpop.permute.xlu0 %1851
        %1853 = vrot.lane.b32.xlu0 %v1771, 96
        %v1854 = vpop.permute.xlu0 %1853
        %1855 = vrot.lane.b32.xlu0 %v1772, 96
        %v1856 = vpop.permute.xlu0 %1855
        %1857 = vrot.lane.b32.xlu0 %v1773, 96
        %v1858 = vpop.permute.xlu0 %1857
        %1859 = vrot.lane.b32.xlu0 %v1774, 96
        %v1860 = vpop.permute.xlu0 %1859
        %1861 = vrot.lane.b32.xlu0 %v1775, 96
        %v1862 = vpop.permute.xlu0 %1861
        %1863 = vrot.lane.b32.xlu0 %v1776, 96
        %v1864 = vpop.permute.xlu0 %1863
        %1865 = vrot.lane.b32.xlu0 %v1777, 96
        %v1866 = vpop.permute.xlu0 %1865
        %1867 = vrot.lane.b32.xlu0 %v1778, 96
        %v1868 = vpop.permute.xlu0 %1867
        %1869 = vrot.lane.b32.xlu0 %v1779, 96
        %v1870 = vpop.permute.xlu0 %1869
        %1871 = vrot.lane.b32.xlu0 %v1780, 96
        %v1872 = vpop.permute.xlu0 %1871
        %1873 = vrot.lane.b32.xlu0 %v1781, 96
        %v1874 = vpop.permute.xlu0 %1873
        %1875 = vrot.lane.b32.xlu0 %v1782, 96
        %v1876 = vpop.permute.xlu0 %1875
        %1877 = vrot.lane.b32.xlu0 %v1783, 96
        %v1878 = vpop.permute.xlu0 %1877
        %1879 = vrot.lane.b32.xlu0 %v1784, 96
        %v1880 = vpop.permute.xlu0 %1879
        %vm1913 = vcmask 1044224
        %1914 = vst.msk [vmem:[#allocation3] sm:$0xf] %vm1913, %v1818
        %1915 = vst.msk [vmem:[#allocation3 + $0xc] sm:$0xf] %vm1913, %v1820
        %1916 = vst.msk [vmem:[#allocation3 + $0x18] sm:$0xf] %vm1913, %v1822
        %1917 = vst.msk [vmem:[#allocation3 + $0x24] sm:$0xf] %vm1913, %v1824
        %1918 = vst.msk [vmem:[#allocation3 + $0x30] sm:$0xf] %vm1913, %v1826
        %1919 = vst.msk [vmem:[#allocation3 + $0x3c] sm:$0xf] %vm1913, %v1828
        %1920 = vst.msk [vmem:[#allocation3 + $0x48] sm:$0xf] %vm1913, %v1830
        %1921 = vst.msk [vmem:[#allocation3 + $0x54] sm:$0xf] %vm1913, %v1832
        %1922 = vst.msk [vmem:[#allocation3 + $0x60] sm:$0xf] %vm1913, %v1834
        %1923 = vst.msk [vmem:[#allocation3 + $0x6c] sm:$0xf] %vm1913, %v1836
        %1924 = vst.msk [vmem:[#allocation3 + $0x78] sm:$0xf] %vm1913, %v1838
        %1925 = vst.msk [vmem:[#allocation3 + $0x84] sm:$0xf] %vm1913, %v1840
        %1926 = vst.msk [vmem:[#allocation3 + $0x90] sm:$0xf] %vm1913, %v1842
        %1927 = vst.msk [vmem:[#allocation3 + $0x9c] sm:$0xf] %vm1913, %v1844
        %1928 = vst.msk [vmem:[#allocation3 + $0xa8] sm:$0xf] %vm1913, %v1846
        %1929 = vst.msk [vmem:[#allocation3 + $0xb4] sm:$0xf] %vm1913, %v1848
        %1930 = vst.msk [vmem:[#allocation3 + $0xc0] sm:$0xf] %vm1913, %v1850
        %1931 = vst.msk [vmem:[#allocation3 + $0xcc] sm:$0xf] %vm1913, %v1852
        %1932 = vst.msk [vmem:[#allocation3 + $0xd8] sm:$0xf] %vm1913, %v1854
        %1933 = vst.msk [vmem:[#allocation3 + $0xe4] sm:$0xf] %vm1913, %v1856
        %1934 = vst.msk [vmem:[#allocation3 + $0xf0] sm:$0xf] %vm1913, %v1858
        %1935 = vst.msk [vmem:[#allocation3 + $0xfc] sm:$0xf] %vm1913, %v1860
        %1936 = vst.msk [vmem:[#allocation3 + $0x108] sm:$0xf] %vm1913, %v1862
        %1937 = vst.msk [vmem:[#allocation3 + $0x114] sm:$0xf] %vm1913, %v1864
        %1938 = vst.msk [vmem:[#allocation3 + $0x120] sm:$0xf] %vm1913, %v1866
        %1939 = vst.msk [vmem:[#allocation3 + $0x12c] sm:$0xf] %vm1913, %v1868
        %1940 = vst.msk [vmem:[#allocation3 + $0x138] sm:$0xf] %vm1913, %v1870
        %1941 = vst.msk [vmem:[#allocation3 + $0x144] sm:$0xf] %vm1913, %v1872
        %1942 = vst.msk [vmem:[#allocation3 + $0x150] sm:$0xf] %vm1913, %v1874
        %1943 = vst.msk [vmem:[#allocation3 + $0x15c] sm:$0xf] %vm1913, %v1876
        %1944 = vst.msk [vmem:[#allocation3 + $0x168] sm:$0xf] %vm1913, %v1878
        %1945 = vst.msk [vmem:[#allocation3 + $0x174] sm:$0xf] %vm1913, %v1880
        %v1946 = vld [vmem:[%s667] sm:$0xf]
        %v1947 = vld [vmem:[%s667 + $0x4] sm:$0xf]
        %v1948 = vld [vmem:[%s667 + $0x8] sm:$0x1]
        %v1949 = vld [vmem:[%s667 + $0xc] sm:$0xf]
        %v1950 = vld [vmem:[%s667 + $0x10] sm:$0xf]
        %v1951 = vld [vmem:[%s667 + $0x14] sm:$0x1]
        %v1952 = vld [vmem:[%s667 + $0x18] sm:$0xf]
        %v1953 = vld [vmem:[%s667 + $0x1c] sm:$0xf]
        %v1954 = vld [vmem:[%s667 + $0x20] sm:$0x1]
        %v1955 = vld [vmem:[%s667 + $0x24] sm:$0xf]
        %v1956 = vld [vmem:[%s667 + $0x28] sm:$0xf]
        %v1957 = vld [vmem:[%s667 + $0x2c] sm:$0x1]
        %v1958 = vld [vmem:[%s667 + $0x30] sm:$0xf]
        %v1959 = vld [vmem:[%s667 + $0x34] sm:$0xf]
        %v1960 = vld [vmem:[%s667 + $0x38] sm:$0x1]
        %v1961 = vld [vmem:[%s667 + $0x3c] sm:$0xf]
        %v1962 = vld [vmem:[%s667 + $0x40] sm:$0xf]
        %v1963 = vld [vmem:[%s667 + $0x44] sm:$0x1]
        %v1964 = vld [vmem:[%s667 + $0x48] sm:$0xf]
        %v1965 = vld [vmem:[%s667 + $0x4c] sm:$0xf]
        %v1966 = vld [vmem:[%s667 + $0x50] sm:$0x1]
        %v1967 = vld [vmem:[%s667 + $0x54] sm:$0xf]
        %v1968 = vld [vmem:[%s667 + $0x58] sm:$0xf]
        %v1969 = vld [vmem:[%s667 + $0x5c] sm:$0x1]
        %v1970 = vld [vmem:[%s667 + $0x60] sm:$0xf]
        %v1971 = vld [vmem:[%s667 + $0x64] sm:$0xf]
        %v1972 = vld [vmem:[%s667 + $0x68] sm:$0x1]
        %v1973 = vld [vmem:[%s667 + $0x6c] sm:$0xf]
        %v1974 = vld [vmem:[%s667 + $0x70] sm:$0xf]
        %v1975 = vld [vmem:[%s667 + $0x74] sm:$0x1]
        %v1976 = vld [vmem:[%s667 + $0x78] sm:$0xf]
        %v1977 = vld [vmem:[%s667 + $0x7c] sm:$0xf]
        %v1978 = vld [vmem:[%s667 + $0x80] sm:$0x1]
        %v1979 = vld [vmem:[%s667 + $0x84] sm:$0xf]
        %v1980 = vld [vmem:[%s667 + $0x88] sm:$0xf]
        %v1981 = vld [vmem:[%s667 + $0x8c] sm:$0x1]
        %v1982 = vld [vmem:[%s667 + $0x90] sm:$0xf]
        %v1983 = vld [vmem:[%s667 + $0x94] sm:$0xf]
        %v1984 = vld [vmem:[%s667 + $0x98] sm:$0x1]
        %v1985 = vld [vmem:[%s667 + $0x9c] sm:$0xf]
        %v1986 = vld [vmem:[%s667 + $0xa0] sm:$0xf]
        %v1987 = vld [vmem:[%s667 + $0xa4] sm:$0x1]
        %v1988 = vld [vmem:[%s667 + $0xa8] sm:$0xf]
        %v1989 = vld [vmem:[%s667 + $0xac] sm:$0xf]
        %v1990 = vld [vmem:[%s667 + $0xb0] sm:$0x1]
        %v1991 = vld [vmem:[%s667 + $0xb4] sm:$0xf]
        %v1992 = vld [vmem:[%s667 + $0xb8] sm:$0xf]
        %v1993 = vld [vmem:[%s667 + $0xbc] sm:$0x1]
        %v1995 = vshrl.u32 %v1946, 16
        %v1997 = vrot.slane %v1995, 4
        %v1998 = vshll.u32 %v1946, 16
        %v2000 = vrot.slane %v1998, 5
        %v2001 = vor.u32 %v1997, %v2000
        %v2002 = vrot.slane %v2001, 4
        %v2004 = vshll.u32 %v1947, 16
        %v2006 = vrot.slane %v2004, 5
        %v2007 = vsel %vm899, %v2002, %v2006
        %v2008 = vshrl.u32 %v1947, 16
        %v2010 = vrot.slane %v2008, 4
        %v2011 = vor.u32 %v2010, %v2006
        %v2012 = vrot.slane %v2011, 4
        %v2014 = vshll.u32 %v1948, 16
        %v2016 = vrot.slane %v2014, 5
        %v2017 = vsel %vm899, %v2012, %v2016
        %v2019 = vshrl.u32 %v1949, 16
        %v2021 = vrot.slane %v2019, 4
        %v2022 = vshll.u32 %v1949, 16
        %v2024 = vrot.slane %v2022, 5
        %v2025 = vor.u32 %v2021, %v2024
        %v2026 = vrot.slane %v2025, 4
        %v2028 = vshll.u32 %v1950, 16
        %v2030 = vrot.slane %v2028, 5
        %v2031 = vsel %vm899, %v2026, %v2030
        %v2032 = vshrl.u32 %v1950, 16
        %v2034 = vrot.slane %v2032, 4
        %v2035 = vor.u32 %v2034, %v2030
        %v2036 = vrot.slane %v2035, 4
        %v2038 = vshll.u32 %v1951, 16
        %v2040 = vrot.slane %v2038, 5
        %v2041 = vsel %vm899, %v2036, %v2040
        %v2043 = vshrl.u32 %v1952, 16
        %v2045 = vrot.slane %v2043, 4
        %v2046 = vshll.u32 %v1952, 16
        %v2048 = vrot.slane %v2046, 5
        %v2049 = vor.u32 %v2045, %v2048
        %v2050 = vrot.slane %v2049, 4
        %v2052 = vshll.u32 %v1953, 16
        %v2054 = vrot.slane %v2052, 5
        %v2055 = vsel %vm899, %v2050, %v2054
        %v2056 = vshrl.u32 %v1953, 16
        %v2058 = vrot.slane %v2056, 4
        %v2059 = vor.u32 %v2058, %v2054
        %v2060 = vrot.slane %v2059, 4
        %v2062 = vshll.u32 %v1954, 16
        %v2064 = vrot.slane %v2062, 5
        %v2065 = vsel %vm899, %v2060, %v2064
        %v2067 = vshrl.u32 %v1955, 16
        %v2069 = vrot.slane %v2067, 4
        %v2070 = vshll.u32 %v1955, 16
        %v2072 = vrot.slane %v2070, 5
        %v2073 = vor.u32 %v2069, %v2072
        %v2074 = vrot.slane %v2073, 4
        %v2076 = vshll.u32 %v1956, 16
        %v2078 = vrot.slane %v2076, 5
        %v2079 = vsel %vm899, %v2074, %v2078
        %v2080 = vshrl.u32 %v1956, 16
        %v2082 = vrot.slane %v2080, 4
        %v2083 = vor.u32 %v2082, %v2078
        %v2084 = vrot.slane %v2083, 4
        %v2086 = vshll.u32 %v1957, 16
        %v2088 = vrot.slane %v2086, 5
        %v2089 = vsel %vm899, %v2084, %v2088
        %v2091 = vshrl.u32 %v1958, 16
        %v2093 = vrot.slane %v2091, 4
        %v2094 = vshll.u32 %v1958, 16
        %v2096 = vrot.slane %v2094, 5
        %v2097 = vor.u32 %v2093, %v2096
        %v2098 = vrot.slane %v2097, 4
        %v2100 = vshll.u32 %v1959, 16
        %v2102 = vrot.slane %v2100, 5
        %v2103 = vsel %vm899, %v2098, %v2102
        %v2104 = vshrl.u32 %v1959, 16
        %v2106 = vrot.slane %v2104, 4
        %v2107 = vor.u32 %v2106, %v2102
        %v2108 = vrot.slane %v2107, 4
        %v2110 = vshll.u32 %v1960, 16
        %v2112 = vrot.slane %v2110, 5
        %v2113 = vsel %vm899, %v2108, %v2112
        %v2115 = vshrl.u32 %v1961, 16
        %v2117 = vrot.slane %v2115, 4
        %v2118 = vshll.u32 %v1961, 16
        %v2120 = vrot.slane %v2118, 5
        %v2121 = vor.u32 %v2117, %v2120
        %v2122 = vrot.slane %v2121, 4
        %v2124 = vshll.u32 %v1962, 16
        %v2126 = vrot.slane %v2124, 5
        %v2127 = vsel %vm899, %v2122, %v2126
        %v2128 = vshrl.u32 %v1962, 16
        %v2130 = vrot.slane %v2128, 4
        %v2131 = vor.u32 %v2130, %v2126
        %v2132 = vrot.slane %v2131, 4
        %v2134 = vshll.u32 %v1963, 16
        %v2136 = vrot.slane %v2134, 5
        %v2137 = vsel %vm899, %v2132, %v2136
        %v2139 = vshrl.u32 %v1964, 16
        %v2141 = vrot.slane %v2139, 4
        %v2142 = vshll.u32 %v1964, 16
        %v2144 = vrot.slane %v2142, 5
        %v2145 = vor.u32 %v2141, %v2144
        %v2146 = vrot.slane %v2145, 4
        %v2148 = vshll.u32 %v1965, 16
        %v2150 = vrot.slane %v2148, 5
        %v2151 = vsel %vm899, %v2146, %v2150
        %v2152 = vshrl.u32 %v1965, 16
        %v2154 = vrot.slane %v2152, 4
        %v2155 = vor.u32 %v2154, %v2150
        %v2156 = vrot.slane %v2155, 4
        %v2158 = vshll.u32 %v1966, 16
        %v2160 = vrot.slane %v2158, 5
        %v2161 = vsel %vm899, %v2156, %v2160
        %v2163 = vshrl.u32 %v1967, 16
        %v2165 = vrot.slane %v2163, 4
        %v2166 = vshll.u32 %v1967, 16
        %v2168 = vrot.slane %v2166, 5
        %v2169 = vor.u32 %v2165, %v2168
        %v2170 = vrot.slane %v2169, 4
        %v2172 = vshll.u32 %v1968, 16
        %v2174 = vrot.slane %v2172, 5
        %v2175 = vsel %vm899, %v2170, %v2174
        %v2176 = vshrl.u32 %v1968, 16
        %v2178 = vrot.slane %v2176, 4
        %v2179 = vor.u32 %v2178, %v2174
        %v2180 = vrot.slane %v2179, 4
        %v2182 = vshll.u32 %v1969, 16
        %v2184 = vrot.slane %v2182, 5
        %v2185 = vsel %vm899, %v2180, %v2184
        %v2187 = vshrl.u32 %v1970, 16
        %v2189 = vrot.slane %v2187, 4
        %v2190 = vshll.u32 %v1970, 16
        %v2192 = vrot.slane %v2190, 5
        %v2193 = vor.u32 %v2189, %v2192
        %v2194 = vrot.slane %v2193, 4
        %v2196 = vshll.u32 %v1971, 16
        %v2198 = vrot.slane %v2196, 5
        %v2199 = vsel %vm899, %v2194, %v2198
        %v2200 = vshrl.u32 %v1971, 16
        %v2202 = vrot.slane %v2200, 4
        %v2203 = vor.u32 %v2202, %v2198
        %v2204 = vrot.slane %v2203, 4
        %v2206 = vshll.u32 %v1972, 16
        %v2208 = vrot.slane %v2206, 5
        %v2209 = vsel %vm899, %v2204, %v2208
        %v2211 = vshrl.u32 %v1973, 16
        %v2213 = vrot.slane %v2211, 4
        %v2214 = vshll.u32 %v1973, 16
        %v2216 = vrot.slane %v2214, 5
        %v2217 = vor.u32 %v2213, %v2216
        %v2218 = vrot.slane %v2217, 4
        %v2220 = vshll.u32 %v1974, 16
        %v2222 = vrot.slane %v2220, 5
        %v2223 = vsel %vm899, %v2218, %v2222
        %v2224 = vshrl.u32 %v1974, 16
        %v2226 = vrot.slane %v2224, 4
        %v2227 = vor.u32 %v2226, %v2222
        %v2228 = vrot.slane %v2227, 4
        %v2230 = vshll.u32 %v1975, 16
        %v2232 = vrot.slane %v2230, 5
        %v2233 = vsel %vm899, %v2228, %v2232
        %v2235 = vshrl.u32 %v1976, 16
        %v2237 = vrot.slane %v2235, 4
        %v2238 = vshll.u32 %v1976, 16
        %v2240 = vrot.slane %v2238, 5
        %v2241 = vor.u32 %v2237, %v2240
        %v2242 = vrot.slane %v2241, 4
        %v2244 = vshll.u32 %v1977, 16
        %v2246 = vrot.slane %v2244, 5
        %v2247 = vsel %vm899, %v2242, %v2246
        %v2248 = vshrl.u32 %v1977, 16
        %v2250 = vrot.slane %v2248, 4
        %v2251 = vor.u32 %v2250, %v2246
        %v2252 = vrot.slane %v2251, 4
        %v2254 = vshll.u32 %v1978, 16
        %v2256 = vrot.slane %v2254, 5
        %v2257 = vsel %vm899, %v2252, %v2256
        %v2259 = vshrl.u32 %v1979, 16
        %v2261 = vrot.slane %v2259, 4
        %v2262 = vshll.u32 %v1979, 16
        %v2264 = vrot.slane %v2262, 5
        %v2265 = vor.u32 %v2261, %v2264
        %v2266 = vrot.slane %v2265, 4
        %v2268 = vshll.u32 %v1980, 16
        %v2270 = vrot.slane %v2268, 5
        %v2271 = vsel %vm899, %v2266, %v2270
        %v2272 = vshrl.u32 %v1980, 16
        %v2274 = vrot.slane %v2272, 4
        %v2275 = vor.u32 %v2274, %v2270
        %v2276 = vrot.slane %v2275, 4
        %v2278 = vshll.u32 %v1981, 16
        %v2280 = vrot.slane %v2278, 5
        %v2281 = vsel %vm899, %v2276, %v2280
        %v2283 = vshrl.u32 %v1982, 16
        %v2285 = vrot.slane %v2283, 4
        %v2286 = vshll.u32 %v1982, 16
        %v2288 = vrot.slane %v2286, 5
        %v2289 = vor.u32 %v2285, %v2288
        %v2290 = vrot.slane %v2289, 4
        %v2292 = vshll.u32 %v1983, 16
        %v2294 = vrot.slane %v2292, 5
        %v2295 = vsel %vm899, %v2290, %v2294
        %v2296 = vshrl.u32 %v1983, 16
        %v2298 = vrot.slane %v2296, 4
        %v2299 = vor.u32 %v2298, %v2294
        %v2300 = vrot.slane %v2299, 4
        %v2302 = vshll.u32 %v1984, 16
        %v2304 = vrot.slane %v2302, 5
        %v2305 = vsel %vm899, %v2300, %v2304
        %v2307 = vshrl.u32 %v1985, 16
        %v2309 = vrot.slane %v2307, 4
        %v2310 = vshll.u32 %v1985, 16
        %v2312 = vrot.slane %v2310, 5
        %v2313 = vor.u32 %v2309, %v2312
        %v2314 = vrot.slane %v2313, 4
        %v2316 = vshll.u32 %v1986, 16
        %v2318 = vrot.slane %v2316, 5
        %v2319 = vsel %vm899, %v2314, %v2318
        %v2320 = vshrl.u32 %v1986, 16
        %v2322 = vrot.slane %v2320, 4
        %v2323 = vor.u32 %v2322, %v2318
        %v2324 = vrot.slane %v2323, 4
        %v2326 = vshll.u32 %v1987, 16
        %v2328 = vrot.slane %v2326, 5
        %v2329 = vsel %vm899, %v2324, %v2328
        %v2331 = vshrl.u32 %v1988, 16
        %v2333 = vrot.slane %v2331, 4
        %v2334 = vshll.u32 %v1988, 16
        %v2336 = vrot.slane %v2334, 5
        %v2337 = vor.u32 %v2333, %v2336
        %v2338 = vrot.slane %v2337, 4
        %v2340 = vshll.u32 %v1989, 16
        %v2342 = vrot.slane %v2340, 5
        %v2343 = vsel %vm899, %v2338, %v2342
        %v2344 = vshrl.u32 %v1989, 16
        %v2346 = vrot.slane %v2344, 4
        %v2347 = vor.u32 %v2346, %v2342
        %v2348 = vrot.slane %v2347, 4
        %v2350 = vshll.u32 %v1990, 16
        %v2352 = vrot.slane %v2350, 5
        %v2353 = vsel %vm899, %v2348, %v2352
        %v2355 = vshrl.u32 %v1991, 16
        %v2357 = vrot.slane %v2355, 4
        %v2358 = vshll.u32 %v1991, 16
        %v2360 = vrot.slane %v2358, 5
        %v2361 = vor.u32 %v2357, %v2360
        %v2362 = vrot.slane %v2361, 4
        %v2364 = vshll.u32 %v1992, 16
        %v2366 = vrot.slane %v2364, 5
        %v2367 = vsel %vm899, %v2362, %v2366
        %v2368 = vshrl.u32 %v1992, 16
        %v2370 = vrot.slane %v2368, 4
        %v2371 = vor.u32 %v2370, %v2366
        %v2372 = vrot.slane %v2371, 4
        %v2374 = vshll.u32 %v1993, 16
        %v2376 = vrot.slane %v2374, 5
        %v2377 = vsel %vm899, %v2372, %v2376
        %2410 = vst.msk [vmem:[#allocation3 + $0x4] sm:$0xf] %vm256, %v2007
        %2411 = vst.msk [vmem:[#allocation3 + $0x10] sm:$0xf] %vm256, %v2017
        %2412 = vst.msk [vmem:[#allocation3 + $0x1c] sm:$0xf] %vm256, %v2031
        %2413 = vst.msk [vmem:[#allocation3 + $0x28] sm:$0xf] %vm256, %v2041
        %2414 = vst.msk [vmem:[#allocation3 + $0x34] sm:$0xf] %vm256, %v2055
        %2415 = vst.msk [vmem:[#allocation3 + $0x40] sm:$0xf] %vm256, %v2065
        %2416 = vst.msk [vmem:[#allocation3 + $0x4c] sm:$0xf] %vm256, %v2079
        %2417 = vst.msk [vmem:[#allocation3 + $0x58] sm:$0xf] %vm256, %v2089
        %2418 = vst.msk [vmem:[#allocation3 + $0x64] sm:$0xf] %vm256, %v2103
        %2419 = vst.msk [vmem:[#allocation3 + $0x70] sm:$0xf] %vm256, %v2113
        %2420 = vst.msk [vmem:[#allocation3 + $0x7c] sm:$0xf] %vm256, %v2127
        %2421 = vst.msk [vmem:[#allocation3 + $0x88] sm:$0xf] %vm256, %v2137
        %2422 = vst.msk [vmem:[#allocation3 + $0x94] sm:$0xf] %vm256, %v2151
        %2423 = vst.msk [vmem:[#allocation3 + $0xa0] sm:$0xf] %vm256, %v2161
        %2424 = vst.msk [vmem:[#allocation3 + $0xac] sm:$0xf] %vm256, %v2175
        %2425 = vst.msk [vmem:[#allocation3 + $0xb8] sm:$0xf] %vm256, %v2185
        %2426 = vst.msk [vmem:[#allocation3 + $0xc4] sm:$0xf] %vm256, %v2199
        %2427 = vst.msk [vmem:[#allocation3 + $0xd0] sm:$0xf] %vm256, %v2209
        %2428 = vst.msk [vmem:[#allocation3 + $0xdc] sm:$0xf] %vm256, %v2223
        %2429 = vst.msk [vmem:[#allocation3 + $0xe8] sm:$0xf] %vm256, %v2233
        %2430 = vst.msk [vmem:[#allocation3 + $0xf4] sm:$0xf] %vm256, %v2247
        %2431 = vst.msk [vmem:[#allocation3 + $0x100] sm:$0xf] %vm256, %v2257
        %2432 = vst.msk [vmem:[#allocation3 + $0x10c] sm:$0xf] %vm256, %v2271
        %2433 = vst.msk [vmem:[#allocation3 + $0x118] sm:$0xf] %vm256, %v2281
        %2434 = vst.msk [vmem:[#allocation3 + $0x124] sm:$0xf] %vm256, %v2295
        %2435 = vst.msk [vmem:[#allocation3 + $0x130] sm:$0xf] %vm256, %v2305
        %2436 = vst.msk [vmem:[#allocation3 + $0x13c] sm:$0xf] %vm256, %v2319
        %2437 = vst.msk [vmem:[#allocation3 + $0x148] sm:$0xf] %vm256, %v2329
        %2438 = vst.msk [vmem:[#allocation3 + $0x154] sm:$0xf] %vm256, %v2343
        %2439 = vst.msk [vmem:[#allocation3 + $0x160] sm:$0xf] %vm256, %v2353
        %2440 = vst.msk [vmem:[#allocation3 + $0x16c] sm:$0xf] %vm256, %v2367
        %2441 = vst.msk [vmem:[#allocation3 + $0x178] sm:$0xf] %vm256, %v2377
        %v2442 = vld [vmem:[%s667] sm:$0xe]
        %v2443 = vld [vmem:[%s667 + $0x4] sm:$0xf]
        %v2444 = vld [vmem:[%s667 + $0x8] sm:$0x1]
        %v2445 = vld [vmem:[%s667 + $0xc] sm:$0xe]
        %v2446 = vld [vmem:[%s667 + $0x10] sm:$0xf]
        %v2447 = vld [vmem:[%s667 + $0x14] sm:$0x1]
        %v2448 = vld [vmem:[%s667 + $0x18] sm:$0xe]
        %v2449 = vld [vmem:[%s667 + $0x1c] sm:$0xf]
        %v2450 = vld [vmem:[%s667 + $0x20] sm:$0x1]
        %v2451 = vld [vmem:[%s667 + $0x24] sm:$0xe]
        %v2452 = vld [vmem:[%s667 + $0x28] sm:$0xf]
        %v2453 = vld [vmem:[%s667 + $0x2c] sm:$0x1]
        %v2454 = vld [vmem:[%s667 + $0x30] sm:$0xe]
        %v2455 = vld [vmem:[%s667 + $0x34] sm:$0xf]
        %v2456 = vld [vmem:[%s667 + $0x38] sm:$0x1]
        %v2457 = vld [vmem:[%s667 + $0x3c] sm:$0xe]
        %v2458 = vld [vmem:[%s667 + $0x40] sm:$0xf]
        %v2459 = vld [vmem:[%s667 + $0x44] sm:$0x1]
        %v2460 = vld [vmem:[%s667 + $0x48] sm:$0xe]
        %v2461 = vld [vmem:[%s667 + $0x4c] sm:$0xf]
        %v2462 = vld [vmem:[%s667 + $0x50] sm:$0x1]
        %v2463 = vld [vmem:[%s667 + $0x54] sm:$0xe]
        %v2464 = vld [vmem:[%s667 + $0x58] sm:$0xf]
        %v2465 = vld [vmem:[%s667 + $0x5c] sm:$0x1]
        %v2466 = vld [vmem:[%s667 + $0x60] sm:$0xe]
        %v2467 = vld [vmem:[%s667 + $0x64] sm:$0xf]
        %v2468 = vld [vmem:[%s667 + $0x68] sm:$0x1]
        %v2469 = vld [vmem:[%s667 + $0x6c] sm:$0xe]
        %v2470 = vld [vmem:[%s667 + $0x70] sm:$0xf]
        %v2471 = vld [vmem:[%s667 + $0x74] sm:$0x1]
        %v2472 = vld [vmem:[%s667 + $0x78] sm:$0xe]
        %v2473 = vld [vmem:[%s667 + $0x7c] sm:$0xf]
        %v2474 = vld [vmem:[%s667 + $0x80] sm:$0x1]
        %v2475 = vld [vmem:[%s667 + $0x84] sm:$0xe]
        %v2476 = vld [vmem:[%s667 + $0x88] sm:$0xf]
        %v2477 = vld [vmem:[%s667 + $0x8c] sm:$0x1]
        %v2478 = vld [vmem:[%s667 + $0x90] sm:$0xe]
        %v2479 = vld [vmem:[%s667 + $0x94] sm:$0xf]
        %v2480 = vld [vmem:[%s667 + $0x98] sm:$0x1]
        %v2481 = vld [vmem:[%s667 + $0x9c] sm:$0xe]
        %v2482 = vld [vmem:[%s667 + $0xa0] sm:$0xf]
        %v2483 = vld [vmem:[%s667 + $0xa4] sm:$0x1]
        %v2484 = vld [vmem:[%s667 + $0xa8] sm:$0xe]
        %v2485 = vld [vmem:[%s667 + $0xac] sm:$0xf]
        %v2486 = vld [vmem:[%s667 + $0xb0] sm:$0x1]
        %v2487 = vld [vmem:[%s667 + $0xb4] sm:$0xe]
        %v2488 = vld [vmem:[%s667 + $0xb8] sm:$0xf]
        %v2489 = vld [vmem:[%s667 + $0xbc] sm:$0x1]
        %v2538 = vrot.slane %v2442, 5
        %v2539 = vrot.slane %v2538, 4
        %v2540 = vrot.slane %v2443, 5
        %v2541 = vsel %vm1511, %v2539, %v2540
        %v2542 = vrot.slane %v2540, 4
        %v2543 = vrot.slane %v2444, 5
        %v2544 = vsel %vm1511, %v2542, %v2543
        %v2545 = vrot.slane %v2445, 5
        %v2546 = vrot.slane %v2545, 4
        %v2547 = vrot.slane %v2446, 5
        %v2548 = vsel %vm1511, %v2546, %v2547
        %v2549 = vrot.slane %v2547, 4
        %v2550 = vrot.slane %v2447, 5
        %v2551 = vsel %vm1511, %v2549, %v2550
        %v2552 = vrot.slane %v2448, 5
        %v2553 = vrot.slane %v2552, 4
        %v2554 = vrot.slane %v2449, 5
        %v2555 = vsel %vm1511, %v2553, %v2554
        %v2556 = vrot.slane %v2554, 4
        %v2557 = vrot.slane %v2450, 5
        %v2558 = vsel %vm1511, %v2556, %v2557
        %v2559 = vrot.slane %v2451, 5
        %v2560 = vrot.slane %v2559, 4
        %v2561 = vrot.slane %v2452, 5
        %v2562 = vsel %vm1511, %v2560, %v2561
        %v2563 = vrot.slane %v2561, 4
        %v2564 = vrot.slane %v2453, 5
        %v2565 = vsel %vm1511, %v2563, %v2564
        %v2566 = vrot.slane %v2454, 5
        %v2567 = vrot.slane %v2566, 4
        %v2568 = vrot.slane %v2455, 5
        %v2569 = vsel %vm1511, %v2567, %v2568
        %v2570 = vrot.slane %v2568, 4
        %v2571 = vrot.slane %v2456, 5
        %v2572 = vsel %vm1511, %v2570, %v2571
        %v2573 = vrot.slane %v2457, 5
        %v2574 = vrot.slane %v2573, 4
        %v2575 = vrot.slane %v2458, 5
        %v2576 = vsel %vm1511, %v2574, %v2575
        %v2577 = vrot.slane %v2575, 4
        %v2578 = vrot.slane %v2459, 5
        %v2579 = vsel %vm1511, %v2577, %v2578
        %v2580 = vrot.slane %v2460, 5
        %v2581 = vrot.slane %v2580, 4
        %v2582 = vrot.slane %v2461, 5
        %v2583 = vsel %vm1511, %v2581, %v2582
        %v2584 = vrot.slane %v2582, 4
        %v2585 = vrot.slane %v2462, 5
        %v2586 = vsel %vm1511, %v2584, %v2585
        %v2587 = vrot.slane %v2463, 5
        %v2588 = vrot.slane %v2587, 4
        %v2589 = vrot.slane %v2464, 5
        %v2590 = vsel %vm1511, %v2588, %v2589
        %v2591 = vrot.slane %v2589, 4
        %v2592 = vrot.slane %v2465, 5
        %v2593 = vsel %vm1511, %v2591, %v2592
        %v2594 = vrot.slane %v2466, 5
        %v2595 = vrot.slane %v2594, 4
        %v2596 = vrot.slane %v2467, 5
        %v2597 = vsel %vm1511, %v2595, %v2596
        %v2598 = vrot.slane %v2596, 4
        %v2599 = vrot.slane %v2468, 5
        %v2600 = vsel %vm1511, %v2598, %v2599
        %v2601 = vrot.slane %v2469, 5
        %v2602 = vrot.slane %v2601, 4
        %v2603 = vrot.slane %v2470, 5
        %v2604 = vsel %vm1511, %v2602, %v2603
        %v2605 = vrot.slane %v2603, 4
        %v2606 = vrot.slane %v2471, 5
        %v2607 = vsel %vm1511, %v2605, %v2606
        %v2608 = vrot.slane %v2472, 5
        %v2609 = vrot.slane %v2608, 4
        %v2610 = vrot.slane %v2473, 5
        %v2611 = vsel %vm1511, %v2609, %v2610
        %v2612 = vrot.slane %v2610, 4
        %v2613 = vrot.slane %v2474, 5
        %v2614 = vsel %vm1511, %v2612, %v2613
        %v2615 = vrot.slane %v2475, 5
        %v2616 = vrot.slane %v2615, 4
        %v2617 = vrot.slane %v2476, 5
        %v2618 = vsel %vm1511, %v2616, %v2617
        %v2619 = vrot.slane %v2617, 4
        %v2620 = vrot.slane %v2477, 5
        %v2621 = vsel %vm1511, %v2619, %v2620
        %v2622 = vrot.slane %v2478, 5
        %v2623 = vrot.slane %v2622, 4
        %v2624 = vrot.slane %v2479, 5
        %v2625 = vsel %vm1511, %v2623, %v2624
        %v2626 = vrot.slane %v2624, 4
        %v2627 = vrot.slane %v2480, 5
        %v2628 = vsel %vm1511, %v2626, %v2627
        %v2629 = vrot.slane %v2481, 5
        %v2630 = vrot.slane %v2629, 4
        %v2631 = vrot.slane %v2482, 5
        %v2632 = vsel %vm1511, %v2630, %v2631
        %v2633 = vrot.slane %v2631, 4
        %v2634 = vrot.slane %v2483, 5
        %v2635 = vsel %vm1511, %v2633, %v2634
        %v2636 = vrot.slane %v2484, 5
        %v2637 = vrot.slane %v2636, 4
        %v2638 = vrot.slane %v2485, 5
        %v2639 = vsel %vm1511, %v2637, %v2638
        %v2640 = vrot.slane %v2638, 4
        %v2641 = vrot.slane %v2486, 5
        %v2642 = vsel %vm1511, %v2640, %v2641
        %v2643 = vrot.slane %v2487, 5
        %v2644 = vrot.slane %v2643, 4
        %v2645 = vrot.slane %v2488, 5
        %v2646 = vsel %vm1511, %v2644, %v2645
        %v2647 = vrot.slane %v2645, 4
        %v2648 = vrot.slane %v2489, 5
        %v2649 = vsel %vm1511, %v2647, %v2648
        %2650 = vrot.lane.b32.xlu0 %v2541, 32
        %v2651 = vpop.permute.xlu0 %2650
        %2652 = vrot.lane.b32.xlu0 %v2544, 32
        %v2653 = vpop.permute.xlu0 %2652
        %2654 = vrot.lane.b32.xlu0 %v2548, 32
        %v2655 = vpop.permute.xlu0 %2654
        %2656 = vrot.lane.b32.xlu0 %v2551, 32
        %v2657 = vpop.permute.xlu0 %2656
        %2658 = vrot.lane.b32.xlu0 %v2555, 32
        %v2659 = vpop.permute.xlu0 %2658
        %2660 = vrot.lane.b32.xlu0 %v2558, 32
        %v2661 = vpop.permute.xlu0 %2660
        %2662 = vrot.lane.b32.xlu0 %v2562, 32
        %v2663 = vpop.permute.xlu0 %2662
        %2664 = vrot.lane.b32.xlu0 %v2565, 32
        %v2665 = vpop.permute.xlu0 %2664
        %2666 = vrot.lane.b32.xlu0 %v2569, 32
        %v2667 = vpop.permute.xlu0 %2666
        %2668 = vrot.lane.b32.xlu0 %v2572, 32
        %v2669 = vpop.permute.xlu0 %2668
        %2670 = vrot.lane.b32.xlu0 %v2576, 32
        %v2671 = vpop.permute.xlu0 %2670
        %2672 = vrot.lane.b32.xlu0 %v2579, 32
        %v2673 = vpop.permute.xlu0 %2672
        %2674 = vrot.lane.b32.xlu0 %v2583, 32
        %v2675 = vpop.permute.xlu0 %2674
        %2676 = vrot.lane.b32.xlu0 %v2586, 32
        %v2677 = vpop.permute.xlu0 %2676
        %2678 = vrot.lane.b32.xlu0 %v2590, 32
        %v2679 = vpop.permute.xlu0 %2678
        %2680 = vrot.lane.b32.xlu0 %v2593, 32
        %v2681 = vpop.permute.xlu0 %2680
        %2682 = vrot.lane.b32.xlu0 %v2597, 32
        %v2683 = vpop.permute.xlu0 %2682
        %2684 = vrot.lane.b32.xlu0 %v2600, 32
        %v2685 = vpop.permute.xlu0 %2684
        %2686 = vrot.lane.b32.xlu0 %v2604, 32
        %v2687 = vpop.permute.xlu0 %2686
        %2688 = vrot.lane.b32.xlu0 %v2607, 32
        %v2689 = vpop.permute.xlu0 %2688
        %2690 = vrot.lane.b32.xlu0 %v2611, 32
        %v2691 = vpop.permute.xlu0 %2690
        %2692 = vrot.lane.b32.xlu0 %v2614, 32
        %v2693 = vpop.permute.xlu0 %2692
        %2694 = vrot.lane.b32.xlu0 %v2618, 32
        %v2695 = vpop.permute.xlu0 %2694
        %2696 = vrot.lane.b32.xlu0 %v2621, 32
        %v2697 = vpop.permute.xlu0 %2696
        %2698 = vrot.lane.b32.xlu0 %v2625, 32
        %v2699 = vpop.permute.xlu0 %2698
        %2700 = vrot.lane.b32.xlu0 %v2628, 32
        %v2701 = vpop.permute.xlu0 %2700
        %2702 = vrot.lane.b32.xlu0 %v2632, 32
        %v2703 = vpop.permute.xlu0 %2702
        %2704 = vrot.lane.b32.xlu0 %v2635, 32
        %v2705 = vpop.permute.xlu0 %2704
        %2706 = vrot.lane.b32.xlu0 %v2639, 32
        %v2707 = vpop.permute.xlu0 %2706
        %2708 = vrot.lane.b32.xlu0 %v2642, 32
        %v2709 = vpop.permute.xlu0 %2708
        %2710 = vrot.lane.b32.xlu0 %v2646, 32
        %v2711 = vpop.permute.xlu0 %2710
        %2712 = vrot.lane.b32.xlu0 %v2649, 32
        %v2713 = vpop.permute.xlu0 %2712
        %2746 = vst.msk [vmem:[#allocation3 + $0x4] sm:$0xf] %vm1380, %v2651
        %2747 = vst.msk [vmem:[#allocation3 + $0x10] sm:$0xf] %vm1380, %v2653
        %2748 = vst.msk [vmem:[#allocation3 + $0x1c] sm:$0xf] %vm1380, %v2655
        %2749 = vst.msk [vmem:[#allocation3 + $0x28] sm:$0xf] %vm1380, %v2657
        %2750 = vst.msk [vmem:[#allocation3 + $0x34] sm:$0xf] %vm1380, %v2659
        %2751 = vst.msk [vmem:[#allocation3 + $0x40] sm:$0xf] %vm1380, %v2661
        %2752 = vst.msk [vmem:[#allocation3 + $0x4c] sm:$0xf] %vm1380, %v2663
        %2753 = vst.msk [vmem:[#allocation3 + $0x58] sm:$0xf] %vm1380, %v2665
        %2754 = vst.msk [vmem:[#allocation3 + $0x64] sm:$0xf] %vm1380, %v2667
        %2755 = vst.msk [vmem:[#allocation3 + $0x70] sm:$0xf] %vm1380, %v2669
        %2756 = vst.msk [vmem:[#allocation3 + $0x7c] sm:$0xf] %vm1380, %v2671
        %2757 = vst.msk [vmem:[#allocation3 + $0x88] sm:$0xf] %vm1380, %v2673
        %2758 = vst.msk [vmem:[#allocation3 + $0x94] sm:$0xf] %vm1380, %v2675
        %2759 = vst.msk [vmem:[#allocation3 + $0xa0] sm:$0xf] %vm1380, %v2677
        %2760 = vst.msk [vmem:[#allocation3 + $0xac] sm:$0xf] %vm1380, %v2679
        %2761 = vst.msk [vmem:[#allocation3 + $0xb8] sm:$0xf] %vm1380, %v2681
        %2762 = vst.msk [vmem:[#allocation3 + $0xc4] sm:$0xf] %vm1380, %v2683
        %2763 = vst.msk [vmem:[#allocation3 + $0xd0] sm:$0xf] %vm1380, %v2685
        %2764 = vst.msk [vmem:[#allocation3 + $0xdc] sm:$0xf] %vm1380, %v2687
        %2765 = vst.msk [vmem:[#allocation3 + $0xe8] sm:$0xf] %vm1380, %v2689
        %2766 = vst.msk [vmem:[#allocation3 + $0xf4] sm:$0xf] %vm1380, %v2691
        %2767 = vst.msk [vmem:[#allocation3 + $0x100] sm:$0xf] %vm1380, %v2693
        %2768 = vst.msk [vmem:[#allocation3 + $0x10c] sm:$0xf] %vm1380, %v2695
        %2769 = vst.msk [vmem:[#allocation3 + $0x118] sm:$0xf] %vm1380, %v2697
        %2770 = vst.msk [vmem:[#allocation3 + $0x124] sm:$0xf] %vm1380, %v2699
        %2771 = vst.msk [vmem:[#allocation3 + $0x130] sm:$0xf] %vm1380, %v2701
        %2772 = vst.msk [vmem:[#allocation3 + $0x13c] sm:$0xf] %vm1380, %v2703
        %2773 = vst.msk [vmem:[#allocation3 + $0x148] sm:$0xf] %vm1380, %v2705
        %2774 = vst.msk [vmem:[#allocation3 + $0x154] sm:$0xf] %vm1380, %v2707
        %2775 = vst.msk [vmem:[#allocation3 + $0x160] sm:$0xf] %vm1380, %v2709
        %2776 = vst.msk [vmem:[#allocation3 + $0x16c] sm:$0xf] %vm1380, %v2711
        %2777 = vst.msk [vmem:[#allocation3 + $0x178] sm:$0xf] %vm1380, %v2713
        %s2778 = scalar_lea.vmem [#allocation2], 24
        %v2779 = vld [vmem:[%s2778] sm:$0xf]
        %v2780 = vld [vmem:[%s2778 + $0x4] sm:$0xf]
        %v2781 = vld [vmem:[%s2778 + $0xc] sm:$0xf]
        %v2782 = vld [vmem:[%s2778 + $0x10] sm:$0xf]
        %v2783 = vld [vmem:[%s2778 + $0x18] sm:$0xf]
        %v2784 = vld [vmem:[%s2778 + $0x1c] sm:$0xf]
        %v2785 = vld [vmem:[%s2778 + $0x24] sm:$0xf]
        %v2786 = vld [vmem:[%s2778 + $0x28] sm:$0xf]
        %v2787 = vld [vmem:[%s2778 + $0x30] sm:$0xf]
        %v2788 = vld [vmem:[%s2778 + $0x34] sm:$0xf]
        %v2789 = vld [vmem:[%s2778 + $0x3c] sm:$0xf]
        %v2790 = vld [vmem:[%s2778 + $0x40] sm:$0xf]
        %v2791 = vld [vmem:[%s2778 + $0x48] sm:$0xf]
        %v2792 = vld [vmem:[%s2778 + $0x4c] sm:$0xf]
        %v2793 = vld [vmem:[%s2778 + $0x54] sm:$0xf]
        %v2794 = vld [vmem:[%s2778 + $0x58] sm:$0xf]
        %v2795 = vld [vmem:[%s2778 + $0x60] sm:$0xf]
        %v2796 = vld [vmem:[%s2778 + $0x64] sm:$0xf]
        %v2797 = vld [vmem:[%s2778 + $0x6c] sm:$0xf]
        %v2798 = vld [vmem:[%s2778 + $0x70] sm:$0xf]
        %v2799 = vld [vmem:[%s2778 + $0x78] sm:$0xf]
        %v2800 = vld [vmem:[%s2778 + $0x7c] sm:$0xf]
        %v2801 = vld [vmem:[%s2778 + $0x84] sm:$0xf]
        %v2802 = vld [vmem:[%s2778 + $0x88] sm:$0xf]
        %v2803 = vld [vmem:[%s2778 + $0x90] sm:$0xf]
        %v2804 = vld [vmem:[%s2778 + $0x94] sm:$0xf]
        %v2805 = vld [vmem:[%s2778 + $0x9c] sm:$0xf]
        %v2806 = vld [vmem:[%s2778 + $0xa0] sm:$0xf]
        %v2807 = vld [vmem:[%s2778 + $0xa8] sm:$0xf]
        %v2808 = vld [vmem:[%s2778 + $0xac] sm:$0xf]
        %v2809 = vld [vmem:[%s2778 + $0xb4] sm:$0xf]
        %v2810 = vld [vmem:[%s2778 + $0xb8] sm:$0xf]
        %2843 = vrot.lane.b32.xlu0 %v2779, 64
        %v2844 = vpop.permute.xlu0 %2843
        %2845 = vrot.lane.b32.xlu0 %v2780, 64
        %v2846 = vpop.permute.xlu0 %2845
        %2847 = vrot.lane.b32.xlu0 %v2781, 64
        %v2848 = vpop.permute.xlu0 %2847
        %2849 = vrot.lane.b32.xlu0 %v2782, 64
        %v2850 = vpop.permute.xlu0 %2849
        %2851 = vrot.lane.b32.xlu0 %v2783, 64
        %v2852 = vpop.permute.xlu0 %2851
        %2853 = vrot.lane.b32.xlu0 %v2784, 64
        %v2854 = vpop.permute.xlu0 %2853
        %2855 = vrot.lane.b32.xlu0 %v2785, 64
        %v2856 = vpop.permute.xlu0 %2855
        %2857 = vrot.lane.b32.xlu0 %v2786, 64
        %v2858 = vpop.permute.xlu0 %2857
        %2859 = vrot.lane.b32.xlu0 %v2787, 64
        %v2860 = vpop.permute.xlu0 %2859
        %2861 = vrot.lane.b32.xlu0 %v2788, 64
        %v2862 = vpop.permute.xlu0 %2861
        %2863 = vrot.lane.b32.xlu0 %v2789, 64
        %v2864 = vpop.permute.xlu0 %2863
        %2865 = vrot.lane.b32.xlu0 %v2790, 64
        %v2866 = vpop.permute.xlu0 %2865
        %2867 = vrot.lane.b32.xlu0 %v2791, 64
        %v2868 = vpop.permute.xlu0 %2867
        %2869 = vrot.lane.b32.xlu0 %v2792, 64
        %v2870 = vpop.permute.xlu0 %2869
        %2871 = vrot.lane.b32.xlu0 %v2793, 64
        %v2872 = vpop.permute.xlu0 %2871
        %2873 = vrot.lane.b32.xlu0 %v2794, 64
        %v2874 = vpop.permute.xlu0 %2873
        %2875 = vrot.lane.b32.xlu0 %v2795, 64
        %v2876 = vpop.permute.xlu0 %2875
        %2877 = vrot.lane.b32.xlu0 %v2796, 64
        %v2878 = vpop.permute.xlu0 %2877
        %2879 = vrot.lane.b32.xlu0 %v2797, 64
        %v2880 = vpop.permute.xlu0 %2879
        %2881 = vrot.lane.b32.xlu0 %v2798, 64
        %v2882 = vpop.permute.xlu0 %2881
        %2883 = vrot.lane.b32.xlu0 %v2799, 64
        %v2884 = vpop.permute.xlu0 %2883
        %2885 = vrot.lane.b32.xlu0 %v2800, 64
        %v2886 = vpop.permute.xlu0 %2885
        %2887 = vrot.lane.b32.xlu0 %v2801, 64
        %v2888 = vpop.permute.xlu0 %2887
        %2889 = vrot.lane.b32.xlu0 %v2802, 64
        %v2890 = vpop.permute.xlu0 %2889
        %2891 = vrot.lane.b32.xlu0 %v2803, 64
        %v2892 = vpop.permute.xlu0 %2891
        %2893 = vrot.lane.b32.xlu0 %v2804, 64
        %v2894 = vpop.permute.xlu0 %2893
        %2895 = vrot.lane.b32.xlu0 %v2805, 64
        %v2896 = vpop.permute.xlu0 %2895
        %2897 = vrot.lane.b32.xlu0 %v2806, 64
        %v2898 = vpop.permute.xlu0 %2897
        %2899 = vrot.lane.b32.xlu0 %v2807, 64
        %v2900 = vpop.permute.xlu0 %2899
        %2901 = vrot.lane.b32.xlu0 %v2808, 64
        %v2902 = vpop.permute.xlu0 %2901
        %2903 = vrot.lane.b32.xlu0 %v2809, 64
        %v2904 = vpop.permute.xlu0 %2903
        %2905 = vrot.lane.b32.xlu0 %v2810, 64
        %v2906 = vpop.permute.xlu0 %2905
        %2939 = vst.msk [vmem:[#allocation3 + $0x4] sm:$0xf] %vm1720, %v2844
        %2940 = vst.msk [vmem:[#allocation3 + $0x10] sm:$0xf] %vm1720, %v2846
        %2941 = vst.msk [vmem:[#allocation3 + $0x1c] sm:$0xf] %vm1720, %v2848
        %2942 = vst.msk [vmem:[#allocation3 + $0x28] sm:$0xf] %vm1720, %v2850
        %2943 = vst.msk [vmem:[#allocation3 + $0x34] sm:$0xf] %vm1720, %v2852
        %2944 = vst.msk [vmem:[#allocation3 + $0x40] sm:$0xf] %vm1720, %v2854
        %2945 = vst.msk [vmem:[#allocation3 + $0x4c] sm:$0xf] %vm1720, %v2856
        %2946 = vst.msk [vmem:[#allocation3 + $0x58] sm:$0xf] %vm1720, %v2858
        %2947 = vst.msk [vmem:[#allocation3 + $0x64] sm:$0xf] %vm1720, %v2860
        %2948 = vst.msk [vmem:[#allocation3 + $0x70] sm:$0xf] %vm1720, %v2862
        %2949 = vst.msk [vmem:[#allocation3 + $0x7c] sm:$0xf] %vm1720, %v2864
        %2950 = vst.msk [vmem:[#allocation3 + $0x88] sm:$0xf] %vm1720, %v2866
        %2951 = vst.msk [vmem:[#allocation3 + $0x94] sm:$0xf] %vm1720, %v2868
        %2952 = vst.msk [vmem:[#allocation3 + $0xa0] sm:$0xf] %vm1720, %v2870
        %2953 = vst.msk [vmem:[#allocation3 + $0xac] sm:$0xf] %vm1720, %v2872
        %2954 = vst.msk [vmem:[#allocation3 + $0xb8] sm:$0xf] %vm1720, %v2874
        %2955 = vst.msk [vmem:[#allocation3 + $0xc4] sm:$0xf] %vm1720, %v2876
        %2956 = vst.msk [vmem:[#allocation3 + $0xd0] sm:$0xf] %vm1720, %v2878
        %2957 = vst.msk [vmem:[#allocation3 + $0xdc] sm:$0xf] %vm1720, %v2880
        %2958 = vst.msk [vmem:[#allocation3 + $0xe8] sm:$0xf] %vm1720, %v2882
        %2959 = vst.msk [vmem:[#allocation3 + $0xf4] sm:$0xf] %vm1720, %v2884
        %2960 = vst.msk [vmem:[#allocation3 + $0x100] sm:$0xf] %vm1720, %v2886
        %2961 = vst.msk [vmem:[#allocation3 + $0x10c] sm:$0xf] %vm1720, %v2888
        %2962 = vst.msk [vmem:[#allocation3 + $0x118] sm:$0xf] %vm1720, %v2890
        %2963 = vst.msk [vmem:[#allocation3 + $0x124] sm:$0xf] %vm1720, %v2892
        %2964 = vst.msk [vmem:[#allocation3 + $0x130] sm:$0xf] %vm1720, %v2894
        %2965 = vst.msk [vmem:[#allocation3 + $0x13c] sm:$0xf] %vm1720, %v2896
        %2966 = vst.msk [vmem:[#allocation3 + $0x148] sm:$0xf] %vm1720, %v2898
        %2967 = vst.msk [vmem:[#allocation3 + $0x154] sm:$0xf] %vm1720, %v2900
        %2968 = vst.msk [vmem:[#allocation3 + $0x160] sm:$0xf] %vm1720, %v2902
        %2969 = vst.msk [vmem:[#allocation3 + $0x16c] sm:$0xf] %vm1720, %v2904
        %2970 = vst.msk [vmem:[#allocation3 + $0x178] sm:$0xf] %vm1720, %v2906
        %v2971 = vld [vmem:[%s2778] sm:$0xf]
        %v2972 = vld [vmem:[%s2778 + $0x4] sm:$0xf]
        %v2973 = vld [vmem:[%s2778 + $0x8] sm:$0x1]
        %v2974 = vld [vmem:[%s2778 + $0xc] sm:$0xf]
        %v2975 = vld [vmem:[%s2778 + $0x10] sm:$0xf]
        %v2976 = vld [vmem:[%s2778 + $0x14] sm:$0x1]
        %v2977 = vld [vmem:[%s2778 + $0x18] sm:$0xf]
        %v2978 = vld [vmem:[%s2778 + $0x1c] sm:$0xf]
        %v2979 = vld [vmem:[%s2778 + $0x20] sm:$0x1]
        %v2980 = vld [vmem:[%s2778 + $0x24] sm:$0xf]
        %v2981 = vld [vmem:[%s2778 + $0x28] sm:$0xf]
        %v2982 = vld [vmem:[%s2778 + $0x2c] sm:$0x1]
        %v2983 = vld [vmem:[%s2778 + $0x30] sm:$0xf]
        %v2984 = vld [vmem:[%s2778 + $0x34] sm:$0xf]
        %v2985 = vld [vmem:[%s2778 + $0x38] sm:$0x1]
        %v2986 = vld [vmem:[%s2778 + $0x3c] sm:$0xf]
        %v2987 = vld [vmem:[%s2778 + $0x40] sm:$0xf]
        %v2988 = vld [vmem:[%s2778 + $0x44] sm:$0x1]
        %v2989 = vld [vmem:[%s2778 + $0x48] sm:$0xf]
        %v2990 = vld [vmem:[%s2778 + $0x4c] sm:$0xf]
        %v2991 = vld [vmem:[%s2778 + $0x50] sm:$0x1]
        %v2992 = vld [vmem:[%s2778 + $0x54] sm:$0xf]
        %v2993 = vld [vmem:[%s2778 + $0x58] sm:$0xf]
        %v2994 = vld [vmem:[%s2778 + $0x5c] sm:$0x1]
        %v2995 = vld [vmem:[%s2778 + $0x60] sm:$0xf]
        %v2996 = vld [vmem:[%s2778 + $0x64] sm:$0xf]
        %v2997 = vld [vmem:[%s2778 + $0x68] sm:$0x1]
        %v2998 = vld [vmem:[%s2778 + $0x6c] sm:$0xf]
        %v2999 = vld [vmem:[%s2778 + $0x70] sm:$0xf]
        %v3000 = vld [vmem:[%s2778 + $0x74] sm:$0x1]
        %v3001 = vld [vmem:[%s2778 + $0x78] sm:$0xf]
        %v3002 = vld [vmem:[%s2778 + $0x7c] sm:$0xf]
        %v3003 = vld [vmem:[%s2778 + $0x80] sm:$0x1]
        %v3004 = vld [vmem:[%s2778 + $0x84] sm:$0xf]
        %v3005 = vld [vmem:[%s2778 + $0x88] sm:$0xf]
        %v3006 = vld [vmem:[%s2778 + $0x8c] sm:$0x1]
        %v3007 = vld [vmem:[%s2778 + $0x90] sm:$0xf]
        %v3008 = vld [vmem:[%s2778 + $0x94] sm:$0xf]
        %v3009 = vld [vmem:[%s2778 + $0x98] sm:$0x1]
        %v3010 = vld [vmem:[%s2778 + $0x9c] sm:$0xf]
        %v3011 = vld [vmem:[%s2778 + $0xa0] sm:$0xf]
        %v3012 = vld [vmem:[%s2778 + $0xa4] sm:$0x1]
        %v3013 = vld [vmem:[%s2778 + $0xa8] sm:$0xf]
        %v3014 = vld [vmem:[%s2778 + $0xac] sm:$0xf]
        %v3015 = vld [vmem:[%s2778 + $0xb0] sm:$0x1]
        %v3016 = vld [vmem:[%s2778 + $0xb4] sm:$0xf]
        %v3017 = vld [vmem:[%s2778 + $0xb8] sm:$0xf]
        %v3018 = vld [vmem:[%s2778 + $0xbc] sm:$0x1]
        %v3020 = vshrl.u32 %v2971, 16
        %v3022 = vrot.slane %v3020, 4
        %v3023 = vshll.u32 %v2971, 16
        %v3025 = vrot.slane %v3023, 5
        %v3026 = vor.u32 %v3022, %v3025
        %v3027 = vrot.slane %v3026, 4
        %v3029 = vshll.u32 %v2972, 16
        %v3031 = vrot.slane %v3029, 5
        %v3032 = vsel %vm899, %v3027, %v3031
        %v3033 = vshrl.u32 %v2972, 16
        %v3035 = vrot.slane %v3033, 4
        %v3036 = vor.u32 %v3035, %v3031
        %v3037 = vrot.slane %v3036, 4
        %v3039 = vshll.u32 %v2973, 16
        %v3041 = vrot.slane %v3039, 5
        %v3042 = vsel %vm899, %v3037, %v3041
        %v3044 = vshrl.u32 %v2974, 16
        %v3046 = vrot.slane %v3044, 4
        %v3047 = vshll.u32 %v2974, 16
        %v3049 = vrot.slane %v3047, 5
        %v3050 = vor.u32 %v3046, %v3049
        %v3051 = vrot.slane %v3050, 4
        %v3053 = vshll.u32 %v2975, 16
        %v3055 = vrot.slane %v3053, 5
        %v3056 = vsel %vm899, %v3051, %v3055
        %v3057 = vshrl.u32 %v2975, 16
        %v3059 = vrot.slane %v3057, 4
        %v3060 = vor.u32 %v3059, %v3055
        %v3061 = vrot.slane %v3060, 4
        %v3063 = vshll.u32 %v2976, 16
        %v3065 = vrot.slane %v3063, 5
        %v3066 = vsel %vm899, %v3061, %v3065
        %v3068 = vshrl.u32 %v2977, 16
        %v3070 = vrot.slane %v3068, 4
        %v3071 = vshll.u32 %v2977, 16
        %v3073 = vrot.slane %v3071, 5
        %v3074 = vor.u32 %v3070, %v3073
        %v3075 = vrot.slane %v3074, 4
        %v3077 = vshll.u32 %v2978, 16
        %v3079 = vrot.slane %v3077, 5
        %v3080 = vsel %vm899, %v3075, %v3079
        %v3081 = vshrl.u32 %v2978, 16
        %v3083 = vrot.slane %v3081, 4
        %v3084 = vor.u32 %v3083, %v3079
        %v3085 = vrot.slane %v3084, 4
        %v3087 = vshll.u32 %v2979, 16
        %v3089 = vrot.slane %v3087, 5
        %v3090 = vsel %vm899, %v3085, %v3089
        %v3092 = vshrl.u32 %v2980, 16
        %v3094 = vrot.slane %v3092, 4
        %v3095 = vshll.u32 %v2980, 16
        %v3097 = vrot.slane %v3095, 5
        %v3098 = vor.u32 %v3094, %v3097
        %v3099 = vrot.slane %v3098, 4
        %v3101 = vshll.u32 %v2981, 16
        %v3103 = vrot.slane %v3101, 5
        %v3104 = vsel %vm899, %v3099, %v3103
        %v3105 = vshrl.u32 %v2981, 16
        %v3107 = vrot.slane %v3105, 4
        %v3108 = vor.u32 %v3107, %v3103
        %v3109 = vrot.slane %v3108, 4
        %v3111 = vshll.u32 %v2982, 16
        %v3113 = vrot.slane %v3111, 5
        %v3114 = vsel %vm899, %v3109, %v3113
        %v3116 = vshrl.u32 %v2983, 16
        %v3118 = vrot.slane %v3116, 4
        %v3119 = vshll.u32 %v2983, 16
        %v3121 = vrot.slane %v3119, 5
        %v3122 = vor.u32 %v3118, %v3121
        %v3123 = vrot.slane %v3122, 4
        %v3125 = vshll.u32 %v2984, 16
        %v3127 = vrot.slane %v3125, 5
        %v3128 = vsel %vm899, %v3123, %v3127
        %v3129 = vshrl.u32 %v2984, 16
        %v3131 = vrot.slane %v3129, 4
        %v3132 = vor.u32 %v3131, %v3127
        %v3133 = vrot.slane %v3132, 4
        %v3135 = vshll.u32 %v2985, 16
        %v3137 = vrot.slane %v3135, 5
        %v3138 = vsel %vm899, %v3133, %v3137
        %v3140 = vshrl.u32 %v2986, 16
        %v3142 = vrot.slane %v3140, 4
        %v3143 = vshll.u32 %v2986, 16
        %v3145 = vrot.slane %v3143, 5
        %v3146 = vor.u32 %v3142, %v3145
        %v3147 = vrot.slane %v3146, 4
        %v3149 = vshll.u32 %v2987, 16
        %v3151 = vrot.slane %v3149, 5
        %v3152 = vsel %vm899, %v3147, %v3151
        %v3153 = vshrl.u32 %v2987, 16
        %v3155 = vrot.slane %v3153, 4
        %v3156 = vor.u32 %v3155, %v3151
        %v3157 = vrot.slane %v3156, 4
        %v3159 = vshll.u32 %v2988, 16
        %v3161 = vrot.slane %v3159, 5
        %v3162 = vsel %vm899, %v3157, %v3161
        %v3164 = vshrl.u32 %v2989, 16
        %v3166 = vrot.slane %v3164, 4
        %v3167 = vshll.u32 %v2989, 16
        %v3169 = vrot.slane %v3167, 5
        %v3170 = vor.u32 %v3166, %v3169
        %v3171 = vrot.slane %v3170, 4
        %v3173 = vshll.u32 %v2990, 16
        %v3175 = vrot.slane %v3173, 5
        %v3176 = vsel %vm899, %v3171, %v3175
        %v3177 = vshrl.u32 %v2990, 16
        %v3179 = vrot.slane %v3177, 4
        %v3180 = vor.u32 %v3179, %v3175
        %v3181 = vrot.slane %v3180, 4
        %v3183 = vshll.u32 %v2991, 16
        %v3185 = vrot.slane %v3183, 5
        %v3186 = vsel %vm899, %v3181, %v3185
        %v3188 = vshrl.u32 %v2992, 16
        %v3190 = vrot.slane %v3188, 4
        %v3191 = vshll.u32 %v2992, 16
        %v3193 = vrot.slane %v3191, 5
        %v3194 = vor.u32 %v3190, %v3193
        %v3195 = vrot.slane %v3194, 4
        %v3197 = vshll.u32 %v2993, 16
        %v3199 = vrot.slane %v3197, 5
        %v3200 = vsel %vm899, %v3195, %v3199
        %v3201 = vshrl.u32 %v2993, 16
        %v3203 = vrot.slane %v3201, 4
        %v3204 = vor.u32 %v3203, %v3199
        %v3205 = vrot.slane %v3204, 4
        %v3207 = vshll.u32 %v2994, 16
        %v3209 = vrot.slane %v3207, 5
        %v3210 = vsel %vm899, %v3205, %v3209
        %v3212 = vshrl.u32 %v2995, 16
        %v3214 = vrot.slane %v3212, 4
        %v3215 = vshll.u32 %v2995, 16
        %v3217 = vrot.slane %v3215, 5
        %v3218 = vor.u32 %v3214, %v3217
        %v3219 = vrot.slane %v3218, 4
        %v3221 = vshll.u32 %v2996, 16
        %v3223 = vrot.slane %v3221, 5
        %v3224 = vsel %vm899, %v3219, %v3223
        %v3225 = vshrl.u32 %v2996, 16
        %v3227 = vrot.slane %v3225, 4
        %v3228 = vor.u32 %v3227, %v3223
        %v3229 = vrot.slane %v3228, 4
        %v3231 = vshll.u32 %v2997, 16
        %v3233 = vrot.slane %v3231, 5
        %v3234 = vsel %vm899, %v3229, %v3233
        %v3236 = vshrl.u32 %v2998, 16
        %v3238 = vrot.slane %v3236, 4
        %v3239 = vshll.u32 %v2998, 16
        %v3241 = vrot.slane %v3239, 5
        %v3242 = vor.u32 %v3238, %v3241
        %v3243 = vrot.slane %v3242, 4
        %v3245 = vshll.u32 %v2999, 16
        %v3247 = vrot.slane %v3245, 5
        %v3248 = vsel %vm899, %v3243, %v3247
        %v3249 = vshrl.u32 %v2999, 16
        %v3251 = vrot.slane %v3249, 4
        %v3252 = vor.u32 %v3251, %v3247
        %v3253 = vrot.slane %v3252, 4
        %v3255 = vshll.u32 %v3000, 16
        %v3257 = vrot.slane %v3255, 5
        %v3258 = vsel %vm899, %v3253, %v3257
        %v3260 = vshrl.u32 %v3001, 16
        %v3262 = vrot.slane %v3260, 4
        %v3263 = vshll.u32 %v3001, 16
        %v3265 = vrot.slane %v3263, 5
        %v3266 = vor.u32 %v3262, %v3265
        %v3267 = vrot.slane %v3266, 4
        %v3269 = vshll.u32 %v3002, 16
        %v3271 = vrot.slane %v3269, 5
        %v3272 = vsel %vm899, %v3267, %v3271
        %v3273 = vshrl.u32 %v3002, 16
        %v3275 = vrot.slane %v3273, 4
        %v3276 = vor.u32 %v3275, %v3271
        %v3277 = vrot.slane %v3276, 4
        %v3279 = vshll.u32 %v3003, 16
        %v3281 = vrot.slane %v3279, 5
        %v3282 = vsel %vm899, %v3277, %v3281
        %v3284 = vshrl.u32 %v3004, 16
        %v3286 = vrot.slane %v3284, 4
        %v3287 = vshll.u32 %v3004, 16
        %v3289 = vrot.slane %v3287, 5
        %v3290 = vor.u32 %v3286, %v3289
        %v3291 = vrot.slane %v3290, 4
        %v3293 = vshll.u32 %v3005, 16
        %v3295 = vrot.slane %v3293, 5
        %v3296 = vsel %vm899, %v3291, %v3295
        %v3297 = vshrl.u32 %v3005, 16
        %v3299 = vrot.slane %v3297, 4
        %v3300 = vor.u32 %v3299, %v3295
        %v3301 = vrot.slane %v3300, 4
        %v3303 = vshll.u32 %v3006, 16
        %v3305 = vrot.slane %v3303, 5
        %v3306 = vsel %vm899, %v3301, %v3305
        %v3308 = vshrl.u32 %v3007, 16
        %v3310 = vrot.slane %v3308, 4
        %v3311 = vshll.u32 %v3007, 16
        %v3313 = vrot.slane %v3311, 5
        %v3314 = vor.u32 %v3310, %v3313
        %v3315 = vrot.slane %v3314, 4
        %v3317 = vshll.u32 %v3008, 16
        %v3319 = vrot.slane %v3317, 5
        %v3320 = vsel %vm899, %v3315, %v3319
        %v3321 = vshrl.u32 %v3008, 16
        %v3323 = vrot.slane %v3321, 4
        %v3324 = vor.u32 %v3323, %v3319
        %v3325 = vrot.slane %v3324, 4
        %v3327 = vshll.u32 %v3009, 16
        %v3329 = vrot.slane %v3327, 5
        %v3330 = vsel %vm899, %v3325, %v3329
        %v3332 = vshrl.u32 %v3010, 16
        %v3334 = vrot.slane %v3332, 4
        %v3335 = vshll.u32 %v3010, 16
        %v3337 = vrot.slane %v3335, 5
        %v3338 = vor.u32 %v3334, %v3337
        %v3339 = vrot.slane %v3338, 4
        %v3341 = vshll.u32 %v3011, 16
        %v3343 = vrot.slane %v3341, 5
        %v3344 = vsel %vm899, %v3339, %v3343
        %v3345 = vshrl.u32 %v3011, 16
        %v3347 = vrot.slane %v3345, 4
        %v3348 = vor.u32 %v3347, %v3343
        %v3349 = vrot.slane %v3348, 4
        %v3351 = vshll.u32 %v3012, 16
        %v3353 = vrot.slane %v3351, 5
        %v3354 = vsel %vm899, %v3349, %v3353
        %v3356 = vshrl.u32 %v3013, 16
        %v3358 = vrot.slane %v3356, 4
        %v3359 = vshll.u32 %v3013, 16
        %v3361 = vrot.slane %v3359, 5
        %v3362 = vor.u32 %v3358, %v3361
        %v3363 = vrot.slane %v3362, 4
        %v3365 = vshll.u32 %v3014, 16
        %v3367 = vrot.slane %v3365, 5
        %v3368 = vsel %vm899, %v3363, %v3367
        %v3369 = vshrl.u32 %v3014, 16
        %v3371 = vrot.slane %v3369, 4
        %v3372 = vor.u32 %v3371, %v3367
        %v3373 = vrot.slane %v3372, 4
        %v3375 = vshll.u32 %v3015, 16
        %v3377 = vrot.slane %v3375, 5
        %v3378 = vsel %vm899, %v3373, %v3377
        %v3380 = vshrl.u32 %v3016, 16
        %v3382 = vrot.slane %v3380, 4
        %v3383 = vshll.u32 %v3016, 16
        %v3385 = vrot.slane %v3383, 5
        %v3386 = vor.u32 %v3382, %v3385
        %v3387 = vrot.slane %v3386, 4
        %v3389 = vshll.u32 %v3017, 16
        %v3391 = vrot.slane %v3389, 5
        %v3392 = vsel %vm899, %v3387, %v3391
        %v3393 = vshrl.u32 %v3017, 16
        %v3395 = vrot.slane %v3393, 4
        %v3396 = vor.u32 %v3395, %v3391
        %v3397 = vrot.slane %v3396, 4
        %v3399 = vshll.u32 %v3018, 16
        %v3401 = vrot.slane %v3399, 5
        %v3402 = vsel %vm899, %v3397, %v3401
        %3403 = vrot.lane.b32.xlu0 %v3032, 96
        %v3404 = vpop.permute.xlu0 %3403
        %3405 = vrot.lane.b32.xlu0 %v3042, 96
        %v3406 = vpop.permute.xlu0 %3405
        %3407 = vrot.lane.b32.xlu0 %v3056, 96
        %v3408 = vpop.permute.xlu0 %3407
        %3409 = vrot.lane.b32.xlu0 %v3066, 96
        %v3410 = vpop.permute.xlu0 %3409
        %3411 = vrot.lane.b32.xlu0 %v3080, 96
        %v3412 = vpop.permute.xlu0 %3411
        %3413 = vrot.lane.b32.xlu0 %v3090, 96
        %v3414 = vpop.permute.xlu0 %3413
        %3415 = vrot.lane.b32.xlu0 %v3104, 96
        %v3416 = vpop.permute.xlu0 %3415
        %3417 = vrot.lane.b32.xlu0 %v3114, 96
        %v3418 = vpop.permute.xlu0 %3417
        %3419 = vrot.lane.b32.xlu0 %v3128, 96
        %v3420 = vpop.permute.xlu0 %3419
        %3421 = vrot.lane.b32.xlu0 %v3138, 96
        %v3422 = vpop.permute.xlu0 %3421
        %3423 = vrot.lane.b32.xlu0 %v3152, 96
        %v3424 = vpop.permute.xlu0 %3423
        %3425 = vrot.lane.b32.xlu0 %v3162, 96
        %v3426 = vpop.permute.xlu0 %3425
        %3427 = vrot.lane.b32.xlu0 %v3176, 96
        %v3428 = vpop.permute.xlu0 %3427
        %3429 = vrot.lane.b32.xlu0 %v3186, 96
        %v3430 = vpop.permute.xlu0 %3429
        %3431 = vrot.lane.b32.xlu0 %v3200, 96
        %v3432 = vpop.permute.xlu0 %3431
        %3433 = vrot.lane.b32.xlu0 %v3210, 96
        %v3434 = vpop.permute.xlu0 %3433
        %3435 = vrot.lane.b32.xlu0 %v3224, 96
        %v3436 = vpop.permute.xlu0 %3435
        %3437 = vrot.lane.b32.xlu0 %v3234, 96
        %v3438 = vpop.permute.xlu0 %3437
        %3439 = vrot.lane.b32.xlu0 %v3248, 96
        %v3440 = vpop.permute.xlu0 %3439
        %3441 = vrot.lane.b32.xlu0 %v3258, 96
        %v3442 = vpop.permute.xlu0 %3441
        %3443 = vrot.lane.b32.xlu0 %v3272, 96
        %v3444 = vpop.permute.xlu0 %3443
        %3445 = vrot.lane.b32.xlu0 %v3282, 96
        %v3446 = vpop.permute.xlu0 %3445
        %3447 = vrot.lane.b32.xlu0 %v3296, 96
        %v3448 = vpop.permute.xlu0 %3447
        %3449 = vrot.lane.b32.xlu0 %v3306, 96
        %v3450 = vpop.permute.xlu0 %3449
        %3451 = vrot.lane.b32.xlu0 %v3320, 96
        %v3452 = vpop.permute.xlu0 %3451
        %3453 = vrot.lane.b32.xlu0 %v3330, 96
        %v3454 = vpop.permute.xlu0 %3453
        %3455 = vrot.lane.b32.xlu0 %v3344, 96
        %v3456 = vpop.permute.xlu0 %3455
        %3457 = vrot.lane.b32.xlu0 %v3354, 96
        %v3458 = vpop.permute.xlu0 %3457
        %3459 = vrot.lane.b32.xlu0 %v3368, 96
        %v3460 = vpop.permute.xlu0 %3459
        %3461 = vrot.lane.b32.xlu0 %v3378, 96
        %v3462 = vpop.permute.xlu0 %3461
        %3463 = vrot.lane.b32.xlu0 %v3392, 96
        %v3464 = vpop.permute.xlu0 %3463
        %3465 = vrot.lane.b32.xlu0 %v3402, 96
        %v3466 = vpop.permute.xlu0 %3465
        %3499 = vst.msk [vmem:[#allocation3 + $0x4] sm:$0xf] %vm1913, %v3404
        %3500 = vst.msk [vmem:[#allocation3 + $0x10] sm:$0xf] %vm1913, %v3406
        %3501 = vst.msk [vmem:[#allocation3 + $0x1c] sm:$0xf] %vm1913, %v3408
        %3502 = vst.msk [vmem:[#allocation3 + $0x28] sm:$0xf] %vm1913, %v3410
        %3503 = vst.msk [vmem:[#allocation3 + $0x34] sm:$0xf] %vm1913, %v3412
        %3504 = vst.msk [vmem:[#allocation3 + $0x40] sm:$0xf] %vm1913, %v3414
        %3505 = vst.msk [vmem:[#allocation3 + $0x4c] sm:$0xf] %vm1913, %v3416
        %3506 = vst.msk [vmem:[#allocation3 + $0x58] sm:$0xf] %vm1913, %v3418
        %3507 = vst.msk [vmem:[#allocation3 + $0x64] sm:$0xf] %vm1913, %v3420
        %3508 = vst.msk [vmem:[#allocation3 + $0x70] sm:$0xf] %vm1913, %v3422
        %3509 = vst.msk [vmem:[#allocation3 + $0x7c] sm:$0xf] %vm1913, %v3424
        %3510 = vst.msk [vmem:[#allocation3 + $0x88] sm:$0xf] %vm1913, %v3426
        %3511 = vst.msk [vmem:[#allocation3 + $0x94] sm:$0xf] %vm1913, %v3428
        %3512 = vst.msk [vmem:[#allocation3 + $0xa0] sm:$0xf] %vm1913, %v3430
        %3513 = vst.msk [vmem:[#allocation3 + $0xac] sm:$0xf] %vm1913, %v3432
        %3514 = vst.msk [vmem:[#allocation3 + $0xb8] sm:$0xf] %vm1913, %v3434
        %3515 = vst.msk [vmem:[#allocation3 + $0xc4] sm:$0xf] %vm1913, %v3436
        %3516 = vst.msk [vmem:[#allocation3 + $0xd0] sm:$0xf] %vm1913, %v3438
        %3517 = vst.msk [vmem:[#allocation3 + $0xdc] sm:$0xf] %vm1913, %v3440
        %3518 = vst.msk [vmem:[#allocation3 + $0xe8] sm:$0xf] %vm1913, %v3442
        %3519 = vst.msk [vmem:[#allocation3 + $0xf4] sm:$0xf] %vm1913, %v3444
        %3520 = vst.msk [vmem:[#allocation3 + $0x100] sm:$0xf] %vm1913, %v3446
        %3521 = vst.msk [vmem:[#allocation3 + $0x10c] sm:$0xf] %vm1913, %v3448
        %3522 = vst.msk [vmem:[#allocation3 + $0x118] sm:$0xf] %vm1913, %v3450
        %3523 = vst.msk [vmem:[#allocation3 + $0x124] sm:$0xf] %vm1913, %v3452
        %3524 = vst.msk [vmem:[#allocation3 + $0x130] sm:$0xf] %vm1913, %v3454
        %3525 = vst.msk [vmem:[#allocation3 + $0x13c] sm:$0xf] %vm1913, %v3456
        %3526 = vst.msk [vmem:[#allocation3 + $0x148] sm:$0xf] %vm1913, %v3458
        %3527 = vst.msk [vmem:[#allocation3 + $0x154] sm:$0xf] %vm1913, %v3460
        %3528 = vst.msk [vmem:[#allocation3 + $0x160] sm:$0xf] %vm1913, %v3462
        %3529 = vst.msk [vmem:[#allocation3 + $0x16c] sm:$0xf] %vm1913, %v3464
        %3530 = vst.msk [vmem:[#allocation3 + $0x178] sm:$0xf] %vm1913, %v3466
        %v3531 = vld [vmem:[%s2778] sm:$0xe]
        %v3532 = vld [vmem:[%s2778 + $0x4] sm:$0xf]
        %v3533 = vld [vmem:[%s2778 + $0x8] sm:$0x1]
        %v3534 = vld [vmem:[%s2778 + $0xc] sm:$0xe]
        %v3535 = vld [vmem:[%s2778 + $0x10] sm:$0xf]
        %v3536 = vld [vmem:[%s2778 + $0x14] sm:$0x1]
        %v3537 = vld [vmem:[%s2778 + $0x18] sm:$0xe]
        %v3538 = vld [vmem:[%s2778 + $0x1c] sm:$0xf]
        %v3539 = vld [vmem:[%s2778 + $0x20] sm:$0x1]
        %v3540 = vld [vmem:[%s2778 + $0x24] sm:$0xe]
        %v3541 = vld [vmem:[%s2778 + $0x28] sm:$0xf]
        %v3542 = vld [vmem:[%s2778 + $0x2c] sm:$0x1]
        %v3543 = vld [vmem:[%s2778 + $0x30] sm:$0xe]
        %v3544 = vld [vmem:[%s2778 + $0x34] sm:$0xf]
        %v3545 = vld [vmem:[%s2778 + $0x38] sm:$0x1]
        %v3546 = vld [vmem:[%s2778 + $0x3c] sm:$0xe]
        %v3547 = vld [vmem:[%s2778 + $0x40] sm:$0xf]
        %v3548 = vld [vmem:[%s2778 + $0x44] sm:$0x1]
        %v3549 = vld [vmem:[%s2778 + $0x48] sm:$0xe]
        %v3550 = vld [vmem:[%s2778 + $0x4c] sm:$0xf]
        %v3551 = vld [vmem:[%s2778 + $0x50] sm:$0x1]
        %v3552 = vld [vmem:[%s2778 + $0x54] sm:$0xe]
        %v3553 = vld [vmem:[%s2778 + $0x58] sm:$0xf]
        %v3554 = vld [vmem:[%s2778 + $0x5c] sm:$0x1]
        %v3555 = vld [vmem:[%s2778 + $0x60] sm:$0xe]
        %v3556 = vld [vmem:[%s2778 + $0x64] sm:$0xf]
        %v3557 = vld [vmem:[%s2778 + $0x68] sm:$0x1]
        %v3558 = vld [vmem:[%s2778 + $0x6c] sm:$0xe]
        %v3559 = vld [vmem:[%s2778 + $0x70] sm:$0xf]
        %v3560 = vld [vmem:[%s2778 + $0x74] sm:$0x1]
        %v3561 = vld [vmem:[%s2778 + $0x78] sm:$0xe]
        %v3562 = vld [vmem:[%s2778 + $0x7c] sm:$0xf]
        %v3563 = vld [vmem:[%s2778 + $0x80] sm:$0x1]
        %v3564 = vld [vmem:[%s2778 + $0x84] sm:$0xe]
        %v3565 = vld [vmem:[%s2778 + $0x88] sm:$0xf]
        %v3566 = vld [vmem:[%s2778 + $0x8c] sm:$0x1]
        %v3567 = vld [vmem:[%s2778 + $0x90] sm:$0xe]
        %v3568 = vld [vmem:[%s2778 + $0x94] sm:$0xf]
        %v3569 = vld [vmem:[%s2778 + $0x98] sm:$0x1]
        %v3570 = vld [vmem:[%s2778 + $0x9c] sm:$0xe]
        %v3571 = vld [vmem:[%s2778 + $0xa0] sm:$0xf]
        %v3572 = vld [vmem:[%s2778 + $0xa4] sm:$0x1]
        %v3573 = vld [vmem:[%s2778 + $0xa8] sm:$0xe]
        %v3574 = vld [vmem:[%s2778 + $0xac] sm:$0xf]
        %v3575 = vld [vmem:[%s2778 + $0xb0] sm:$0x1]
        %v3576 = vld [vmem:[%s2778 + $0xb4] sm:$0xe]
        %v3577 = vld [vmem:[%s2778 + $0xb8] sm:$0xf]
        %v3578 = vld [vmem:[%s2778 + $0xbc] sm:$0x1]
        %v3627 = vrot.slane %v3531, 5
        %v3628 = vrot.slane %v3627, 4
        %v3629 = vrot.slane %v3532, 5
        %v3630 = vsel %vm1511, %v3628, %v3629
        %v3631 = vrot.slane %v3629, 4
        %v3632 = vrot.slane %v3533, 5
        %v3633 = vsel %vm1511, %v3631, %v3632
        %v3634 = vrot.slane %v3534, 5
        %v3635 = vrot.slane %v3634, 4
        %v3636 = vrot.slane %v3535, 5
        %v3637 = vsel %vm1511, %v3635, %v3636
        %v3638 = vrot.slane %v3636, 4
        %v3639 = vrot.slane %v3536, 5
        %v3640 = vsel %vm1511, %v3638, %v3639
        %v3641 = vrot.slane %v3537, 5
        %v3642 = vrot.slane %v3641, 4
        %v3643 = vrot.slane %v3538, 5
        %v3644 = vsel %vm1511, %v3642, %v3643
        %v3645 = vrot.slane %v3643, 4
        %v3646 = vrot.slane %v3539, 5
        %v3647 = vsel %vm1511, %v3645, %v3646
        %v3648 = vrot.slane %v3540, 5
        %v3649 = vrot.slane %v3648, 4
        %v3650 = vrot.slane %v3541, 5
        %v3651 = vsel %vm1511, %v3649, %v3650
        %v3652 = vrot.slane %v3650, 4
        %v3653 = vrot.slane %v3542, 5
        %v3654 = vsel %vm1511, %v3652, %v3653
        %v3655 = vrot.slane %v3543, 5
        %v3656 = vrot.slane %v3655, 4
        %v3657 = vrot.slane %v3544, 5
        %v3658 = vsel %vm1511, %v3656, %v3657
        %v3659 = vrot.slane %v3657, 4
        %v3660 = vrot.slane %v3545, 5
        %v3661 = vsel %vm1511, %v3659, %v3660
        %v3662 = vrot.slane %v3546, 5
        %v3663 = vrot.slane %v3662, 4
        %v3664 = vrot.slane %v3547, 5
        %v3665 = vsel %vm1511, %v3663, %v3664
        %v3666 = vrot.slane %v3664, 4
        %v3667 = vrot.slane %v3548, 5
        %v3668 = vsel %vm1511, %v3666, %v3667
        %v3669 = vrot.slane %v3549, 5
        %v3670 = vrot.slane %v3669, 4
        %v3671 = vrot.slane %v3550, 5
        %v3672 = vsel %vm1511, %v3670, %v3671
        %v3673 = vrot.slane %v3671, 4
        %v3674 = vrot.slane %v3551, 5
        %v3675 = vsel %vm1511, %v3673, %v3674
        %v3676 = vrot.slane %v3552, 5
        %v3677 = vrot.slane %v3676, 4
        %v3678 = vrot.slane %v3553, 5
        %v3679 = vsel %vm1511, %v3677, %v3678
        %v3680 = vrot.slane %v3678, 4
        %v3681 = vrot.slane %v3554, 5
        %v3682 = vsel %vm1511, %v3680, %v3681
        %v3683 = vrot.slane %v3555, 5
        %v3684 = vrot.slane %v3683, 4
        %v3685 = vrot.slane %v3556, 5
        %v3686 = vsel %vm1511, %v3684, %v3685
        %v3687 = vrot.slane %v3685, 4
        %v3688 = vrot.slane %v3557, 5
        %v3689 = vsel %vm1511, %v3687, %v3688
        %v3690 = vrot.slane %v3558, 5
        %v3691 = vrot.slane %v3690, 4
        %v3692 = vrot.slane %v3559, 5
        %v3693 = vsel %vm1511, %v3691, %v3692
        %v3694 = vrot.slane %v3692, 4
        %v3695 = vrot.slane %v3560, 5
        %v3696 = vsel %vm1511, %v3694, %v3695
        %v3697 = vrot.slane %v3561, 5
        %v3698 = vrot.slane %v3697, 4
        %v3699 = vrot.slane %v3562, 5
        %v3700 = vsel %vm1511, %v3698, %v3699
        %v3701 = vrot.slane %v3699, 4
        %v3702 = vrot.slane %v3563, 5
        %v3703 = vsel %vm1511, %v3701, %v3702
        %v3704 = vrot.slane %v3564, 5
        %v3705 = vrot.slane %v3704, 4
        %v3706 = vrot.slane %v3565, 5
        %v3707 = vsel %vm1511, %v3705, %v3706
        %v3708 = vrot.slane %v3706, 4
        %v3709 = vrot.slane %v3566, 5
        %v3710 = vsel %vm1511, %v3708, %v3709
        %v3711 = vrot.slane %v3567, 5
        %v3712 = vrot.slane %v3711, 4
        %v3713 = vrot.slane %v3568, 5
        %v3714 = vsel %vm1511, %v3712, %v3713
        %v3715 = vrot.slane %v3713, 4
        %v3716 = vrot.slane %v3569, 5
        %v3717 = vsel %vm1511, %v3715, %v3716
        %v3718 = vrot.slane %v3570, 5
        %v3719 = vrot.slane %v3718, 4
        %v3720 = vrot.slane %v3571, 5
        %v3721 = vsel %vm1511, %v3719, %v3720
        %v3722 = vrot.slane %v3720, 4
        %v3723 = vrot.slane %v3572, 5
        %v3724 = vsel %vm1511, %v3722, %v3723
        %v3725 = vrot.slane %v3573, 5
        %v3726 = vrot.slane %v3725, 4
        %v3727 = vrot.slane %v3574, 5
        %v3728 = vsel %vm1511, %v3726, %v3727
        %v3729 = vrot.slane %v3727, 4
        %v3730 = vrot.slane %v3575, 5
        %v3731 = vsel %vm1511, %v3729, %v3730
        %v3732 = vrot.slane %v3576, 5
        %v3733 = vrot.slane %v3732, 4
        %v3734 = vrot.slane %v3577, 5
        %v3735 = vsel %vm1511, %v3733, %v3734
        %v3736 = vrot.slane %v3734, 4
        %v3737 = vrot.slane %v3578, 5
        %v3738 = vsel %vm1511, %v3736, %v3737
        %3771 = vst.msk [vmem:[#allocation3 + $0x8] sm:$0xf] %vm256, %v3630
        %3772 = vst.msk [vmem:[#allocation3 + $0x14] sm:$0xf] %vm256, %v3633
        %3773 = vst.msk [vmem:[#allocation3 + $0x20] sm:$0xf] %vm256, %v3637
        %3774 = vst.msk [vmem:[#allocation3 + $0x2c] sm:$0xf] %vm256, %v3640
        %3775 = vst.msk [vmem:[#allocation3 + $0x38] sm:$0xf] %vm256, %v3644
        %3776 = vst.msk [vmem:[#allocation3 + $0x44] sm:$0xf] %vm256, %v3647
        %3777 = vst.msk [vmem:[#allocation3 + $0x50] sm:$0xf] %vm256, %v3651
        %3778 = vst.msk [vmem:[#allocation3 + $0x5c] sm:$0xf] %vm256, %v3654
        %3779 = vst.msk [vmem:[#allocation3 + $0x68] sm:$0xf] %vm256, %v3658
        %3780 = vst.msk [vmem:[#allocation3 + $0x74] sm:$0xf] %vm256, %v3661
        %3781 = vst.msk [vmem:[#allocation3 + $0x80] sm:$0xf] %vm256, %v3665
        %3782 = vst.msk [vmem:[#allocation3 + $0x8c] sm:$0xf] %vm256, %v3668
        %3783 = vst.msk [vmem:[#allocation3 + $0x98] sm:$0xf] %vm256, %v3672
        %3784 = vst.msk [vmem:[#allocation3 + $0xa4] sm:$0xf] %vm256, %v3675
        %3785 = vst.msk [vmem:[#allocation3 + $0xb0] sm:$0xf] %vm256, %v3679
        %3786 = vst.msk [vmem:[#allocation3 + $0xbc] sm:$0xf] %vm256, %v3682
        %3787 = vst.msk [vmem:[#allocation3 + $0xc8] sm:$0xf] %vm256, %v3686
        %3788 = vst.msk [vmem:[#allocation3 + $0xd4] sm:$0xf] %vm256, %v3689
        %3789 = vst.msk [vmem:[#allocation3 + $0xe0] sm:$0xf] %vm256, %v3693
        %3790 = vst.msk [vmem:[#allocation3 + $0xec] sm:$0xf] %vm256, %v3696
        %3791 = vst.msk [vmem:[#allocation3 + $0xf8] sm:$0xf] %vm256, %v3700
        %3792 = vst.msk [vmem:[#allocation3 + $0x104] sm:$0xf] %vm256, %v3703
        %3793 = vst.msk [vmem:[#allocation3 + $0x110] sm:$0xf] %vm256, %v3707
        %3794 = vst.msk [vmem:[#allocation3 + $0x11c] sm:$0xf] %vm256, %v3710
        %3795 = vst.msk [vmem:[#allocation3 + $0x128] sm:$0xf] %vm256, %v3714
        %3796 = vst.msk [vmem:[#allocation3 + $0x134] sm:$0xf] %vm256, %v3717
        %3797 = vst.msk [vmem:[#allocation3 + $0x140] sm:$0xf] %vm256, %v3721
        %3798 = vst.msk [vmem:[#allocation3 + $0x14c] sm:$0xf] %vm256, %v3724
        %3799 = vst.msk [vmem:[#allocation3 + $0x158] sm:$0xf] %vm256, %v3728
        %3800 = vst.msk [vmem:[#allocation3 + $0x164] sm:$0xf] %vm256, %v3731
        %3801 = vst.msk [vmem:[#allocation3 + $0x170] sm:$0xf] %vm256, %v3735
        %3802 = vst.msk [vmem:[#allocation3 + $0x17c] sm:$0xf] %vm256, %v3738
        %v3803 = vld [vmem:[#allocation3] sm:$0xff]
        %v3804 = vld [vmem:[#allocation3 + $0x8] sm:$0xf]
        %v3805 = vld [vmem:[#allocation3 + $0xc] sm:$0xff]
        %v3806 = vld [vmem:[#allocation3 + $0x14] sm:$0xf]
        %v3807 = vld [vmem:[#allocation3 + $0x18] sm:$0xff]
        %v3808 = vld [vmem:[#allocation3 + $0x20] sm:$0xf]
        %v3809 = vld [vmem:[#allocation3 + $0x24] sm:$0xff]
        %v3810 = vld [vmem:[#allocation3 + $0x2c] sm:$0xf]
        %v3811 = vld [vmem:[#allocation3 + $0x30] sm:$0xff]
        %v3812 = vld [vmem:[#allocation3 + $0x38] sm:$0xf]
        %v3813 = vld [vmem:[#allocation3 + $0x3c] sm:$0xff]
        %v3814 = vld [vmem:[#allocation3 + $0x44] sm:$0xf]
        %v3815 = vld [vmem:[#allocation3 + $0x48] sm:$0xff]
        %v3816 = vld [vmem:[#allocation3 + $0x50] sm:$0xf]
        %v3817 = vld [vmem:[#allocation3 + $0x54] sm:$0xff]
        %v3818 = vld [vmem:[#allocation3 + $0x5c] sm:$0xf]
        %v3819 = vld [vmem:[#allocation3 + $0x60] sm:$0xff]
        %v3820 = vld [vmem:[#allocation3 + $0x68] sm:$0xf]
        %v3821 = vld [vmem:[#allocation3 + $0x6c] sm:$0xff]
        %v3822 = vld [vmem:[#allocation3 + $0x74] sm:$0xf]
        %v3823 = vld [vmem:[#allocation3 + $0x78] sm:$0xff]
        %v3824 = vld [vmem:[#allocation3 + $0x80] sm:$0xf]
        %v3825 = vld [vmem:[#allocation3 + $0x84] sm:$0xff]
        %v3826 = vld [vmem:[#allocation3 + $0x8c] sm:$0xf]
        %v3827 = vld [vmem:[#allocation3 + $0x90] sm:$0xff]
        %v3828 = vld [vmem:[#allocation3 + $0x98] sm:$0xf]
        %v3829 = vld [vmem:[#allocation3 + $0x9c] sm:$0xff]
        %v3830 = vld [vmem:[#allocation3 + $0xa4] sm:$0xf]
        %v3831 = vld [vmem:[#allocation3 + $0xa8] sm:$0xff]
        %v3832 = vld [vmem:[#allocation3 + $0xb0] sm:$0xf]
        %v3833 = vld [vmem:[#allocation3 + $0xb4] sm:$0xff]
        %v3834 = vld [vmem:[#allocation3 + $0xbc] sm:$0xf]
        %v3835 = vld [vmem:[#allocation3 + $0xc0] sm:$0xff]
        %v3836 = vld [vmem:[#allocation3 + $0xc8] sm:$0xf]
        %v3837 = vld [vmem:[#allocation3 + $0xcc] sm:$0xff]
        %v3838 = vld [vmem:[#allocation3 + $0xd4] sm:$0xf]
        %v3839 = vld [vmem:[#allocation3 + $0xd8] sm:$0xff]
        %v3840 = vld [vmem:[#allocation3 + $0xe0] sm:$0xf]
        %v3841 = vld [vmem:[#allocation3 + $0xe4] sm:$0xff]
        %v3842 = vld [vmem:[#allocation3 + $0xec] sm:$0xf]
        %v3843 = vld [vmem:[#allocation3 + $0xf0] sm:$0xff]
        %v3844 = vld [vmem:[#allocation3 + $0xf8] sm:$0xf]
        %v3845 = vld [vmem:[#allocation3 + $0xfc] sm:$0xff]
        %v3846 = vld [vmem:[#allocation3 + $0x104] sm:$0xf]
        %v3847 = vld [vmem:[#allocation3 + $0x108] sm:$0xff]
        %v3848 = vld [vmem:[#allocation3 + $0x110] sm:$0xf]
        %v3849 = vld [vmem:[#allocation3 + $0x114] sm:$0xff]
        %v3850 = vld [vmem:[#allocation3 + $0x11c] sm:$0xf]
        %v3851 = vld [vmem:[#allocation3 + $0x120] sm:$0xff]
        %v3852 = vld [vmem:[#allocation3 + $0x128] sm:$0xf]
        %v3853 = vld [vmem:[#allocation3 + $0x12c] sm:$0xff]
        %v3854 = vld [vmem:[#allocation3 + $0x134] sm:$0xf]
        %v3855 = vld [vmem:[#allocation3 + $0x138] sm:$0xff]
        %v3856 = vld [vmem:[#allocation3 + $0x140] sm:$0xf]
        %v3857 = vld [vmem:[#allocation3 + $0x144] sm:$0xff]
        %v3858 = vld [vmem:[#allocation3 + $0x14c] sm:$0xf]
        %v3859 = vld [vmem:[#allocation3 + $0x150] sm:$0xff]
        %v3860 = vld [vmem:[#allocation3 + $0x158] sm:$0xf]
        %v3861 = vld [vmem:[#allocation3 + $0x15c] sm:$0xff]
        %v3862 = vld [vmem:[#allocation3 + $0x164] sm:$0xf]
        %v3863 = vld [vmem:[#allocation3 + $0x168] sm:$0xff]
        %v3864 = vld [vmem:[#allocation3 + $0x170] sm:$0xf]
        %v3865 = vld [vmem:[#allocation3 + $0x174] sm:$0xff]
        %v3866 = vld [vmem:[#allocation3 + $0x17c] sm:$0xf]
        %v3867 = vunpack.c.l.bf16 %v3803
        %v3868 = vunpack.c.h.bf16 %v3803
        %v3869 = vunpack.c.l.bf16 %v3804
        %v3870 = vunpack.c.l.bf16 %v3805
        %v3871 = vunpack.c.h.bf16 %v3805
        %v3872 = vunpack.c.l.bf16 %v3806
        %v3873 = vunpack.c.l.bf16 %v3807
        %v3874 = vunpack.c.h.bf16 %v3807
        %v3875 = vunpack.c.l.bf16 %v3808
        %v3876 = vunpack.c.l.bf16 %v3809
        %v3877 = vunpack.c.h.bf16 %v3809
        %v3878 = vunpack.c.l.bf16 %v3810
        %v3879 = vunpack.c.l.bf16 %v3811
        %v3880 = vunpack.c.h.bf16 %v3811
        %v3881 = vunpack.c.l.bf16 %v3812
        %v3882 = vunpack.c.l.bf16 %v3813
        %v3883 = vunpack.c.h.bf16 %v3813
        %v3884 = vunpack.c.l.bf16 %v3814
        %v3885 = vunpack.c.l.bf16 %v3815
        %v3886 = vunpack.c.h.bf16 %v3815
        %v3887 = vunpack.c.l.bf16 %v3816
        %v3888 = vunpack.c.l.bf16 %v3817
        %v3889 = vunpack.c.h.bf16 %v3817
        %v3890 = vunpack.c.l.bf16 %v3818
        %v3891 = vunpack.c.l.bf16 %v3819
        %v3892 = vunpack.c.h.bf16 %v3819
        %v3893 = vunpack.c.l.bf16 %v3820
        %v3894 = vunpack.c.l.bf16 %v3821
        %v3895 = vunpack.c.h.bf16 %v3821
        %v3896 = vunpack.c.l.bf16 %v3822
        %v3897 = vunpack.c.l.bf16 %v3823
        %v3898 = vunpack.c.h.bf16 %v3823
        %v3899 = vunpack.c.l.bf16 %v3824
        %v3900 = vunpack.c.l.bf16 %v3825
        %v3901 = vunpack.c.h.bf16 %v3825
        %v3902 = vunpack.c.l.bf16 %v3826
        %v3903 = vunpack.c.l.bf16 %v3827
        %v3904 = vunpack.c.h.bf16 %v3827
        %v3905 = vunpack.c.l.bf16 %v3828
        %v3906 = vunpack.c.l.bf16 %v3829
        %v3907 = vunpack.c.h.bf16 %v3829
        %v3908 = vunpack.c.l.bf16 %v3830
        %v3909 = vunpack.c.l.bf16 %v3831
        %v3910 = vunpack.c.h.bf16 %v3831
        %v3911 = vunpack.c.l.bf16 %v3832
        %v3912 = vunpack.c.l.bf16 %v3833
        %v3913 = vunpack.c.h.bf16 %v3833
        %v3914 = vunpack.c.l.bf16 %v3834
        %v3915 = vunpack.c.l.bf16 %v3835
        %v3916 = vunpack.c.h.bf16 %v3835
        %v3917 = vunpack.c.l.bf16 %v3836
        %v3918 = vunpack.c.l.bf16 %v3837
        %v3919 = vunpack.c.h.bf16 %v3837
        %v3920 = vunpack.c.l.bf16 %v3838
        %v3921 = vunpack.c.l.bf16 %v3839
        %v3922 = vunpack.c.h.bf16 %v3839
        %v3923 = vunpack.c.l.bf16 %v3840
        %v3924 = vunpack.c.l.bf16 %v3841
        %v3925 = vunpack.c.h.bf16 %v3841
        %v3926 = vunpack.c.l.bf16 %v3842
        %v3927 = vunpack.c.l.bf16 %v3843
        %v3928 = vunpack.c.h.bf16 %v3843
        %v3929 = vunpack.c.l.bf16 %v3844
        %v3930 = vunpack.c.l.bf16 %v3845
        %v3931 = vunpack.c.h.bf16 %v3845
        %v3932 = vunpack.c.l.bf16 %v3846
        %v3933 = vunpack.c.l.bf16 %v3847
        %v3934 = vunpack.c.h.bf16 %v3847
        %v3935 = vunpack.c.l.bf16 %v3848
        %v3936 = vunpack.c.l.bf16 %v3849
        %v3937 = vunpack.c.h.bf16 %v3849
        %v3938 = vunpack.c.l.bf16 %v3850
        %v3939 = vunpack.c.l.bf16 %v3851
        %v3940 = vunpack.c.h.bf16 %v3851
        %v3941 = vunpack.c.l.bf16 %v3852
        %v3942 = vunpack.c.l.bf16 %v3853
        %v3943 = vunpack.c.h.bf16 %v3853
        %v3944 = vunpack.c.l.bf16 %v3854
        %v3945 = vunpack.c.l.bf16 %v3855
        %v3946 = vunpack.c.h.bf16 %v3855
        %v3947 = vunpack.c.l.bf16 %v3856
        %v3948 = vunpack.c.l.bf16 %v3857
        %v3949 = vunpack.c.h.bf16 %v3857
        %v3950 = vunpack.c.l.bf16 %v3858
        %v3951 = vunpack.c.l.bf16 %v3859
        %v3952 = vunpack.c.h.bf16 %v3859
        %v3953 = vunpack.c.l.bf16 %v3860
        %v3954 = vunpack.c.l.bf16 %v3861
        %v3955 = vunpack.c.h.bf16 %v3861
        %v3956 = vunpack.c.l.bf16 %v3862
        %v3957 = vunpack.c.l.bf16 %v3863
        %v3958 = vunpack.c.h.bf16 %v3863
        %v3959 = vunpack.c.l.bf16 %v3864
        %v3960 = vunpack.c.l.bf16 %v3865
        %v3961 = vunpack.c.h.bf16 %v3865
        %v3962 = vunpack.c.l.bf16 %v3866
        %v3963 = vmax.f32 %v3867, 0.0
        %v3964 = vmax.f32 %v3868, 0.0
        %v3965 = vmax.f32 %v3869, 0.0
        %v3966 = vmax.f32 %v3870, 0.0
        %v3967 = vmax.f32 %v3871, 0.0
        %v3968 = vmax.f32 %v3872, 0.0
        %v3969 = vmax.f32 %v3873, 0.0
        %v3970 = vmax.f32 %v3874, 0.0
        %v3971 = vmax.f32 %v3875, 0.0
        %v3972 = vmax.f32 %v3876, 0.0
        %v3973 = vmax.f32 %v3877, 0.0
        %v3974 = vmax.f32 %v3878, 0.0
        %v3975 = vmax.f32 %v3879, 0.0
        %v3976 = vmax.f32 %v3880, 0.0
        %v3977 = vmax.f32 %v3881, 0.0
        %v3978 = vmax.f32 %v3882, 0.0
        %v3979 = vmax.f32 %v3883, 0.0
        %v3980 = vmax.f32 %v3884, 0.0
        %v3981 = vmax.f32 %v3885, 0.0
        %v3982 = vmax.f32 %v3886, 0.0
        %v3983 = vmax.f32 %v3887, 0.0
        %v3984 = vmax.f32 %v3888, 0.0
        %v3985 = vmax.f32 %v3889, 0.0
        %v3986 = vmax.f32 %v3890, 0.0
        %v3987 = vmax.f32 %v3891, 0.0
        %v3988 = vmax.f32 %v3892, 0.0
        %v3989 = vmax.f32 %v3893, 0.0
        %v3990 = vmax.f32 %v3894, 0.0
        %v3991 = vmax.f32 %v3895, 0.0
        %v3992 = vmax.f32 %v3896, 0.0
        %v3993 = vmax.f32 %v3897, 0.0
        %v3994 = vmax.f32 %v3898, 0.0
        %v3995 = vmax.f32 %v3899, 0.0
        %v3996 = vmax.f32 %v3900, 0.0
        %v3997 = vmax.f32 %v3901, 0.0
        %v3998 = vmax.f32 %v3902, 0.0
        %v3999 = vmax.f32 %v3903, 0.0
        %v4000 = vmax.f32 %v3904, 0.0
        %v4001 = vmax.f32 %v3905, 0.0
        %v4002 = vmax.f32 %v3906, 0.0
        %v4003 = vmax.f32 %v3907, 0.0
        %v4004 = vmax.f32 %v3908, 0.0
        %v4005 = vmax.f32 %v3909, 0.0
        %v4006 = vmax.f32 %v3910, 0.0
        %v4007 = vmax.f32 %v3911, 0.0
        %v4008 = vmax.f32 %v3912, 0.0
        %v4009 = vmax.f32 %v3913, 0.0
        %v4010 = vmax.f32 %v3914, 0.0
        %v4011 = vmax.f32 %v3915, 0.0
        %v4012 = vmax.f32 %v3916, 0.0
        %v4013 = vmax.f32 %v3917, 0.0
        %v4014 = vmax.f32 %v3918, 0.0
        %v4015 = vmax.f32 %v3919, 0.0
        %v4016 = vmax.f32 %v3920, 0.0
        %v4017 = vmax.f32 %v3921, 0.0
        %v4018 = vmax.f32 %v3922, 0.0
        %v4019 = vmax.f32 %v3923, 0.0
        %v4020 = vmax.f32 %v3924, 0.0
        %v4021 = vmax.f32 %v3925, 0.0
        %v4022 = vmax.f32 %v3926, 0.0
        %v4023 = vmax.f32 %v3927, 0.0
        %v4024 = vmax.f32 %v3928, 0.0
        %v4025 = vmax.f32 %v3929, 0.0
        %v4026 = vmax.f32 %v3930, 0.0
        %v4027 = vmax.f32 %v3931, 0.0
        %v4028 = vmax.f32 %v3932, 0.0
        %v4029 = vmax.f32 %v3933, 0.0
        %v4030 = vmax.f32 %v3934, 0.0
        %v4031 = vmax.f32 %v3935, 0.0
        %v4032 = vmax.f32 %v3936, 0.0
        %v4033 = vmax.f32 %v3937, 0.0
        %v4034 = vmax.f32 %v3938, 0.0
        %v4035 = vmax.f32 %v3939, 0.0
        %v4036 = vmax.f32 %v3940, 0.0
        %v4037 = vmax.f32 %v3941, 0.0
        %v4038 = vmax.f32 %v3942, 0.0
        %v4039 = vmax.f32 %v3943, 0.0
        %v4040 = vmax.f32 %v3944, 0.0
        %v4041 = vmax.f32 %v3945, 0.0
        %v4042 = vmax.f32 %v3946, 0.0
        %v4043 = vmax.f32 %v3947, 0.0
        %v4044 = vmax.f32 %v3948, 0.0
        %v4045 = vmax.f32 %v3949, 0.0
        %v4046 = vmax.f32 %v3950, 0.0
        %v4047 = vmax.f32 %v3951, 0.0
        %v4048 = vmax.f32 %v3952, 0.0
        %v4049 = vmax.f32 %v3953, 0.0
        %v4050 = vmax.f32 %v3954, 0.0
        %v4051 = vmax.f32 %v3955, 0.0
        %v4052 = vmax.f32 %v3956, 0.0
        %v4053 = vmax.f32 %v3957, 0.0
        %v4054 = vmax.f32 %v3958, 0.0
        %v4055 = vmax.f32 %v3959, 0.0
        %v4056 = vmax.f32 %v3960, 0.0
        %v4057 = vmax.f32 %v3961, 0.0
        %v4058 = vmax.f32 %v3962, 0.0
        %v4059 = vpack.c.bf16 %v3966, %v3963
        %v4060 = vpack.c.bf16 %v3967, %v3964
        %v4061 = vpack.c.bf16 %v3968, %v3965
        %v4062 = vpack.c.bf16 %v3972, %v3969
        %v4063 = vpack.c.bf16 %v3973, %v3970
        %v4064 = vpack.c.bf16 %v3974, %v3971
        %v4065 = vpack.c.bf16 %v3978, %v3975
        %v4066 = vpack.c.bf16 %v3979, %v3976
        %v4067 = vpack.c.bf16 %v3980, %v3977
        %v4068 = vpack.c.bf16 %v3984, %v3981
        %v4069 = vpack.c.bf16 %v3985, %v3982
        %v4070 = vpack.c.bf16 %v3986, %v3983
        %v4071 = vpack.c.bf16 %v3990, %v3987
        %v4072 = vpack.c.bf16 %v3991, %v3988
        %v4073 = vpack.c.bf16 %v3992, %v3989
        %v4074 = vpack.c.bf16 %v3996, %v3993
        %v4075 = vpack.c.bf16 %v3997, %v3994
        %v4076 = vpack.c.bf16 %v3998, %v3995
        %v4077 = vpack.c.bf16 %v4002, %v3999
        %v4078 = vpack.c.bf16 %v4003, %v4000
        %v4079 = vpack.c.bf16 %v4004, %v4001
        %v4080 = vpack.c.bf16 %v4008, %v4005
        %v4081 = vpack.c.bf16 %v4009, %v4006
        %v4082 = vpack.c.bf16 %v4010, %v4007
        %v4083 = vpack.c.bf16 %v4014, %v4011
        %v4084 = vpack.c.bf16 %v4015, %v4012
        %v4085 = vpack.c.bf16 %v4016, %v4013
        %v4086 = vpack.c.bf16 %v4020, %v4017
        %v4087 = vpack.c.bf16 %v4021, %v4018
        %v4088 = vpack.c.bf16 %v4022, %v4019
        %v4089 = vpack.c.bf16 %v4026, %v4023
        %v4090 = vpack.c.bf16 %v4027, %v4024
        %v4091 = vpack.c.bf16 %v4028, %v4025
        %v4092 = vpack.c.bf16 %v4032, %v4029
        %v4093 = vpack.c.bf16 %v4033, %v4030
        %v4094 = vpack.c.bf16 %v4034, %v4031
        %v4095 = vpack.c.bf16 %v4038, %v4035
        %v4096 = vpack.c.bf16 %v4039, %v4036
        %v4097 = vpack.c.bf16 %v4040, %v4037
        %v4098 = vpack.c.bf16 %v4044, %v4041
        %v4099 = vpack.c.bf16 %v4045, %v4042
        %v4100 = vpack.c.bf16 %v4046, %v4043
        %v4101 = vpack.c.bf16 %v4050, %v4047
        %v4102 = vpack.c.bf16 %v4051, %v4048
        %v4103 = vpack.c.bf16 %v4052, %v4049
        %v4104 = vpack.c.bf16 %v4056, %v4053
        %v4105 = vpack.c.bf16 %v4057, %v4054
        %v4106 = vpack.c.bf16 %v4058, %v4055
        %v4107 = vld [vmem:[%s1] sm:$0xf]
        %v4108 = vld [vmem:[%s1 + $0x4] sm:$0xf]
        %v4109 = vld [vmem:[%s1 + $0x8] sm:$0xf]
        %v4110 = vld [vmem:[%s1 + $0xc] sm:$0xf]
        %v4111 = vld [vmem:[%s1 + $0x10] sm:$0xf]
        %v4112 = vld [vmem:[%s1 + $0x14] sm:$0xf]
        %v4113 = vld [vmem:[%s1 + $0x18] sm:$0xf]
        %v4114 = vld [vmem:[%s1 + $0x1c] sm:$0xf]
        %v4115 = vld [vmem:[%s1 + $0x20] sm:$0xf]
        %v4116 = vld [vmem:[%s1 + $0x24] sm:$0xf]
        %v4117 = vld [vmem:[%s1 + $0x28] sm:$0xf]
        %v4118 = vld [vmem:[%s1 + $0x2c] sm:$0xf]
        %v4119 = vld [vmem:[%s1 + $0x30] sm:$0xf]
        %v4120 = vld [vmem:[%s1 + $0x34] sm:$0xf]
        %v4121 = vld [vmem:[%s1 + $0x38] sm:$0xf]
        %v4122 = vld [vmem:[%s1 + $0x3c] sm:$0xf]
        %v4123 = vld [vmem:[%s1 + $0x40] sm:$0xf]
        %v4124 = vld [vmem:[%s1 + $0x44] sm:$0xf]
        %v4125 = vld [vmem:[%s1 + $0x48] sm:$0xf]
        %v4126 = vld [vmem:[%s1 + $0x4c] sm:$0xf]
        %v4127 = vld [vmem:[%s1 + $0x50] sm:$0xf]
        %v4128 = vld [vmem:[%s1 + $0x54] sm:$0xf]
        %v4129 = vld [vmem:[%s1 + $0x58] sm:$0xf]
        %v4130 = vld [vmem:[%s1 + $0x5c] sm:$0xf]
        %v4131 = vld [vmem:[%s1 + $0x60] sm:$0xf]
        %v4132 = vld [vmem:[%s1 + $0x64] sm:$0xf]
        %v4133 = vld [vmem:[%s1 + $0x68] sm:$0xf]
        %v4134 = vld [vmem:[%s1 + $0x6c] sm:$0xf]
        %v4135 = vld [vmem:[%s1 + $0x70] sm:$0xf]
        %v4136 = vld [vmem:[%s1 + $0x74] sm:$0xf]
        %v4137 = vld [vmem:[%s1 + $0x78] sm:$0xf]
        %v4138 = vld [vmem:[%s1 + $0x7c] sm:$0xf]
        %v4139 = vld [vmem:[%s1 + $0x80] sm:$0xf]
        %v4140 = vld [vmem:[%s1 + $0x84] sm:$0xf]
        %v4141 = vld [vmem:[%s1 + $0x88] sm:$0xf]
        %v4142 = vld [vmem:[%s1 + $0x8c] sm:$0xf]
        %v4143 = vld [vmem:[%s2] sm:$0x1]
        %v4145 = vperm.slane %v4143, 0
        %v4183 = vunpack.c.l.b16 %v4107
        %v4184 = vunpack.c.l.b16 %v4108
        %v4185 = vunpack.c.l.b16 %v4109
        %v4186 = vunpack.c.l.b16 %v4110
        %v4187 = vunpack.c.l.b16 %v4111
        %v4188 = vunpack.c.l.b16 %v4112
        %v4189 = vunpack.c.l.b16 %v4113
        %v4190 = vunpack.c.l.b16 %v4114
        %v4191 = vunpack.c.l.b16 %v4115
        %v4192 = vunpack.c.l.b16 %v4116
        %v4193 = vunpack.c.l.b16 %v4117
        %v4194 = vunpack.c.l.b16 %v4118
        %v4195 = vunpack.c.l.b16 %v4119
        %v4196 = vunpack.c.l.b16 %v4120
        %v4197 = vunpack.c.l.b16 %v4121
        %v4198 = vunpack.c.l.b16 %v4122
        %v4199 = vunpack.c.l.b16 %v4123
        %v4200 = vunpack.c.l.b16 %v4124
        %v4201 = vunpack.c.l.b16 %v4125
        %v4202 = vunpack.c.l.b16 %v4126
        %v4203 = vunpack.c.l.b16 %v4127
        %v4204 = vunpack.c.l.b16 %v4128
        %v4205 = vunpack.c.l.b16 %v4129
        %v4206 = vunpack.c.l.b16 %v4130
        %v4207 = vunpack.c.l.b16 %v4131
        %v4208 = vunpack.c.l.b16 %v4132
        %v4209 = vunpack.c.l.b16 %v4133
        %v4210 = vunpack.c.l.b16 %v4134
        %v4211 = vunpack.c.l.b16 %v4135
        %v4212 = vunpack.c.l.b16 %v4136
        %v4213 = vunpack.c.l.b16 %v4137
        %v4214 = vunpack.c.l.b16 %v4138
        %v4215 = vunpack.c.l.b16 %v4139
        %v4216 = vunpack.c.l.b16 %v4140
        %v4217 = vunpack.c.l.b16 %v4141
        %v4218 = vunpack.c.l.b16 %v4142
        %v4219 = vpack.c.b16 %v4184, %v4183
        %v4220 = vpack.c.b16 %v4186, %v4185
        %v4221 = vpack.c.b16 %v4188, %v4187
        %v4222 = vpack.c.b16 %v4190, %v4189
        %v4223 = vpack.c.b16 %v4192, %v4191
        %v4224 = vpack.c.b16 %v4194, %v4193
        %v4225 = vpack.c.b16 %v4196, %v4195
        %v4226 = vpack.c.b16 %v4198, %v4197
        %v4227 = vpack.c.b16 %v4200, %v4199
        %v4228 = vpack.c.b16 %v4202, %v4201
        %v4229 = vpack.c.b16 %v4204, %v4203
        %v4230 = vpack.c.b16 %v4206, %v4205
        %v4231 = vpack.c.b16 %v4208, %v4207
        %v4232 = vpack.c.b16 %v4210, %v4209
        %v4233 = vpack.c.b16 %v4212, %v4211
        %v4234 = vpack.c.b16 %v4214, %v4213
        %v4235 = vpack.c.b16 %v4216, %v4215
        %v4236 = vpack.c.b16 %v4218, %v4217
        %vm4255 = vcmask 261120
        %v4257 = vsel %vm4255, %v4061, 0
        %v4260 = vsel %vm4255, %v4064, 0
        %v4263 = vsel %vm4255, %v4067, 0
        %v4266 = vsel %vm4255, %v4070, 0
        %v4269 = vsel %vm4255, %v4073, 0
        %v4272 = vsel %vm4255, %v4076, 0
        %v4275 = vsel %vm4255, %v4079, 0
        %v4278 = vsel %vm4255, %v4082, 0
        %v4281 = vsel %vm4255, %v4085, 0
        %v4284 = vsel %vm4255, %v4088, 0
        %v4287 = vsel %vm4255, %v4091, 0
        %v4290 = vsel %vm4255, %v4094, 0
        %v4293 = vsel %vm4255, %v4097, 0
        %v4296 = vsel %vm4255, %v4100, 0
        %v4299 = vsel %vm4255, %v4103, 0
        %v4302 = vsel %vm4255, %v4106, 0
        %4304 = vmatpush.bf16.msra.mxu0 %v4226
        %4305 = vmatpush.bf16.msra.mxu0 %v4225
        %4306 = vmatpush.bf16.msra.mxu0 %v4224
        %4307 = vmatpush.bf16.msra.mxu0 %v4223
        %4308 = vmatpush.bf16.msra.mxu0 %v4222
        %4309 = vmatpush.bf16.msra.mxu0 %v4221
        %4310 = vmatpush.bf16.msra.mxu0 %v4220
        %4311 = vmatpush.bf16.msra.mxu0 %v4219
        %4312 = vmatmul.bf16.gmra.mxu0 %v4059
        %v4313 = vpop.f32.mrf.mxu0
        %v4314 = vadd.f32 %v4145, %v4313
        %v4315 = vpop.f32.mrf.mxu0
        %v4316 = vadd.f32 %v4145, %v4315
        %4317 = vmatmul.bf16.gmra.mxu0 %v4062
        %v4318 = vpop.f32.mrf.mxu0
        %v4319 = vadd.f32 %v4145, %v4318
        %v4320 = vpop.f32.mrf.mxu0
        %v4321 = vadd.f32 %v4145, %v4320
        %4322 = vmatmul.bf16.gmra.mxu0 %v4065
        %v4323 = vpop.f32.mrf.mxu0
        %v4324 = vadd.f32 %v4145, %v4323
        %v4325 = vpop.f32.mrf.mxu0
        %v4326 = vadd.f32 %v4145, %v4325
        %4327 = vmatmul.bf16.gmra.mxu0 %v4068
        %v4328 = vpop.f32.mrf.mxu0
        %v4329 = vadd.f32 %v4145, %v4328
        %v4330 = vpop.f32.mrf.mxu0
        %v4331 = vadd.f32 %v4145, %v4330
        %4332 = vmatmul.bf16.gmra.mxu0 %v4071
        %v4333 = vpop.f32.mrf.mxu0
        %v4334 = vadd.f32 %v4145, %v4333
        %v4335 = vpop.f32.mrf.mxu0
        %v4336 = vadd.f32 %v4145, %v4335
        %4337 = vmatmul.bf16.gmra.mxu0 %v4074
        %v4338 = vpop.f32.mrf.mxu0
        %v4339 = vadd.f32 %v4145, %v4338
        %v4340 = vpop.f32.mrf.mxu0
        %v4341 = vadd.f32 %v4145, %v4340
        %4342 = vmatmul.bf16.gmra.mxu0 %v4077
        %v4343 = vpop.f32.mrf.mxu0
        %v4344 = vadd.f32 %v4145, %v4343
        %v4345 = vpop.f32.mrf.mxu0
        %v4346 = vadd.f32 %v4145, %v4345
        %4347 = vmatmul.bf16.gmra.mxu0 %v4080
        %v4348 = vpop.f32.mrf.mxu0
        %v4349 = vadd.f32 %v4145, %v4348
        %v4350 = vpop.f32.mrf.mxu0
        %v4351 = vadd.f32 %v4145, %v4350
        %4352 = vmatmul.bf16.gmra.mxu0 %v4083
        %v4353 = vpop.f32.mrf.mxu0
        %v4354 = vadd.f32 %v4145, %v4353
        %v4355 = vpop.f32.mrf.mxu0
        %v4356 = vadd.f32 %v4145, %v4355
        %4357 = vmatmul.bf16.gmra.mxu0 %v4086
        %v4358 = vpop.f32.mrf.mxu0
        %v4359 = vadd.f32 %v4145, %v4358
        %v4360 = vpop.f32.mrf.mxu0
        %v4361 = vadd.f32 %v4145, %v4360
        %4362 = vmatmul.bf16.gmra.mxu0 %v4089
        %v4363 = vpop.f32.mrf.mxu0
        %v4364 = vadd.f32 %v4145, %v4363
        %v4365 = vpop.f32.mrf.mxu0
        %v4366 = vadd.f32 %v4145, %v4365
        %4367 = vmatmul.bf16.gmra.mxu0 %v4092
        %v4368 = vpop.f32.mrf.mxu0
        %v4369 = vadd.f32 %v4145, %v4368
        %v4370 = vpop.f32.mrf.mxu0
        %v4371 = vadd.f32 %v4145, %v4370
        %4372 = vmatmul.bf16.gmra.mxu0 %v4095
        %v4373 = vpop.f32.mrf.mxu0
        %v4374 = vadd.f32 %v4145, %v4373
        %v4375 = vpop.f32.mrf.mxu0
        %v4376 = vadd.f32 %v4145, %v4375
        %4377 = vmatmul.bf16.gmra.mxu0 %v4098
        %v4378 = vpop.f32.mrf.mxu0
        %v4379 = vadd.f32 %v4145, %v4378
        %v4380 = vpop.f32.mrf.mxu0
        %v4381 = vadd.f32 %v4145, %v4380
        %4382 = vmatmul.bf16.gmra.mxu0 %v4101
        %v4383 = vpop.f32.mrf.mxu0
        %v4384 = vadd.f32 %v4145, %v4383
        %v4385 = vpop.f32.mrf.mxu0
        %v4386 = vadd.f32 %v4145, %v4385
        %4387 = vmatmul.bf16.gmra.mxu0 %v4104
        %v4388 = vpop.f32.mrf.mxu0
        %v4389 = vadd.f32 %v4145, %v4388
        %v4390 = vpop.f32.mrf.mxu0
        %v4391 = vadd.f32 %v4145, %v4390
        %4392 = vdwg.mxu0
        %4393 = vmatpush.bf16.msra.mxu0 %v4234
        %4394 = vmatpush.bf16.msra.mxu0 %v4233
        %4395 = vmatpush.bf16.msra.mxu0 %v4232
        %4396 = vmatpush.bf16.msra.mxu0 %v4231
        %4397 = vmatpush.bf16.msra.mxu0 %v4230
        %4398 = vmatpush.bf16.msra.mxu0 %v4229
        %4399 = vmatpush.bf16.msra.mxu0 %v4228
        %4400 = vmatpush.bf16.msra.mxu0 %v4227
        %4401 = vmatmul.bf16.gmra.mxu0 %v4060
        %v4402 = vpop.f32.mrf.mxu0
        %v4403 = vadd.f32 %v4314, %v4402
        %v4404 = vpop.f32.mrf.mxu0
        %v4405 = vadd.f32 %v4316, %v4404
        %4406 = vmatmul.bf16.gmra.mxu0 %v4063
        %v4407 = vpop.f32.mrf.mxu0
        %v4408 = vadd.f32 %v4319, %v4407
        %v4409 = vpop.f32.mrf.mxu0
        %v4410 = vadd.f32 %v4321, %v4409
        %4411 = vmatmul.bf16.gmra.mxu0 %v4066
        %v4412 = vpop.f32.mrf.mxu0
        %v4413 = vadd.f32 %v4324, %v4412
        %v4414 = vpop.f32.mrf.mxu0
        %v4415 = vadd.f32 %v4326, %v4414
        %4416 = vmatmul.bf16.gmra.mxu0 %v4069
        %v4417 = vpop.f32.mrf.mxu0
        %v4418 = vadd.f32 %v4329, %v4417
        %v4419 = vpop.f32.mrf.mxu0
        %v4420 = vadd.f32 %v4331, %v4419
        %4421 = vmatmul.bf16.gmra.mxu0 %v4072
        %v4422 = vpop.f32.mrf.mxu0
        %v4423 = vadd.f32 %v4334, %v4422
        %v4424 = vpop.f32.mrf.mxu0
        %v4425 = vadd.f32 %v4336, %v4424
        %4426 = vmatmul.bf16.gmra.mxu0 %v4075
        %v4427 = vpop.f32.mrf.mxu0
        %v4428 = vadd.f32 %v4339, %v4427
        %v4429 = vpop.f32.mrf.mxu0
        %v4430 = vadd.f32 %v4341, %v4429
        %4431 = vmatmul.bf16.gmra.mxu0 %v4078
        %v4432 = vpop.f32.mrf.mxu0
        %v4433 = vadd.f32 %v4344, %v4432
        %v4434 = vpop.f32.mrf.mxu0
        %v4435 = vadd.f32 %v4346, %v4434
        %4436 = vmatmul.bf16.gmra.mxu0 %v4081
        %v4437 = vpop.f32.mrf.mxu0
        %v4438 = vadd.f32 %v4349, %v4437
        %v4439 = vpop.f32.mrf.mxu0
        %v4440 = vadd.f32 %v4351, %v4439
        %4441 = vmatmul.bf16.gmra.mxu0 %v4084
        %v4442 = vpop.f32.mrf.mxu0
        %v4443 = vadd.f32 %v4354, %v4442
        %v4444 = vpop.f32.mrf.mxu0
        %v4445 = vadd.f32 %v4356, %v4444
        %4446 = vmatmul.bf16.gmra.mxu0 %v4087
        %v4447 = vpop.f32.mrf.mxu0
        %v4448 = vadd.f32 %v4359, %v4447
        %v4449 = vpop.f32.mrf.mxu0
        %v4450 = vadd.f32 %v4361, %v4449
        %4451 = vmatmul.bf16.gmra.mxu0 %v4090
        %v4452 = vpop.f32.mrf.mxu0
        %v4453 = vadd.f32 %v4364, %v4452
        %v4454 = vpop.f32.mrf.mxu0
        %v4455 = vadd.f32 %v4366, %v4454
        %4456 = vmatmul.bf16.gmra.mxu0 %v4093
        %v4457 = vpop.f32.mrf.mxu0
        %v4458 = vadd.f32 %v4369, %v4457
        %v4459 = vpop.f32.mrf.mxu0
        %v4460 = vadd.f32 %v4371, %v4459
        %4461 = vmatmul.bf16.gmra.mxu0 %v4096
        %v4462 = vpop.f32.mrf.mxu0
        %v4463 = vadd.f32 %v4374, %v4462
        %v4464 = vpop.f32.mrf.mxu0
        %v4465 = vadd.f32 %v4376, %v4464
        %4466 = vmatmul.bf16.gmra.mxu0 %v4099
        %v4467 = vpop.f32.mrf.mxu0
        %v4468 = vadd.f32 %v4379, %v4467
        %v4469 = vpop.f32.mrf.mxu0
        %v4470 = vadd.f32 %v4381, %v4469
        %4471 = vmatmul.bf16.gmra.mxu0 %v4102
        %v4472 = vpop.f32.mrf.mxu0
        %v4473 = vadd.f32 %v4384, %v4472
        %v4474 = vpop.f32.mrf.mxu0
        %v4475 = vadd.f32 %v4386, %v4474
        %4476 = vmatmul.bf16.gmra.mxu0 %v4105
        %v4477 = vpop.f32.mrf.mxu0
        %v4478 = vadd.f32 %v4389, %v4477
        %v4479 = vpop.f32.mrf.mxu0
        %v4480 = vadd.f32 %v4391, %v4479
        %4481 = vdwg.mxu0
        %4482 = vmatpush.bf16.msra.mxu0 0
        %4483 = vmatpush.bf16.msra.mxu0 0
        %4484 = vmatpush.bf16.msra.mxu0 0
        %4485 = vmatpush.bf16.msra.mxu0 0
        %4486 = vmatpush.bf16.msra.mxu0 0
        %4487 = vmatpush.bf16.msra.mxu0 0
        %4488 = vmatpush.bf16.msra.mxu0 %v4236
        %4489 = vmatpush.bf16.msra.mxu0 %v4235
        %4490 = vmatmul.bf16.gmra.mxu0 %v4257
        %v4491 = vpop.f32.mrf.mxu0
        %v4492 = vadd.f32 %v4403, %v4491
        %v4493 = vpop.f32.mrf.mxu0
        %v4494 = vadd.f32 %v4405, %v4493
        %4495 = vmatmul.bf16.gmra.mxu0 %v4260
        %v4496 = vpop.f32.mrf.mxu0
        %v4497 = vadd.f32 %v4408, %v4496
        %v4498 = vpop.f32.mrf.mxu0
        %v4499 = vadd.f32 %v4410, %v4498
        %4500 = vmatmul.bf16.gmra.mxu0 %v4263
        %v4501 = vpop.f32.mrf.mxu0
        %v4502 = vadd.f32 %v4413, %v4501
        %v4503 = vpop.f32.mrf.mxu0
        %v4504 = vadd.f32 %v4415, %v4503
        %4505 = vmatmul.bf16.gmra.mxu0 %v4266
        %v4506 = vpop.f32.mrf.mxu0
        %v4507 = vadd.f32 %v4418, %v4506
        %v4508 = vpop.f32.mrf.mxu0
        %v4509 = vadd.f32 %v4420, %v4508
        %4510 = vmatmul.bf16.gmra.mxu0 %v4269
        %v4511 = vpop.f32.mrf.mxu0
        %v4512 = vadd.f32 %v4423, %v4511
        %v4513 = vpop.f32.mrf.mxu0
        %v4514 = vadd.f32 %v4425, %v4513
        %4515 = vmatmul.bf16.gmra.mxu0 %v4272
        %v4516 = vpop.f32.mrf.mxu0
        %v4517 = vadd.f32 %v4428, %v4516
        %v4518 = vpop.f32.mrf.mxu0
        %v4519 = vadd.f32 %v4430, %v4518
        %4520 = vmatmul.bf16.gmra.mxu0 %v4275
        %v4521 = vpop.f32.mrf.mxu0
        %v4522 = vadd.f32 %v4433, %v4521
        %v4523 = vpop.f32.mrf.mxu0
        %v4524 = vadd.f32 %v4435, %v4523
        %4525 = vmatmul.bf16.gmra.mxu0 %v4278
        %v4526 = vpop.f32.mrf.mxu0
        %v4527 = vadd.f32 %v4438, %v4526
        %v4528 = vpop.f32.mrf.mxu0
        %v4529 = vadd.f32 %v4440, %v4528
        %4530 = vmatmul.bf16.gmra.mxu0 %v4281
        %v4531 = vpop.f32.mrf.mxu0
        %v4532 = vadd.f32 %v4443, %v4531
        %v4533 = vpop.f32.mrf.mxu0
        %v4534 = vadd.f32 %v4445, %v4533
        %4535 = vmatmul.bf16.gmra.mxu0 %v4284
        %v4536 = vpop.f32.mrf.mxu0
        %v4537 = vadd.f32 %v4448, %v4536
        %v4538 = vpop.f32.mrf.mxu0
        %v4539 = vadd.f32 %v4450, %v4538
        %4540 = vmatmul.bf16.gmra.mxu0 %v4287
        %v4541 = vpop.f32.mrf.mxu0
        %v4542 = vadd.f32 %v4453, %v4541
        %v4543 = vpop.f32.mrf.mxu0
        %v4544 = vadd.f32 %v4455, %v4543
        %4545 = vmatmul.bf16.gmra.mxu0 %v4290
        %v4546 = vpop.f32.mrf.mxu0
        %v4547 = vadd.f32 %v4458, %v4546
        %v4548 = vpop.f32.mrf.mxu0
        %v4549 = vadd.f32 %v4460, %v4548
        %4550 = vmatmul.bf16.gmra.mxu0 %v4293
        %v4551 = vpop.f32.mrf.mxu0
        %v4552 = vadd.f32 %v4463, %v4551
        %v4553 = vpop.f32.mrf.mxu0
        %v4554 = vadd.f32 %v4465, %v4553
        %4555 = vmatmul.bf16.gmra.mxu0 %v4296
        %v4556 = vpop.f32.mrf.mxu0
        %v4557 = vadd.f32 %v4468, %v4556
        %v4558 = vpop.f32.mrf.mxu0
        %v4559 = vadd.f32 %v4470, %v4558
        %4560 = vmatmul.bf16.gmra.mxu0 %v4299
        %v4561 = vpop.f32.mrf.mxu0
        %v4562 = vadd.f32 %v4473, %v4561
        %v4563 = vpop.f32.mrf.mxu0
        %v4564 = vadd.f32 %v4475, %v4563
        %4565 = vmatmul.bf16.gmra.mxu0 %v4302
        %v4566 = vpop.f32.mrf.mxu0
        %v4567 = vadd.f32 %v4478, %v4566
        %v4568 = vpop.f32.mrf.mxu0
        %v4569 = vadd.f32 %v4480, %v4568
        %4570 = vdwg.mxu0
        %4571 = vst.msk [vmem:[#allocation4] sm:$0xf] %vm256, 0
        %4572 = vst.msk [vmem:[#allocation4 + $0x4] sm:$0xf] %vm256, 0
        %4573 = vst.msk [vmem:[#allocation4 + $0x8] sm:$0x1] %vm259, 0
        %4574 = vst.msk [vmem:[#allocation4 + $0xc] sm:$0xf] %vm256, 0
        %4575 = vst.msk [vmem:[#allocation4 + $0x10] sm:$0xf] %vm256, 0
        %4576 = vst.msk [vmem:[#allocation4 + $0x14] sm:$0x1] %vm259, 0
        %4577 = vst.msk [vmem:[#allocation4 + $0x18] sm:$0xf] %vm256, 0
        %4578 = vst.msk [vmem:[#allocation4 + $0x1c] sm:$0xf] %vm256, 0
        %4579 = vst.msk [vmem:[#allocation4 + $0x20] sm:$0x1] %vm259, 0
        %4580 = vst.msk [vmem:[#allocation4 + $0x24] sm:$0xf] %vm256, 0
        %4581 = vst.msk [vmem:[#allocation4 + $0x28] sm:$0xf] %vm256, 0
        %4582 = vst.msk [vmem:[#allocation4 + $0x2c] sm:$0x1] %vm259, 0
        %4583 = vst.msk [vmem:[#allocation4 + $0x30] sm:$0xf] %vm256, 0
        %4584 = vst.msk [vmem:[#allocation4 + $0x34] sm:$0xf] %vm256, 0
        %4585 = vst.msk [vmem:[#allocation4 + $0x38] sm:$0x1] %vm259, 0
        %4586 = vst.msk [vmem:[#allocation4 + $0x3c] sm:$0xf] %vm256, 0
        %4587 = vst.msk [vmem:[#allocation4 + $0x40] sm:$0xf] %vm256, 0
        %4588 = vst.msk [vmem:[#allocation4 + $0x44] sm:$0x1] %vm259, 0
        %4589 = vst.msk [vmem:[#allocation4 + $0x48] sm:$0xf] %vm256, 0
        %4590 = vst.msk [vmem:[#allocation4 + $0x4c] sm:$0xf] %vm256, 0
        %4591 = vst.msk [vmem:[#allocation4 + $0x50] sm:$0x1] %vm259, 0
        %4592 = vst.msk [vmem:[#allocation4 + $0x54] sm:$0xf] %vm256, 0
        %4593 = vst.msk [vmem:[#allocation4 + $0x58] sm:$0xf] %vm256, 0
        %4594 = vst.msk [vmem:[#allocation4 + $0x5c] sm:$0x1] %vm259, 0
        %4595 = vst.msk [vmem:[#allocation4 + $0x60] sm:$0xf] %vm256, 0
        %4596 = vst.msk [vmem:[#allocation4 + $0x64] sm:$0xf] %vm256, 0
        %4597 = vst.msk [vmem:[#allocation4 + $0x68] sm:$0x1] %vm259, 0
        %4598 = vst.msk [vmem:[#allocation4 + $0x6c] sm:$0xf] %vm256, 0
        %4599 = vst.msk [vmem:[#allocation4 + $0x70] sm:$0xf] %vm256, 0
        %4600 = vst.msk [vmem:[#allocation4 + $0x74] sm:$0x1] %vm259, 0
        %4601 = vst.msk [vmem:[#allocation4 + $0x78] sm:$0xf] %vm256, 0
        %4602 = vst.msk [vmem:[#allocation4 + $0x7c] sm:$0xf] %vm256, 0
        %4603 = vst.msk [vmem:[#allocation4 + $0x80] sm:$0x1] %vm259, 0
        %4604 = vst.msk [vmem:[#allocation4 + $0x84] sm:$0xf] %vm256, 0
        %4605 = vst.msk [vmem:[#allocation4 + $0x88] sm:$0xf] %vm256, 0
        %4606 = vst.msk [vmem:[#allocation4 + $0x8c] sm:$0x1] %vm259, 0
        %4607 = vst.msk [vmem:[#allocation4 + $0x90] sm:$0xf] %vm256, 0
        %4608 = vst.msk [vmem:[#allocation4 + $0x94] sm:$0xf] %vm256, 0
        %4609 = vst.msk [vmem:[#allocation4 + $0x98] sm:$0x1] %vm259, 0
        %4610 = vst.msk [vmem:[#allocation4 + $0x9c] sm:$0xf] %vm256, 0
        %4611 = vst.msk [vmem:[#allocation4 + $0xa0] sm:$0xf] %vm256, 0
        %4612 = vst.msk [vmem:[#allocation4 + $0xa4] sm:$0x1] %vm259, 0
        %4613 = vst.msk [vmem:[#allocation4 + $0xa8] sm:$0xf] %vm256, 0
        %4614 = vst.msk [vmem:[#allocation4 + $0xac] sm:$0xf] %vm256, 0
        %4615 = vst.msk [vmem:[#allocation4 + $0xb0] sm:$0x1] %vm259, 0
        %4616 = vst.msk [vmem:[#allocation4 + $0xb4] sm:$0xf] %vm256, 0
        %4617 = vst.msk [vmem:[#allocation4 + $0xb8] sm:$0xf] %vm256, 0
        %4618 = vst.msk [vmem:[#allocation4 + $0xbc] sm:$0x1] %vm259, 0
        %4619 = vst.msk [vmem:[#allocation4 + $0xc0] sm:$0xf] %vm256, 0
        %4620 = vst.msk [vmem:[#allocation4 + $0xc4] sm:$0xf] %vm256, 0
        %4621 = vst.msk [vmem:[#allocation4 + $0xc8] sm:$0x1] %vm259, 0
        %4622 = vst.msk [vmem:[#allocation4 + $0xcc] sm:$0xf] %vm256, 0
        %4623 = vst.msk [vmem:[#allocation4 + $0xd0] sm:$0xf] %vm256, 0
        %4624 = vst.msk [vmem:[#allocation4 + $0xd4] sm:$0x1] %vm259, 0
        %v4625 = vmax.f32 %v4492, 0.0
        %v4626 = vmax.f32 %v4494, 0.0
        %v4627 = vmax.f32 %v4497, 0.0
        %v4628 = vmax.f32 %v4499, 0.0
        %v4629 = vmax.f32 %v4502, 0.0
        %v4630 = vmax.f32 %v4504, 0.0
        %v4631 = vmax.f32 %v4507, 0.0
        %v4632 = vmax.f32 %v4509, 0.0
        %v4633 = vmax.f32 %v4512, 0.0
        %v4634 = vmax.f32 %v4514, 0.0
        %v4635 = vmax.f32 %v4517, 0.0
        %v4636 = vmax.f32 %v4519, 0.0
        %v4637 = vmax.f32 %v4522, 0.0
        %v4638 = vmax.f32 %v4524, 0.0
        %v4639 = vmax.f32 %v4527, 0.0
        %v4640 = vmax.f32 %v4529, 0.0
        %v4641 = vmax.f32 %v4532, 0.0
        %v4642 = vmax.f32 %v4534, 0.0
        %v4643 = vmax.f32 %v4537, 0.0
        %v4644 = vmax.f32 %v4539, 0.0
        %v4645 = vmax.f32 %v4542, 0.0
        %v4646 = vmax.f32 %v4544, 0.0
        %v4647 = vmax.f32 %v4547, 0.0
        %v4648 = vmax.f32 %v4549, 0.0
        %v4649 = vmax.f32 %v4552, 0.0
        %v4650 = vmax.f32 %v4554, 0.0
        %v4651 = vmax.f32 %v4557, 0.0
        %v4652 = vmax.f32 %v4559, 0.0
        %v4653 = vmax.f32 %v4562, 0.0
        %v4654 = vmax.f32 %v4564, 0.0
        %v4655 = vmax.f32 %v4567, 0.0
        %v4656 = vmax.f32 %v4569, 0.0
        %v4657 = vpack.c.bf16 %v4625, %v4625
        %v4658 = vpack.c.bf16 %v4626, %v4626
        %v4659 = vpack.c.bf16 %v4627, %v4627
        %v4660 = vpack.c.bf16 %v4628, %v4628
        %v4661 = vpack.c.bf16 %v4629, %v4629
        %v4662 = vpack.c.bf16 %v4630, %v4630
        %v4663 = vpack.c.bf16 %v4631, %v4631
        %v4664 = vpack.c.bf16 %v4632, %v4632
        %v4665 = vpack.c.bf16 %v4633, %v4633
        %v4666 = vpack.c.bf16 %v4634, %v4634
        %v4667 = vpack.c.bf16 %v4635, %v4635
        %v4668 = vpack.c.bf16 %v4636, %v4636
        %v4669 = vpack.c.bf16 %v4637, %v4637
        %v4670 = vpack.c.bf16 %v4638, %v4638
        %v4671 = vpack.c.bf16 %v4639, %v4639
        %v4672 = vpack.c.bf16 %v4640, %v4640
        %v4673 = vpack.c.bf16 %v4641, %v4641
        %v4674 = vpack.c.bf16 %v4642, %v4642
        %v4675 = vpack.c.bf16 %v4643, %v4643
        %v4676 = vpack.c.bf16 %v4644, %v4644
        %v4677 = vpack.c.bf16 %v4645, %v4645
        %v4678 = vpack.c.bf16 %v4646, %v4646
        %v4679 = vpack.c.bf16 %v4647, %v4647
        %v4680 = vpack.c.bf16 %v4648, %v4648
        %v4681 = vpack.c.bf16 %v4649, %v4649
        %v4682 = vpack.c.bf16 %v4650, %v4650
        %v4683 = vpack.c.bf16 %v4651, %v4651
        %v4684 = vpack.c.bf16 %v4652, %v4652
        %v4685 = vpack.c.bf16 %v4653, %v4653
        %v4686 = vpack.c.bf16 %v4654, %v4654
        %v4687 = vpack.c.bf16 %v4655, %v4655
        %v4688 = vpack.c.bf16 %v4656, %v4656
        %v4690 = vshrl.u32 %v4657, 16
        %v4692 = vrot.slane %v4690, 7
        %v4693 = vshll.u32 %v4657, 16
        %v4695 = vor.u32 %v4692, %v4693
        %v4696 = vrot.slane %v4692, 4
        %v4698 = vshrl.u32 %v4658, 16
        %v4700 = vrot.slane %v4698, 7
        %v4701 = vshll.u32 %v4658, 16
        %v4703 = vor.u32 %v4700, %v4701
        %v4704 = vsel %vm346, %v4696, %v4703
        %v4705 = vrot.slane %v4700, 4
        %v4707 = vshrl.u32 %v4659, 16
        %v4709 = vrot.slane %v4707, 7
        %v4710 = vshll.u32 %v4659, 16
        %v4712 = vor.u32 %v4709, %v4710
        %v4713 = vrot.slane %v4709, 4
        %v4715 = vshrl.u32 %v4660, 16
        %v4717 = vrot.slane %v4715, 7
        %v4718 = vshll.u32 %v4660, 16
        %v4720 = vor.u32 %v4717, %v4718
        %v4721 = vsel %vm346, %v4713, %v4720
        %v4722 = vrot.slane %v4717, 4
        %v4724 = vshrl.u32 %v4661, 16
        %v4726 = vrot.slane %v4724, 7
        %v4727 = vshll.u32 %v4661, 16
        %v4729 = vor.u32 %v4726, %v4727
        %v4730 = vrot.slane %v4726, 4
        %v4732 = vshrl.u32 %v4662, 16
        %v4734 = vrot.slane %v4732, 7
        %v4735 = vshll.u32 %v4662, 16
        %v4737 = vor.u32 %v4734, %v4735
        %v4738 = vsel %vm346, %v4730, %v4737
        %v4739 = vrot.slane %v4734, 4
        %v4741 = vshrl.u32 %v4663, 16
        %v4743 = vrot.slane %v4741, 7
        %v4744 = vshll.u32 %v4663, 16
        %v4746 = vor.u32 %v4743, %v4744
        %v4747 = vrot.slane %v4743, 4
        %v4749 = vshrl.u32 %v4664, 16
        %v4751 = vrot.slane %v4749, 7
        %v4752 = vshll.u32 %v4664, 16
        %v4754 = vor.u32 %v4751, %v4752
        %v4755 = vsel %vm346, %v4747, %v4754
        %v4756 = vrot.slane %v4751, 4
        %v4758 = vshrl.u32 %v4665, 16
        %v4760 = vrot.slane %v4758, 7
        %v4761 = vshll.u32 %v4665, 16
        %v4763 = vor.u32 %v4760, %v4761
        %v4764 = vrot.slane %v4760, 4
        %v4766 = vshrl.u32 %v4666, 16
        %v4768 = vrot.slane %v4766, 7
        %v4769 = vshll.u32 %v4666, 16
        %v4771 = vor.u32 %v4768, %v4769
        %v4772 = vsel %vm346, %v4764, %v4771
        %v4773 = vrot.slane %v4768, 4
        %v4775 = vshrl.u32 %v4667, 16
        %v4777 = vrot.slane %v4775, 7
        %v4778 = vshll.u32 %v4667, 16
        %v4780 = vor.u32 %v4777, %v4778
        %v4781 = vrot.slane %v4777, 4
        %v4783 = vshrl.u32 %v4668, 16
        %v4785 = vrot.slane %v4783, 7
        %v4786 = vshll.u32 %v4668, 16
        %v4788 = vor.u32 %v4785, %v4786
        %v4789 = vsel %vm346, %v4781, %v4788
        %v4790 = vrot.slane %v4785, 4
        %v4792 = vshrl.u32 %v4669, 16
        %v4794 = vrot.slane %v4792, 7
        %v4795 = vshll.u32 %v4669, 16
        %v4797 = vor.u32 %v4794, %v4795
        %v4798 = vrot.slane %v4794, 4
        %v4800 = vshrl.u32 %v4670, 16
        %v4802 = vrot.slane %v4800, 7
        %v4803 = vshll.u32 %v4670, 16
        %v4805 = vor.u32 %v4802, %v4803
        %v4806 = vsel %vm346, %v4798, %v4805
        %v4807 = vrot.slane %v4802, 4
        %v4809 = vshrl.u32 %v4671, 16
        %v4811 = vrot.slane %v4809, 7
        %v4812 = vshll.u32 %v4671, 16
        %v4814 = vor.u32 %v4811, %v4812
        %v4815 = vrot.slane %v4811, 4
        %v4817 = vshrl.u32 %v4672, 16
        %v4819 = vrot.slane %v4817, 7
        %v4820 = vshll.u32 %v4672, 16
        %v4822 = vor.u32 %v4819, %v4820
        %v4823 = vsel %vm346, %v4815, %v4822
        %v4824 = vrot.slane %v4819, 4
        %v4826 = vshrl.u32 %v4673, 16
        %v4828 = vrot.slane %v4826, 7
        %v4829 = vshll.u32 %v4673, 16
        %v4831 = vor.u32 %v4828, %v4829
        %v4832 = vrot.slane %v4828, 4
        %v4834 = vshrl.u32 %v4674, 16
        %v4836 = vrot.slane %v4834, 7
        %v4837 = vshll.u32 %v4674, 16
        %v4839 = vor.u32 %v4836, %v4837
        %v4840 = vsel %vm346, %v4832, %v4839
        %v4841 = vrot.slane %v4836, 4
        %v4843 = vshrl.u32 %v4675, 16
        %v4845 = vrot.slane %v4843, 7
        %v4846 = vshll.u32 %v4675, 16
        %v4848 = vor.u32 %v4845, %v4846
        %v4849 = vrot.slane %v4845, 4
        %v4851 = vshrl.u32 %v4676, 16
        %v4853 = vrot.slane %v4851, 7
        %v4854 = vshll.u32 %v4676, 16
        %v4856 = vor.u32 %v4853, %v4854
        %v4857 = vsel %vm346, %v4849, %v4856
        %v4858 = vrot.slane %v4853, 4
        %v4860 = vshrl.u32 %v4677, 16
        %v4862 = vrot.slane %v4860, 7
        %v4863 = vshll.u32 %v4677, 16
        %v4865 = vor.u32 %v4862, %v4863
        %v4866 = vrot.slane %v4862, 4
        %v4868 = vshrl.u32 %v4678, 16
        %v4870 = vrot.slane %v4868, 7
        %v4871 = vshll.u32 %v4678, 16
        %v4873 = vor.u32 %v4870, %v4871
        %v4874 = vsel %vm346, %v4866, %v4873
        %v4875 = vrot.slane %v4870, 4
        %v4877 = vshrl.u32 %v4679, 16
        %v4879 = vrot.slane %v4877, 7
        %v4880 = vshll.u32 %v4679, 16
        %v4882 = vor.u32 %v4879, %v4880
        %v4883 = vrot.slane %v4879, 4
        %v4885 = vshrl.u32 %v4680, 16
        %v4887 = vrot.slane %v4885, 7
        %v4888 = vshll.u32 %v4680, 16
        %v4890 = vor.u32 %v4887, %v4888
        %v4891 = vsel %vm346, %v4883, %v4890
        %v4892 = vrot.slane %v4887, 4
        %v4894 = vshrl.u32 %v4681, 16
        %v4896 = vrot.slane %v4894, 7
        %v4897 = vshll.u32 %v4681, 16
        %v4899 = vor.u32 %v4896, %v4897
        %v4900 = vrot.slane %v4896, 4
        %v4902 = vshrl.u32 %v4682, 16
        %v4904 = vrot.slane %v4902, 7
        %v4905 = vshll.u32 %v4682, 16
        %v4907 = vor.u32 %v4904, %v4905
        %v4908 = vsel %vm346, %v4900, %v4907
        %v4909 = vrot.slane %v4904, 4
        %v4911 = vshrl.u32 %v4683, 16
        %v4913 = vrot.slane %v4911, 7
        %v4914 = vshll.u32 %v4683, 16
        %v4916 = vor.u32 %v4913, %v4914
        %v4917 = vrot.slane %v4913, 4
        %v4919 = vshrl.u32 %v4684, 16
        %v4921 = vrot.slane %v4919, 7
        %v4922 = vshll.u32 %v4684, 16
        %v4924 = vor.u32 %v4921, %v4922
        %v4925 = vsel %vm346, %v4917, %v4924
        %v4926 = vrot.slane %v4921, 4
        %v4928 = vshrl.u32 %v4685, 16
        %v4930 = vrot.slane %v4928, 7
        %v4931 = vshll.u32 %v4685, 16
        %v4933 = vor.u32 %v4930, %v4931
        %v4934 = vrot.slane %v4930, 4
        %v4936 = vshrl.u32 %v4686, 16
        %v4938 = vrot.slane %v4936, 7
        %v4939 = vshll.u32 %v4686, 16
        %v4941 = vor.u32 %v4938, %v4939
        %v4942 = vsel %vm346, %v4934, %v4941
        %v4943 = vrot.slane %v4938, 4
        %v4945 = vshrl.u32 %v4687, 16
        %v4947 = vrot.slane %v4945, 7
        %v4948 = vshll.u32 %v4687, 16
        %v4950 = vor.u32 %v4947, %v4948
        %v4951 = vrot.slane %v4947, 4
        %v4953 = vshrl.u32 %v4688, 16
        %v4955 = vrot.slane %v4953, 7
        %v4956 = vshll.u32 %v4688, 16
        %v4958 = vor.u32 %v4955, %v4956
        %v4959 = vsel %vm346, %v4951, %v4958
        %v4960 = vrot.slane %v4955, 4
        %s5009 = scalar_lea.vmem [#allocation4], 12
        %v5010 = vld [vmem:[%s5009] sm:$0xf]
        %v5011 = vsel %vm670, %v4695, %v5010
        %5012 = vst [vmem:[%s5009] sm:$0xf] %v5011
        %5013 = vst.msk [vmem:[%s5009 + $0x4] sm:$0xf] %vm256, %v4704
        %v5014 = vld [vmem:[%s5009 + $0x8] sm:$0x1]
        %v5015 = vsel %vm676, %v4705, %v5014
        %5016 = vst [vmem:[%s5009 + $0x8] sm:$0x1] %v5015
        %v5017 = vld [vmem:[%s5009 + $0xc] sm:$0xf]
        %v5018 = vsel %vm670, %v4712, %v5017
        %5019 = vst [vmem:[%s5009 + $0xc] sm:$0xf] %v5018
        %5020 = vst.msk [vmem:[%s5009 + $0x10] sm:$0xf] %vm256, %v4721
        %v5021 = vld [vmem:[%s5009 + $0x14] sm:$0x1]
        %v5022 = vsel %vm676, %v4722, %v5021
        %5023 = vst [vmem:[%s5009 + $0x14] sm:$0x1] %v5022
        %v5024 = vld [vmem:[%s5009 + $0x18] sm:$0xf]
        %v5025 = vsel %vm670, %v4729, %v5024
        %5026 = vst [vmem:[%s5009 + $0x18] sm:$0xf] %v5025
        %5027 = vst.msk [vmem:[%s5009 + $0x1c] sm:$0xf] %vm256, %v4738
        %v5028 = vld [vmem:[%s5009 + $0x20] sm:$0x1]
        %v5029 = vsel %vm676, %v4739, %v5028
        %5030 = vst [vmem:[%s5009 + $0x20] sm:$0x1] %v5029
        %v5031 = vld [vmem:[%s5009 + $0x24] sm:$0xf]
        %v5032 = vsel %vm670, %v4746, %v5031
        %5033 = vst [vmem:[%s5009 + $0x24] sm:$0xf] %v5032
        %5034 = vst.msk [vmem:[%s5009 + $0x28] sm:$0xf] %vm256, %v4755
        %v5035 = vld [vmem:[%s5009 + $0x2c] sm:$0x1]
        %v5036 = vsel %vm676, %v4756, %v5035
        %5037 = vst [vmem:[%s5009 + $0x2c] sm:$0x1] %v5036
        %v5038 = vld [vmem:[%s5009 + $0x30] sm:$0xf]
        %v5039 = vsel %vm670, %v4763, %v5038
        %5040 = vst [vmem:[%s5009 + $0x30] sm:$0xf] %v5039
        %5041 = vst.msk [vmem:[%s5009 + $0x34] sm:$0xf] %vm256, %v4772
        %v5042 = vld [vmem:[%s5009 + $0x38] sm:$0x1]
        %v5043 = vsel %vm676, %v4773, %v5042
        %5044 = vst [vmem:[%s5009 + $0x38] sm:$0x1] %v5043
        %v5045 = vld [vmem:[%s5009 + $0x3c] sm:$0xf]
        %v5046 = vsel %vm670, %v4780, %v5045
        %5047 = vst [vmem:[%s5009 + $0x3c] sm:$0xf] %v5046
        %5048 = vst.msk [vmem:[%s5009 + $0x40] sm:$0xf] %vm256, %v4789
        %v5049 = vld [vmem:[%s5009 + $0x44] sm:$0x1]
        %v5050 = vsel %vm676, %v4790, %v5049
        %5051 = vst [vmem:[%s5009 + $0x44] sm:$0x1] %v5050
        %v5052 = vld [vmem:[%s5009 + $0x48] sm:$0xf]
        %v5053 = vsel %vm670, %v4797, %v5052
        %5054 = vst [vmem:[%s5009 + $0x48] sm:$0xf] %v5053
        %5055 = vst.msk [vmem:[%s5009 + $0x4c] sm:$0xf] %vm256, %v4806
        %v5056 = vld [vmem:[%s5009 + $0x50] sm:$0x1]
        %v5057 = vsel %vm676, %v4807, %v5056
        %5058 = vst [vmem:[%s5009 + $0x50] sm:$0x1] %v5057
        %v5059 = vld [vmem:[%s5009 + $0x54] sm:$0xf]
        %v5060 = vsel %vm670, %v4814, %v5059
        %5061 = vst [vmem:[%s5009 + $0x54] sm:$0xf] %v5060
        %5062 = vst.msk [vmem:[%s5009 + $0x58] sm:$0xf] %vm256, %v4823
        %v5063 = vld [vmem:[%s5009 + $0x5c] sm:$0x1]
        %v5064 = vsel %vm676, %v4824, %v5063
        %5065 = vst [vmem:[%s5009 + $0x5c] sm:$0x1] %v5064
        %v5066 = vld [vmem:[%s5009 + $0x60] sm:$0xf]
        %v5067 = vsel %vm670, %v4831, %v5066
        %5068 = vst [vmem:[%s5009 + $0x60] sm:$0xf] %v5067
        %5069 = vst.msk [vmem:[%s5009 + $0x64] sm:$0xf] %vm256, %v4840
        %v5070 = vld [vmem:[%s5009 + $0x68] sm:$0x1]
        %v5071 = vsel %vm676, %v4841, %v5070
        %5072 = vst [vmem:[%s5009 + $0x68] sm:$0x1] %v5071
        %v5073 = vld [vmem:[%s5009 + $0x6c] sm:$0xf]
        %v5074 = vsel %vm670, %v4848, %v5073
        %5075 = vst [vmem:[%s5009 + $0x6c] sm:$0xf] %v5074
        %5076 = vst.msk [vmem:[%s5009 + $0x70] sm:$0xf] %vm256, %v4857
        %v5077 = vld [vmem:[%s5009 + $0x74] sm:$0x1]
        %v5078 = vsel %vm676, %v4858, %v5077
        %5079 = vst [vmem:[%s5009 + $0x74] sm:$0x1] %v5078
        %v5080 = vld [vmem:[%s5009 + $0x78] sm:$0xf]
        %v5081 = vsel %vm670, %v4865, %v5080
        %5082 = vst [vmem:[%s5009 + $0x78] sm:$0xf] %v5081
        %5083 = vst.msk [vmem:[%s5009 + $0x7c] sm:$0xf] %vm256, %v4874
        %v5084 = vld [vmem:[%s5009 + $0x80] sm:$0x1]
        %v5085 = vsel %vm676, %v4875, %v5084
        %5086 = vst [vmem:[%s5009 + $0x80] sm:$0x1] %v5085
        %v5087 = vld [vmem:[%s5009 + $0x84] sm:$0xf]
        %v5088 = vsel %vm670, %v4882, %v5087
        %5089 = vst [vmem:[%s5009 + $0x84] sm:$0xf] %v5088
        %5090 = vst.msk [vmem:[%s5009 + $0x88] sm:$0xf] %vm256, %v4891
        %v5091 = vld [vmem:[%s5009 + $0x8c] sm:$0x1]
        %v5092 = vsel %vm676, %v4892, %v5091
        %5093 = vst [vmem:[%s5009 + $0x8c] sm:$0x1] %v5092
        %v5094 = vld [vmem:[%s5009 + $0x90] sm:$0xf]
        %v5095 = vsel %vm670, %v4899, %v5094
        %5096 = vst [vmem:[%s5009 + $0x90] sm:$0xf] %v5095
        %5097 = vst.msk [vmem:[%s5009 + $0x94] sm:$0xf] %vm256, %v4908
        %v5098 = vld [vmem:[%s5009 + $0x98] sm:$0x1]
        %v5099 = vsel %vm676, %v4909, %v5098
        %5100 = vst [vmem:[%s5009 + $0x98] sm:$0x1] %v5099
        %v5101 = vld [vmem:[%s5009 + $0x9c] sm:$0xf]
        %v5102 = vsel %vm670, %v4916, %v5101
        %5103 = vst [vmem:[%s5009 + $0x9c] sm:$0xf] %v5102
        %5104 = vst.msk [vmem:[%s5009 + $0xa0] sm:$0xf] %vm256, %v4925
        %v5105 = vld [vmem:[%s5009 + $0xa4] sm:$0x1]
        %v5106 = vsel %vm676, %v4926, %v5105
        %5107 = vst [vmem:[%s5009 + $0xa4] sm:$0x1] %v5106
        %v5108 = vld [vmem:[%s5009 + $0xa8] sm:$0xf]
        %v5109 = vsel %vm670, %v4933, %v5108
        %5110 = vst [vmem:[%s5009 + $0xa8] sm:$0xf] %v5109
        %5111 = vst.msk [vmem:[%s5009 + $0xac] sm:$0xf] %vm256, %v4942
        %v5112 = vld [vmem:[%s5009 + $0xb0] sm:$0x1]
        %v5113 = vsel %vm676, %v4943, %v5112
        %5114 = vst [vmem:[%s5009 + $0xb0] sm:$0x1] %v5113
        %v5115 = vld [vmem:[%s5009 + $0xb4] sm:$0xf]
        %v5116 = vsel %vm670, %v4950, %v5115
        %5117 = vst [vmem:[%s5009 + $0xb4] sm:$0xf] %v5116
        %5118 = vst.msk [vmem:[%s5009 + $0xb8] sm:$0xf] %vm256, %v4959
        %v5119 = vld [vmem:[%s5009 + $0xbc] sm:$0x1]
        %v5120 = vsel %vm676, %v4960, %v5119
        %5121 = vst [vmem:[%s5009 + $0xbc] sm:$0x1] %v5120
        %v5122 = vld [vmem:[#allocation4] sm:$0xf]
        %v5123 = vld [vmem:[#allocation4 + $0x4] sm:$0xf]
        %v5124 = vld [vmem:[#allocation4 + $0xc] sm:$0xf]
        %v5125 = vld [vmem:[#allocation4 + $0x10] sm:$0xf]
        %v5126 = vld [vmem:[#allocation4 + $0x18] sm:$0xf]
        %v5127 = vld [vmem:[#allocation4 + $0x1c] sm:$0xf]
        %v5128 = vld [vmem:[#allocation4 + $0x24] sm:$0xf]
        %v5129 = vld [vmem:[#allocation4 + $0x28] sm:$0xf]
        %v5130 = vld [vmem:[#allocation4 + $0x30] sm:$0xf]
        %v5131 = vld [vmem:[#allocation4 + $0x34] sm:$0xf]
        %v5132 = vld [vmem:[#allocation4 + $0x3c] sm:$0xf]
        %v5133 = vld [vmem:[#allocation4 + $0x40] sm:$0xf]
        %v5134 = vld [vmem:[#allocation4 + $0x48] sm:$0xf]
        %v5135 = vld [vmem:[#allocation4 + $0x4c] sm:$0xf]
        %v5136 = vld [vmem:[#allocation4 + $0x54] sm:$0xf]
        %v5137 = vld [vmem:[#allocation4 + $0x58] sm:$0xf]
        %v5138 = vld [vmem:[#allocation4 + $0x60] sm:$0xf]
        %v5139 = vld [vmem:[#allocation4 + $0x64] sm:$0xf]
        %v5140 = vld [vmem:[#allocation4 + $0x6c] sm:$0xf]
        %v5141 = vld [vmem:[#allocation4 + $0x70] sm:$0xf]
        %v5142 = vld [vmem:[#allocation4 + $0x78] sm:$0xf]
        %v5143 = vld [vmem:[#allocation4 + $0x7c] sm:$0xf]
        %v5144 = vld [vmem:[#allocation4 + $0x84] sm:$0xf]
        %v5145 = vld [vmem:[#allocation4 + $0x88] sm:$0xf]
        %v5146 = vld [vmem:[#allocation4 + $0x90] sm:$0xf]
        %v5147 = vld [vmem:[#allocation4 + $0x94] sm:$0xf]
        %v5148 = vld [vmem:[#allocation4 + $0x9c] sm:$0xf]
        %v5149 = vld [vmem:[#allocation4 + $0xa0] sm:$0xf]
        %v5150 = vld [vmem:[#allocation4 + $0xa8] sm:$0xf]
        %v5151 = vld [vmem:[#allocation4 + $0xac] sm:$0xf]
        %v5152 = vld [vmem:[#allocation4 + $0xb4] sm:$0xf]
        %v5153 = vld [vmem:[#allocation4 + $0xb8] sm:$0xf]
        %5154 = vst.msk [vmem:[#allocation5] sm:$0xf] %vm256, %v5122
        %5155 = vst.msk [vmem:[#allocation5 + $0xc] sm:$0xf] %vm256, %v5123
        %5156 = vst.msk [vmem:[#allocation5 + $0x18] sm:$0xf] %vm256, %v5124
        %5157 = vst.msk [vmem:[#allocation5 + $0x24] sm:$0xf] %vm256, %v5125
        %5158 = vst.msk [vmem:[#allocation5 + $0x30] sm:$0xf] %vm256, %v5126
        %5159 = vst.msk [vmem:[#allocation5 + $0x3c] sm:$0xf] %vm256, %v5127
        %5160 = vst.msk [vmem:[#allocation5 + $0x48] sm:$0xf] %vm256, %v5128
        %5161 = vst.msk [vmem:[#allocation5 + $0x54] sm:$0xf] %vm256, %v5129
        %5162 = vst.msk [vmem:[#allocation5 + $0x60] sm:$0xf] %vm256, %v5130
        %5163 = vst.msk [vmem:[#allocation5 + $0x6c] sm:$0xf] %vm256, %v5131
        %5164 = vst.msk [vmem:[#allocation5 + $0x78] sm:$0xf] %vm256, %v5132
        %5165 = vst.msk [vmem:[#allocation5 + $0x84] sm:$0xf] %vm256, %v5133
        %5166 = vst.msk [vmem:[#allocation5 + $0x90] sm:$0xf] %vm256, %v5134
        %5167 = vst.msk [vmem:[#allocation5 + $0x9c] sm:$0xf] %vm256, %v5135
        %5168 = vst.msk [vmem:[#allocation5 + $0xa8] sm:$0xf] %vm256, %v5136
        %5169 = vst.msk [vmem:[#allocation5 + $0xb4] sm:$0xf] %vm256, %v5137
        %5170 = vst.msk [vmem:[#allocation5 + $0xc0] sm:$0xf] %vm256, %v5138
        %5171 = vst.msk [vmem:[#allocation5 + $0xcc] sm:$0xf] %vm256, %v5139
        %5172 = vst.msk [vmem:[#allocation5 + $0xd8] sm:$0xf] %vm256, %v5140
        %5173 = vst.msk [vmem:[#allocation5 + $0xe4] sm:$0xf] %vm256, %v5141
        %5174 = vst.msk [vmem:[#allocation5 + $0xf0] sm:$0xf] %vm256, %v5142
        %5175 = vst.msk [vmem:[#allocation5 + $0xfc] sm:$0xf] %vm256, %v5143
        %5176 = vst.msk [vmem:[#allocation5 + $0x108] sm:$0xf] %vm256, %v5144
        %5177 = vst.msk [vmem:[#allocation5 + $0x114] sm:$0xf] %vm256, %v5145
        %5178 = vst.msk [vmem:[#allocation5 + $0x120] sm:$0xf] %vm256, %v5146
        %5179 = vst.msk [vmem:[#allocation5 + $0x12c] sm:$0xf] %vm256, %v5147
        %5180 = vst.msk [vmem:[#allocation5 + $0x138] sm:$0xf] %vm256, %v5148
        %5181 = vst.msk [vmem:[#allocation5 + $0x144] sm:$0xf] %vm256, %v5149
        %5182 = vst.msk [vmem:[#allocation5 + $0x150] sm:$0xf] %vm256, %v5150
        %5183 = vst.msk [vmem:[#allocation5 + $0x15c] sm:$0xf] %vm256, %v5151
        %5184 = vst.msk [vmem:[#allocation5 + $0x168] sm:$0xf] %vm256, %v5152
        %5185 = vst.msk [vmem:[#allocation5 + $0x174] sm:$0xf] %vm256, %v5153
        %v5186 = vld [vmem:[#allocation4] sm:$0xf]
        %v5187 = vld [vmem:[#allocation4 + $0x4] sm:$0xf]
        %v5188 = vld [vmem:[#allocation4 + $0x8] sm:$0x1]
        %v5189 = vld [vmem:[#allocation4 + $0xc] sm:$0xf]
        %v5190 = vld [vmem:[#allocation4 + $0x10] sm:$0xf]
        %v5191 = vld [vmem:[#allocation4 + $0x14] sm:$0x1]
        %v5192 = vld [vmem:[#allocation4 + $0x18] sm:$0xf]
        %v5193 = vld [vmem:[#allocation4 + $0x1c] sm:$0xf]
        %v5194 = vld [vmem:[#allocation4 + $0x20] sm:$0x1]
        %v5195 = vld [vmem:[#allocation4 + $0x24] sm:$0xf]
        %v5196 = vld [vmem:[#allocation4 + $0x28] sm:$0xf]
        %v5197 = vld [vmem:[#allocation4 + $0x2c] sm:$0x1]
        %v5198 = vld [vmem:[#allocation4 + $0x30] sm:$0xf]
        %v5199 = vld [vmem:[#allocation4 + $0x34] sm:$0xf]
        %v5200 = vld [vmem:[#allocation4 + $0x38] sm:$0x1]
        %v5201 = vld [vmem:[#allocation4 + $0x3c] sm:$0xf]
        %v5202 = vld [vmem:[#allocation4 + $0x40] sm:$0xf]
        %v5203 = vld [vmem:[#allocation4 + $0x44] sm:$0x1]
        %v5204 = vld [vmem:[#allocation4 + $0x48] sm:$0xf]
        %v5205 = vld [vmem:[#allocation4 + $0x4c] sm:$0xf]
        %v5206 = vld [vmem:[#allocation4 + $0x50] sm:$0x1]
        %v5207 = vld [vmem:[#allocation4 + $0x54] sm:$0xf]
        %v5208 = vld [vmem:[#allocation4 + $0x58] sm:$0xf]
        %v5209 = vld [vmem:[#allocation4 + $0x5c] sm:$0x1]
        %v5210 = vld [vmem:[#allocation4 + $0x60] sm:$0xf]
        %v5211 = vld [vmem:[#allocation4 + $0x64] sm:$0xf]
        %v5212 = vld [vmem:[#allocation4 + $0x68] sm:$0x1]
        %v5213 = vld [vmem:[#allocation4 + $0x6c] sm:$0xf]
        %v5214 = vld [vmem:[#allocation4 + $0x70] sm:$0xf]
        %v5215 = vld [vmem:[#allocation4 + $0x74] sm:$0x1]
        %v5216 = vld [vmem:[#allocation4 + $0x78] sm:$0xf]
        %v5217 = vld [vmem:[#allocation4 + $0x7c] sm:$0xf]
        %v5218 = vld [vmem:[#allocation4 + $0x80] sm:$0x1]
        %v5219 = vld [vmem:[#allocation4 + $0x84] sm:$0xf]
        %v5220 = vld [vmem:[#allocation4 + $0x88] sm:$0xf]
        %v5221 = vld [vmem:[#allocation4 + $0x8c] sm:$0x1]
        %v5222 = vld [vmem:[#allocation4 + $0x90] sm:$0xf]
        %v5223 = vld [vmem:[#allocation4 + $0x94] sm:$0xf]
        %v5224 = vld [vmem:[#allocation4 + $0x98] sm:$0x1]
        %v5225 = vld [vmem:[#allocation4 + $0x9c] sm:$0xf]
        %v5226 = vld [vmem:[#allocation4 + $0xa0] sm:$0xf]
        %v5227 = vld [vmem:[#allocation4 + $0xa4] sm:$0x1]
        %v5228 = vld [vmem:[#allocation4 + $0xa8] sm:$0xf]
        %v5229 = vld [vmem:[#allocation4 + $0xac] sm:$0xf]
        %v5230 = vld [vmem:[#allocation4 + $0xb0] sm:$0x1]
        %v5231 = vld [vmem:[#allocation4 + $0xb4] sm:$0xf]
        %v5232 = vld [vmem:[#allocation4 + $0xb8] sm:$0xf]
        %v5233 = vld [vmem:[#allocation4 + $0xbc] sm:$0x1]
        %v5235 = vshrl.u32 %v5186, 16
        %v5237 = vrot.slane %v5235, 4
        %v5238 = vshll.u32 %v5186, 16
        %v5240 = vrot.slane %v5238, 5
        %v5241 = vor.u32 %v5237, %v5240
        %v5242 = vrot.slane %v5241, 4
        %v5244 = vshll.u32 %v5187, 16
        %v5246 = vrot.slane %v5244, 5
        %v5247 = vsel %vm899, %v5242, %v5246
        %v5248 = vshrl.u32 %v5187, 16
        %v5250 = vrot.slane %v5248, 4
        %v5251 = vor.u32 %v5250, %v5246
        %v5252 = vrot.slane %v5251, 4
        %v5254 = vshll.u32 %v5188, 16
        %v5256 = vrot.slane %v5254, 5
        %v5257 = vsel %vm899, %v5252, %v5256
        %v5259 = vshrl.u32 %v5189, 16
        %v5261 = vrot.slane %v5259, 4
        %v5262 = vshll.u32 %v5189, 16
        %v5264 = vrot.slane %v5262, 5
        %v5265 = vor.u32 %v5261, %v5264
        %v5266 = vrot.slane %v5265, 4
        %v5268 = vshll.u32 %v5190, 16
        %v5270 = vrot.slane %v5268, 5
        %v5271 = vsel %vm899, %v5266, %v5270
        %v5272 = vshrl.u32 %v5190, 16
        %v5274 = vrot.slane %v5272, 4
        %v5275 = vor.u32 %v5274, %v5270
        %v5276 = vrot.slane %v5275, 4
        %v5278 = vshll.u32 %v5191, 16
        %v5280 = vrot.slane %v5278, 5
        %v5281 = vsel %vm899, %v5276, %v5280
        %v5283 = vshrl.u32 %v5192, 16
        %v5285 = vrot.slane %v5283, 4
        %v5286 = vshll.u32 %v5192, 16
        %v5288 = vrot.slane %v5286, 5
        %v5289 = vor.u32 %v5285, %v5288
        %v5290 = vrot.slane %v5289, 4
        %v5292 = vshll.u32 %v5193, 16
        %v5294 = vrot.slane %v5292, 5
        %v5295 = vsel %vm899, %v5290, %v5294
        %v5296 = vshrl.u32 %v5193, 16
        %v5298 = vrot.slane %v5296, 4
        %v5299 = vor.u32 %v5298, %v5294
        %v5300 = vrot.slane %v5299, 4
        %v5302 = vshll.u32 %v5194, 16
        %v5304 = vrot.slane %v5302, 5
        %v5305 = vsel %vm899, %v5300, %v5304
        %v5307 = vshrl.u32 %v5195, 16
        %v5309 = vrot.slane %v5307, 4
        %v5310 = vshll.u32 %v5195, 16
        %v5312 = vrot.slane %v5310, 5
        %v5313 = vor.u32 %v5309, %v5312
        %v5314 = vrot.slane %v5313, 4
        %v5316 = vshll.u32 %v5196, 16
        %v5318 = vrot.slane %v5316, 5
        %v5319 = vsel %vm899, %v5314, %v5318
        %v5320 = vshrl.u32 %v5196, 16
        %v5322 = vrot.slane %v5320, 4
        %v5323 = vor.u32 %v5322, %v5318
        %v5324 = vrot.slane %v5323, 4
        %v5326 = vshll.u32 %v5197, 16
        %v5328 = vrot.slane %v5326, 5
        %v5329 = vsel %vm899, %v5324, %v5328
        %v5331 = vshrl.u32 %v5198, 16
        %v5333 = vrot.slane %v5331, 4
        %v5334 = vshll.u32 %v5198, 16
        %v5336 = vrot.slane %v5334, 5
        %v5337 = vor.u32 %v5333, %v5336
        %v5338 = vrot.slane %v5337, 4
        %v5340 = vshll.u32 %v5199, 16
        %v5342 = vrot.slane %v5340, 5
        %v5343 = vsel %vm899, %v5338, %v5342
        %v5344 = vshrl.u32 %v5199, 16
        %v5346 = vrot.slane %v5344, 4
        %v5347 = vor.u32 %v5346, %v5342
        %v5348 = vrot.slane %v5347, 4
        %v5350 = vshll.u32 %v5200, 16
        %v5352 = vrot.slane %v5350, 5
        %v5353 = vsel %vm899, %v5348, %v5352
        %v5355 = vshrl.u32 %v5201, 16
        %v5357 = vrot.slane %v5355, 4
        %v5358 = vshll.u32 %v5201, 16
        %v5360 = vrot.slane %v5358, 5
        %v5361 = vor.u32 %v5357, %v5360
        %v5362 = vrot.slane %v5361, 4
        %v5364 = vshll.u32 %v5202, 16
        %v5366 = vrot.slane %v5364, 5
        %v5367 = vsel %vm899, %v5362, %v5366
        %v5368 = vshrl.u32 %v5202, 16
        %v5370 = vrot.slane %v5368, 4
        %v5371 = vor.u32 %v5370, %v5366
        %v5372 = vrot.slane %v5371, 4
        %v5374 = vshll.u32 %v5203, 16
        %v5376 = vrot.slane %v5374, 5
        %v5377 = vsel %vm899, %v5372, %v5376
        %v5379 = vshrl.u32 %v5204, 16
        %v5381 = vrot.slane %v5379, 4
        %v5382 = vshll.u32 %v5204, 16
        %v5384 = vrot.slane %v5382, 5
        %v5385 = vor.u32 %v5381, %v5384
        %v5386 = vrot.slane %v5385, 4
        %v5388 = vshll.u32 %v5205, 16
        %v5390 = vrot.slane %v5388, 5
        %v5391 = vsel %vm899, %v5386, %v5390
        %v5392 = vshrl.u32 %v5205, 16
        %v5394 = vrot.slane %v5392, 4
        %v5395 = vor.u32 %v5394, %v5390
        %v5396 = vrot.slane %v5395, 4
        %v5398 = vshll.u32 %v5206, 16
        %v5400 = vrot.slane %v5398, 5
        %v5401 = vsel %vm899, %v5396, %v5400
        %v5403 = vshrl.u32 %v5207, 16
        %v5405 = vrot.slane %v5403, 4
        %v5406 = vshll.u32 %v5207, 16
        %v5408 = vrot.slane %v5406, 5
        %v5409 = vor.u32 %v5405, %v5408
        %v5410 = vrot.slane %v5409, 4
        %v5412 = vshll.u32 %v5208, 16
        %v5414 = vrot.slane %v5412, 5
        %v5415 = vsel %vm899, %v5410, %v5414
        %v5416 = vshrl.u32 %v5208, 16
        %v5418 = vrot.slane %v5416, 4
        %v5419 = vor.u32 %v5418, %v5414
        %v5420 = vrot.slane %v5419, 4
        %v5422 = vshll.u32 %v5209, 16
        %v5424 = vrot.slane %v5422, 5
        %v5425 = vsel %vm899, %v5420, %v5424
        %v5427 = vshrl.u32 %v5210, 16
        %v5429 = vrot.slane %v5427, 4
        %v5430 = vshll.u32 %v5210, 16
        %v5432 = vrot.slane %v5430, 5
        %v5433 = vor.u32 %v5429, %v5432
        %v5434 = vrot.slane %v5433, 4
        %v5436 = vshll.u32 %v5211, 16
        %v5438 = vrot.slane %v5436, 5
        %v5439 = vsel %vm899, %v5434, %v5438
        %v5440 = vshrl.u32 %v5211, 16
        %v5442 = vrot.slane %v5440, 4
        %v5443 = vor.u32 %v5442, %v5438
        %v5444 = vrot.slane %v5443, 4
        %v5446 = vshll.u32 %v5212, 16
        %v5448 = vrot.slane %v5446, 5
        %v5449 = vsel %vm899, %v5444, %v5448
        %v5451 = vshrl.u32 %v5213, 16
        %v5453 = vrot.slane %v5451, 4
        %v5454 = vshll.u32 %v5213, 16
        %v5456 = vrot.slane %v5454, 5
        %v5457 = vor.u32 %v5453, %v5456
        %v5458 = vrot.slane %v5457, 4
        %v5460 = vshll.u32 %v5214, 16
        %v5462 = vrot.slane %v5460, 5
        %v5463 = vsel %vm899, %v5458, %v5462
        %v5464 = vshrl.u32 %v5214, 16
        %v5466 = vrot.slane %v5464, 4
        %v5467 = vor.u32 %v5466, %v5462
        %v5468 = vrot.slane %v5467, 4
        %v5470 = vshll.u32 %v5215, 16
        %v5472 = vrot.slane %v5470, 5
        %v5473 = vsel %vm899, %v5468, %v5472
        %v5475 = vshrl.u32 %v5216, 16
        %v5477 = vrot.slane %v5475, 4
        %v5478 = vshll.u32 %v5216, 16
        %v5480 = vrot.slane %v5478, 5
        %v5481 = vor.u32 %v5477, %v5480
        %v5482 = vrot.slane %v5481, 4
        %v5484 = vshll.u32 %v5217, 16
        %v5486 = vrot.slane %v5484, 5
        %v5487 = vsel %vm899, %v5482, %v5486
        %v5488 = vshrl.u32 %v5217, 16
        %v5490 = vrot.slane %v5488, 4
        %v5491 = vor.u32 %v5490, %v5486
        %v5492 = vrot.slane %v5491, 4
        %v5494 = vshll.u32 %v5218, 16
        %v5496 = vrot.slane %v5494, 5
        %v5497 = vsel %vm899, %v5492, %v5496
        %v5499 = vshrl.u32 %v5219, 16
        %v5501 = vrot.slane %v5499, 4
        %v5502 = vshll.u32 %v5219, 16
        %v5504 = vrot.slane %v5502, 5
        %v5505 = vor.u32 %v5501, %v5504
        %v5506 = vrot.slane %v5505, 4
        %v5508 = vshll.u32 %v5220, 16
        %v5510 = vrot.slane %v5508, 5
        %v5511 = vsel %vm899, %v5506, %v5510
        %v5512 = vshrl.u32 %v5220, 16
        %v5514 = vrot.slane %v5512, 4
        %v5515 = vor.u32 %v5514, %v5510
        %v5516 = vrot.slane %v5515, 4
        %v5518 = vshll.u32 %v5221, 16
        %v5520 = vrot.slane %v5518, 5
        %v5521 = vsel %vm899, %v5516, %v5520
        %v5523 = vshrl.u32 %v5222, 16
        %v5525 = vrot.slane %v5523, 4
        %v5526 = vshll.u32 %v5222, 16
        %v5528 = vrot.slane %v5526, 5
        %v5529 = vor.u32 %v5525, %v5528
        %v5530 = vrot.slane %v5529, 4
        %v5532 = vshll.u32 %v5223, 16
        %v5534 = vrot.slane %v5532, 5
        %v5535 = vsel %vm899, %v5530, %v5534
        %v5536 = vshrl.u32 %v5223, 16
        %v5538 = vrot.slane %v5536, 4
        %v5539 = vor.u32 %v5538, %v5534
        %v5540 = vrot.slane %v5539, 4
        %v5542 = vshll.u32 %v5224, 16
        %v5544 = vrot.slane %v5542, 5
        %v5545 = vsel %vm899, %v5540, %v5544
        %v5547 = vshrl.u32 %v5225, 16
        %v5549 = vrot.slane %v5547, 4
        %v5550 = vshll.u32 %v5225, 16
        %v5552 = vrot.slane %v5550, 5
        %v5553 = vor.u32 %v5549, %v5552
        %v5554 = vrot.slane %v5553, 4
        %v5556 = vshll.u32 %v5226, 16
        %v5558 = vrot.slane %v5556, 5
        %v5559 = vsel %vm899, %v5554, %v5558
        %v5560 = vshrl.u32 %v5226, 16
        %v5562 = vrot.slane %v5560, 4
        %v5563 = vor.u32 %v5562, %v5558
        %v5564 = vrot.slane %v5563, 4
        %v5566 = vshll.u32 %v5227, 16
        %v5568 = vrot.slane %v5566, 5
        %v5569 = vsel %vm899, %v5564, %v5568
        %v5571 = vshrl.u32 %v5228, 16
        %v5573 = vrot.slane %v5571, 4
        %v5574 = vshll.u32 %v5228, 16
        %v5576 = vrot.slane %v5574, 5
        %v5577 = vor.u32 %v5573, %v5576
        %v5578 = vrot.slane %v5577, 4
        %v5580 = vshll.u32 %v5229, 16
        %v5582 = vrot.slane %v5580, 5
        %v5583 = vsel %vm899, %v5578, %v5582
        %v5584 = vshrl.u32 %v5229, 16
        %v5586 = vrot.slane %v5584, 4
        %v5587 = vor.u32 %v5586, %v5582
        %v5588 = vrot.slane %v5587, 4
        %v5590 = vshll.u32 %v5230, 16
        %v5592 = vrot.slane %v5590, 5
        %v5593 = vsel %vm899, %v5588, %v5592
        %v5595 = vshrl.u32 %v5231, 16
        %v5597 = vrot.slane %v5595, 4
        %v5598 = vshll.u32 %v5231, 16
        %v5600 = vrot.slane %v5598, 5
        %v5601 = vor.u32 %v5597, %v5600
        %v5602 = vrot.slane %v5601, 4
        %v5604 = vshll.u32 %v5232, 16
        %v5606 = vrot.slane %v5604, 5
        %v5607 = vsel %vm899, %v5602, %v5606
        %v5608 = vshrl.u32 %v5232, 16
        %v5610 = vrot.slane %v5608, 4
        %v5611 = vor.u32 %v5610, %v5606
        %v5612 = vrot.slane %v5611, 4
        %v5614 = vshll.u32 %v5233, 16
        %v5616 = vrot.slane %v5614, 5
        %v5617 = vsel %vm899, %v5612, %v5616
        %5618 = vrot.lane.b32.xlu0 %v5247, 32
        %v5619 = vpop.permute.xlu0 %5618
        %5620 = vrot.lane.b32.xlu0 %v5257, 32
        %v5621 = vpop.permute.xlu0 %5620
        %5622 = vrot.lane.b32.xlu0 %v5271, 32
        %v5623 = vpop.permute.xlu0 %5622
        %5624 = vrot.lane.b32.xlu0 %v5281, 32
        %v5625 = vpop.permute.xlu0 %5624
        %5626 = vrot.lane.b32.xlu0 %v5295, 32
        %v5627 = vpop.permute.xlu0 %5626
        %5628 = vrot.lane.b32.xlu0 %v5305, 32
        %v5629 = vpop.permute.xlu0 %5628
        %5630 = vrot.lane.b32.xlu0 %v5319, 32
        %v5631 = vpop.permute.xlu0 %5630
        %5632 = vrot.lane.b32.xlu0 %v5329, 32
        %v5633 = vpop.permute.xlu0 %5632
        %5634 = vrot.lane.b32.xlu0 %v5343, 32
        %v5635 = vpop.permute.xlu0 %5634
        %5636 = vrot.lane.b32.xlu0 %v5353, 32
        %v5637 = vpop.permute.xlu0 %5636
        %5638 = vrot.lane.b32.xlu0 %v5367, 32
        %v5639 = vpop.permute.xlu0 %5638
        %5640 = vrot.lane.b32.xlu0 %v5377, 32
        %v5641 = vpop.permute.xlu0 %5640
        %5642 = vrot.lane.b32.xlu0 %v5391, 32
        %v5643 = vpop.permute.xlu0 %5642
        %5644 = vrot.lane.b32.xlu0 %v5401, 32
        %v5645 = vpop.permute.xlu0 %5644
        %5646 = vrot.lane.b32.xlu0 %v5415, 32
        %v5647 = vpop.permute.xlu0 %5646
        %5648 = vrot.lane.b32.xlu0 %v5425, 32
        %v5649 = vpop.permute.xlu0 %5648
        %5650 = vrot.lane.b32.xlu0 %v5439, 32
        %v5651 = vpop.permute.xlu0 %5650
        %5652 = vrot.lane.b32.xlu0 %v5449, 32
        %v5653 = vpop.permute.xlu0 %5652
        %5654 = vrot.lane.b32.xlu0 %v5463, 32
        %v5655 = vpop.permute.xlu0 %5654
        %5656 = vrot.lane.b32.xlu0 %v5473, 32
        %v5657 = vpop.permute.xlu0 %5656
        %5658 = vrot.lane.b32.xlu0 %v5487, 32
        %v5659 = vpop.permute.xlu0 %5658
        %5660 = vrot.lane.b32.xlu0 %v5497, 32
        %v5661 = vpop.permute.xlu0 %5660
        %5662 = vrot.lane.b32.xlu0 %v5511, 32
        %v5663 = vpop.permute.xlu0 %5662
        %5664 = vrot.lane.b32.xlu0 %v5521, 32
        %v5665 = vpop.permute.xlu0 %5664
        %5666 = vrot.lane.b32.xlu0 %v5535, 32
        %v5667 = vpop.permute.xlu0 %5666
        %5668 = vrot.lane.b32.xlu0 %v5545, 32
        %v5669 = vpop.permute.xlu0 %5668
        %5670 = vrot.lane.b32.xlu0 %v5559, 32
        %v5671 = vpop.permute.xlu0 %5670
        %5672 = vrot.lane.b32.xlu0 %v5569, 32
        %v5673 = vpop.permute.xlu0 %5672
        %5674 = vrot.lane.b32.xlu0 %v5583, 32
        %v5675 = vpop.permute.xlu0 %5674
        %5676 = vrot.lane.b32.xlu0 %v5593, 32
        %v5677 = vpop.permute.xlu0 %5676
        %5678 = vrot.lane.b32.xlu0 %v5607, 32
        %v5679 = vpop.permute.xlu0 %5678
        %5680 = vrot.lane.b32.xlu0 %v5617, 32
        %v5681 = vpop.permute.xlu0 %5680
        %5714 = vst.msk [vmem:[#allocation5] sm:$0xf] %vm1380, %v5619
        %5715 = vst.msk [vmem:[#allocation5 + $0xc] sm:$0xf] %vm1380, %v5621
        %5716 = vst.msk [vmem:[#allocation5 + $0x18] sm:$0xf] %vm1380, %v5623
        %5717 = vst.msk [vmem:[#allocation5 + $0x24] sm:$0xf] %vm1380, %v5625
        %5718 = vst.msk [vmem:[#allocation5 + $0x30] sm:$0xf] %vm1380, %v5627
        %5719 = vst.msk [vmem:[#allocation5 + $0x3c] sm:$0xf] %vm1380, %v5629
        %5720 = vst.msk [vmem:[#allocation5 + $0x48] sm:$0xf] %vm1380, %v5631
        %5721 = vst.msk [vmem:[#allocation5 + $0x54] sm:$0xf] %vm1380, %v5633
        %5722 = vst.msk [vmem:[#allocation5 + $0x60] sm:$0xf] %vm1380, %v5635
        %5723 = vst.msk [vmem:[#allocation5 + $0x6c] sm:$0xf] %vm1380, %v5637
        %5724 = vst.msk [vmem:[#allocation5 + $0x78] sm:$0xf] %vm1380, %v5639
        %5725 = vst.msk [vmem:[#allocation5 + $0x84] sm:$0xf] %vm1380, %v5641
        %5726 = vst.msk [vmem:[#allocation5 + $0x90] sm:$0xf] %vm1380, %v5643
        %5727 = vst.msk [vmem:[#allocation5 + $0x9c] sm:$0xf] %vm1380, %v5645
        %5728 = vst.msk [vmem:[#allocation5 + $0xa8] sm:$0xf] %vm1380, %v5647
        %5729 = vst.msk [vmem:[#allocation5 + $0xb4] sm:$0xf] %vm1380, %v5649
        %5730 = vst.msk [vmem:[#allocation5 + $0xc0] sm:$0xf] %vm1380, %v5651
        %5731 = vst.msk [vmem:[#allocation5 + $0xcc] sm:$0xf] %vm1380, %v5653
        %5732 = vst.msk [vmem:[#allocation5 + $0xd8] sm:$0xf] %vm1380, %v5655
        %5733 = vst.msk [vmem:[#allocation5 + $0xe4] sm:$0xf] %vm1380, %v5657
        %5734 = vst.msk [vmem:[#allocation5 + $0xf0] sm:$0xf] %vm1380, %v5659
        %5735 = vst.msk [vmem:[#allocation5 + $0xfc] sm:$0xf] %vm1380, %v5661
        %5736 = vst.msk [vmem:[#allocation5 + $0x108] sm:$0xf] %vm1380, %v5663
        %5737 = vst.msk [vmem:[#allocation5 + $0x114] sm:$0xf] %vm1380, %v5665
        %5738 = vst.msk [vmem:[#allocation5 + $0x120] sm:$0xf] %vm1380, %v5667
        %5739 = vst.msk [vmem:[#allocation5 + $0x12c] sm:$0xf] %vm1380, %v5669
        %5740 = vst.msk [vmem:[#allocation5 + $0x138] sm:$0xf] %vm1380, %v5671
        %5741 = vst.msk [vmem:[#allocation5 + $0x144] sm:$0xf] %vm1380, %v5673
        %5742 = vst.msk [vmem:[#allocation5 + $0x150] sm:$0xf] %vm1380, %v5675
        %5743 = vst.msk [vmem:[#allocation5 + $0x15c] sm:$0xf] %vm1380, %v5677
        %5744 = vst.msk [vmem:[#allocation5 + $0x168] sm:$0xf] %vm1380, %v5679
        %5745 = vst.msk [vmem:[#allocation5 + $0x174] sm:$0xf] %vm1380, %v5681
        %v5746 = vld [vmem:[#allocation4] sm:$0xe]
        %v5747 = vld [vmem:[#allocation4 + $0x4] sm:$0xf]
        %v5748 = vld [vmem:[#allocation4 + $0x8] sm:$0x1]
        %v5749 = vld [vmem:[#allocation4 + $0xc] sm:$0xe]
        %v5750 = vld [vmem:[#allocation4 + $0x10] sm:$0xf]
        %v5751 = vld [vmem:[#allocation4 + $0x14] sm:$0x1]
        %v5752 = vld [vmem:[#allocation4 + $0x18] sm:$0xe]
        %v5753 = vld [vmem:[#allocation4 + $0x1c] sm:$0xf]
        %v5754 = vld [vmem:[#allocation4 + $0x20] sm:$0x1]
        %v5755 = vld [vmem:[#allocation4 + $0x24] sm:$0xe]
        %v5756 = vld [vmem:[#allocation4 + $0x28] sm:$0xf]
        %v5757 = vld [vmem:[#allocation4 + $0x2c] sm:$0x1]
        %v5758 = vld [vmem:[#allocation4 + $0x30] sm:$0xe]
        %v5759 = vld [vmem:[#allocation4 + $0x34] sm:$0xf]
        %v5760 = vld [vmem:[#allocation4 + $0x38] sm:$0x1]
        %v5761 = vld [vmem:[#allocation4 + $0x3c] sm:$0xe]
        %v5762 = vld [vmem:[#allocation4 + $0x40] sm:$0xf]
        %v5763 = vld [vmem:[#allocation4 + $0x44] sm:$0x1]
        %v5764 = vld [vmem:[#allocation4 + $0x48] sm:$0xe]
        %v5765 = vld [vmem:[#allocation4 + $0x4c] sm:$0xf]
        %v5766 = vld [vmem:[#allocation4 + $0x50] sm:$0x1]
        %v5767 = vld [vmem:[#allocation4 + $0x54] sm:$0xe]
        %v5768 = vld [vmem:[#allocation4 + $0x58] sm:$0xf]
        %v5769 = vld [vmem:[#allocation4 + $0x5c] sm:$0x1]
        %v5770 = vld [vmem:[#allocation4 + $0x60] sm:$0xe]
        %v5771 = vld [vmem:[#allocation4 + $0x64] sm:$0xf]
        %v5772 = vld [vmem:[#allocation4 + $0x68] sm:$0x1]
        %v5773 = vld [vmem:[#allocation4 + $0x6c] sm:$0xe]
        %v5774 = vld [vmem:[#allocation4 + $0x70] sm:$0xf]
        %v5775 = vld [vmem:[#allocation4 + $0x74] sm:$0x1]
        %v5776 = vld [vmem:[#allocation4 + $0x78] sm:$0xe]
        %v5777 = vld [vmem:[#allocation4 + $0x7c] sm:$0xf]
        %v5778 = vld [vmem:[#allocation4 + $0x80] sm:$0x1]
        %v5779 = vld [vmem:[#allocation4 + $0x84] sm:$0xe]
        %v5780 = vld [vmem:[#allocation4 + $0x88] sm:$0xf]
        %v5781 = vld [vmem:[#allocation4 + $0x8c] sm:$0x1]
        %v5782 = vld [vmem:[#allocation4 + $0x90] sm:$0xe]
        %v5783 = vld [vmem:[#allocation4 + $0x94] sm:$0xf]
        %v5784 = vld [vmem:[#allocation4 + $0x98] sm:$0x1]
        %v5785 = vld [vmem:[#allocation4 + $0x9c] sm:$0xe]
        %v5786 = vld [vmem:[#allocation4 + $0xa0] sm:$0xf]
        %v5787 = vld [vmem:[#allocation4 + $0xa4] sm:$0x1]
        %v5788 = vld [vmem:[#allocation4 + $0xa8] sm:$0xe]
        %v5789 = vld [vmem:[#allocation4 + $0xac] sm:$0xf]
        %v5790 = vld [vmem:[#allocation4 + $0xb0] sm:$0x1]
        %v5791 = vld [vmem:[#allocation4 + $0xb4] sm:$0xe]
        %v5792 = vld [vmem:[#allocation4 + $0xb8] sm:$0xf]
        %v5793 = vld [vmem:[#allocation4 + $0xbc] sm:$0x1]
        %v5842 = vrot.slane %v5746, 5
        %v5843 = vrot.slane %v5842, 4
        %v5844 = vrot.slane %v5747, 5
        %v5845 = vsel %vm1511, %v5843, %v5844
        %v5846 = vrot.slane %v5844, 4
        %v5847 = vrot.slane %v5748, 5
        %v5848 = vsel %vm1511, %v5846, %v5847
        %v5849 = vrot.slane %v5749, 5
        %v5850 = vrot.slane %v5849, 4
        %v5851 = vrot.slane %v5750, 5
        %v5852 = vsel %vm1511, %v5850, %v5851
        %v5853 = vrot.slane %v5851, 4
        %v5854 = vrot.slane %v5751, 5
        %v5855 = vsel %vm1511, %v5853, %v5854
        %v5856 = vrot.slane %v5752, 5
        %v5857 = vrot.slane %v5856, 4
        %v5858 = vrot.slane %v5753, 5
        %v5859 = vsel %vm1511, %v5857, %v5858
        %v5860 = vrot.slane %v5858, 4
        %v5861 = vrot.slane %v5754, 5
        %v5862 = vsel %vm1511, %v5860, %v5861
        %v5863 = vrot.slane %v5755, 5
        %v5864 = vrot.slane %v5863, 4
        %v5865 = vrot.slane %v5756, 5
        %v5866 = vsel %vm1511, %v5864, %v5865
        %v5867 = vrot.slane %v5865, 4
        %v5868 = vrot.slane %v5757, 5
        %v5869 = vsel %vm1511, %v5867, %v5868
        %v5870 = vrot.slane %v5758, 5
        %v5871 = vrot.slane %v5870, 4
        %v5872 = vrot.slane %v5759, 5
        %v5873 = vsel %vm1511, %v5871, %v5872
        %v5874 = vrot.slane %v5872, 4
        %v5875 = vrot.slane %v5760, 5
        %v5876 = vsel %vm1511, %v5874, %v5875
        %v5877 = vrot.slane %v5761, 5
        %v5878 = vrot.slane %v5877, 4
        %v5879 = vrot.slane %v5762, 5
        %v5880 = vsel %vm1511, %v5878, %v5879
        %v5881 = vrot.slane %v5879, 4
        %v5882 = vrot.slane %v5763, 5
        %v5883 = vsel %vm1511, %v5881, %v5882
        %v5884 = vrot.slane %v5764, 5
        %v5885 = vrot.slane %v5884, 4
        %v5886 = vrot.slane %v5765, 5
        %v5887 = vsel %vm1511, %v5885, %v5886
        %v5888 = vrot.slane %v5886, 4
        %v5889 = vrot.slane %v5766, 5
        %v5890 = vsel %vm1511, %v5888, %v5889
        %v5891 = vrot.slane %v5767, 5
        %v5892 = vrot.slane %v5891, 4
        %v5893 = vrot.slane %v5768, 5
        %v5894 = vsel %vm1511, %v5892, %v5893
        %v5895 = vrot.slane %v5893, 4
        %v5896 = vrot.slane %v5769, 5
        %v5897 = vsel %vm1511, %v5895, %v5896
        %v5898 = vrot.slane %v5770, 5
        %v5899 = vrot.slane %v5898, 4
        %v5900 = vrot.slane %v5771, 5
        %v5901 = vsel %vm1511, %v5899, %v5900
        %v5902 = vrot.slane %v5900, 4
        %v5903 = vrot.slane %v5772, 5
        %v5904 = vsel %vm1511, %v5902, %v5903
        %v5905 = vrot.slane %v5773, 5
        %v5906 = vrot.slane %v5905, 4
        %v5907 = vrot.slane %v5774, 5
        %v5908 = vsel %vm1511, %v5906, %v5907
        %v5909 = vrot.slane %v5907, 4
        %v5910 = vrot.slane %v5775, 5
        %v5911 = vsel %vm1511, %v5909, %v5910
        %v5912 = vrot.slane %v5776, 5
        %v5913 = vrot.slane %v5912, 4
        %v5914 = vrot.slane %v5777, 5
        %v5915 = vsel %vm1511, %v5913, %v5914
        %v5916 = vrot.slane %v5914, 4
        %v5917 = vrot.slane %v5778, 5
        %v5918 = vsel %vm1511, %v5916, %v5917
        %v5919 = vrot.slane %v5779, 5
        %v5920 = vrot.slane %v5919, 4
        %v5921 = vrot.slane %v5780, 5
        %v5922 = vsel %vm1511, %v5920, %v5921
        %v5923 = vrot.slane %v5921, 4
        %v5924 = vrot.slane %v5781, 5
        %v5925 = vsel %vm1511, %v5923, %v5924
        %v5926 = vrot.slane %v5782, 5
        %v5927 = vrot.slane %v5926, 4
        %v5928 = vrot.slane %v5783, 5
        %v5929 = vsel %vm1511, %v5927, %v5928
        %v5930 = vrot.slane %v5928, 4
        %v5931 = vrot.slane %v5784, 5
        %v5932 = vsel %vm1511, %v5930, %v5931
        %v5933 = vrot.slane %v5785, 5
        %v5934 = vrot.slane %v5933, 4
        %v5935 = vrot.slane %v5786, 5
        %v5936 = vsel %vm1511, %v5934, %v5935
        %v5937 = vrot.slane %v5935, 4
        %v5938 = vrot.slane %v5787, 5
        %v5939 = vsel %vm1511, %v5937, %v5938
        %v5940 = vrot.slane %v5788, 5
        %v5941 = vrot.slane %v5940, 4
        %v5942 = vrot.slane %v5789, 5
        %v5943 = vsel %vm1511, %v5941, %v5942
        %v5944 = vrot.slane %v5942, 4
        %v5945 = vrot.slane %v5790, 5
        %v5946 = vsel %vm1511, %v5944, %v5945
        %v5947 = vrot.slane %v5791, 5
        %v5948 = vrot.slane %v5947, 4
        %v5949 = vrot.slane %v5792, 5
        %v5950 = vsel %vm1511, %v5948, %v5949
        %v5951 = vrot.slane %v5949, 4
        %v5952 = vrot.slane %v5793, 5
        %v5953 = vsel %vm1511, %v5951, %v5952
        %5954 = vrot.lane.b32.xlu0 %v5845, 64
        %v5955 = vpop.permute.xlu0 %5954
        %5956 = vrot.lane.b32.xlu0 %v5848, 64
        %v5957 = vpop.permute.xlu0 %5956
        %5958 = vrot.lane.b32.xlu0 %v5852, 64
        %v5959 = vpop.permute.xlu0 %5958
        %5960 = vrot.lane.b32.xlu0 %v5855, 64
        %v5961 = vpop.permute.xlu0 %5960
        %5962 = vrot.lane.b32.xlu0 %v5859, 64
        %v5963 = vpop.permute.xlu0 %5962
        %5964 = vrot.lane.b32.xlu0 %v5862, 64
        %v5965 = vpop.permute.xlu0 %5964
        %5966 = vrot.lane.b32.xlu0 %v5866, 64
        %v5967 = vpop.permute.xlu0 %5966
        %5968 = vrot.lane.b32.xlu0 %v5869, 64
        %v5969 = vpop.permute.xlu0 %5968
        %5970 = vrot.lane.b32.xlu0 %v5873, 64
        %v5971 = vpop.permute.xlu0 %5970
        %5972 = vrot.lane.b32.xlu0 %v5876, 64
        %v5973 = vpop.permute.xlu0 %5972
        %5974 = vrot.lane.b32.xlu0 %v5880, 64
        %v5975 = vpop.permute.xlu0 %5974
        %5976 = vrot.lane.b32.xlu0 %v5883, 64
        %v5977 = vpop.permute.xlu0 %5976
        %5978 = vrot.lane.b32.xlu0 %v5887, 64
        %v5979 = vpop.permute.xlu0 %5978
        %5980 = vrot.lane.b32.xlu0 %v5890, 64
        %v5981 = vpop.permute.xlu0 %5980
        %5982 = vrot.lane.b32.xlu0 %v5894, 64
        %v5983 = vpop.permute.xlu0 %5982
        %5984 = vrot.lane.b32.xlu0 %v5897, 64
        %v5985 = vpop.permute.xlu0 %5984
        %5986 = vrot.lane.b32.xlu0 %v5901, 64
        %v5987 = vpop.permute.xlu0 %5986
        %5988 = vrot.lane.b32.xlu0 %v5904, 64
        %v5989 = vpop.permute.xlu0 %5988
        %5990 = vrot.lane.b32.xlu0 %v5908, 64
        %v5991 = vpop.permute.xlu0 %5990
        %5992 = vrot.lane.b32.xlu0 %v5911, 64
        %v5993 = vpop.permute.xlu0 %5992
        %5994 = vrot.lane.b32.xlu0 %v5915, 64
        %v5995 = vpop.permute.xlu0 %5994
        %5996 = vrot.lane.b32.xlu0 %v5918, 64
        %v5997 = vpop.permute.xlu0 %5996
        %5998 = vrot.lane.b32.xlu0 %v5922, 64
        %v5999 = vpop.permute.xlu0 %5998
        %6000 = vrot.lane.b32.xlu0 %v5925, 64
        %v6001 = vpop.permute.xlu0 %6000
        %6002 = vrot.lane.b32.xlu0 %v5929, 64
        %v6003 = vpop.permute.xlu0 %6002
        %6004 = vrot.lane.b32.xlu0 %v5932, 64
        %v6005 = vpop.permute.xlu0 %6004
        %6006 = vrot.lane.b32.xlu0 %v5936, 64
        %v6007 = vpop.permute.xlu0 %6006
        %6008 = vrot.lane.b32.xlu0 %v5939, 64
        %v6009 = vpop.permute.xlu0 %6008
        %6010 = vrot.lane.b32.xlu0 %v5943, 64
        %v6011 = vpop.permute.xlu0 %6010
        %6012 = vrot.lane.b32.xlu0 %v5946, 64
        %v6013 = vpop.permute.xlu0 %6012
        %6014 = vrot.lane.b32.xlu0 %v5950, 64
        %v6015 = vpop.permute.xlu0 %6014
        %6016 = vrot.lane.b32.xlu0 %v5953, 64
        %v6017 = vpop.permute.xlu0 %6016
        %6050 = vst.msk [vmem:[#allocation5] sm:$0xf] %vm1720, %v5955
        %6051 = vst.msk [vmem:[#allocation5 + $0xc] sm:$0xf] %vm1720, %v5957
        %6052 = vst.msk [vmem:[#allocation5 + $0x18] sm:$0xf] %vm1720, %v5959
        %6053 = vst.msk [vmem:[#allocation5 + $0x24] sm:$0xf] %vm1720, %v5961
        %6054 = vst.msk [vmem:[#allocation5 + $0x30] sm:$0xf] %vm1720, %v5963
        %6055 = vst.msk [vmem:[#allocation5 + $0x3c] sm:$0xf] %vm1720, %v5965
        %6056 = vst.msk [vmem:[#allocation5 + $0x48] sm:$0xf] %vm1720, %v5967
        %6057 = vst.msk [vmem:[#allocation5 + $0x54] sm:$0xf] %vm1720, %v5969
        %6058 = vst.msk [vmem:[#allocation5 + $0x60] sm:$0xf] %vm1720, %v5971
        %6059 = vst.msk [vmem:[#allocation5 + $0x6c] sm:$0xf] %vm1720, %v5973
        %6060 = vst.msk [vmem:[#allocation5 + $0x78] sm:$0xf] %vm1720, %v5975
        %6061 = vst.msk [vmem:[#allocation5 + $0x84] sm:$0xf] %vm1720, %v5977
        %6062 = vst.msk [vmem:[#allocation5 + $0x90] sm:$0xf] %vm1720, %v5979
        %6063 = vst.msk [vmem:[#allocation5 + $0x9c] sm:$0xf] %vm1720, %v5981
        %6064 = vst.msk [vmem:[#allocation5 + $0xa8] sm:$0xf] %vm1720, %v5983
        %6065 = vst.msk [vmem:[#allocation5 + $0xb4] sm:$0xf] %vm1720, %v5985
        %6066 = vst.msk [vmem:[#allocation5 + $0xc0] sm:$0xf] %vm1720, %v5987
        %6067 = vst.msk [vmem:[#allocation5 + $0xcc] sm:$0xf] %vm1720, %v5989
        %6068 = vst.msk [vmem:[#allocation5 + $0xd8] sm:$0xf] %vm1720, %v5991
        %6069 = vst.msk [vmem:[#allocation5 + $0xe4] sm:$0xf] %vm1720, %v5993
        %6070 = vst.msk [vmem:[#allocation5 + $0xf0] sm:$0xf] %vm1720, %v5995
        %6071 = vst.msk [vmem:[#allocation5 + $0xfc] sm:$0xf] %vm1720, %v5997
        %6072 = vst.msk [vmem:[#allocation5 + $0x108] sm:$0xf] %vm1720, %v5999
        %6073 = vst.msk [vmem:[#allocation5 + $0x114] sm:$0xf] %vm1720, %v6001
        %6074 = vst.msk [vmem:[#allocation5 + $0x120] sm:$0xf] %vm1720, %v6003
        %6075 = vst.msk [vmem:[#allocation5 + $0x12c] sm:$0xf] %vm1720, %v6005
        %6076 = vst.msk [vmem:[#allocation5 + $0x138] sm:$0xf] %vm1720, %v6007
        %6077 = vst.msk [vmem:[#allocation5 + $0x144] sm:$0xf] %vm1720, %v6009
        %6078 = vst.msk [vmem:[#allocation5 + $0x150] sm:$0xf] %vm1720, %v6011
        %6079 = vst.msk [vmem:[#allocation5 + $0x15c] sm:$0xf] %vm1720, %v6013
        %6080 = vst.msk [vmem:[#allocation5 + $0x168] sm:$0xf] %vm1720, %v6015
        %6081 = vst.msk [vmem:[#allocation5 + $0x174] sm:$0xf] %vm1720, %v6017
        %v6082 = vld [vmem:[%s5009] sm:$0xf]
        %v6083 = vld [vmem:[%s5009 + $0x4] sm:$0xf]
        %v6084 = vld [vmem:[%s5009 + $0xc] sm:$0xf]
        %v6085 = vld [vmem:[%s5009 + $0x10] sm:$0xf]
        %v6086 = vld [vmem:[%s5009 + $0x18] sm:$0xf]
        %v6087 = vld [vmem:[%s5009 + $0x1c] sm:$0xf]
        %v6088 = vld [vmem:[%s5009 + $0x24] sm:$0xf]
        %v6089 = vld [vmem:[%s5009 + $0x28] sm:$0xf]
        %v6090 = vld [vmem:[%s5009 + $0x30] sm:$0xf]
        %v6091 = vld [vmem:[%s5009 + $0x34] sm:$0xf]
        %v6092 = vld [vmem:[%s5009 + $0x3c] sm:$0xf]
        %v6093 = vld [vmem:[%s5009 + $0x40] sm:$0xf]
        %v6094 = vld [vmem:[%s5009 + $0x48] sm:$0xf]
        %v6095 = vld [vmem:[%s5009 + $0x4c] sm:$0xf]
        %v6096 = vld [vmem:[%s5009 + $0x54] sm:$0xf]
        %v6097 = vld [vmem:[%s5009 + $0x58] sm:$0xf]
        %v6098 = vld [vmem:[%s5009 + $0x60] sm:$0xf]
        %v6099 = vld [vmem:[%s5009 + $0x64] sm:$0xf]
        %v6100 = vld [vmem:[%s5009 + $0x6c] sm:$0xf]
        %v6101 = vld [vmem:[%s5009 + $0x70] sm:$0xf]
        %v6102 = vld [vmem:[%s5009 + $0x78] sm:$0xf]
        %v6103 = vld [vmem:[%s5009 + $0x7c] sm:$0xf]
        %v6104 = vld [vmem:[%s5009 + $0x84] sm:$0xf]
        %v6105 = vld [vmem:[%s5009 + $0x88] sm:$0xf]
        %v6106 = vld [vmem:[%s5009 + $0x90] sm:$0xf]
        %v6107 = vld [vmem:[%s5009 + $0x94] sm:$0xf]
        %v6108 = vld [vmem:[%s5009 + $0x9c] sm:$0xf]
        %v6109 = vld [vmem:[%s5009 + $0xa0] sm:$0xf]
        %v6110 = vld [vmem:[%s5009 + $0xa8] sm:$0xf]
        %v6111 = vld [vmem:[%s5009 + $0xac] sm:$0xf]
        %v6112 = vld [vmem:[%s5009 + $0xb4] sm:$0xf]
        %v6113 = vld [vmem:[%s5009 + $0xb8] sm:$0xf]
        %6146 = vrot.lane.b32.xlu0 %v6082, 96
        %v6147 = vpop.permute.xlu0 %6146
        %6148 = vrot.lane.b32.xlu0 %v6083, 96
        %v6149 = vpop.permute.xlu0 %6148
        %6150 = vrot.lane.b32.xlu0 %v6084, 96
        %v6151 = vpop.permute.xlu0 %6150
        %6152 = vrot.lane.b32.xlu0 %v6085, 96
        %v6153 = vpop.permute.xlu0 %6152
        %6154 = vrot.lane.b32.xlu0 %v6086, 96
        %v6155 = vpop.permute.xlu0 %6154
        %6156 = vrot.lane.b32.xlu0 %v6087, 96
        %v6157 = vpop.permute.xlu0 %6156
        %6158 = vrot.lane.b32.xlu0 %v6088, 96
        %v6159 = vpop.permute.xlu0 %6158
        %6160 = vrot.lane.b32.xlu0 %v6089, 96
        %v6161 = vpop.permute.xlu0 %6160
        %6162 = vrot.lane.b32.xlu0 %v6090, 96
        %v6163 = vpop.permute.xlu0 %6162
        %6164 = vrot.lane.b32.xlu0 %v6091, 96
        %v6165 = vpop.permute.xlu0 %6164
        %6166 = vrot.lane.b32.xlu0 %v6092, 96
        %v6167 = vpop.permute.xlu0 %6166
        %6168 = vrot.lane.b32.xlu0 %v6093, 96
        %v6169 = vpop.permute.xlu0 %6168
        %6170 = vrot.lane.b32.xlu0 %v6094, 96
        %v6171 = vpop.permute.xlu0 %6170
        %6172 = vrot.lane.b32.xlu0 %v6095, 96
        %v6173 = vpop.permute.xlu0 %6172
        %6174 = vrot.lane.b32.xlu0 %v6096, 96
        %v6175 = vpop.permute.xlu0 %6174
        %6176 = vrot.lane.b32.xlu0 %v6097, 96
        %v6177 = vpop.permute.xlu0 %6176
        %6178 = vrot.lane.b32.xlu0 %v6098, 96
        %v6179 = vpop.permute.xlu0 %6178
        %6180 = vrot.lane.b32.xlu0 %v6099, 96
        %v6181 = vpop.permute.xlu0 %6180
        %6182 = vrot.lane.b32.xlu0 %v6100, 96
        %v6183 = vpop.permute.xlu0 %6182
        %6184 = vrot.lane.b32.xlu0 %v6101, 96
        %v6185 = vpop.permute.xlu0 %6184
        %6186 = vrot.lane.b32.xlu0 %v6102, 96
        %v6187 = vpop.permute.xlu0 %6186
        %6188 = vrot.lane.b32.xlu0 %v6103, 96
        %v6189 = vpop.permute.xlu0 %6188
        %6190 = vrot.lane.b32.xlu0 %v6104, 96
        %v6191 = vpop.permute.xlu0 %6190
        %6192 = vrot.lane.b32.xlu0 %v6105, 96
        %v6193 = vpop.permute.xlu0 %6192
        %6194 = vrot.lane.b32.xlu0 %v6106, 96
        %v6195 = vpop.permute.xlu0 %6194
        %6196 = vrot.lane.b32.xlu0 %v6107, 96
        %v6197 = vpop.permute.xlu0 %6196
        %6198 = vrot.lane.b32.xlu0 %v6108, 96
        %v6199 = vpop.permute.xlu0 %6198
        %6200 = vrot.lane.b32.xlu0 %v6109, 96
        %v6201 = vpop.permute.xlu0 %6200
        %6202 = vrot.lane.b32.xlu0 %v6110, 96
        %v6203 = vpop.permute.xlu0 %6202
        %6204 = vrot.lane.b32.xlu0 %v6111, 96
        %v6205 = vpop.permute.xlu0 %6204
        %6206 = vrot.lane.b32.xlu0 %v6112, 96
        %v6207 = vpop.permute.xlu0 %6206
        %6208 = vrot.lane.b32.xlu0 %v6113, 96
        %v6209 = vpop.permute.xlu0 %6208
        %6242 = vst.msk [vmem:[#allocation5] sm:$0xf] %vm1913, %v6147
        %6243 = vst.msk [vmem:[#allocation5 + $0xc] sm:$0xf] %vm1913, %v6149
        %6244 = vst.msk [vmem:[#allocation5 + $0x18] sm:$0xf] %vm1913, %v6151
        %6245 = vst.msk [vmem:[#allocation5 + $0x24] sm:$0xf] %vm1913, %v6153
        %6246 = vst.msk [vmem:[#allocation5 + $0x30] sm:$0xf] %vm1913, %v6155
        %6247 = vst.msk [vmem:[#allocation5 + $0x3c] sm:$0xf] %vm1913, %v6157
        %6248 = vst.msk [vmem:[#allocation5 + $0x48] sm:$0xf] %vm1913, %v6159
        %6249 = vst.msk [vmem:[#allocation5 + $0x54] sm:$0xf] %vm1913, %v6161
        %6250 = vst.msk [vmem:[#allocation5 + $0x60] sm:$0xf] %vm1913, %v6163
        %6251 = vst.msk [vmem:[#allocation5 + $0x6c] sm:$0xf] %vm1913, %v6165
        %6252 = vst.msk [vmem:[#allocation5 + $0x78] sm:$0xf] %vm1913, %v6167
        %6253 = vst.msk [vmem:[#allocation5 + $0x84] sm:$0xf] %vm1913, %v6169
        %6254 = vst.msk [vmem:[#allocation5 + $0x90] sm:$0xf] %vm1913, %v6171
        %6255 = vst.msk [vmem:[#allocation5 + $0x9c] sm:$0xf] %vm1913, %v6173
        %6256 = vst.msk [vmem:[#allocation5 + $0xa8] sm:$0xf] %vm1913, %v6175
        %6257 = vst.msk [vmem:[#allocation5 + $0xb4] sm:$0xf] %vm1913, %v6177
        %6258 = vst.msk [vmem:[#allocation5 + $0xc0] sm:$0xf] %vm1913, %v6179
        %6259 = vst.msk [vmem:[#allocation5 + $0xcc] sm:$0xf] %vm1913, %v6181
        %6260 = vst.msk [vmem:[#allocation5 + $0xd8] sm:$0xf] %vm1913, %v6183
        %6261 = vst.msk [vmem:[#allocation5 + $0xe4] sm:$0xf] %vm1913, %v6185
        %6262 = vst.msk [vmem:[#allocation5 + $0xf0] sm:$0xf] %vm1913, %v6187
        %6263 = vst.msk [vmem:[#allocation5 + $0xfc] sm:$0xf] %vm1913, %v6189
        %6264 = vst.msk [vmem:[#allocation5 + $0x108] sm:$0xf] %vm1913, %v6191
        %6265 = vst.msk [vmem:[#allocation5 + $0x114] sm:$0xf] %vm1913, %v6193
        %6266 = vst.msk [vmem:[#allocation5 + $0x120] sm:$0xf] %vm1913, %v6195
        %6267 = vst.msk [vmem:[#allocation5 + $0x12c] sm:$0xf] %vm1913, %v6197
        %6268 = vst.msk [vmem:[#allocation5 + $0x138] sm:$0xf] %vm1913, %v6199
        %6269 = vst.msk [vmem:[#allocation5 + $0x144] sm:$0xf] %vm1913, %v6201
        %6270 = vst.msk [vmem:[#allocation5 + $0x150] sm:$0xf] %vm1913, %v6203
        %6271 = vst.msk [vmem:[#allocation5 + $0x15c] sm:$0xf] %vm1913, %v6205
        %6272 = vst.msk [vmem:[#allocation5 + $0x168] sm:$0xf] %vm1913, %v6207
        %6273 = vst.msk [vmem:[#allocation5 + $0x174] sm:$0xf] %vm1913, %v6209
        %v6274 = vld [vmem:[%s5009] sm:$0xf]
        %v6275 = vld [vmem:[%s5009 + $0x4] sm:$0xf]
        %v6276 = vld [vmem:[%s5009 + $0x8] sm:$0x1]
        %v6277 = vld [vmem:[%s5009 + $0xc] sm:$0xf]
        %v6278 = vld [vmem:[%s5009 + $0x10] sm:$0xf]
        %v6279 = vld [vmem:[%s5009 + $0x14] sm:$0x1]
        %v6280 = vld [vmem:[%s5009 + $0x18] sm:$0xf]
        %v6281 = vld [vmem:[%s5009 + $0x1c] sm:$0xf]
        %v6282 = vld [vmem:[%s5009 + $0x20] sm:$0x1]
        %v6283 = vld [vmem:[%s5009 + $0x24] sm:$0xf]
        %v6284 = vld [vmem:[%s5009 + $0x28] sm:$0xf]
        %v6285 = vld [vmem:[%s5009 + $0x2c] sm:$0x1]
        %v6286 = vld [vmem:[%s5009 + $0x30] sm:$0xf]
        %v6287 = vld [vmem:[%s5009 + $0x34] sm:$0xf]
        %v6288 = vld [vmem:[%s5009 + $0x38] sm:$0x1]
        %v6289 = vld [vmem:[%s5009 + $0x3c] sm:$0xf]
        %v6290 = vld [vmem:[%s5009 + $0x40] sm:$0xf]
        %v6291 = vld [vmem:[%s5009 + $0x44] sm:$0x1]
        %v6292 = vld [vmem:[%s5009 + $0x48] sm:$0xf]
        %v6293 = vld [vmem:[%s5009 + $0x4c] sm:$0xf]
        %v6294 = vld [vmem:[%s5009 + $0x50] sm:$0x1]
        %v6295 = vld [vmem:[%s5009 + $0x54] sm:$0xf]
        %v6296 = vld [vmem:[%s5009 + $0x58] sm:$0xf]
        %v6297 = vld [vmem:[%s5009 + $0x5c] sm:$0x1]
        %v6298 = vld [vmem:[%s5009 + $0x60] sm:$0xf]
        %v6299 = vld [vmem:[%s5009 + $0x64] sm:$0xf]
        %v6300 = vld [vmem:[%s5009 + $0x68] sm:$0x1]
        %v6301 = vld [vmem:[%s5009 + $0x6c] sm:$0xf]
        %v6302 = vld [vmem:[%s5009 + $0x70] sm:$0xf]
        %v6303 = vld [vmem:[%s5009 + $0x74] sm:$0x1]
        %v6304 = vld [vmem:[%s5009 + $0x78] sm:$0xf]
        %v6305 = vld [vmem:[%s5009 + $0x7c] sm:$0xf]
        %v6306 = vld [vmem:[%s5009 + $0x80] sm:$0x1]
        %v6307 = vld [vmem:[%s5009 + $0x84] sm:$0xf]
        %v6308 = vld [vmem:[%s5009 + $0x88] sm:$0xf]
        %v6309 = vld [vmem:[%s5009 + $0x8c] sm:$0x1]
        %v6310 = vld [vmem:[%s5009 + $0x90] sm:$0xf]
        %v6311 = vld [vmem:[%s5009 + $0x94] sm:$0xf]
        %v6312 = vld [vmem:[%s5009 + $0x98] sm:$0x1]
        %v6313 = vld [vmem:[%s5009 + $0x9c] sm:$0xf]
        %v6314 = vld [vmem:[%s5009 + $0xa0] sm:$0xf]
        %v6315 = vld [vmem:[%s5009 + $0xa4] sm:$0x1]
        %v6316 = vld [vmem:[%s5009 + $0xa8] sm:$0xf]
        %v6317 = vld [vmem:[%s5009 + $0xac] sm:$0xf]
        %v6318 = vld [vmem:[%s5009 + $0xb0] sm:$0x1]
        %v6319 = vld [vmem:[%s5009 + $0xb4] sm:$0xf]
        %v6320 = vld [vmem:[%s5009 + $0xb8] sm:$0xf]
        %v6321 = vld [vmem:[%s5009 + $0xbc] sm:$0x1]
        %v6323 = vshrl.u32 %v6274, 16
        %v6325 = vrot.slane %v6323, 4
        %v6326 = vshll.u32 %v6274, 16
        %v6328 = vrot.slane %v6326, 5
        %v6329 = vor.u32 %v6325, %v6328
        %v6330 = vrot.slane %v6329, 4
        %v6332 = vshll.u32 %v6275, 16
        %v6334 = vrot.slane %v6332, 5
        %v6335 = vsel %vm899, %v6330, %v6334
        %v6336 = vshrl.u32 %v6275, 16
        %v6338 = vrot.slane %v6336, 4
        %v6339 = vor.u32 %v6338, %v6334
        %v6340 = vrot.slane %v6339, 4
        %v6342 = vshll.u32 %v6276, 16
        %v6344 = vrot.slane %v6342, 5
        %v6345 = vsel %vm899, %v6340, %v6344
        %v6347 = vshrl.u32 %v6277, 16
        %v6349 = vrot.slane %v6347, 4
        %v6350 = vshll.u32 %v6277, 16
        %v6352 = vrot.slane %v6350, 5
        %v6353 = vor.u32 %v6349, %v6352
        %v6354 = vrot.slane %v6353, 4
        %v6356 = vshll.u32 %v6278, 16
        %v6358 = vrot.slane %v6356, 5
        %v6359 = vsel %vm899, %v6354, %v6358
        %v6360 = vshrl.u32 %v6278, 16
        %v6362 = vrot.slane %v6360, 4
        %v6363 = vor.u32 %v6362, %v6358
        %v6364 = vrot.slane %v6363, 4
        %v6366 = vshll.u32 %v6279, 16
        %v6368 = vrot.slane %v6366, 5
        %v6369 = vsel %vm899, %v6364, %v6368
        %v6371 = vshrl.u32 %v6280, 16
        %v6373 = vrot.slane %v6371, 4
        %v6374 = vshll.u32 %v6280, 16
        %v6376 = vrot.slane %v6374, 5
        %v6377 = vor.u32 %v6373, %v6376
        %v6378 = vrot.slane %v6377, 4
        %v6380 = vshll.u32 %v6281, 16
        %v6382 = vrot.slane %v6380, 5
        %v6383 = vsel %vm899, %v6378, %v6382
        %v6384 = vshrl.u32 %v6281, 16
        %v6386 = vrot.slane %v6384, 4
        %v6387 = vor.u32 %v6386, %v6382
        %v6388 = vrot.slane %v6387, 4
        %v6390 = vshll.u32 %v6282, 16
        %v6392 = vrot.slane %v6390, 5
        %v6393 = vsel %vm899, %v6388, %v6392
        %v6395 = vshrl.u32 %v6283, 16
        %v6397 = vrot.slane %v6395, 4
        %v6398 = vshll.u32 %v6283, 16
        %v6400 = vrot.slane %v6398, 5
        %v6401 = vor.u32 %v6397, %v6400
        %v6402 = vrot.slane %v6401, 4
        %v6404 = vshll.u32 %v6284, 16
        %v6406 = vrot.slane %v6404, 5
        %v6407 = vsel %vm899, %v6402, %v6406
        %v6408 = vshrl.u32 %v6284, 16
        %v6410 = vrot.slane %v6408, 4
        %v6411 = vor.u32 %v6410, %v6406
        %v6412 = vrot.slane %v6411, 4
        %v6414 = vshll.u32 %v6285, 16
        %v6416 = vrot.slane %v6414, 5
        %v6417 = vsel %vm899, %v6412, %v6416
        %v6419 = vshrl.u32 %v6286, 16
        %v6421 = vrot.slane %v6419, 4
        %v6422 = vshll.u32 %v6286, 16
        %v6424 = vrot.slane %v6422, 5
        %v6425 = vor.u32 %v6421, %v6424
        %v6426 = vrot.slane %v6425, 4
        %v6428 = vshll.u32 %v6287, 16
        %v6430 = vrot.slane %v6428, 5
        %v6431 = vsel %vm899, %v6426, %v6430
        %v6432 = vshrl.u32 %v6287, 16
        %v6434 = vrot.slane %v6432, 4
        %v6435 = vor.u32 %v6434, %v6430
        %v6436 = vrot.slane %v6435, 4
        %v6438 = vshll.u32 %v6288, 16
        %v6440 = vrot.slane %v6438, 5
        %v6441 = vsel %vm899, %v6436, %v6440
        %v6443 = vshrl.u32 %v6289, 16
        %v6445 = vrot.slane %v6443, 4
        %v6446 = vshll.u32 %v6289, 16
        %v6448 = vrot.slane %v6446, 5
        %v6449 = vor.u32 %v6445, %v6448
        %v6450 = vrot.slane %v6449, 4
        %v6452 = vshll.u32 %v6290, 16
        %v6454 = vrot.slane %v6452, 5
        %v6455 = vsel %vm899, %v6450, %v6454
        %v6456 = vshrl.u32 %v6290, 16
        %v6458 = vrot.slane %v6456, 4
        %v6459 = vor.u32 %v6458, %v6454
        %v6460 = vrot.slane %v6459, 4
        %v6462 = vshll.u32 %v6291, 16
        %v6464 = vrot.slane %v6462, 5
        %v6465 = vsel %vm899, %v6460, %v6464
        %v6467 = vshrl.u32 %v6292, 16
        %v6469 = vrot.slane %v6467, 4
        %v6470 = vshll.u32 %v6292, 16
        %v6472 = vrot.slane %v6470, 5
        %v6473 = vor.u32 %v6469, %v6472
        %v6474 = vrot.slane %v6473, 4
        %v6476 = vshll.u32 %v6293, 16
        %v6478 = vrot.slane %v6476, 5
        %v6479 = vsel %vm899, %v6474, %v6478
        %v6480 = vshrl.u32 %v6293, 16
        %v6482 = vrot.slane %v6480, 4
        %v6483 = vor.u32 %v6482, %v6478
        %v6484 = vrot.slane %v6483, 4
        %v6486 = vshll.u32 %v6294, 16
        %v6488 = vrot.slane %v6486, 5
        %v6489 = vsel %vm899, %v6484, %v6488
        %v6491 = vshrl.u32 %v6295, 16
        %v6493 = vrot.slane %v6491, 4
        %v6494 = vshll.u32 %v6295, 16
        %v6496 = vrot.slane %v6494, 5
        %v6497 = vor.u32 %v6493, %v6496
        %v6498 = vrot.slane %v6497, 4
        %v6500 = vshll.u32 %v6296, 16
        %v6502 = vrot.slane %v6500, 5
        %v6503 = vsel %vm899, %v6498, %v6502
        %v6504 = vshrl.u32 %v6296, 16
        %v6506 = vrot.slane %v6504, 4
        %v6507 = vor.u32 %v6506, %v6502
        %v6508 = vrot.slane %v6507, 4
        %v6510 = vshll.u32 %v6297, 16
        %v6512 = vrot.slane %v6510, 5
        %v6513 = vsel %vm899, %v6508, %v6512
        %v6515 = vshrl.u32 %v6298, 16
        %v6517 = vrot.slane %v6515, 4
        %v6518 = vshll.u32 %v6298, 16
        %v6520 = vrot.slane %v6518, 5
        %v6521 = vor.u32 %v6517, %v6520
        %v6522 = vrot.slane %v6521, 4
        %v6524 = vshll.u32 %v6299, 16
        %v6526 = vrot.slane %v6524, 5
        %v6527 = vsel %vm899, %v6522, %v6526
        %v6528 = vshrl.u32 %v6299, 16
        %v6530 = vrot.slane %v6528, 4
        %v6531 = vor.u32 %v6530, %v6526
        %v6532 = vrot.slane %v6531, 4
        %v6534 = vshll.u32 %v6300, 16
        %v6536 = vrot.slane %v6534, 5
        %v6537 = vsel %vm899, %v6532, %v6536
        %v6539 = vshrl.u32 %v6301, 16
        %v6541 = vrot.slane %v6539, 4
        %v6542 = vshll.u32 %v6301, 16
        %v6544 = vrot.slane %v6542, 5
        %v6545 = vor.u32 %v6541, %v6544
        %v6546 = vrot.slane %v6545, 4
        %v6548 = vshll.u32 %v6302, 16
        %v6550 = vrot.slane %v6548, 5
        %v6551 = vsel %vm899, %v6546, %v6550
        %v6552 = vshrl.u32 %v6302, 16
        %v6554 = vrot.slane %v6552, 4
        %v6555 = vor.u32 %v6554, %v6550
        %v6556 = vrot.slane %v6555, 4
        %v6558 = vshll.u32 %v6303, 16
        %v6560 = vrot.slane %v6558, 5
        %v6561 = vsel %vm899, %v6556, %v6560
        %v6563 = vshrl.u32 %v6304, 16
        %v6565 = vrot.slane %v6563, 4
        %v6566 = vshll.u32 %v6304, 16
        %v6568 = vrot.slane %v6566, 5
        %v6569 = vor.u32 %v6565, %v6568
        %v6570 = vrot.slane %v6569, 4
        %v6572 = vshll.u32 %v6305, 16
        %v6574 = vrot.slane %v6572, 5
        %v6575 = vsel %vm899, %v6570, %v6574
        %v6576 = vshrl.u32 %v6305, 16
        %v6578 = vrot.slane %v6576, 4
        %v6579 = vor.u32 %v6578, %v6574
        %v6580 = vrot.slane %v6579, 4
        %v6582 = vshll.u32 %v6306, 16
        %v6584 = vrot.slane %v6582, 5
        %v6585 = vsel %vm899, %v6580, %v6584
        %v6587 = vshrl.u32 %v6307, 16
        %v6589 = vrot.slane %v6587, 4
        %v6590 = vshll.u32 %v6307, 16
        %v6592 = vrot.slane %v6590, 5
        %v6593 = vor.u32 %v6589, %v6592
        %v6594 = vrot.slane %v6593, 4
        %v6596 = vshll.u32 %v6308, 16
        %v6598 = vrot.slane %v6596, 5
        %v6599 = vsel %vm899, %v6594, %v6598
        %v6600 = vshrl.u32 %v6308, 16
        %v6602 = vrot.slane %v6600, 4
        %v6603 = vor.u32 %v6602, %v6598
        %v6604 = vrot.slane %v6603, 4
        %v6606 = vshll.u32 %v6309, 16
        %v6608 = vrot.slane %v6606, 5
        %v6609 = vsel %vm899, %v6604, %v6608
        %v6611 = vshrl.u32 %v6310, 16
        %v6613 = vrot.slane %v6611, 4
        %v6614 = vshll.u32 %v6310, 16
        %v6616 = vrot.slane %v6614, 5
        %v6617 = vor.u32 %v6613, %v6616
        %v6618 = vrot.slane %v6617, 4
        %v6620 = vshll.u32 %v6311, 16
        %v6622 = vrot.slane %v6620, 5
        %v6623 = vsel %vm899, %v6618, %v6622
        %v6624 = vshrl.u32 %v6311, 16
        %v6626 = vrot.slane %v6624, 4
        %v6627 = vor.u32 %v6626, %v6622
        %v6628 = vrot.slane %v6627, 4
        %v6630 = vshll.u32 %v6312, 16
        %v6632 = vrot.slane %v6630, 5
        %v6633 = vsel %vm899, %v6628, %v6632
        %v6635 = vshrl.u32 %v6313, 16
        %v6637 = vrot.slane %v6635, 4
        %v6638 = vshll.u32 %v6313, 16
        %v6640 = vrot.slane %v6638, 5
        %v6641 = vor.u32 %v6637, %v6640
        %v6642 = vrot.slane %v6641, 4
        %v6644 = vshll.u32 %v6314, 16
        %v6646 = vrot.slane %v6644, 5
        %v6647 = vsel %vm899, %v6642, %v6646
        %v6648 = vshrl.u32 %v6314, 16
        %v6650 = vrot.slane %v6648, 4
        %v6651 = vor.u32 %v6650, %v6646
        %v6652 = vrot.slane %v6651, 4
        %v6654 = vshll.u32 %v6315, 16
        %v6656 = vrot.slane %v6654, 5
        %v6657 = vsel %vm899, %v6652, %v6656
        %v6659 = vshrl.u32 %v6316, 16
        %v6661 = vrot.slane %v6659, 4
        %v6662 = vshll.u32 %v6316, 16
        %v6664 = vrot.slane %v6662, 5
        %v6665 = vor.u32 %v6661, %v6664
        %v6666 = vrot.slane %v6665, 4
        %v6668 = vshll.u32 %v6317, 16
        %v6670 = vrot.slane %v6668, 5
        %v6671 = vsel %vm899, %v6666, %v6670
        %v6672 = vshrl.u32 %v6317, 16
        %v6674 = vrot.slane %v6672, 4
        %v6675 = vor.u32 %v6674, %v6670
        %v6676 = vrot.slane %v6675, 4
        %v6678 = vshll.u32 %v6318, 16
        %v6680 = vrot.slane %v6678, 5
        %v6681 = vsel %vm899, %v6676, %v6680
        %v6683 = vshrl.u32 %v6319, 16
        %v6685 = vrot.slane %v6683, 4
        %v6686 = vshll.u32 %v6319, 16
        %v6688 = vrot.slane %v6686, 5
        %v6689 = vor.u32 %v6685, %v6688
        %v6690 = vrot.slane %v6689, 4
        %v6692 = vshll.u32 %v6320, 16
        %v6694 = vrot.slane %v6692, 5
        %v6695 = vsel %vm899, %v6690, %v6694
        %v6696 = vshrl.u32 %v6320, 16
        %v6698 = vrot.slane %v6696, 4
        %v6699 = vor.u32 %v6698, %v6694
        %v6700 = vrot.slane %v6699, 4
        %v6702 = vshll.u32 %v6321, 16
        %v6704 = vrot.slane %v6702, 5
        %v6705 = vsel %vm899, %v6700, %v6704
        %6738 = vst.msk [vmem:[#allocation5 + $0x4] sm:$0xf] %vm256, %v6335
        %6739 = vst.msk [vmem:[#allocation5 + $0x10] sm:$0xf] %vm256, %v6345
        %6740 = vst.msk [vmem:[#allocation5 + $0x1c] sm:$0xf] %vm256, %v6359
        %6741 = vst.msk [vmem:[#allocation5 + $0x28] sm:$0xf] %vm256, %v6369
        %6742 = vst.msk [vmem:[#allocation5 + $0x34] sm:$0xf] %vm256, %v6383
        %6743 = vst.msk [vmem:[#allocation5 + $0x40] sm:$0xf] %vm256, %v6393
        %6744 = vst.msk [vmem:[#allocation5 + $0x4c] sm:$0xf] %vm256, %v6407
        %6745 = vst.msk [vmem:[#allocation5 + $0x58] sm:$0xf] %vm256, %v6417
        %6746 = vst.msk [vmem:[#allocation5 + $0x64] sm:$0xf] %vm256, %v6431
        %6747 = vst.msk [vmem:[#allocation5 + $0x70] sm:$0xf] %vm256, %v6441
        %6748 = vst.msk [vmem:[#allocation5 + $0x7c] sm:$0xf] %vm256, %v6455
        %6749 = vst.msk [vmem:[#allocation5 + $0x88] sm:$0xf] %vm256, %v6465
        %6750 = vst.msk [vmem:[#allocation5 + $0x94] sm:$0xf] %vm256, %v6479
        %6751 = vst.msk [vmem:[#allocation5 + $0xa0] sm:$0xf] %vm256, %v6489
        %6752 = vst.msk [vmem:[#allocation5 + $0xac] sm:$0xf] %vm256, %v6503
        %6753 = vst.msk [vmem:[#allocation5 + $0xb8] sm:$0xf] %vm256, %v6513
        %6754 = vst.msk [vmem:[#allocation5 + $0xc4] sm:$0xf] %vm256, %v6527
        %6755 = vst.msk [vmem:[#allocation5 + $0xd0] sm:$0xf] %vm256, %v6537
        %6756 = vst.msk [vmem:[#allocation5 + $0xdc] sm:$0xf] %vm256, %v6551
        %6757 = vst.msk [vmem:[#allocation5 + $0xe8] sm:$0xf] %vm256, %v6561
        %6758 = vst.msk [vmem:[#allocation5 + $0xf4] sm:$0xf] %vm256, %v6575
        %6759 = vst.msk [vmem:[#allocation5 + $0x100] sm:$0xf] %vm256, %v6585
        %6760 = vst.msk [vmem:[#allocation5 + $0x10c] sm:$0xf] %vm256, %v6599
        %6761 = vst.msk [vmem:[#allocation5 + $0x118] sm:$0xf] %vm256, %v6609
        %6762 = vst.msk [vmem:[#allocation5 + $0x124] sm:$0xf] %vm256, %v6623
        %6763 = vst.msk [vmem:[#allocation5 + $0x130] sm:$0xf] %vm256, %v6633
        %6764 = vst.msk [vmem:[#allocation5 + $0x13c] sm:$0xf] %vm256, %v6647
        %6765 = vst.msk [vmem:[#allocation5 + $0x148] sm:$0xf] %vm256, %v6657
        %6766 = vst.msk [vmem:[#allocation5 + $0x154] sm:$0xf] %vm256, %v6671
        %6767 = vst.msk [vmem:[#allocation5 + $0x160] sm:$0xf] %vm256, %v6681
        %6768 = vst.msk [vmem:[#allocation5 + $0x16c] sm:$0xf] %vm256, %v6695
        %6769 = vst.msk [vmem:[#allocation5 + $0x178] sm:$0xf] %vm256, %v6705
        %v6770 = vld [vmem:[%s5009] sm:$0xe]
        %v6771 = vld [vmem:[%s5009 + $0x4] sm:$0xf]
        %v6772 = vld [vmem:[%s5009 + $0x8] sm:$0x1]
        %v6773 = vld [vmem:[%s5009 + $0xc] sm:$0xe]
        %v6774 = vld [vmem:[%s5009 + $0x10] sm:$0xf]
        %v6775 = vld [vmem:[%s5009 + $0x14] sm:$0x1]
        %v6776 = vld [vmem:[%s5009 + $0x18] sm:$0xe]
        %v6777 = vld [vmem:[%s5009 + $0x1c] sm:$0xf]
        %v6778 = vld [vmem:[%s5009 + $0x20] sm:$0x1]
        %v6779 = vld [vmem:[%s5009 + $0x24] sm:$0xe]
        %v6780 = vld [vmem:[%s5009 + $0x28] sm:$0xf]
        %v6781 = vld [vmem:[%s5009 + $0x2c] sm:$0x1]
        %v6782 = vld [vmem:[%s5009 + $0x30] sm:$0xe]
        %v6783 = vld [vmem:[%s5009 + $0x34] sm:$0xf]
        %v6784 = vld [vmem:[%s5009 + $0x38] sm:$0x1]
        %v6785 = vld [vmem:[%s5009 + $0x3c] sm:$0xe]
        %v6786 = vld [vmem:[%s5009 + $0x40] sm:$0xf]
        %v6787 = vld [vmem:[%s5009 + $0x44] sm:$0x1]
        %v6788 = vld [vmem:[%s5009 + $0x48] sm:$0xe]
        %v6789 = vld [vmem:[%s5009 + $0x4c] sm:$0xf]
        %v6790 = vld [vmem:[%s5009 + $0x50] sm:$0x1]
        %v6791 = vld [vmem:[%s5009 + $0x54] sm:$0xe]
        %v6792 = vld [vmem:[%s5009 + $0x58] sm:$0xf]
        %v6793 = vld [vmem:[%s5009 + $0x5c] sm:$0x1]
        %v6794 = vld [vmem:[%s5009 + $0x60] sm:$0xe]
        %v6795 = vld [vmem:[%s5009 + $0x64] sm:$0xf]
        %v6796 = vld [vmem:[%s5009 + $0x68] sm:$0x1]
        %v6797 = vld [vmem:[%s5009 + $0x6c] sm:$0xe]
        %v6798 = vld [vmem:[%s5009 + $0x70] sm:$0xf]
        %v6799 = vld [vmem:[%s5009 + $0x74] sm:$0x1]
        %v6800 = vld [vmem:[%s5009 + $0x78] sm:$0xe]
        %v6801 = vld [vmem:[%s5009 + $0x7c] sm:$0xf]
        %v6802 = vld [vmem:[%s5009 + $0x80] sm:$0x1]
        %v6803 = vld [vmem:[%s5009 + $0x84] sm:$0xe]
        %v6804 = vld [vmem:[%s5009 + $0x88] sm:$0xf]
        %v6805 = vld [vmem:[%s5009 + $0x8c] sm:$0x1]
        %v6806 = vld [vmem:[%s5009 + $0x90] sm:$0xe]
        %v6807 = vld [vmem:[%s5009 + $0x94] sm:$0xf]
        %v6808 = vld [vmem:[%s5009 + $0x98] sm:$0x1]
        %v6809 = vld [vmem:[%s5009 + $0x9c] sm:$0xe]
        %v6810 = vld [vmem:[%s5009 + $0xa0] sm:$0xf]
        %v6811 = vld [vmem:[%s5009 + $0xa4] sm:$0x1]
        %v6812 = vld [vmem:[%s5009 + $0xa8] sm:$0xe]
        %v6813 = vld [vmem:[%s5009 + $0xac] sm:$0xf]
        %v6814 = vld [vmem:[%s5009 + $0xb0] sm:$0x1]
        %v6815 = vld [vmem:[%s5009 + $0xb4] sm:$0xe]
        %v6816 = vld [vmem:[%s5009 + $0xb8] sm:$0xf]
        %v6817 = vld [vmem:[%s5009 + $0xbc] sm:$0x1]
        %v6866 = vrot.slane %v6770, 5
        %v6867 = vrot.slane %v6866, 4
        %v6868 = vrot.slane %v6771, 5
        %v6869 = vsel %vm1511, %v6867, %v6868
        %v6870 = vrot.slane %v6868, 4
        %v6871 = vrot.slane %v6772, 5
        %v6872 = vsel %vm1511, %v6870, %v6871
        %v6873 = vrot.slane %v6773, 5
        %v6874 = vrot.slane %v6873, 4
        %v6875 = vrot.slane %v6774, 5
        %v6876 = vsel %vm1511, %v6874, %v6875
        %v6877 = vrot.slane %v6875, 4
        %v6878 = vrot.slane %v6775, 5
        %v6879 = vsel %vm1511, %v6877, %v6878
        %v6880 = vrot.slane %v6776, 5
        %v6881 = vrot.slane %v6880, 4
        %v6882 = vrot.slane %v6777, 5
        %v6883 = vsel %vm1511, %v6881, %v6882
        %v6884 = vrot.slane %v6882, 4
        %v6885 = vrot.slane %v6778, 5
        %v6886 = vsel %vm1511, %v6884, %v6885
        %v6887 = vrot.slane %v6779, 5
        %v6888 = vrot.slane %v6887, 4
        %v6889 = vrot.slane %v6780, 5
        %v6890 = vsel %vm1511, %v6888, %v6889
        %v6891 = vrot.slane %v6889, 4
        %v6892 = vrot.slane %v6781, 5
        %v6893 = vsel %vm1511, %v6891, %v6892
        %v6894 = vrot.slane %v6782, 5
        %v6895 = vrot.slane %v6894, 4
        %v6896 = vrot.slane %v6783, 5
        %v6897 = vsel %vm1511, %v6895, %v6896
        %v6898 = vrot.slane %v6896, 4
        %v6899 = vrot.slane %v6784, 5
        %v6900 = vsel %vm1511, %v6898, %v6899
        %v6901 = vrot.slane %v6785, 5
        %v6902 = vrot.slane %v6901, 4
        %v6903 = vrot.slane %v6786, 5
        %v6904 = vsel %vm1511, %v6902, %v6903
        %v6905 = vrot.slane %v6903, 4
        %v6906 = vrot.slane %v6787, 5
        %v6907 = vsel %vm1511, %v6905, %v6906
        %v6908 = vrot.slane %v6788, 5
        %v6909 = vrot.slane %v6908, 4
        %v6910 = vrot.slane %v6789, 5
        %v6911 = vsel %vm1511, %v6909, %v6910
        %v6912 = vrot.slane %v6910, 4
        %v6913 = vrot.slane %v6790, 5
        %v6914 = vsel %vm1511, %v6912, %v6913
        %v6915 = vrot.slane %v6791, 5
        %v6916 = vrot.slane %v6915, 4
        %v6917 = vrot.slane %v6792, 5
        %v6918 = vsel %vm1511, %v6916, %v6917
        %v6919 = vrot.slane %v6917, 4
        %v6920 = vrot.slane %v6793, 5
        %v6921 = vsel %vm1511, %v6919, %v6920
        %v6922 = vrot.slane %v6794, 5
        %v6923 = vrot.slane %v6922, 4
        %v6924 = vrot.slane %v6795, 5
        %v6925 = vsel %vm1511, %v6923, %v6924
        %v6926 = vrot.slane %v6924, 4
        %v6927 = vrot.slane %v6796, 5
        %v6928 = vsel %vm1511, %v6926, %v6927
        %v6929 = vrot.slane %v6797, 5
        %v6930 = vrot.slane %v6929, 4
        %v6931 = vrot.slane %v6798, 5
        %v6932 = vsel %vm1511, %v6930, %v6931
        %v6933 = vrot.slane %v6931, 4
        %v6934 = vrot.slane %v6799, 5
        %v6935 = vsel %vm1511, %v6933, %v6934
        %v6936 = vrot.slane %v6800, 5
        %v6937 = vrot.slane %v6936, 4
        %v6938 = vrot.slane %v6801, 5
        %v6939 = vsel %vm1511, %v6937, %v6938
        %v6940 = vrot.slane %v6938, 4
        %v6941 = vrot.slane %v6802, 5
        %v6942 = vsel %vm1511, %v6940, %v6941
        %v6943 = vrot.slane %v6803, 5
        %v6944 = vrot.slane %v6943, 4
        %v6945 = vrot.slane %v6804, 5
        %v6946 = vsel %vm1511, %v6944, %v6945
        %v6947 = vrot.slane %v6945, 4
        %v6948 = vrot.slane %v6805, 5
        %v6949 = vsel %vm1511, %v6947, %v6948
        %v6950 = vrot.slane %v6806, 5
        %v6951 = vrot.slane %v6950, 4
        %v6952 = vrot.slane %v6807, 5
        %v6953 = vsel %vm1511, %v6951, %v6952
        %v6954 = vrot.slane %v6952, 4
        %v6955 = vrot.slane %v6808, 5
        %v6956 = vsel %vm1511, %v6954, %v6955
        %v6957 = vrot.slane %v6809, 5
        %v6958 = vrot.slane %v6957, 4
        %v6959 = vrot.slane %v6810, 5
        %v6960 = vsel %vm1511, %v6958, %v6959
        %v6961 = vrot.slane %v6959, 4
        %v6962 = vrot.slane %v6811, 5
        %v6963 = vsel %vm1511, %v6961, %v6962
        %v6964 = vrot.slane %v6812, 5
        %v6965 = vrot.slane %v6964, 4
        %v6966 = vrot.slane %v6813, 5
        %v6967 = vsel %vm1511, %v6965, %v6966
        %v6968 = vrot.slane %v6966, 4
        %v6969 = vrot.slane %v6814, 5
        %v6970 = vsel %vm1511, %v6968, %v6969
        %v6971 = vrot.slane %v6815, 5
        %v6972 = vrot.slane %v6971, 4
        %v6973 = vrot.slane %v6816, 5
        %v6974 = vsel %vm1511, %v6972, %v6973
        %v6975 = vrot.slane %v6973, 4
        %v6976 = vrot.slane %v6817, 5
        %v6977 = vsel %vm1511, %v6975, %v6976
        %6978 = vrot.lane.b32.xlu0 %v6869, 32
        %v6979 = vpop.permute.xlu0 %6978
        %6980 = vrot.lane.b32.xlu0 %v6872, 32
        %v6981 = vpop.permute.xlu0 %6980
        %6982 = vrot.lane.b32.xlu0 %v6876, 32
        %v6983 = vpop.permute.xlu0 %6982
        %6984 = vrot.lane.b32.xlu0 %v6879, 32
        %v6985 = vpop.permute.xlu0 %6984
        %6986 = vrot.lane.b32.xlu0 %v6883, 32
        %v6987 = vpop.permute.xlu0 %6986
        %6988 = vrot.lane.b32.xlu0 %v6886, 32
        %v6989 = vpop.permute.xlu0 %6988
        %6990 = vrot.lane.b32.xlu0 %v6890, 32
        %v6991 = vpop.permute.xlu0 %6990
        %6992 = vrot.lane.b32.xlu0 %v6893, 32
        %v6993 = vpop.permute.xlu0 %6992
        %6994 = vrot.lane.b32.xlu0 %v6897, 32
        %v6995 = vpop.permute.xlu0 %6994
        %6996 = vrot.lane.b32.xlu0 %v6900, 32
        %v6997 = vpop.permute.xlu0 %6996
        %6998 = vrot.lane.b32.xlu0 %v6904, 32
        %v6999 = vpop.permute.xlu0 %6998
        %7000 = vrot.lane.b32.xlu0 %v6907, 32
        %v7001 = vpop.permute.xlu0 %7000
        %7002 = vrot.lane.b32.xlu0 %v6911, 32
        %v7003 = vpop.permute.xlu0 %7002
        %7004 = vrot.lane.b32.xlu0 %v6914, 32
        %v7005 = vpop.permute.xlu0 %7004
        %7006 = vrot.lane.b32.xlu0 %v6918, 32
        %v7007 = vpop.permute.xlu0 %7006
        %7008 = vrot.lane.b32.xlu0 %v6921, 32
        %v7009 = vpop.permute.xlu0 %7008
        %7010 = vrot.lane.b32.xlu0 %v6925, 32
        %v7011 = vpop.permute.xlu0 %7010
        %7012 = vrot.lane.b32.xlu0 %v6928, 32
        %v7013 = vpop.permute.xlu0 %7012
        %7014 = vrot.lane.b32.xlu0 %v6932, 32
        %v7015 = vpop.permute.xlu0 %7014
        %7016 = vrot.lane.b32.xlu0 %v6935, 32
        %v7017 = vpop.permute.xlu0 %7016
        %7018 = vrot.lane.b32.xlu0 %v6939, 32
        %v7019 = vpop.permute.xlu0 %7018
        %7020 = vrot.lane.b32.xlu0 %v6942, 32
        %v7021 = vpop.permute.xlu0 %7020
        %7022 = vrot.lane.b32.xlu0 %v6946, 32
        %v7023 = vpop.permute.xlu0 %7022
        %7024 = vrot.lane.b32.xlu0 %v6949, 32
        %v7025 = vpop.permute.xlu0 %7024
        %7026 = vrot.lane.b32.xlu0 %v6953, 32
        %v7027 = vpop.permute.xlu0 %7026
        %7028 = vrot.lane.b32.xlu0 %v6956, 32
        %v7029 = vpop.permute.xlu0 %7028
        %7030 = vrot.lane.b32.xlu0 %v6960, 32
        %v7031 = vpop.permute.xlu0 %7030
        %7032 = vrot.lane.b32.xlu0 %v6963, 32
        %v7033 = vpop.permute.xlu0 %7032
        %7034 = vrot.lane.b32.xlu0 %v6967, 32
        %v7035 = vpop.permute.xlu0 %7034
        %7036 = vrot.lane.b32.xlu0 %v6970, 32
        %v7037 = vpop.permute.xlu0 %7036
        %7038 = vrot.lane.b32.xlu0 %v6974, 32
        %v7039 = vpop.permute.xlu0 %7038
        %7040 = vrot.lane.b32.xlu0 %v6977, 32
        %v7041 = vpop.permute.xlu0 %7040
        %7074 = vst.msk [vmem:[#allocation5 + $0x4] sm:$0xf] %vm1380, %v6979
        %7075 = vst.msk [vmem:[#allocation5 + $0x10] sm:$0xf] %vm1380, %v6981
        %7076 = vst.msk [vmem:[#allocation5 + $0x1c] sm:$0xf] %vm1380, %v6983
        %7077 = vst.msk [vmem:[#allocation5 + $0x28] sm:$0xf] %vm1380, %v6985
        %7078 = vst.msk [vmem:[#allocation5 + $0x34] sm:$0xf] %vm1380, %v6987
        %7079 = vst.msk [vmem:[#allocation5 + $0x40] sm:$0xf] %vm1380, %v6989
        %7080 = vst.msk [vmem:[#allocation5 + $0x4c] sm:$0xf] %vm1380, %v6991
        %7081 = vst.msk [vmem:[#allocation5 + $0x58] sm:$0xf] %vm1380, %v6993
        %7082 = vst.msk [vmem:[#allocation5 + $0x64] sm:$0xf] %vm1380, %v6995
        %7083 = vst.msk [vmem:[#allocation5 + $0x70] sm:$0xf] %vm1380, %v6997
        %7084 = vst.msk [vmem:[#allocation5 + $0x7c] sm:$0xf] %vm1380, %v6999
        %7085 = vst.msk [vmem:[#allocation5 + $0x88] sm:$0xf] %vm1380, %v7001
        %7086 = vst.msk [vmem:[#allocation5 + $0x94] sm:$0xf] %vm1380, %v7003
        %7087 = vst.msk [vmem:[#allocation5 + $0xa0] sm:$0xf] %vm1380, %v7005
        %7088 = vst.msk [vmem:[#allocation5 + $0xac] sm:$0xf] %vm1380, %v7007
        %7089 = vst.msk [vmem:[#allocation5 + $0xb8] sm:$0xf] %vm1380, %v7009
        %7090 = vst.msk [vmem:[#allocation5 + $0xc4] sm:$0xf] %vm1380, %v7011
        %7091 = vst.msk [vmem:[#allocation5 + $0xd0] sm:$0xf] %vm1380, %v7013
        %7092 = vst.msk [vmem:[#allocation5 + $0xdc] sm:$0xf] %vm1380, %v7015
        %7093 = vst.msk [vmem:[#allocation5 + $0xe8] sm:$0xf] %vm1380, %v7017
        %7094 = vst.msk [vmem:[#allocation5 + $0xf4] sm:$0xf] %vm1380, %v7019
        %7095 = vst.msk [vmem:[#allocation5 + $0x100] sm:$0xf] %vm1380, %v7021
        %7096 = vst.msk [vmem:[#allocation5 + $0x10c] sm:$0xf] %vm1380, %v7023
        %7097 = vst.msk [vmem:[#allocation5 + $0x118] sm:$0xf] %vm1380, %v7025
        %7098 = vst.msk [vmem:[#allocation5 + $0x124] sm:$0xf] %vm1380, %v7027
        %7099 = vst.msk [vmem:[#allocation5 + $0x130] sm:$0xf] %vm1380, %v7029
        %7100 = vst.msk [vmem:[#allocation5 + $0x13c] sm:$0xf] %vm1380, %v7031
        %7101 = vst.msk [vmem:[#allocation5 + $0x148] sm:$0xf] %vm1380, %v7033
        %7102 = vst.msk [vmem:[#allocation5 + $0x154] sm:$0xf] %vm1380, %v7035
        %7103 = vst.msk [vmem:[#allocation5 + $0x160] sm:$0xf] %vm1380, %v7037
        %7104 = vst.msk [vmem:[#allocation5 + $0x16c] sm:$0xf] %vm1380, %v7039
        %7105 = vst.msk [vmem:[#allocation5 + $0x178] sm:$0xf] %vm1380, %v7041
        %s7106 = scalar_lea.vmem [#allocation4], 24
        %v7107 = vld [vmem:[%s7106] sm:$0xf]
        %v7108 = vld [vmem:[%s7106 + $0x4] sm:$0xf]
        %v7109 = vld [vmem:[%s7106 + $0xc] sm:$0xf]
        %v7110 = vld [vmem:[%s7106 + $0x10] sm:$0xf]
        %v7111 = vld [vmem:[%s7106 + $0x18] sm:$0xf]
        %v7112 = vld [vmem:[%s7106 + $0x1c] sm:$0xf]
        %v7113 = vld [vmem:[%s7106 + $0x24] sm:$0xf]
        %v7114 = vld [vmem:[%s7106 + $0x28] sm:$0xf]
        %v7115 = vld [vmem:[%s7106 + $0x30] sm:$0xf]
        %v7116 = vld [vmem:[%s7106 + $0x34] sm:$0xf]
        %v7117 = vld [vmem:[%s7106 + $0x3c] sm:$0xf]
        %v7118 = vld [vmem:[%s7106 + $0x40] sm:$0xf]
        %v7119 = vld [vmem:[%s7106 + $0x48] sm:$0xf]
        %v7120 = vld [vmem:[%s7106 + $0x4c] sm:$0xf]
        %v7121 = vld [vmem:[%s7106 + $0x54] sm:$0xf]
        %v7122 = vld [vmem:[%s7106 + $0x58] sm:$0xf]
        %v7123 = vld [vmem:[%s7106 + $0x60] sm:$0xf]
        %v7124 = vld [vmem:[%s7106 + $0x64] sm:$0xf]
        %v7125 = vld [vmem:[%s7106 + $0x6c] sm:$0xf]
        %v7126 = vld [vmem:[%s7106 + $0x70] sm:$0xf]
        %v7127 = vld [vmem:[%s7106 + $0x78] sm:$0xf]
        %v7128 = vld [vmem:[%s7106 + $0x7c] sm:$0xf]
        %v7129 = vld [vmem:[%s7106 + $0x84] sm:$0xf]
        %v7130 = vld [vmem:[%s7106 + $0x88] sm:$0xf]
        %v7131 = vld [vmem:[%s7106 + $0x90] sm:$0xf]
        %v7132 = vld [vmem:[%s7106 + $0x94] sm:$0xf]
        %v7133 = vld [vmem:[%s7106 + $0x9c] sm:$0xf]
        %v7134 = vld [vmem:[%s7106 + $0xa0] sm:$0xf]
        %v7135 = vld [vmem:[%s7106 + $0xa8] sm:$0xf]
        %v7136 = vld [vmem:[%s7106 + $0xac] sm:$0xf]
        %v7137 = vld [vmem:[%s7106 + $0xb4] sm:$0xf]
        %v7138 = vld [vmem:[%s7106 + $0xb8] sm:$0xf]
        %7171 = vrot.lane.b32.xlu0 %v7107, 64
        %v7172 = vpop.permute.xlu0 %7171
        %7173 = vrot.lane.b32.xlu0 %v7108, 64
        %v7174 = vpop.permute.xlu0 %7173
        %7175 = vrot.lane.b32.xlu0 %v7109, 64
        %v7176 = vpop.permute.xlu0 %7175
        %7177 = vrot.lane.b32.xlu0 %v7110, 64
        %v7178 = vpop.permute.xlu0 %7177
        %7179 = vrot.lane.b32.xlu0 %v7111, 64
        %v7180 = vpop.permute.xlu0 %7179
        %7181 = vrot.lane.b32.xlu0 %v7112, 64
        %v7182 = vpop.permute.xlu0 %7181
        %7183 = vrot.lane.b32.xlu0 %v7113, 64
        %v7184 = vpop.permute.xlu0 %7183
        %7185 = vrot.lane.b32.xlu0 %v7114, 64
        %v7186 = vpop.permute.xlu0 %7185
        %7187 = vrot.lane.b32.xlu0 %v7115, 64
        %v7188 = vpop.permute.xlu0 %7187
        %7189 = vrot.lane.b32.xlu0 %v7116, 64
        %v7190 = vpop.permute.xlu0 %7189
        %7191 = vrot.lane.b32.xlu0 %v7117, 64
        %v7192 = vpop.permute.xlu0 %7191
        %7193 = vrot.lane.b32.xlu0 %v7118, 64
        %v7194 = vpop.permute.xlu0 %7193
        %7195 = vrot.lane.b32.xlu0 %v7119, 64
        %v7196 = vpop.permute.xlu0 %7195
        %7197 = vrot.lane.b32.xlu0 %v7120, 64
        %v7198 = vpop.permute.xlu0 %7197
        %7199 = vrot.lane.b32.xlu0 %v7121, 64
        %v7200 = vpop.permute.xlu0 %7199
        %7201 = vrot.lane.b32.xlu0 %v7122, 64
        %v7202 = vpop.permute.xlu0 %7201
        %7203 = vrot.lane.b32.xlu0 %v7123, 64
        %v7204 = vpop.permute.xlu0 %7203
        %7205 = vrot.lane.b32.xlu0 %v7124, 64
        %v7206 = vpop.permute.xlu0 %7205
        %7207 = vrot.lane.b32.xlu0 %v7125, 64
        %v7208 = vpop.permute.xlu0 %7207
        %7209 = vrot.lane.b32.xlu0 %v7126, 64
        %v7210 = vpop.permute.xlu0 %7209
        %7211 = vrot.lane.b32.xlu0 %v7127, 64
        %v7212 = vpop.permute.xlu0 %7211
        %7213 = vrot.lane.b32.xlu0 %v7128, 64
        %v7214 = vpop.permute.xlu0 %7213
        %7215 = vrot.lane.b32.xlu0 %v7129, 64
        %v7216 = vpop.permute.xlu0 %7215
        %7217 = vrot.lane.b32.xlu0 %v7130, 64
        %v7218 = vpop.permute.xlu0 %7217
        %7219 = vrot.lane.b32.xlu0 %v7131, 64
        %v7220 = vpop.permute.xlu0 %7219
        %7221 = vrot.lane.b32.xlu0 %v7132, 64
        %v7222 = vpop.permute.xlu0 %7221
        %7223 = vrot.lane.b32.xlu0 %v7133, 64
        %v7224 = vpop.permute.xlu0 %7223
        %7225 = vrot.lane.b32.xlu0 %v7134, 64
        %v7226 = vpop.permute.xlu0 %7225
        %7227 = vrot.lane.b32.xlu0 %v7135, 64
        %v7228 = vpop.permute.xlu0 %7227
        %7229 = vrot.lane.b32.xlu0 %v7136, 64
        %v7230 = vpop.permute.xlu0 %7229
        %7231 = vrot.lane.b32.xlu0 %v7137, 64
        %v7232 = vpop.permute.xlu0 %7231
        %7233 = vrot.lane.b32.xlu0 %v7138, 64
        %v7234 = vpop.permute.xlu0 %7233
        %7267 = vst.msk [vmem:[#allocation5 + $0x4] sm:$0xf] %vm1720, %v7172
        %7268 = vst.msk [vmem:[#allocation5 + $0x10] sm:$0xf] %vm1720, %v7174
        %7269 = vst.msk [vmem:[#allocation5 + $0x1c] sm:$0xf] %vm1720, %v7176
        %7270 = vst.msk [vmem:[#allocation5 + $0x28] sm:$0xf] %vm1720, %v7178
        %7271 = vst.msk [vmem:[#allocation5 + $0x34] sm:$0xf] %vm1720, %v7180
        %7272 = vst.msk [vmem:[#allocation5 + $0x40] sm:$0xf] %vm1720, %v7182
        %7273 = vst.msk [vmem:[#allocation5 + $0x4c] sm:$0xf] %vm1720, %v7184
        %7274 = vst.msk [vmem:[#allocation5 + $0x58] sm:$0xf] %vm1720, %v7186
        %7275 = vst.msk [vmem:[#allocation5 + $0x64] sm:$0xf] %vm1720, %v7188
        %7276 = vst.msk [vmem:[#allocation5 + $0x70] sm:$0xf] %vm1720, %v7190
        %7277 = vst.msk [vmem:[#allocation5 + $0x7c] sm:$0xf] %vm1720, %v7192
        %7278 = vst.msk [vmem:[#allocation5 + $0x88] sm:$0xf] %vm1720, %v7194
        %7279 = vst.msk [vmem:[#allocation5 + $0x94] sm:$0xf] %vm1720, %v7196
        %7280 = vst.msk [vmem:[#allocation5 + $0xa0] sm:$0xf] %vm1720, %v7198
        %7281 = vst.msk [vmem:[#allocation5 + $0xac] sm:$0xf] %vm1720, %v7200
        %7282 = vst.msk [vmem:[#allocation5 + $0xb8] sm:$0xf] %vm1720, %v7202
        %7283 = vst.msk [vmem:[#allocation5 + $0xc4] sm:$0xf] %vm1720, %v7204
        %7284 = vst.msk [vmem:[#allocation5 + $0xd0] sm:$0xf] %vm1720, %v7206
        %7285 = vst.msk [vmem:[#allocation5 + $0xdc] sm:$0xf] %vm1720, %v7208
        %7286 = vst.msk [vmem:[#allocation5 + $0xe8] sm:$0xf] %vm1720, %v7210
        %7287 = vst.msk [vmem:[#allocation5 + $0xf4] sm:$0xf] %vm1720, %v7212
        %7288 = vst.msk [vmem:[#allocation5 + $0x100] sm:$0xf] %vm1720, %v7214
        %7289 = vst.msk [vmem:[#allocation5 + $0x10c] sm:$0xf] %vm1720, %v7216
        %7290 = vst.msk [vmem:[#allocation5 + $0x118] sm:$0xf] %vm1720, %v7218
        %7291 = vst.msk [vmem:[#allocation5 + $0x124] sm:$0xf] %vm1720, %v7220
        %7292 = vst.msk [vmem:[#allocation5 + $0x130] sm:$0xf] %vm1720, %v7222
        %7293 = vst.msk [vmem:[#allocation5 + $0x13c] sm:$0xf] %vm1720, %v7224
        %7294 = vst.msk [vmem:[#allocation5 + $0x148] sm:$0xf] %vm1720, %v7226
        %7295 = vst.msk [vmem:[#allocation5 + $0x154] sm:$0xf] %vm1720, %v7228
        %7296 = vst.msk [vmem:[#allocation5 + $0x160] sm:$0xf] %vm1720, %v7230
        %7297 = vst.msk [vmem:[#allocation5 + $0x16c] sm:$0xf] %vm1720, %v7232
        %7298 = vst.msk [vmem:[#allocation5 + $0x178] sm:$0xf] %vm1720, %v7234
        %v7299 = vld [vmem:[%s7106] sm:$0xf]
        %v7300 = vld [vmem:[%s7106 + $0x4] sm:$0xf]
        %v7301 = vld [vmem:[%s7106 + $0x8] sm:$0x1]
        %v7302 = vld [vmem:[%s7106 + $0xc] sm:$0xf]
        %v7303 = vld [vmem:[%s7106 + $0x10] sm:$0xf]
        %v7304 = vld [vmem:[%s7106 + $0x14] sm:$0x1]
        %v7305 = vld [vmem:[%s7106 + $0x18] sm:$0xf]
        %v7306 = vld [vmem:[%s7106 + $0x1c] sm:$0xf]
        %v7307 = vld [vmem:[%s7106 + $0x20] sm:$0x1]
        %v7308 = vld [vmem:[%s7106 + $0x24] sm:$0xf]
        %v7309 = vld [vmem:[%s7106 + $0x28] sm:$0xf]
        %v7310 = vld [vmem:[%s7106 + $0x2c] sm:$0x1]
        %v7311 = vld [vmem:[%s7106 + $0x30] sm:$0xf]
        %v7312 = vld [vmem:[%s7106 + $0x34] sm:$0xf]
        %v7313 = vld [vmem:[%s7106 + $0x38] sm:$0x1]
        %v7314 = vld [vmem:[%s7106 + $0x3c] sm:$0xf]
        %v7315 = vld [vmem:[%s7106 + $0x40] sm:$0xf]
        %v7316 = vld [vmem:[%s7106 + $0x44] sm:$0x1]
        %v7317 = vld [vmem:[%s7106 + $0x48] sm:$0xf]
        %v7318 = vld [vmem:[%s7106 + $0x4c] sm:$0xf]
        %v7319 = vld [vmem:[%s7106 + $0x50] sm:$0x1]
        %v7320 = vld [vmem:[%s7106 + $0x54] sm:$0xf]
        %v7321 = vld [vmem:[%s7106 + $0x58] sm:$0xf]
        %v7322 = vld [vmem:[%s7106 + $0x5c] sm:$0x1]
        %v7323 = vld [vmem:[%s7106 + $0x60] sm:$0xf]
        %v7324 = vld [vmem:[%s7106 + $0x64] sm:$0xf]
        %v7325 = vld [vmem:[%s7106 + $0x68] sm:$0x1]
        %v7326 = vld [vmem:[%s7106 + $0x6c] sm:$0xf]
        %v7327 = vld [vmem:[%s7106 + $0x70] sm:$0xf]
        %v7328 = vld [vmem:[%s7106 + $0x74] sm:$0x1]
        %v7329 = vld [vmem:[%s7106 + $0x78] sm:$0xf]
        %v7330 = vld [vmem:[%s7106 + $0x7c] sm:$0xf]
        %v7331 = vld [vmem:[%s7106 + $0x80] sm:$0x1]
        %v7332 = vld [vmem:[%s7106 + $0x84] sm:$0xf]
        %v7333 = vld [vmem:[%s7106 + $0x88] sm:$0xf]
        %v7334 = vld [vmem:[%s7106 + $0x8c] sm:$0x1]
        %v7335 = vld [vmem:[%s7106 + $0x90] sm:$0xf]
        %v7336 = vld [vmem:[%s7106 + $0x94] sm:$0xf]
        %v7337 = vld [vmem:[%s7106 + $0x98] sm:$0x1]
        %v7338 = vld [vmem:[%s7106 + $0x9c] sm:$0xf]
        %v7339 = vld [vmem:[%s7106 + $0xa0] sm:$0xf]
        %v7340 = vld [vmem:[%s7106 + $0xa4] sm:$0x1]
        %v7341 = vld [vmem:[%s7106 + $0xa8] sm:$0xf]
        %v7342 = vld [vmem:[%s7106 + $0xac] sm:$0xf]
        %v7343 = vld [vmem:[%s7106 + $0xb0] sm:$0x1]
        %v7344 = vld [vmem:[%s7106 + $0xb4] sm:$0xf]
        %v7345 = vld [vmem:[%s7106 + $0xb8] sm:$0xf]
        %v7346 = vld [vmem:[%s7106 + $0xbc] sm:$0x1]
        %v7348 = vshrl.u32 %v7299, 16
        %v7350 = vrot.slane %v7348, 4
        %v7351 = vshll.u32 %v7299, 16
        %v7353 = vrot.slane %v7351, 5
        %v7354 = vor.u32 %v7350, %v7353
        %v7355 = vrot.slane %v7354, 4
        %v7357 = vshll.u32 %v7300, 16
        %v7359 = vrot.slane %v7357, 5
        %v7360 = vsel %vm899, %v7355, %v7359
        %v7361 = vshrl.u32 %v7300, 16
        %v7363 = vrot.slane %v7361, 4
        %v7364 = vor.u32 %v7363, %v7359
        %v7365 = vrot.slane %v7364, 4
        %v7367 = vshll.u32 %v7301, 16
        %v7369 = vrot.slane %v7367, 5
        %v7370 = vsel %vm899, %v7365, %v7369
        %v7372 = vshrl.u32 %v7302, 16
        %v7374 = vrot.slane %v7372, 4
        %v7375 = vshll.u32 %v7302, 16
        %v7377 = vrot.slane %v7375, 5
        %v7378 = vor.u32 %v7374, %v7377
        %v7379 = vrot.slane %v7378, 4
        %v7381 = vshll.u32 %v7303, 16
        %v7383 = vrot.slane %v7381, 5
        %v7384 = vsel %vm899, %v7379, %v7383
        %v7385 = vshrl.u32 %v7303, 16
        %v7387 = vrot.slane %v7385, 4
        %v7388 = vor.u32 %v7387, %v7383
        %v7389 = vrot.slane %v7388, 4
        %v7391 = vshll.u32 %v7304, 16
        %v7393 = vrot.slane %v7391, 5
        %v7394 = vsel %vm899, %v7389, %v7393
        %v7396 = vshrl.u32 %v7305, 16
        %v7398 = vrot.slane %v7396, 4
        %v7399 = vshll.u32 %v7305, 16
        %v7401 = vrot.slane %v7399, 5
        %v7402 = vor.u32 %v7398, %v7401
        %v7403 = vrot.slane %v7402, 4
        %v7405 = vshll.u32 %v7306, 16
        %v7407 = vrot.slane %v7405, 5
        %v7408 = vsel %vm899, %v7403, %v7407
        %v7409 = vshrl.u32 %v7306, 16
        %v7411 = vrot.slane %v7409, 4
        %v7412 = vor.u32 %v7411, %v7407
        %v7413 = vrot.slane %v7412, 4
        %v7415 = vshll.u32 %v7307, 16
        %v7417 = vrot.slane %v7415, 5
        %v7418 = vsel %vm899, %v7413, %v7417
        %v7420 = vshrl.u32 %v7308, 16
        %v7422 = vrot.slane %v7420, 4
        %v7423 = vshll.u32 %v7308, 16
        %v7425 = vrot.slane %v7423, 5
        %v7426 = vor.u32 %v7422, %v7425
        %v7427 = vrot.slane %v7426, 4
        %v7429 = vshll.u32 %v7309, 16
        %v7431 = vrot.slane %v7429, 5
        %v7432 = vsel %vm899, %v7427, %v7431
        %v7433 = vshrl.u32 %v7309, 16
        %v7435 = vrot.slane %v7433, 4
        %v7436 = vor.u32 %v7435, %v7431
        %v7437 = vrot.slane %v7436, 4
        %v7439 = vshll.u32 %v7310, 16
        %v7441 = vrot.slane %v7439, 5
        %v7442 = vsel %vm899, %v7437, %v7441
        %v7444 = vshrl.u32 %v7311, 16
        %v7446 = vrot.slane %v7444, 4
        %v7447 = vshll.u32 %v7311, 16
        %v7449 = vrot.slane %v7447, 5
        %v7450 = vor.u32 %v7446, %v7449
        %v7451 = vrot.slane %v7450, 4
        %v7453 = vshll.u32 %v7312, 16
        %v7455 = vrot.slane %v7453, 5
        %v7456 = vsel %vm899, %v7451, %v7455
        %v7457 = vshrl.u32 %v7312, 16
        %v7459 = vrot.slane %v7457, 4
        %v7460 = vor.u32 %v7459, %v7455
        %v7461 = vrot.slane %v7460, 4
        %v7463 = vshll.u32 %v7313, 16
        %v7465 = vrot.slane %v7463, 5
        %v7466 = vsel %vm899, %v7461, %v7465
        %v7468 = vshrl.u32 %v7314, 16
        %v7470 = vrot.slane %v7468, 4
        %v7471 = vshll.u32 %v7314, 16
        %v7473 = vrot.slane %v7471, 5
        %v7474 = vor.u32 %v7470, %v7473
        %v7475 = vrot.slane %v7474, 4
        %v7477 = vshll.u32 %v7315, 16
        %v7479 = vrot.slane %v7477, 5
        %v7480 = vsel %vm899, %v7475, %v7479
        %v7481 = vshrl.u32 %v7315, 16
        %v7483 = vrot.slane %v7481, 4
        %v7484 = vor.u32 %v7483, %v7479
        %v7485 = vrot.slane %v7484, 4
        %v7487 = vshll.u32 %v7316, 16
        %v7489 = vrot.slane %v7487, 5
        %v7490 = vsel %vm899, %v7485, %v7489
        %v7492 = vshrl.u32 %v7317, 16
        %v7494 = vrot.slane %v7492, 4
        %v7495 = vshll.u32 %v7317, 16
        %v7497 = vrot.slane %v7495, 5
        %v7498 = vor.u32 %v7494, %v7497
        %v7499 = vrot.slane %v7498, 4
        %v7501 = vshll.u32 %v7318, 16
        %v7503 = vrot.slane %v7501, 5
        %v7504 = vsel %vm899, %v7499, %v7503
        %v7505 = vshrl.u32 %v7318, 16
        %v7507 = vrot.slane %v7505, 4
        %v7508 = vor.u32 %v7507, %v7503
        %v7509 = vrot.slane %v7508, 4
        %v7511 = vshll.u32 %v7319, 16
        %v7513 = vrot.slane %v7511, 5
        %v7514 = vsel %vm899, %v7509, %v7513
        %v7516 = vshrl.u32 %v7320, 16
        %v7518 = vrot.slane %v7516, 4
        %v7519 = vshll.u32 %v7320, 16
        %v7521 = vrot.slane %v7519, 5
        %v7522 = vor.u32 %v7518, %v7521
        %v7523 = vrot.slane %v7522, 4
        %v7525 = vshll.u32 %v7321, 16
        %v7527 = vrot.slane %v7525, 5
        %v7528 = vsel %vm899, %v7523, %v7527
        %v7529 = vshrl.u32 %v7321, 16
        %v7531 = vrot.slane %v7529, 4
        %v7532 = vor.u32 %v7531, %v7527
        %v7533 = vrot.slane %v7532, 4
        %v7535 = vshll.u32 %v7322, 16
        %v7537 = vrot.slane %v7535, 5
        %v7538 = vsel %vm899, %v7533, %v7537
        %v7540 = vshrl.u32 %v7323, 16
        %v7542 = vrot.slane %v7540, 4
        %v7543 = vshll.u32 %v7323, 16
        %v7545 = vrot.slane %v7543, 5
        %v7546 = vor.u32 %v7542, %v7545
        %v7547 = vrot.slane %v7546, 4
        %v7549 = vshll.u32 %v7324, 16
        %v7551 = vrot.slane %v7549, 5
        %v7552 = vsel %vm899, %v7547, %v7551
        %v7553 = vshrl.u32 %v7324, 16
        %v7555 = vrot.slane %v7553, 4
        %v7556 = vor.u32 %v7555, %v7551
        %v7557 = vrot.slane %v7556, 4
        %v7559 = vshll.u32 %v7325, 16
        %v7561 = vrot.slane %v7559, 5
        %v7562 = vsel %vm899, %v7557, %v7561
        %v7564 = vshrl.u32 %v7326, 16
        %v7566 = vrot.slane %v7564, 4
        %v7567 = vshll.u32 %v7326, 16
        %v7569 = vrot.slane %v7567, 5
        %v7570 = vor.u32 %v7566, %v7569
        %v7571 = vrot.slane %v7570, 4
        %v7573 = vshll.u32 %v7327, 16
        %v7575 = vrot.slane %v7573, 5
        %v7576 = vsel %vm899, %v7571, %v7575
        %v7577 = vshrl.u32 %v7327, 16
        %v7579 = vrot.slane %v7577, 4
        %v7580 = vor.u32 %v7579, %v7575
        %v7581 = vrot.slane %v7580, 4
        %v7583 = vshll.u32 %v7328, 16
        %v7585 = vrot.slane %v7583, 5
        %v7586 = vsel %vm899, %v7581, %v7585
        %v7588 = vshrl.u32 %v7329, 16
        %v7590 = vrot.slane %v7588, 4
        %v7591 = vshll.u32 %v7329, 16
        %v7593 = vrot.slane %v7591, 5
        %v7594 = vor.u32 %v7590, %v7593
        %v7595 = vrot.slane %v7594, 4
        %v7597 = vshll.u32 %v7330, 16
        %v7599 = vrot.slane %v7597, 5
        %v7600 = vsel %vm899, %v7595, %v7599
        %v7601 = vshrl.u32 %v7330, 16
        %v7603 = vrot.slane %v7601, 4
        %v7604 = vor.u32 %v7603, %v7599
        %v7605 = vrot.slane %v7604, 4
        %v7607 = vshll.u32 %v7331, 16
        %v7609 = vrot.slane %v7607, 5
        %v7610 = vsel %vm899, %v7605, %v7609
        %v7612 = vshrl.u32 %v7332, 16
        %v7614 = vrot.slane %v7612, 4
        %v7615 = vshll.u32 %v7332, 16
        %v7617 = vrot.slane %v7615, 5
        %v7618 = vor.u32 %v7614, %v7617
        %v7619 = vrot.slane %v7618, 4
        %v7621 = vshll.u32 %v7333, 16
        %v7623 = vrot.slane %v7621, 5
        %v7624 = vsel %vm899, %v7619, %v7623
        %v7625 = vshrl.u32 %v7333, 16
        %v7627 = vrot.slane %v7625, 4
        %v7628 = vor.u32 %v7627, %v7623
        %v7629 = vrot.slane %v7628, 4
        %v7631 = vshll.u32 %v7334, 16
        %v7633 = vrot.slane %v7631, 5
        %v7634 = vsel %vm899, %v7629, %v7633
        %v7636 = vshrl.u32 %v7335, 16
        %v7638 = vrot.slane %v7636, 4
        %v7639 = vshll.u32 %v7335, 16
        %v7641 = vrot.slane %v7639, 5
        %v7642 = vor.u32 %v7638, %v7641
        %v7643 = vrot.slane %v7642, 4
        %v7645 = vshll.u32 %v7336, 16
        %v7647 = vrot.slane %v7645, 5
        %v7648 = vsel %vm899, %v7643, %v7647
        %v7649 = vshrl.u32 %v7336, 16
        %v7651 = vrot.slane %v7649, 4
        %v7652 = vor.u32 %v7651, %v7647
        %v7653 = vrot.slane %v7652, 4
        %v7655 = vshll.u32 %v7337, 16
        %v7657 = vrot.slane %v7655, 5
        %v7658 = vsel %vm899, %v7653, %v7657
        %v7660 = vshrl.u32 %v7338, 16
        %v7662 = vrot.slane %v7660, 4
        %v7663 = vshll.u32 %v7338, 16
        %v7665 = vrot.slane %v7663, 5
        %v7666 = vor.u32 %v7662, %v7665
        %v7667 = vrot.slane %v7666, 4
        %v7669 = vshll.u32 %v7339, 16
        %v7671 = vrot.slane %v7669, 5
        %v7672 = vsel %vm899, %v7667, %v7671
        %v7673 = vshrl.u32 %v7339, 16
        %v7675 = vrot.slane %v7673, 4
        %v7676 = vor.u32 %v7675, %v7671
        %v7677 = vrot.slane %v7676, 4
        %v7679 = vshll.u32 %v7340, 16
        %v7681 = vrot.slane %v7679, 5
        %v7682 = vsel %vm899, %v7677, %v7681
        %v7684 = vshrl.u32 %v7341, 16
        %v7686 = vrot.slane %v7684, 4
        %v7687 = vshll.u32 %v7341, 16
        %v7689 = vrot.slane %v7687, 5
        %v7690 = vor.u32 %v7686, %v7689
        %v7691 = vrot.slane %v7690, 4
        %v7693 = vshll.u32 %v7342, 16
        %v7695 = vrot.slane %v7693, 5
        %v7696 = vsel %vm899, %v7691, %v7695
        %v7697 = vshrl.u32 %v7342, 16
        %v7699 = vrot.slane %v7697, 4
        %v7700 = vor.u32 %v7699, %v7695
        %v7701 = vrot.slane %v7700, 4
        %v7703 = vshll.u32 %v7343, 16
        %v7705 = vrot.slane %v7703, 5
        %v7706 = vsel %vm899, %v7701, %v7705
        %v7708 = vshrl.u32 %v7344, 16
        %v7710 = vrot.slane %v7708, 4
        %v7711 = vshll.u32 %v7344, 16
        %v7713 = vrot.slane %v7711, 5
        %v7714 = vor.u32 %v7710, %v7713
        %v7715 = vrot.slane %v7714, 4
        %v7717 = vshll.u32 %v7345, 16
        %v7719 = vrot.slane %v7717, 5
        %v7720 = vsel %vm899, %v7715, %v7719
        %v7721 = vshrl.u32 %v7345, 16
        %v7723 = vrot.slane %v7721, 4
        %v7724 = vor.u32 %v7723, %v7719
        %v7725 = vrot.slane %v7724, 4
        %v7727 = vshll.u32 %v7346, 16
        %v7729 = vrot.slane %v7727, 5
        %v7730 = vsel %vm899, %v7725, %v7729
        %7731 = vrot.lane.b32.xlu0 %v7360, 96
        %v7732 = vpop.permute.xlu0 %7731
        %7733 = vrot.lane.b32.xlu0 %v7370, 96
        %v7734 = vpop.permute.xlu0 %7733
        %7735 = vrot.lane.b32.xlu0 %v7384, 96
        %v7736 = vpop.permute.xlu0 %7735
        %7737 = vrot.lane.b32.xlu0 %v7394, 96
        %v7738 = vpop.permute.xlu0 %7737
        %7739 = vrot.lane.b32.xlu0 %v7408, 96
        %v7740 = vpop.permute.xlu0 %7739
        %7741 = vrot.lane.b32.xlu0 %v7418, 96
        %v7742 = vpop.permute.xlu0 %7741
        %7743 = vrot.lane.b32.xlu0 %v7432, 96
        %v7744 = vpop.permute.xlu0 %7743
        %7745 = vrot.lane.b32.xlu0 %v7442, 96
        %v7746 = vpop.permute.xlu0 %7745
        %7747 = vrot.lane.b32.xlu0 %v7456, 96
        %v7748 = vpop.permute.xlu0 %7747
        %7749 = vrot.lane.b32.xlu0 %v7466, 96
        %v7750 = vpop.permute.xlu0 %7749
        %7751 = vrot.lane.b32.xlu0 %v7480, 96
        %v7752 = vpop.permute.xlu0 %7751
        %7753 = vrot.lane.b32.xlu0 %v7490, 96
        %v7754 = vpop.permute.xlu0 %7753
        %7755 = vrot.lane.b32.xlu0 %v7504, 96
        %v7756 = vpop.permute.xlu0 %7755
        %7757 = vrot.lane.b32.xlu0 %v7514, 96
        %v7758 = vpop.permute.xlu0 %7757
        %7759 = vrot.lane.b32.xlu0 %v7528, 96
        %v7760 = vpop.permute.xlu0 %7759
        %7761 = vrot.lane.b32.xlu0 %v7538, 96
        %v7762 = vpop.permute.xlu0 %7761
        %7763 = vrot.lane.b32.xlu0 %v7552, 96
        %v7764 = vpop.permute.xlu0 %7763
        %7765 = vrot.lane.b32.xlu0 %v7562, 96
        %v7766 = vpop.permute.xlu0 %7765
        %7767 = vrot.lane.b32.xlu0 %v7576, 96
        %v7768 = vpop.permute.xlu0 %7767
        %7769 = vrot.lane.b32.xlu0 %v7586, 96
        %v7770 = vpop.permute.xlu0 %7769
        %7771 = vrot.lane.b32.xlu0 %v7600, 96
        %v7772 = vpop.permute.xlu0 %7771
        %7773 = vrot.lane.b32.xlu0 %v7610, 96
        %v7774 = vpop.permute.xlu0 %7773
        %7775 = vrot.lane.b32.xlu0 %v7624, 96
        %v7776 = vpop.permute.xlu0 %7775
        %7777 = vrot.lane.b32.xlu0 %v7634, 96
        %v7778 = vpop.permute.xlu0 %7777
        %7779 = vrot.lane.b32.xlu0 %v7648, 96
        %v7780 = vpop.permute.xlu0 %7779
        %7781 = vrot.lane.b32.xlu0 %v7658, 96
        %v7782 = vpop.permute.xlu0 %7781
        %7783 = vrot.lane.b32.xlu0 %v7672, 96
        %v7784 = vpop.permute.xlu0 %7783
        %7785 = vrot.lane.b32.xlu0 %v7682, 96
        %v7786 = vpop.permute.xlu0 %7785
        %7787 = vrot.lane.b32.xlu0 %v7696, 96
        %v7788 = vpop.permute.xlu0 %7787
        %7789 = vrot.lane.b32.xlu0 %v7706, 96
        %v7790 = vpop.permute.xlu0 %7789
        %7791 = vrot.lane.b32.xlu0 %v7720, 96
        %v7792 = vpop.permute.xlu0 %7791
        %7793 = vrot.lane.b32.xlu0 %v7730, 96
        %v7794 = vpop.permute.xlu0 %7793
        %7827 = vst.msk [vmem:[#allocation5 + $0x4] sm:$0xf] %vm1913, %v7732
        %7828 = vst.msk [vmem:[#allocation5 + $0x10] sm:$0xf] %vm1913, %v7734
        %7829 = vst.msk [vmem:[#allocation5 + $0x1c] sm:$0xf] %vm1913, %v7736
        %7830 = vst.msk [vmem:[#allocation5 + $0x28] sm:$0xf] %vm1913, %v7738
        %7831 = vst.msk [vmem:[#allocation5 + $0x34] sm:$0xf] %vm1913, %v7740
        %7832 = vst.msk [vmem:[#allocation5 + $0x40] sm:$0xf] %vm1913, %v7742
        %7833 = vst.msk [vmem:[#allocation5 + $0x4c] sm:$0xf] %vm1913, %v7744
        %7834 = vst.msk [vmem:[#allocation5 + $0x58] sm:$0xf] %vm1913, %v7746
        %7835 = vst.msk [vmem:[#allocation5 + $0x64] sm:$0xf] %vm1913, %v7748
        %7836 = vst.msk [vmem:[#allocation5 + $0x70] sm:$0xf] %vm1913, %v7750
        %7837 = vst.msk [vmem:[#allocation5 + $0x7c] sm:$0xf] %vm1913, %v7752
        %7838 = vst.msk [vmem:[#allocation5 + $0x88] sm:$0xf] %vm1913, %v7754
        %7839 = vst.msk [vmem:[#allocation5 + $0x94] sm:$0xf] %vm1913, %v7756
        %7840 = vst.msk [vmem:[#allocation5 + $0xa0] sm:$0xf] %vm1913, %v7758
        %7841 = vst.msk [vmem:[#allocation5 + $0xac] sm:$0xf] %vm1913, %v7760
        %7842 = vst.msk [vmem:[#allocation5 + $0xb8] sm:$0xf] %vm1913, %v7762
        %7843 = vst.msk [vmem:[#allocation5 + $0xc4] sm:$0xf] %vm1913, %v7764
        %7844 = vst.msk [vmem:[#allocation5 + $0xd0] sm:$0xf] %vm1913, %v7766
        %7845 = vst.msk [vmem:[#allocation5 + $0xdc] sm:$0xf] %vm1913, %v7768
        %7846 = vst.msk [vmem:[#allocation5 + $0xe8] sm:$0xf] %vm1913, %v7770
        %7847 = vst.msk [vmem:[#allocation5 + $0xf4] sm:$0xf] %vm1913, %v7772
        %7848 = vst.msk [vmem:[#allocation5 + $0x100] sm:$0xf] %vm1913, %v7774
        %7849 = vst.msk [vmem:[#allocation5 + $0x10c] sm:$0xf] %vm1913, %v7776
        %7850 = vst.msk [vmem:[#allocation5 + $0x118] sm:$0xf] %vm1913, %v7778
        %7851 = vst.msk [vmem:[#allocation5 + $0x124] sm:$0xf] %vm1913, %v7780
        %7852 = vst.msk [vmem:[#allocation5 + $0x130] sm:$0xf] %vm1913, %v7782
        %7853 = vst.msk [vmem:[#allocation5 + $0x13c] sm:$0xf] %vm1913, %v7784
        %7854 = vst.msk [vmem:[#allocation5 + $0x148] sm:$0xf] %vm1913, %v7786
        %7855 = vst.msk [vmem:[#allocation5 + $0x154] sm:$0xf] %vm1913, %v7788
        %7856 = vst.msk [vmem:[#allocation5 + $0x160] sm:$0xf] %vm1913, %v7790
        %7857 = vst.msk [vmem:[#allocation5 + $0x16c] sm:$0xf] %vm1913, %v7792
        %7858 = vst.msk [vmem:[#allocation5 + $0x178] sm:$0xf] %vm1913, %v7794
        %v7859 = vld [vmem:[%s7106] sm:$0xe]
        %v7860 = vld [vmem:[%s7106 + $0x4] sm:$0xf]
        %v7861 = vld [vmem:[%s7106 + $0x8] sm:$0x1]
        %v7862 = vld [vmem:[%s7106 + $0xc] sm:$0xe]
        %v7863 = vld [vmem:[%s7106 + $0x10] sm:$0xf]
        %v7864 = vld [vmem:[%s7106 + $0x14] sm:$0x1]
        %v7865 = vld [vmem:[%s7106 + $0x18] sm:$0xe]
        %v7866 = vld [vmem:[%s7106 + $0x1c] sm:$0xf]
        %v7867 = vld [vmem:[%s7106 + $0x20] sm:$0x1]
        %v7868 = vld [vmem:[%s7106 + $0x24] sm:$0xe]
        %v7869 = vld [vmem:[%s7106 + $0x28] sm:$0xf]
        %v7870 = vld [vmem:[%s7106 + $0x2c] sm:$0x1]
        %v7871 = vld [vmem:[%s7106 + $0x30] sm:$0xe]
        %v7872 = vld [vmem:[%s7106 + $0x34] sm:$0xf]
        %v7873 = vld [vmem:[%s7106 + $0x38] sm:$0x1]
        %v7874 = vld [vmem:[%s7106 + $0x3c] sm:$0xe]
        %v7875 = vld [vmem:[%s7106 + $0x40] sm:$0xf]
        %v7876 = vld [vmem:[%s7106 + $0x44] sm:$0x1]
        %v7877 = vld [vmem:[%s7106 + $0x48] sm:$0xe]
        %v7878 = vld [vmem:[%s7106 + $0x4c] sm:$0xf]
        %v7879 = vld [vmem:[%s7106 + $0x50] sm:$0x1]
        %v7880 = vld [vmem:[%s7106 + $0x54] sm:$0xe]
        %v7881 = vld [vmem:[%s7106 + $0x58] sm:$0xf]
        %v7882 = vld [vmem:[%s7106 + $0x5c] sm:$0x1]
        %v7883 = vld [vmem:[%s7106 + $0x60] sm:$0xe]
        %v7884 = vld [vmem:[%s7106 + $0x64] sm:$0xf]
        %v7885 = vld [vmem:[%s7106 + $0x68] sm:$0x1]
        %v7886 = vld [vmem:[%s7106 + $0x6c] sm:$0xe]
        %v7887 = vld [vmem:[%s7106 + $0x70] sm:$0xf]
        %v7888 = vld [vmem:[%s7106 + $0x74] sm:$0x1]
        %v7889 = vld [vmem:[%s7106 + $0x78] sm:$0xe]
        %v7890 = vld [vmem:[%s7106 + $0x7c] sm:$0xf]
        %v7891 = vld [vmem:[%s7106 + $0x80] sm:$0x1]
        %v7892 = vld [vmem:[%s7106 + $0x84] sm:$0xe]
        %v7893 = vld [vmem:[%s7106 + $0x88] sm:$0xf]
        %v7894 = vld [vmem:[%s7106 + $0x8c] sm:$0x1]
        %v7895 = vld [vmem:[%s7106 + $0x90] sm:$0xe]
        %v7896 = vld [vmem:[%s7106 + $0x94] sm:$0xf]
        %v7897 = vld [vmem:[%s7106 + $0x98] sm:$0x1]
        %v7898 = vld [vmem:[%s7106 + $0x9c] sm:$0xe]
        %v7899 = vld [vmem:[%s7106 + $0xa0] sm:$0xf]
        %v7900 = vld [vmem:[%s7106 + $0xa4] sm:$0x1]
        %v7901 = vld [vmem:[%s7106 + $0xa8] sm:$0xe]
        %v7902 = vld [vmem:[%s7106 + $0xac] sm:$0xf]
        %v7903 = vld [vmem:[%s7106 + $0xb0] sm:$0x1]
        %v7904 = vld [vmem:[%s7106 + $0xb4] sm:$0xe]
        %v7905 = vld [vmem:[%s7106 + $0xb8] sm:$0xf]
        %v7906 = vld [vmem:[%s7106 + $0xbc] sm:$0x1]
        %v7955 = vrot.slane %v7859, 5
        %v7956 = vrot.slane %v7955, 4
        %v7957 = vrot.slane %v7860, 5
        %v7958 = vsel %vm1511, %v7956, %v7957
        %v7959 = vrot.slane %v7957, 4
        %v7960 = vrot.slane %v7861, 5
        %v7961 = vsel %vm1511, %v7959, %v7960
        %v7962 = vrot.slane %v7862, 5
        %v7963 = vrot.slane %v7962, 4
        %v7964 = vrot.slane %v7863, 5
        %v7965 = vsel %vm1511, %v7963, %v7964
        %v7966 = vrot.slane %v7964, 4
        %v7967 = vrot.slane %v7864, 5
        %v7968 = vsel %vm1511, %v7966, %v7967
        %v7969 = vrot.slane %v7865, 5
        %v7970 = vrot.slane %v7969, 4
        %v7971 = vrot.slane %v7866, 5
        %v7972 = vsel %vm1511, %v7970, %v7971
        %v7973 = vrot.slane %v7971, 4
        %v7974 = vrot.slane %v7867, 5
        %v7975 = vsel %vm1511, %v7973, %v7974
        %v7976 = vrot.slane %v7868, 5
        %v7977 = vrot.slane %v7976, 4
        %v7978 = vrot.slane %v7869, 5
        %v7979 = vsel %vm1511, %v7977, %v7978
        %v7980 = vrot.slane %v7978, 4
        %v7981 = vrot.slane %v7870, 5
        %v7982 = vsel %vm1511, %v7980, %v7981
        %v7983 = vrot.slane %v7871, 5
        %v7984 = vrot.slane %v7983, 4
        %v7985 = vrot.slane %v7872, 5
        %v7986 = vsel %vm1511, %v7984, %v7985
        %v7987 = vrot.slane %v7985, 4
        %v7988 = vrot.slane %v7873, 5
        %v7989 = vsel %vm1511, %v7987, %v7988
        %v7990 = vrot.slane %v7874, 5
        %v7991 = vrot.slane %v7990, 4
        %v7992 = vrot.slane %v7875, 5
        %v7993 = vsel %vm1511, %v7991, %v7992
        %v7994 = vrot.slane %v7992, 4
        %v7995 = vrot.slane %v7876, 5
        %v7996 = vsel %vm1511, %v7994, %v7995
        %v7997 = vrot.slane %v7877, 5
        %v7998 = vrot.slane %v7997, 4
        %v7999 = vrot.slane %v7878, 5
        %v8000 = vsel %vm1511, %v7998, %v7999
        %v8001 = vrot.slane %v7999, 4
        %v8002 = vrot.slane %v7879, 5
        %v8003 = vsel %vm1511, %v8001, %v8002
        %v8004 = vrot.slane %v7880, 5
        %v8005 = vrot.slane %v8004, 4
        %v8006 = vrot.slane %v7881, 5
        %v8007 = vsel %vm1511, %v8005, %v8006
        %v8008 = vrot.slane %v8006, 4
        %v8009 = vrot.slane %v7882, 5
        %v8010 = vsel %vm1511, %v8008, %v8009
        %v8011 = vrot.slane %v7883, 5
        %v8012 = vrot.slane %v8011, 4
        %v8013 = vrot.slane %v7884, 5
        %v8014 = vsel %vm1511, %v8012, %v8013
        %v8015 = vrot.slane %v8013, 4
        %v8016 = vrot.slane %v7885, 5
        %v8017 = vsel %vm1511, %v8015, %v8016
        %v8018 = vrot.slane %v7886, 5
        %v8019 = vrot.slane %v8018, 4
        %v8020 = vrot.slane %v7887, 5
        %v8021 = vsel %vm1511, %v8019, %v8020
        %v8022 = vrot.slane %v8020, 4
        %v8023 = vrot.slane %v7888, 5
        %v8024 = vsel %vm1511, %v8022, %v8023
        %v8025 = vrot.slane %v7889, 5
        %v8026 = vrot.slane %v8025, 4
        %v8027 = vrot.slane %v7890, 5
        %v8028 = vsel %vm1511, %v8026, %v8027
        %v8029 = vrot.slane %v8027, 4
        %v8030 = vrot.slane %v7891, 5
        %v8031 = vsel %vm1511, %v8029, %v8030
        %v8032 = vrot.slane %v7892, 5
        %v8033 = vrot.slane %v8032, 4
        %v8034 = vrot.slane %v7893, 5
        %v8035 = vsel %vm1511, %v8033, %v8034
        %v8036 = vrot.slane %v8034, 4
        %v8037 = vrot.slane %v7894, 5
        %v8038 = vsel %vm1511, %v8036, %v8037
        %v8039 = vrot.slane %v7895, 5
        %v8040 = vrot.slane %v8039, 4
        %v8041 = vrot.slane %v7896, 5
        %v8042 = vsel %vm1511, %v8040, %v8041
        %v8043 = vrot.slane %v8041, 4
        %v8044 = vrot.slane %v7897, 5
        %v8045 = vsel %vm1511, %v8043, %v8044
        %v8046 = vrot.slane %v7898, 5
        %v8047 = vrot.slane %v8046, 4
        %v8048 = vrot.slane %v7899, 5
        %v8049 = vsel %vm1511, %v8047, %v8048
        %v8050 = vrot.slane %v8048, 4
        %v8051 = vrot.slane %v7900, 5
        %v8052 = vsel %vm1511, %v8050, %v8051
        %v8053 = vrot.slane %v7901, 5
        %v8054 = vrot.slane %v8053, 4
        %v8055 = vrot.slane %v7902, 5
        %v8056 = vsel %vm1511, %v8054, %v8055
        %v8057 = vrot.slane %v8055, 4
        %v8058 = vrot.slane %v7903, 5
        %v8059 = vsel %vm1511, %v8057, %v8058
        %v8060 = vrot.slane %v7904, 5
        %v8061 = vrot.slane %v8060, 4
        %v8062 = vrot.slane %v7905, 5
        %v8063 = vsel %vm1511, %v8061, %v8062
        %v8064 = vrot.slane %v8062, 4
        %v8065 = vrot.slane %v7906, 5
        %v8066 = vsel %vm1511, %v8064, %v8065
        %8099 = vst.msk [vmem:[#allocation5 + $0x8] sm:$0xf] %vm256, %v7958
        %8100 = vst.msk [vmem:[#allocation5 + $0x14] sm:$0xf] %vm256, %v7961
        %8101 = vst.msk [vmem:[#allocation5 + $0x20] sm:$0xf] %vm256, %v7965
        %8102 = vst.msk [vmem:[#allocation5 + $0x2c] sm:$0xf] %vm256, %v7968
        %8103 = vst.msk [vmem:[#allocation5 + $0x38] sm:$0xf] %vm256, %v7972
        %8104 = vst.msk [vmem:[#allocation5 + $0x44] sm:$0xf] %vm256, %v7975
        %8105 = vst.msk [vmem:[#allocation5 + $0x50] sm:$0xf] %vm256, %v7979
        %8106 = vst.msk [vmem:[#allocation5 + $0x5c] sm:$0xf] %vm256, %v7982
        %8107 = vst.msk [vmem:[#allocation5 + $0x68] sm:$0xf] %vm256, %v7986
        %8108 = vst.msk [vmem:[#allocation5 + $0x74] sm:$0xf] %vm256, %v7989
        %8109 = vst.msk [vmem:[#allocation5 + $0x80] sm:$0xf] %vm256, %v7993
        %8110 = vst.msk [vmem:[#allocation5 + $0x8c] sm:$0xf] %vm256, %v7996
        %8111 = vst.msk [vmem:[#allocation5 + $0x98] sm:$0xf] %vm256, %v8000
        %8112 = vst.msk [vmem:[#allocation5 + $0xa4] sm:$0xf] %vm256, %v8003
        %8113 = vst.msk [vmem:[#allocation5 + $0xb0] sm:$0xf] %vm256, %v8007
        %8114 = vst.msk [vmem:[#allocation5 + $0xbc] sm:$0xf] %vm256, %v8010
        %8115 = vst.msk [vmem:[#allocation5 + $0xc8] sm:$0xf] %vm256, %v8014
        %8116 = vst.msk [vmem:[#allocation5 + $0xd4] sm:$0xf] %vm256, %v8017
        %8117 = vst.msk [vmem:[#allocation5 + $0xe0] sm:$0xf] %vm256, %v8021
        %8118 = vst.msk [vmem:[#allocation5 + $0xec] sm:$0xf] %vm256, %v8024
        %8119 = vst.msk [vmem:[#allocation5 + $0xf8] sm:$0xf] %vm256, %v8028
        %8120 = vst.msk [vmem:[#allocation5 + $0x104] sm:$0xf] %vm256, %v8031
        %8121 = vst.msk [vmem:[#allocation5 + $0x110] sm:$0xf] %vm256, %v8035
        %8122 = vst.msk [vmem:[#allocation5 + $0x11c] sm:$0xf] %vm256, %v8038
        %8123 = vst.msk [vmem:[#allocation5 + $0x128] sm:$0xf] %vm256, %v8042
        %8124 = vst.msk [vmem:[#allocation5 + $0x134] sm:$0xf] %vm256, %v8045
        %8125 = vst.msk [vmem:[#allocation5 + $0x140] sm:$0xf] %vm256, %v8049
        %8126 = vst.msk [vmem:[#allocation5 + $0x14c] sm:$0xf] %vm256, %v8052
        %8127 = vst.msk [vmem:[#allocation5 + $0x158] sm:$0xf] %vm256, %v8056
        %8128 = vst.msk [vmem:[#allocation5 + $0x164] sm:$0xf] %vm256, %v8059
        %8129 = vst.msk [vmem:[#allocation5 + $0x170] sm:$0xf] %vm256, %v8063
        %8130 = vst.msk [vmem:[#allocation5 + $0x17c] sm:$0xf] %vm256, %v8066
        %v8131 = vld [vmem:[#allocation5] sm:$0xff]
        %v8132 = vld [vmem:[#allocation5 + $0x8] sm:$0xf]
        %v8133 = vld [vmem:[#allocation5 + $0xc] sm:$0xff]
        %v8134 = vld [vmem:[#allocation5 + $0x14] sm:$0xf]
        %v8135 = vld [vmem:[#allocation5 + $0x18] sm:$0xff]
        %v8136 = vld [vmem:[#allocation5 + $0x20] sm:$0xf]
        %v8137 = vld [vmem:[#allocation5 + $0x24] sm:$0xff]
        %v8138 = vld [vmem:[#allocation5 + $0x2c] sm:$0xf]
        %v8139 = vld [vmem:[#allocation5 + $0x30] sm:$0xff]
        %v8140 = vld [vmem:[#allocation5 + $0x38] sm:$0xf]
        %v8141 = vld [vmem:[#allocation5 + $0x3c] sm:$0xff]
        %v8142 = vld [vmem:[#allocation5 + $0x44] sm:$0xf]
        %v8143 = vld [vmem:[#allocation5 + $0x48] sm:$0xff]
        %v8144 = vld [vmem:[#allocation5 + $0x50] sm:$0xf]
        %v8145 = vld [vmem:[#allocation5 + $0x54] sm:$0xff]
        %v8146 = vld [vmem:[#allocation5 + $0x5c] sm:$0xf]
        %v8147 = vld [vmem:[#allocation5 + $0x60] sm:$0xff]
        %v8148 = vld [vmem:[#allocation5 + $0x68] sm:$0xf]
        %v8149 = vld [vmem:[#allocation5 + $0x6c] sm:$0xff]
        %v8150 = vld [vmem:[#allocation5 + $0x74] sm:$0xf]
        %v8151 = vld [vmem:[#allocation5 + $0x78] sm:$0xff]
        %v8152 = vld [vmem:[#allocation5 + $0x80] sm:$0xf]
        %v8153 = vld [vmem:[#allocation5 + $0x84] sm:$0xff]
        %v8154 = vld [vmem:[#allocation5 + $0x8c] sm:$0xf]
        %v8155 = vld [vmem:[#allocation5 + $0x90] sm:$0xff]
        %v8156 = vld [vmem:[#allocation5 + $0x98] sm:$0xf]
        %v8157 = vld [vmem:[#allocation5 + $0x9c] sm:$0xff]
        %v8158 = vld [vmem:[#allocation5 + $0xa4] sm:$0xf]
        %v8159 = vld [vmem:[#allocation5 + $0xa8] sm:$0xff]
        %v8160 = vld [vmem:[#allocation5 + $0xb0] sm:$0xf]
        %v8161 = vld [vmem:[#allocation5 + $0xb4] sm:$0xff]
        %v8162 = vld [vmem:[#allocation5 + $0xbc] sm:$0xf]
        %v8163 = vld [vmem:[#allocation5 + $0xc0] sm:$0xff]
        %v8164 = vld [vmem:[#allocation5 + $0xc8] sm:$0xf]
        %v8165 = vld [vmem:[#allocation5 + $0xcc] sm:$0xff]
        %v8166 = vld [vmem:[#allocation5 + $0xd4] sm:$0xf]
        %v8167 = vld [vmem:[#allocation5 + $0xd8] sm:$0xff]
        %v8168 = vld [vmem:[#allocation5 + $0xe0] sm:$0xf]
        %v8169 = vld [vmem:[#allocation5 + $0xe4] sm:$0xff]
        %v8170 = vld [vmem:[#allocation5 + $0xec] sm:$0xf]
        %v8171 = vld [vmem:[#allocation5 + $0xf0] sm:$0xff]
        %v8172 = vld [vmem:[#allocation5 + $0xf8] sm:$0xf]
        %v8173 = vld [vmem:[#allocation5 + $0xfc] sm:$0xff]
        %v8174 = vld [vmem:[#allocation5 + $0x104] sm:$0xf]
        %v8175 = vld [vmem:[#allocation5 + $0x108] sm:$0xff]
        %v8176 = vld [vmem:[#allocation5 + $0x110] sm:$0xf]
        %v8177 = vld [vmem:[#allocation5 + $0x114] sm:$0xff]
        %v8178 = vld [vmem:[#allocation5 + $0x11c] sm:$0xf]
        %v8179 = vld [vmem:[#allocation5 + $0x120] sm:$0xff]
        %v8180 = vld [vmem:[#allocation5 + $0x128] sm:$0xf]
        %v8181 = vld [vmem:[#allocation5 + $0x12c] sm:$0xff]
        %v8182 = vld [vmem:[#allocation5 + $0x134] sm:$0xf]
        %v8183 = vld [vmem:[#allocation5 + $0x138] sm:$0xff]
        %v8184 = vld [vmem:[#allocation5 + $0x140] sm:$0xf]
        %v8185 = vld [vmem:[#allocation5 + $0x144] sm:$0xff]
        %v8186 = vld [vmem:[#allocation5 + $0x14c] sm:$0xf]
        %v8187 = vld [vmem:[#allocation5 + $0x150] sm:$0xff]
        %v8188 = vld [vmem:[#allocation5 + $0x158] sm:$0xf]
        %v8189 = vld [vmem:[#allocation5 + $0x15c] sm:$0xff]
        %v8190 = vld [vmem:[#allocation5 + $0x164] sm:$0xf]
        %v8191 = vld [vmem:[#allocation5 + $0x168] sm:$0xff]
        %v8192 = vld [vmem:[#allocation5 + $0x170] sm:$0xf]
        %v8193 = vld [vmem:[#allocation5 + $0x174] sm:$0xff]
        %v8194 = vld [vmem:[#allocation5 + $0x17c] sm:$0xf]
        %v8195 = vld [vmem:[%s3] sm:$0xf]
        %v8196 = vld [vmem:[%s3 + $0x4] sm:$0xf]
        %v8197 = vld [vmem:[%s3 + $0x8] sm:$0xf]
        %v8198 = vld [vmem:[%s3 + $0xc] sm:$0xf]
        %v8199 = vld [vmem:[%s3 + $0x10] sm:$0xf]
        %v8200 = vld [vmem:[%s3 + $0x14] sm:$0xf]
        %v8201 = vld [vmem:[%s3 + $0x18] sm:$0xf]
        %v8202 = vld [vmem:[%s3 + $0x1c] sm:$0xf]
        %v8203 = vld [vmem:[%s3 + $0x20] sm:$0xf]
        %v8204 = vld [vmem:[%s3 + $0x24] sm:$0xf]
        %v8205 = vld [vmem:[%s3 + $0x28] sm:$0xf]
        %v8206 = vld [vmem:[%s3 + $0x2c] sm:$0xf]
        %v8207 = vld [vmem:[%s3 + $0x30] sm:$0xf]
        %v8208 = vld [vmem:[%s3 + $0x34] sm:$0xf]
        %v8209 = vld [vmem:[%s3 + $0x38] sm:$0xf]
        %v8210 = vld [vmem:[%s3 + $0x3c] sm:$0xf]
        %v8211 = vld [vmem:[%s3 + $0x40] sm:$0xf]
        %v8212 = vld [vmem:[%s3 + $0x44] sm:$0xf]
        %v8213 = vld [vmem:[%s3 + $0x48] sm:$0xf]
        %v8214 = vld [vmem:[%s3 + $0x4c] sm:$0xf]
        %v8215 = vld [vmem:[%s3 + $0x50] sm:$0xf]
        %v8216 = vld [vmem:[%s3 + $0x54] sm:$0xf]
        %v8217 = vld [vmem:[%s3 + $0x58] sm:$0xf]
        %v8218 = vld [vmem:[%s3 + $0x5c] sm:$0xf]
        %v8219 = vld [vmem:[%s3 + $0x60] sm:$0xf]
        %v8220 = vld [vmem:[%s3 + $0x64] sm:$0xf]
        %v8221 = vld [vmem:[%s3 + $0x68] sm:$0xf]
        %v8222 = vld [vmem:[%s3 + $0x6c] sm:$0xf]
        %v8223 = vld [vmem:[%s3 + $0x70] sm:$0xf]
        %v8224 = vld [vmem:[%s3 + $0x74] sm:$0xf]
        %v8225 = vld [vmem:[%s3 + $0x78] sm:$0xf]
        %v8226 = vld [vmem:[%s3 + $0x7c] sm:$0xf]
        %v8227 = vld [vmem:[%s3 + $0x80] sm:$0xf]
        %v8228 = vld [vmem:[%s3 + $0x84] sm:$0xf]
        %v8229 = vld [vmem:[%s3 + $0x88] sm:$0xf]
        %v8230 = vld [vmem:[%s3 + $0x8c] sm:$0xf]
        %v8231 = vld [vmem:[%s4] sm:$0x1]
        %v8233 = vperm.slane %v8231, 0
        %v8299 = vunpack.c.l.b16 %v8131
        %v8300 = vunpack.c.h.b16 %v8131
        %v8301 = vunpack.c.l.b16 %v8132
        %v8302 = vunpack.c.l.b16 %v8133
        %v8303 = vunpack.c.h.b16 %v8133
        %v8304 = vunpack.c.l.b16 %v8134
        %v8305 = vunpack.c.l.b16 %v8135
        %v8306 = vunpack.c.h.b16 %v8135
        %v8307 = vunpack.c.l.b16 %v8136
        %v8308 = vunpack.c.l.b16 %v8137
        %v8309 = vunpack.c.h.b16 %v8137
        %v8310 = vunpack.c.l.b16 %v8138
        %v8311 = vunpack.c.l.b16 %v8139
        %v8312 = vunpack.c.h.b16 %v8139
        %v8313 = vunpack.c.l.b16 %v8140
        %v8314 = vunpack.c.l.b16 %v8141
        %v8315 = vunpack.c.h.b16 %v8141
        %v8316 = vunpack.c.l.b16 %v8142
        %v8317 = vunpack.c.l.b16 %v8143
        %v8318 = vunpack.c.h.b16 %v8143
        %v8319 = vunpack.c.l.b16 %v8144
        %v8320 = vunpack.c.l.b16 %v8145
        %v8321 = vunpack.c.h.b16 %v8145
        %v8322 = vunpack.c.l.b16 %v8146
        %v8323 = vunpack.c.l.b16 %v8147
        %v8324 = vunpack.c.h.b16 %v8147
        %v8325 = vunpack.c.l.b16 %v8148
        %v8326 = vunpack.c.l.b16 %v8149
        %v8327 = vunpack.c.h.b16 %v8149
        %v8328 = vunpack.c.l.b16 %v8150
        %v8329 = vunpack.c.l.b16 %v8151
        %v8330 = vunpack.c.h.b16 %v8151
        %v8331 = vunpack.c.l.b16 %v8152
        %v8332 = vunpack.c.l.b16 %v8153
        %v8333 = vunpack.c.h.b16 %v8153
        %v8334 = vunpack.c.l.b16 %v8154
        %v8335 = vunpack.c.l.b16 %v8155
        %v8336 = vunpack.c.h.b16 %v8155
        %v8337 = vunpack.c.l.b16 %v8156
        %v8338 = vunpack.c.l.b16 %v8157
        %v8339 = vunpack.c.h.b16 %v8157
        %v8340 = vunpack.c.l.b16 %v8158
        %v8341 = vunpack.c.l.b16 %v8159
        %v8342 = vunpack.c.h.b16 %v8159
        %v8343 = vunpack.c.l.b16 %v8160
        %v8344 = vunpack.c.l.b16 %v8161
        %v8345 = vunpack.c.h.b16 %v8161
        %v8346 = vunpack.c.l.b16 %v8162
        %v8347 = vunpack.c.l.b16 %v8163
        %v8348 = vunpack.c.h.b16 %v8163
        %v8349 = vunpack.c.l.b16 %v8164
        %v8350 = vunpack.c.l.b16 %v8165
        %v8351 = vunpack.c.h.b16 %v8165
        %v8352 = vunpack.c.l.b16 %v8166
        %v8353 = vunpack.c.l.b16 %v8167
        %v8354 = vunpack.c.h.b16 %v8167
        %v8355 = vunpack.c.l.b16 %v8168
        %v8356 = vunpack.c.l.b16 %v8169
        %v8357 = vunpack.c.h.b16 %v8169
        %v8358 = vunpack.c.l.b16 %v8170
        %v8359 = vunpack.c.l.b16 %v8171
        %v8360 = vunpack.c.h.b16 %v8171
        %v8361 = vunpack.c.l.b16 %v8172
        %v8362 = vunpack.c.l.b16 %v8173
        %v8363 = vunpack.c.h.b16 %v8173
        %v8364 = vunpack.c.l.b16 %v8174
        %v8365 = vunpack.c.l.b16 %v8175
        %v8366 = vunpack.c.h.b16 %v8175
        %v8367 = vunpack.c.l.b16 %v8176
        %v8368 = vunpack.c.l.b16 %v8177
        %v8369 = vunpack.c.h.b16 %v8177
        %v8370 = vunpack.c.l.b16 %v8178
        %v8371 = vunpack.c.l.b16 %v8179
        %v8372 = vunpack.c.h.b16 %v8179
        %v8373 = vunpack.c.l.b16 %v8180
        %v8374 = vunpack.c.l.b16 %v8181
        %v8375 = vunpack.c.h.b16 %v8181
        %v8376 = vunpack.c.l.b16 %v8182
        %v8377 = vunpack.c.l.b16 %v8183
        %v8378 = vunpack.c.h.b16 %v8183
        %v8379 = vunpack.c.l.b16 %v8184
        %v8380 = vunpack.c.l.b16 %v8185
        %v8381 = vunpack.c.h.b16 %v8185
        %v8382 = vunpack.c.l.b16 %v8186
        %v8383 = vunpack.c.l.b16 %v8187
        %v8384 = vunpack.c.h.b16 %v8187
        %v8385 = vunpack.c.l.b16 %v8188
        %v8386 = vunpack.c.l.b16 %v8189
        %v8387 = vunpack.c.h.b16 %v8189
        %v8388 = vunpack.c.l.b16 %v8190
        %v8389 = vunpack.c.l.b16 %v8191
        %v8390 = vunpack.c.h.b16 %v8191
        %v8391 = vunpack.c.l.b16 %v8192
        %v8392 = vunpack.c.l.b16 %v8193
        %v8393 = vunpack.c.h.b16 %v8193
        %v8394 = vunpack.c.l.b16 %v8194
        %v8395 = vpack.c.b16 %v8302, %v8299
        %v8396 = vpack.c.b16 %v8303, %v8300
        %v8397 = vpack.c.b16 %v8304, %v8301
        %v8398 = vpack.c.b16 %v8308, %v8305
        %v8399 = vpack.c.b16 %v8309, %v8306
        %v8400 = vpack.c.b16 %v8310, %v8307
        %v8401 = vpack.c.b16 %v8314, %v8311
        %v8402 = vpack.c.b16 %v8315, %v8312
        %v8403 = vpack.c.b16 %v8316, %v8313
        %v8404 = vpack.c.b16 %v8320, %v8317
        %v8405 = vpack.c.b16 %v8321, %v8318
        %v8406 = vpack.c.b16 %v8322, %v8319
        %v8407 = vpack.c.b16 %v8326, %v8323
        %v8408 = vpack.c.b16 %v8327, %v8324
        %v8409 = vpack.c.b16 %v8328, %v8325
        %v8410 = vpack.c.b16 %v8332, %v8329
        %v8411 = vpack.c.b16 %v8333, %v8330
        %v8412 = vpack.c.b16 %v8334, %v8331
        %v8413 = vpack.c.b16 %v8338, %v8335
        %v8414 = vpack.c.b16 %v8339, %v8336
        %v8415 = vpack.c.b16 %v8340, %v8337
        %v8416 = vpack.c.b16 %v8344, %v8341
        %v8417 = vpack.c.b16 %v8345, %v8342
        %v8418 = vpack.c.b16 %v8346, %v8343
        %v8419 = vpack.c.b16 %v8350, %v8347
        %v8420 = vpack.c.b16 %v8351, %v8348
        %v8421 = vpack.c.b16 %v8352, %v8349
        %v8422 = vpack.c.b16 %v8356, %v8353
        %v8423 = vpack.c.b16 %v8357, %v8354
        %v8424 = vpack.c.b16 %v8358, %v8355
        %v8425 = vpack.c.b16 %v8362, %v8359
        %v8426 = vpack.c.b16 %v8363, %v8360
        %v8427 = vpack.c.b16 %v8364, %v8361
        %v8428 = vpack.c.b16 %v8368, %v8365
        %v8429 = vpack.c.b16 %v8369, %v8366
        %v8430 = vpack.c.b16 %v8370, %v8367
        %v8431 = vpack.c.b16 %v8374, %v8371
        %v8432 = vpack.c.b16 %v8375, %v8372
        %v8433 = vpack.c.b16 %v8376, %v8373
        %v8434 = vpack.c.b16 %v8380, %v8377
        %v8435 = vpack.c.b16 %v8381, %v8378
        %v8436 = vpack.c.b16 %v8382, %v8379
        %v8437 = vpack.c.b16 %v8386, %v8383
        %v8438 = vpack.c.b16 %v8387, %v8384
        %v8439 = vpack.c.b16 %v8388, %v8385
        %v8440 = vpack.c.b16 %v8392, %v8389
        %v8441 = vpack.c.b16 %v8393, %v8390
        %v8442 = vpack.c.b16 %v8394, %v8391
        %v8511 = vunpack.c.l.b16 %v8195
        %v8512 = vunpack.c.l.b16 %v8196
        %v8513 = vunpack.c.l.b16 %v8197
        %v8514 = vunpack.c.l.b16 %v8198
        %v8515 = vunpack.c.l.b16 %v8199
        %v8516 = vunpack.c.l.b16 %v8200
        %v8517 = vunpack.c.l.b16 %v8201
        %v8518 = vunpack.c.l.b16 %v8202
        %v8519 = vunpack.c.l.b16 %v8203
        %v8520 = vunpack.c.l.b16 %v8204
        %v8521 = vunpack.c.l.b16 %v8205
        %v8522 = vunpack.c.l.b16 %v8206
        %v8523 = vunpack.c.l.b16 %v8207
        %v8524 = vunpack.c.l.b16 %v8208
        %v8525 = vunpack.c.l.b16 %v8209
        %v8526 = vunpack.c.l.b16 %v8210
        %v8527 = vunpack.c.l.b16 %v8211
        %v8528 = vunpack.c.l.b16 %v8212
        %v8529 = vunpack.c.l.b16 %v8213
        %v8530 = vunpack.c.l.b16 %v8214
        %v8531 = vunpack.c.l.b16 %v8215
        %v8532 = vunpack.c.l.b16 %v8216
        %v8533 = vunpack.c.l.b16 %v8217
        %v8534 = vunpack.c.l.b16 %v8218
        %v8535 = vunpack.c.l.b16 %v8219
        %v8536 = vunpack.c.l.b16 %v8220
        %v8537 = vunpack.c.l.b16 %v8221
        %v8538 = vunpack.c.l.b16 %v8222
        %v8539 = vunpack.c.l.b16 %v8223
        %v8540 = vunpack.c.l.b16 %v8224
        %v8541 = vunpack.c.l.b16 %v8225
        %v8542 = vunpack.c.l.b16 %v8226
        %v8543 = vunpack.c.l.b16 %v8227
        %v8544 = vunpack.c.l.b16 %v8228
        %v8545 = vunpack.c.l.b16 %v8229
        %v8546 = vunpack.c.l.b16 %v8230
        %v8547 = vpack.c.b16 %v8512, %v8511
        %v8548 = vpack.c.b16 %v8514, %v8513
        %v8549 = vpack.c.b16 %v8516, %v8515
        %v8550 = vpack.c.b16 %v8518, %v8517
        %v8551 = vpack.c.b16 %v8520, %v8519
        %v8552 = vpack.c.b16 %v8522, %v8521
        %v8553 = vpack.c.b16 %v8524, %v8523
        %v8554 = vpack.c.b16 %v8526, %v8525
        %v8555 = vpack.c.b16 %v8528, %v8527
        %v8556 = vpack.c.b16 %v8530, %v8529
        %v8557 = vpack.c.b16 %v8532, %v8531
        %v8558 = vpack.c.b16 %v8534, %v8533
        %v8559 = vpack.c.b16 %v8536, %v8535
        %v8560 = vpack.c.b16 %v8538, %v8537
        %v8561 = vpack.c.b16 %v8540, %v8539
        %v8562 = vpack.c.b16 %v8542, %v8541
        %v8563 = vpack.c.b16 %v8544, %v8543
        %v8564 = vpack.c.b16 %v8546, %v8545
        %v8584 = vsel %vm4255, %v8397, 0
        %v8587 = vsel %vm4255, %v8400, 0
        %v8590 = vsel %vm4255, %v8403, 0
        %v8593 = vsel %vm4255, %v8406, 0
        %v8596 = vsel %vm4255, %v8409, 0
        %v8599 = vsel %vm4255, %v8412, 0
        %v8602 = vsel %vm4255, %v8415, 0
        %v8605 = vsel %vm4255, %v8418, 0
        %v8608 = vsel %vm4255, %v8421, 0
        %v8611 = vsel %vm4255, %v8424, 0
        %v8614 = vsel %vm4255, %v8427, 0
        %v8617 = vsel %vm4255, %v8430, 0
        %v8620 = vsel %vm4255, %v8433, 0
        %v8623 = vsel %vm4255, %v8436, 0
        %v8626 = vsel %vm4255, %v8439, 0
        %v8629 = vsel %vm4255, %v8442, 0
        %8631 = vmatpush.bf16.msra.mxu0 %v8554
        %8632 = vmatpush.bf16.msra.mxu0 %v8553
        %8633 = vmatpush.bf16.msra.mxu0 %v8552
        %8634 = vmatpush.bf16.msra.mxu0 %v8551
        %8635 = vmatpush.bf16.msra.mxu0 %v8550
        %8636 = vmatpush.bf16.msra.mxu0 %v8549
        %8637 = vmatpush.bf16.msra.mxu0 %v8548
        %8638 = vmatpush.bf16.msra.mxu0 %v8547
        %8639 = vmatmul.bf16.gmra.mxu0 %v8395
        %v8640 = vpop.f32.mrf.mxu0
        %v8641 = vadd.f32 %v8233, %v8640
        %v8642 = vpop.f32.mrf.mxu0
        %v8643 = vadd.f32 %v8233, %v8642
        %8644 = vmatmul.bf16.gmra.mxu0 %v8398
        %v8645 = vpop.f32.mrf.mxu0
        %v8646 = vadd.f32 %v8233, %v8645
        %v8647 = vpop.f32.mrf.mxu0
        %v8648 = vadd.f32 %v8233, %v8647
        %8649 = vmatmul.bf16.gmra.mxu0 %v8401
        %v8650 = vpop.f32.mrf.mxu0
        %v8651 = vadd.f32 %v8233, %v8650
        %v8652 = vpop.f32.mrf.mxu0
        %v8653 = vadd.f32 %v8233, %v8652
        %8654 = vmatmul.bf16.gmra.mxu0 %v8404
        %v8655 = vpop.f32.mrf.mxu0
        %v8656 = vadd.f32 %v8233, %v8655
        %v8657 = vpop.f32.mrf.mxu0
        %v8658 = vadd.f32 %v8233, %v8657
        %8659 = vmatmul.bf16.gmra.mxu0 %v8407
        %v8660 = vpop.f32.mrf.mxu0
        %v8661 = vadd.f32 %v8233, %v8660
        %v8662 = vpop.f32.mrf.mxu0
        %v8663 = vadd.f32 %v8233, %v8662
        %8664 = vmatmul.bf16.gmra.mxu0 %v8410
        %v8665 = vpop.f32.mrf.mxu0
        %v8666 = vadd.f32 %v8233, %v8665
        %v8667 = vpop.f32.mrf.mxu0
        %v8668 = vadd.f32 %v8233, %v8667
        %8669 = vmatmul.bf16.gmra.mxu0 %v8413
        %v8670 = vpop.f32.mrf.mxu0
        %v8671 = vadd.f32 %v8233, %v8670
        %v8672 = vpop.f32.mrf.mxu0
        %v8673 = vadd.f32 %v8233, %v8672
        %8674 = vmatmul.bf16.gmra.mxu0 %v8416
        %v8675 = vpop.f32.mrf.mxu0
        %v8676 = vadd.f32 %v8233, %v8675
        %v8677 = vpop.f32.mrf.mxu0
        %v8678 = vadd.f32 %v8233, %v8677
        %8679 = vmatmul.bf16.gmra.mxu0 %v8419
        %v8680 = vpop.f32.mrf.mxu0
        %v8681 = vadd.f32 %v8233, %v8680
        %v8682 = vpop.f32.mrf.mxu0
        %v8683 = vadd.f32 %v8233, %v8682
        %8684 = vmatmul.bf16.gmra.mxu0 %v8422
        %v8685 = vpop.f32.mrf.mxu0
        %v8686 = vadd.f32 %v8233, %v8685
        %v8687 = vpop.f32.mrf.mxu0
        %v8688 = vadd.f32 %v8233, %v8687
        %8689 = vmatmul.bf16.gmra.mxu0 %v8425
        %v8690 = vpop.f32.mrf.mxu0
        %v8691 = vadd.f32 %v8233, %v8690
        %v8692 = vpop.f32.mrf.mxu0
        %v8693 = vadd.f32 %v8233, %v8692
        %8694 = vmatmul.bf16.gmra.mxu0 %v8428
        %v8695 = vpop.f32.mrf.mxu0
        %v8696 = vadd.f32 %v8233, %v8695
        %v8697 = vpop.f32.mrf.mxu0
        %v8698 = vadd.f32 %v8233, %v8697
        %8699 = vmatmul.bf16.gmra.mxu0 %v8431
        %v8700 = vpop.f32.mrf.mxu0
        %v8701 = vadd.f32 %v8233, %v8700
        %v8702 = vpop.f32.mrf.mxu0
        %v8703 = vadd.f32 %v8233, %v8702
        %8704 = vmatmul.bf16.gmra.mxu0 %v8434
        %v8705 = vpop.f32.mrf.mxu0
        %v8706 = vadd.f32 %v8233, %v8705
        %v8707 = vpop.f32.mrf.mxu0
        %v8708 = vadd.f32 %v8233, %v8707
        %8709 = vmatmul.bf16.gmra.mxu0 %v8437
        %v8710 = vpop.f32.mrf.mxu0
        %v8711 = vadd.f32 %v8233, %v8710
        %v8712 = vpop.f32.mrf.mxu0
        %v8713 = vadd.f32 %v8233, %v8712
        %8714 = vmatmul.bf16.gmra.mxu0 %v8440
        %v8715 = vpop.f32.mrf.mxu0
        %v8716 = vadd.f32 %v8233, %v8715
        %v8717 = vpop.f32.mrf.mxu0
        %v8718 = vadd.f32 %v8233, %v8717
        %8719 = vdwg.mxu0
        %8720 = vmatpush.bf16.msra.mxu0 %v8562
        %8721 = vmatpush.bf16.msra.mxu0 %v8561
        %8722 = vmatpush.bf16.msra.mxu0 %v8560
        %8723 = vmatpush.bf16.msra.mxu0 %v8559
        %8724 = vmatpush.bf16.msra.mxu0 %v8558
        %8725 = vmatpush.bf16.msra.mxu0 %v8557
        %8726 = vmatpush.bf16.msra.mxu0 %v8556
        %8727 = vmatpush.bf16.msra.mxu0 %v8555
        %8728 = vmatmul.bf16.gmra.mxu0 %v8396
        %v8729 = vpop.f32.mrf.mxu0
        %v8730 = vadd.f32 %v8641, %v8729
        %v8731 = vpop.f32.mrf.mxu0
        %v8732 = vadd.f32 %v8643, %v8731
        %8733 = vmatmul.bf16.gmra.mxu0 %v8399
        %v8734 = vpop.f32.mrf.mxu0
        %v8735 = vadd.f32 %v8646, %v8734
        %v8736 = vpop.f32.mrf.mxu0
        %v8737 = vadd.f32 %v8648, %v8736
        %8738 = vmatmul.bf16.gmra.mxu0 %v8402
        %v8739 = vpop.f32.mrf.mxu0
        %v8740 = vadd.f32 %v8651, %v8739
        %v8741 = vpop.f32.mrf.mxu0
        %v8742 = vadd.f32 %v8653, %v8741
        %8743 = vmatmul.bf16.gmra.mxu0 %v8405
        %v8744 = vpop.f32.mrf.mxu0
        %v8745 = vadd.f32 %v8656, %v8744
        %v8746 = vpop.f32.mrf.mxu0
        %v8747 = vadd.f32 %v8658, %v8746
        %8748 = vmatmul.bf16.gmra.mxu0 %v8408
        %v8749 = vpop.f32.mrf.mxu0
        %v8750 = vadd.f32 %v8661, %v8749
        %v8751 = vpop.f32.mrf.mxu0
        %v8752 = vadd.f32 %v8663, %v8751
        %8753 = vmatmul.bf16.gmra.mxu0 %v8411
        %v8754 = vpop.f32.mrf.mxu0
        %v8755 = vadd.f32 %v8666, %v8754
        %v8756 = vpop.f32.mrf.mxu0
        %v8757 = vadd.f32 %v8668, %v8756
        %8758 = vmatmul.bf16.gmra.mxu0 %v8414
        %v8759 = vpop.f32.mrf.mxu0
        %v8760 = vadd.f32 %v8671, %v8759
        %v8761 = vpop.f32.mrf.mxu0
        %v8762 = vadd.f32 %v8673, %v8761
        %8763 = vmatmul.bf16.gmra.mxu0 %v8417
        %v8764 = vpop.f32.mrf.mxu0
        %v8765 = vadd.f32 %v8676, %v8764
        %v8766 = vpop.f32.mrf.mxu0
        %v8767 = vadd.f32 %v8678, %v8766
        %8768 = vmatmul.bf16.gmra.mxu0 %v8420
        %v8769 = vpop.f32.mrf.mxu0
        %v8770 = vadd.f32 %v8681, %v8769
        %v8771 = vpop.f32.mrf.mxu0
        %v8772 = vadd.f32 %v8683, %v8771
        %8773 = vmatmul.bf16.gmra.mxu0 %v8423
        %v8774 = vpop.f32.mrf.mxu0
        %v8775 = vadd.f32 %v8686, %v8774
        %v8776 = vpop.f32.mrf.mxu0
        %v8777 = vadd.f32 %v8688, %v8776
        %8778 = vmatmul.bf16.gmra.mxu0 %v8426
        %v8779 = vpop.f32.mrf.mxu0
        %v8780 = vadd.f32 %v8691, %v8779
        %v8781 = vpop.f32.mrf.mxu0
        %v8782 = vadd.f32 %v8693, %v8781
        %8783 = vmatmul.bf16.gmra.mxu0 %v8429
        %v8784 = vpop.f32.mrf.mxu0
        %v8785 = vadd.f32 %v8696, %v8784
        %v8786 = vpop.f32.mrf.mxu0
        %v8787 = vadd.f32 %v8698, %v8786
        %8788 = vmatmul.bf16.gmra.mxu0 %v8432
        %v8789 = vpop.f32.mrf.mxu0
        %v8790 = vadd.f32 %v8701, %v8789
        %v8791 = vpop.f32.mrf.mxu0
        %v8792 = vadd.f32 %v8703, %v8791
        %8793 = vmatmul.bf16.gmra.mxu0 %v8435
        %v8794 = vpop.f32.mrf.mxu0
        %v8795 = vadd.f32 %v8706, %v8794
        %v8796 = vpop.f32.mrf.mxu0
        %v8797 = vadd.f32 %v8708, %v8796
        %8798 = vmatmul.bf16.gmra.mxu0 %v8438
        %v8799 = vpop.f32.mrf.mxu0
        %v8800 = vadd.f32 %v8711, %v8799
        %v8801 = vpop.f32.mrf.mxu0
        %v8802 = vadd.f32 %v8713, %v8801
        %8803 = vmatmul.bf16.gmra.mxu0 %v8441
        %v8804 = vpop.f32.mrf.mxu0
        %v8805 = vadd.f32 %v8716, %v8804
        %v8806 = vpop.f32.mrf.mxu0
        %v8807 = vadd.f32 %v8718, %v8806
        %8808 = vdwg.mxu0
        %8809 = vmatpush.bf16.msra.mxu0 0
        %8810 = vmatpush.bf16.msra.mxu0 0
        %8811 = vmatpush.bf16.msra.mxu0 0
        %8812 = vmatpush.bf16.msra.mxu0 0
        %8813 = vmatpush.bf16.msra.mxu0 0
        %8814 = vmatpush.bf16.msra.mxu0 0
        %8815 = vmatpush.bf16.msra.mxu0 %v8564
        %8816 = vmatpush.bf16.msra.mxu0 %v8563
        %8817 = vmatmul.bf16.gmra.mxu0 %v8584
        %v8818 = vpop.f32.mrf.mxu0
        %v8819 = vadd.f32 %v8730, %v8818
        %v8820 = vpop.f32.mrf.mxu0
        %v8821 = vadd.f32 %v8732, %v8820
        %8822 = vmatmul.bf16.gmra.mxu0 %v8587
        %v8823 = vpop.f32.mrf.mxu0
        %v8824 = vadd.f32 %v8735, %v8823
        %v8825 = vpop.f32.mrf.mxu0
        %v8826 = vadd.f32 %v8737, %v8825
        %8827 = vmatmul.bf16.gmra.mxu0 %v8590
        %v8828 = vpop.f32.mrf.mxu0
        %v8829 = vadd.f32 %v8740, %v8828
        %v8830 = vpop.f32.mrf.mxu0
        %v8831 = vadd.f32 %v8742, %v8830
        %8832 = vmatmul.bf16.gmra.mxu0 %v8593
        %v8833 = vpop.f32.mrf.mxu0
        %v8834 = vadd.f32 %v8745, %v8833
        %v8835 = vpop.f32.mrf.mxu0
        %v8836 = vadd.f32 %v8747, %v8835
        %8837 = vmatmul.bf16.gmra.mxu0 %v8596
        %v8838 = vpop.f32.mrf.mxu0
        %v8839 = vadd.f32 %v8750, %v8838
        %v8840 = vpop.f32.mrf.mxu0
        %v8841 = vadd.f32 %v8752, %v8840
        %8842 = vmatmul.bf16.gmra.mxu0 %v8599
        %v8843 = vpop.f32.mrf.mxu0
        %v8844 = vadd.f32 %v8755, %v8843
        %v8845 = vpop.f32.mrf.mxu0
        %v8846 = vadd.f32 %v8757, %v8845
        %8847 = vmatmul.bf16.gmra.mxu0 %v8602
        %v8848 = vpop.f32.mrf.mxu0
        %v8849 = vadd.f32 %v8760, %v8848
        %v8850 = vpop.f32.mrf.mxu0
        %v8851 = vadd.f32 %v8762, %v8850
        %8852 = vmatmul.bf16.gmra.mxu0 %v8605
        %v8853 = vpop.f32.mrf.mxu0
        %v8854 = vadd.f32 %v8765, %v8853
        %v8855 = vpop.f32.mrf.mxu0
        %v8856 = vadd.f32 %v8767, %v8855
        %8857 = vmatmul.bf16.gmra.mxu0 %v8608
        %v8858 = vpop.f32.mrf.mxu0
        %v8859 = vadd.f32 %v8770, %v8858
        %v8860 = vpop.f32.mrf.mxu0
        %v8861 = vadd.f32 %v8772, %v8860
        %8862 = vmatmul.bf16.gmra.mxu0 %v8611
        %v8863 = vpop.f32.mrf.mxu0
        %v8864 = vadd.f32 %v8775, %v8863
        %v8865 = vpop.f32.mrf.mxu0
        %v8866 = vadd.f32 %v8777, %v8865
        %8867 = vmatmul.bf16.gmra.mxu0 %v8614
        %v8868 = vpop.f32.mrf.mxu0
        %v8869 = vadd.f32 %v8780, %v8868
        %v8870 = vpop.f32.mrf.mxu0
        %v8871 = vadd.f32 %v8782, %v8870
        %8872 = vmatmul.bf16.gmra.mxu0 %v8617
        %v8873 = vpop.f32.mrf.mxu0
        %v8874 = vadd.f32 %v8785, %v8873
        %v8875 = vpop.f32.mrf.mxu0
        %v8876 = vadd.f32 %v8787, %v8875
        %8877 = vmatmul.bf16.gmra.mxu0 %v8620
        %v8878 = vpop.f32.mrf.mxu0
        %v8879 = vadd.f32 %v8790, %v8878
        %v8880 = vpop.f32.mrf.mxu0
        %v8881 = vadd.f32 %v8792, %v8880
        %8882 = vmatmul.bf16.gmra.mxu0 %v8623
        %v8883 = vpop.f32.mrf.mxu0
        %v8884 = vadd.f32 %v8795, %v8883
        %v8885 = vpop.f32.mrf.mxu0
        %v8886 = vadd.f32 %v8797, %v8885
        %8887 = vmatmul.bf16.gmra.mxu0 %v8626
        %v8888 = vpop.f32.mrf.mxu0
        %v8889 = vadd.f32 %v8800, %v8888
        %v8890 = vpop.f32.mrf.mxu0
        %v8891 = vadd.f32 %v8802, %v8890
        %8892 = vmatmul.bf16.gmra.mxu0 %v8629
        %v8893 = vpop.f32.mrf.mxu0
        %v8894 = vadd.f32 %v8805, %v8893
        %v8895 = vpop.f32.mrf.mxu0
        %v8896 = vadd.f32 %v8807, %v8895
        %8897 = vdwg.mxu0
        %v8898 = vadd.f32 %v8819, %v224
        %v8899 = vadd.f32 %v8821, %v225
        %v8900 = vadd.f32 %v8824, %v226
        %v8901 = vadd.f32 %v8826, %v227
        %v8902 = vadd.f32 %v8829, %v228
        %v8903 = vadd.f32 %v8831, %v229
        %v8904 = vadd.f32 %v8834, %v230
        %v8905 = vadd.f32 %v8836, %v231
        %v8906 = vadd.f32 %v8839, %v232
        %v8907 = vadd.f32 %v8841, %v233
        %v8908 = vadd.f32 %v8844, %v234
        %v8909 = vadd.f32 %v8846, %v235
        %v8910 = vadd.f32 %v8849, %v236
        %v8911 = vadd.f32 %v8851, %v237
        %v8912 = vadd.f32 %v8854, %v238
        %v8913 = vadd.f32 %v8856, %v239
        %v8914 = vadd.f32 %v8859, %v240
        %v8915 = vadd.f32 %v8861, %v241
        %v8916 = vadd.f32 %v8864, %v242
        %v8917 = vadd.f32 %v8866, %v243
        %v8918 = vadd.f32 %v8869, %v244
        %v8919 = vadd.f32 %v8871, %v245
        %v8920 = vadd.f32 %v8874, %v246
        %v8921 = vadd.f32 %v8876, %v247
        %v8922 = vadd.f32 %v8879, %v248
        %v8923 = vadd.f32 %v8881, %v249
        %v8924 = vadd.f32 %v8884, %v250
        %v8925 = vadd.f32 %v8886, %v251
        %v8926 = vadd.f32 %v8889, %v252
        %v8927 = vadd.f32 %v8891, %v253
        %v8928 = vadd.f32 %v8894, %v254
        %v8929 = vadd.f32 %v8896, %v255
        %8930 = vst.msk [vmem:[%s217] sm:$0xff] %vm4255, %v8898
        %8931 = vst.msk [vmem:[%s217 + $0x8] sm:$0xff] %vm4255, %v8899
        %8932 = vst.msk [vmem:[%s217 + $0x10] sm:$0xff] %vm4255, %v8900
        %8933 = vst.msk [vmem:[%s217 + $0x18] sm:$0xff] %vm4255, %v8901
        %8934 = vst.msk [vmem:[%s217 + $0x20] sm:$0xff] %vm4255, %v8902
        %8935 = vst.msk [vmem:[%s217 + $0x28] sm:$0xff] %vm4255, %v8903
        %8936 = vst.msk [vmem:[%s217 + $0x30] sm:$0xff] %vm4255, %v8904
        %8937 = vst.msk [vmem:[%s217 + $0x38] sm:$0xff] %vm4255, %v8905
        %8938 = vst.msk [vmem:[%s217 + $0x40] sm:$0xff] %vm4255, %v8906
        %8939 = vst.msk [vmem:[%s217 + $0x48] sm:$0xff] %vm4255, %v8907
        %8940 = vst.msk [vmem:[%s217 + $0x50] sm:$0xff] %vm4255, %v8908
        %8941 = vst.msk [vmem:[%s217 + $0x58] sm:$0xff] %vm4255, %v8909
        %8942 = vst.msk [vmem:[%s217 + $0x60] sm:$0xff] %vm4255, %v8910
        %8943 = vst.msk [vmem:[%s217 + $0x68] sm:$0xff] %vm4255, %v8911
        %8944 = vst.msk [vmem:[%s217 + $0x70] sm:$0xff] %vm4255, %v8912
        %8945 = vst.msk [vmem:[%s217 + $0x78] sm:$0xff] %vm4255, %v8913
        %8946 = vst.msk [vmem:[%s217 + $0x80] sm:$0xff] %vm4255, %v8914
        %8947 = vst.msk [vmem:[%s217 + $0x88] sm:$0xff] %vm4255, %v8915
        %8948 = vst.msk [vmem:[%s217 + $0x90] sm:$0xff] %vm4255, %v8916
        %8949 = vst.msk [vmem:[%s217 + $0x98] sm:$0xff] %vm4255, %v8917
        %8950 = vst.msk [vmem:[%s217 + $0xa0] sm:$0xff] %vm4255, %v8918
        %8951 = vst.msk [vmem:[%s217 + $0xa8] sm:$0xff] %vm4255, %v8919
        %8952 = vst.msk [vmem:[%s217 + $0xb0] sm:$0xff] %vm4255, %v8920
        %8953 = vst.msk [vmem:[%s217 + $0xb8] sm:$0xff] %vm4255, %v8921
        %8954 = vst.msk [vmem:[%s217 + $0xc0] sm:$0xff] %vm4255, %v8922
        %8955 = vst.msk [vmem:[%s217 + $0xc8] sm:$0xff] %vm4255, %v8923
        %8956 = vst.msk [vmem:[%s217 + $0xd0] sm:$0xff] %vm4255, %v8924
        %8957 = vst.msk [vmem:[%s217 + $0xd8] sm:$0xff] %vm4255, %v8925
        %8958 = vst.msk [vmem:[%s217 + $0xe0] sm:$0xff] %vm4255, %v8926
        %8959 = vst.msk [vmem:[%s217 + $0xe8] sm:$0xff] %vm4255, %v8927
        %8960 = vst.msk [vmem:[%s217 + $0xf0] sm:$0xff] %vm4255, %v8928
        %8961 = vst.msk [vmem:[%s217 + $0xf8] sm:$0xff] %vm4255, %v8929
        %s8962 = sand.u32 %s137, 1
        %s8963 = scalar_lea.sflag [#allocation7], %s8962
        %s8964 = sand.u32 %s137, 1
        %s8965 = smul.addr %s8964, 256
        %s8966 = scalar_lea.vmem [#allocation6], %s8965
        // Predicated region
        $region41: #{res_block.1} parent=39 // pred_check
          %p8967 = pneg %p147
        $region42: #{res_block.1} parent=39 // pred_check_branch
          %8969 = sbr.rel (%p8967) target = $region44
        $region43: #{res_block.1} parent=39 // pred_region
          %8971 = vsyncadd %s8963, 0
          %s8972 = smul.addr %s19, 32
          %s8973 = smul.addr %s8972, 8
          %s8974 = scalar_lea.hbm %s5, %s8973
          %s8975 = sshll.u32 %s8966, 4
          %s8976 = int_to_ptr.vmem [resolvable:$true] %s8975
          %s8977 = sshll.u32 %s8974, 4
          %s8978 = int_to_ptr.hbm [resolvable:$true] %s8977
          %8983 = dma.vmem_to_hbm [thread:$0]  %s8976, 4096, %s8978, %s8963, 128, 128, 8
        $region44: #{res_block.1} parent=39 // pred_fallthru
          _
      $region40: #{res_block.1} parent=5 // pred_fallthru
        _
      %p8984 = scmp.le.s32.totalorder 2, %s14
      // Predicated region
      $region45: #{res_block.1} parent=5 // pred_check
        %p8985 = pneg %p8984
      $region46: #{res_block.1} parent=5 // pred_check_branch
        %8987 = sbr.rel (%p8985) target = $region48
      $region47: #{res_block.1} parent=5 // pred_region
        %s8988 = ssub.s32 %s14, 2
        // Predicated region
        $region49: #{res_block.1} parent=47 // pred_check
          %p8989 = pneg %p153
        $region50: #{res_block.1} parent=47 // pred_check_branch
          %8991 = sbr.rel (%p8989) target = $region52
        $region51: #{res_block.1} parent=47 // pred_region
          %s8992 = sand.u32 %s138, 1
          %s8993 = scalar_lea.sflag [#allocation7], %s8992
          %s8994 = sand.u32 %s138, 1
          %s8995 = smul.addr %s8994, 256
          %s8996 = scalar_lea.vmem [#allocation6], %s8995
          %8998 = dma.done %s8993, 4096
        $region52: #{res_block.1} parent=47 // pred_fallthru
          _
      $region48: #{res_block.1} parent=5 // pred_fallthru
        _
    $region6: #{res_block.1} parent=1 // loop_footer
      %s18 = sadd.s32 1, %s14
    $region7: #{res_block.1} parent=1 // loop_footer_branch
      %13 = sbr.rel target = $region3
    $region8: #{res_block.1} parent=1 // loop_exit
      _
    %8999 = vsyncpa [#allocation7], 1
    %s9000 = scalar_lea.sflag [#allocation7], 1
    %9001 = vsyncpa %s9000, 1

</llo_original>
